<compile_context>
chip_gen: v7x
topology: tpu7x:2x2x1
jax: 0.10.0
libtpu: 0.0.40
codegen_flags: <defaults>
</compile_context>

<pallas_src>
import functools

import jax
import jax.numpy as jnp
from jax.experimental import pallas as pl
from jax.experimental.pallas import tpu as pltpu

EPS = 1e-5                      # nn.BatchNorm3d default eps
LANES = 128                     # output channels zero-padded to a multiple of this
PLANE_PAD = 8                   # extra zero rows per flattened padded depth plane (>= 2)
VMEM_LIMIT = 48 * 1024 * 1024   # <= v7x's 64 MiB physical VMEM; ample on v5e/v6e


# ----------------------------- Pallas kernels ------------------------------ #
def _conv27_kernel(x0_ref, x1_ref, x2_ref, w_ref, y_ref, st_ref, lhs_ref, *, H, W):
    """One output depth plane: all 27 taps fused into a single deep-K matmul.

    x{0,1,2}_ref: (PLANE, C)  bf16  flattened padded input planes d, d+1, d+2
    w_ref:        (27*C, CP)  bf16  tap-major weights (constant index_map -> resident)
    y_ref:        (R, CP)     f32   raw conv output for this plane
    st_ref:       (2, CP)     f32   per-plane [sum; sum of squares] (wrap rows masked)
    lhs_ref:      (R, 27*C)   bf16  VMEM im2col scratch (never touches HBM)
    """
    P = W + 2
    R = H * P
    C = x0_ref.shape[1]

    # 27 static row/lane-shifted copies build the lane-dense LHS: row shifts
    # implement (kh, kw); the three plane refs implement kd.
    for kd, xr in enumerate((x0_ref, x1_ref, x2_ref)):
        for kh in range(3):
            for kw in range(3):
                t = (kd * 3 + kh) * 3 + kw
                s = kh * P + kw
                lhs_ref[:, t * C:(t + 1) * C] = xr[s:s + R, :]

    # Single MXU contraction with K = 27*C instead of 27 accumulated K=C matmuls.
    acc = jnp.dot(lhs_ref[...], w_ref[...], preferred_element_type=jnp.float32)
    y_ref[...] = acc

    # Per-plane BN statistics; rows with flattened col >= W are over-computed
    # wrap garbage -> masked with a cheap (R, 1) 0/1 mask.  One packed store.
    col = jax.lax.broadcasted_iota(jnp.int32, (R, 1), 0) % P
    m = (col < W).astype(jnp.float32)
    am = acc * m
    st_ref[...] = jnp.concatenate(
        [jnp.sum(am, axis=0, keepdims=True),
         jnp.sum(am * am, axis=0, keepdims=True)], axis=0)


def _bn_relu_pad_kernel(y_ref, st_ref, xp_ref, *, H, W, D):
    """BN(normalize+affine)+ReLU fused with next-stage padded-input construction.

    Writes depth plane `dp` of the next conv's zero-padded flattened bf16 input:
      dp == 0 or dp == D+1  -> all zeros (depth padding)
      otherwise             -> rows [P+1, P+1+R) hold relu(y*s + t); the conv's
                               wrap rows map exactly onto the spatial padding
                               positions and are zeroed; border rows are zero.
    """
    dp = pl.program_id(1)
    P = W + 2
    R = H * P
    PLANE = xp_ref.shape[0]
    CP = xp_ref.shape[1]

    @pl.when((dp == 0) | (dp == D + 1))
    def _depth_padding():
        xp_ref[...] = jnp.zeros_like(xp_ref)

    @pl.when((dp > 0) & (dp < D + 1))
    def _interior():
        s = st_ref[0:1, :]
        t = st_ref[1:2, :]
        col = jax.lax.broadcasted_iota(jnp.int32, (R, 1), 0) % P
        act = jnp.maximum(y_ref[...] * s + t, 0.0)
        act = jnp.where(col < W, act, 0.0)
        full = jnp.concatenate(
            [jnp.zeros((P + 1, CP), jnp.float32),
             act,
             jnp.zeros((PLANE - (P + 1 + R), CP), jnp.float32)], axis=0)
        xp_ref[...] = full.astype(xp_ref.dtype)      # one lane-dense full store


def _bn_relu_kernel(y_ref, st_ref, o_ref):
    """o = max(y * s + t, 0); st packs s (row 0) and t (row 1)."""
    s = st_ref[0:1, :]
    t = st_ref[1:2, :]
    o_ref[...] = jnp.maximum(y_ref[...] * s + t, 0.0).astype(o_ref.dtype)


# ------------------------------- helpers ----------------------------------- #
def _round_up(x, m):
    return (x + m - 1) // m * m


def _prep_weights(w, c_in_pad, c_out_pad):
    """(c_out, c_in, 3, 3, 3) -> tap-major (27*c_in_pad, c_out_pad) bf16."""
    c_out, c_in = w.shape[0], w.shape[1]
    wt = jnp.transpose(w, (2, 3, 4, 1, 0))            # (kd, kh, kw, c_in, c_out)
    wt = jnp.pad(wt, ((0, 0), (0, 0), (0, 0),
                      (0, c_in_pad - c_in), (0, c_out_pad - c_out)))
    return wt.reshape(27 * c_in_pad, c_out_pad).astype(jnp.bfloat16)


def _fold_bn(stats, count, gamma, beta, cp):
    """Fold batch-stat normalize + affine into one per-channel (s, t) FMA."""
    tot = jnp.sum(stats, axis=(0, 1))                 # (2, CP)
    mean = tot[0] / count
    # TODO(synk): E[x^2]-mean^2 in f32 can cancel for large-mean activations; a
    # Welford / two-pass reduction over the per-plane partials would be safer.
    var = jnp.maximum(tot[1] / count - mean * mean, 0.0)
    g = jnp.pad(gamma.astype(jnp.float32), (0, cp - gamma.shape[0]))
    b = jnp.pad(beta.astype(jnp.float32), (0, cp - beta.shape[0]))
    s = g * jax.lax.rsqrt(var + EPS)
    t = b - mean * s
    return jnp.stack([s, t], axis=0)                  # (2, cp)


def _pack_padded_planes(x_ndhwc):
    """NDHWC -> (N, D+2, (H+2)*(W+2)+PLANE_PAD, C) bf16 zero-padded flat planes."""
    N, D, H, W, C = x_ndhwc.shape
    P = W + 2
    xp = jnp.pad(x_ndhwc, ((0, 0), (1, 1), (1, 1), (1, 1), (0, 0)))
    xp = xp.astype(jnp.bfloat16).reshape(N, D + 2, (H + 2) * P, C)
    return jnp.pad(xp, ((0, 0), (0, 0), (0, PLANE_PAD), (0, 0)))


# --------------------------- pallas_call wrappers --------------------------- #
def _conv3d_stats(xp, w27, H, W):
    """Conv3d(k=3, pad=1) over padded flattened planes + per-plane BN stats."""
    N, Dp2, PLANE, C = xp.shape
    D = Dp2 - 2
    CP = w27.shape[1]
    P = W + 2
    R = H * P

    flops = 2 * N * D * R * (27 * C) * CP
    bytes_accessed = (3 * N * D * PLANE * C * 2 + 27 * C * CP * 2
                      + N * D * R * CP * 4 + N * D * 2 * CP * 4)

    def plane_spec(kd):
        return pl.BlockSpec((None, None, PLANE, C),
                            lambda n, d: (n, d + kd, 0, 0))

    return pl.pallas_call(
        functools.partial(_conv27_kernel, H=H, W=W),
        out_shape=(
            jax.ShapeDtypeStruct((N, D, R, CP), jnp.float32),   # raw conv output
            jax.ShapeDtypeStruct((N, D, 2, CP), jnp.float32),   # per-plane stats
        ),
        grid=(N, D),
        in_specs=[plane_spec(0), plane_spec(1), plane_spec(2),
                  pl.BlockSpec((27 * C, CP), lambda n, d: (0, 0))],
        out_specs=(
            pl.BlockSpec((None, None, R, CP), lambda n, d: (n, d, 0, 0)),
            pl.BlockSpec((None, None, 2, CP), lambda n, d: (n, d, 0, 0)),
        ),
        scratch_shapes=[pltpu.VMEM((R, 27 * C), jnp.bfloat16)],
        compiler_params=pltpu.CompilerParams(
            dimension_semantics=("parallel", "parallel"),
            vmem_limit_bytes=VMEM_LIMIT),
        cost_estimate=pl.CostEstimate(
            flops=flops, transcendentals=0, bytes_accessed=bytes_accessed),
    )(xp, xp, xp, w27)


def _bn_relu_to_next_input(y, st, H, W):
    """Stage-1 BN+ReLU, writing stage-2's zero-padded flattened bf16 input."""
    N, D, R, CP = y.shape
    P = W + 2
    PLANE = (H + 2) * P + PLANE_PAD
    return pl.pallas_call(
        functools.partial(_bn_relu_pad_kernel, H=H, W=W, D=D),
        out_shape=jax.ShapeDtypeStruct((N, D + 2, PLANE, CP), jnp.bfloat16),
        grid=(N, D + 2),
        in_specs=[
            pl.BlockSpec((None, None, R, CP),
                         lambda n, dp: (n, jnp.clip(dp - 1, 0, D - 1), 0, 0)),
            pl.BlockSpec((2, CP), lambda n, dp: (0, 0)),
        ],
        out_specs=pl.BlockSpec((None, None, PLANE, CP),
                               lambda n, dp: (n, dp, 0, 0)),
        compiler_params=pltpu.CompilerParams(
            dimension_semantics=("parallel", "parallel"),
            vmem_limit_bytes=VMEM_LIMIT),
    )(y, st)


def _bn_relu_flat(y_flat, st, out_dtype):
    """Final BN+ReLU over large lane-dense row blocks of the flattened output."""
    TOT, CP = y_flat.shape
    block_rows = TOT if TOT <= 4096 else 4096          # multiple of 8 or full dim
    return pl.pallas_call(
        _bn_relu_kernel,
        out_shape=jax.ShapeDtypeStruct((TOT, CP), out_dtype),
        grid=(pl.cdiv(TOT, block_rows),),
        in_specs=[pl.BlockSpec((block_rows, CP), lambda i: (i, 0)),
                  pl.BlockSpec((2, CP), lambda i: (0, 0))],
        out_specs=pl.BlockSpec((block_rows, CP), lambda i: (i, 0)),
        compiler_params=pltpu.CompilerParams(
            dimension_semantics=("parallel",),
            vmem_limit_bytes=VMEM_LIMIT),
    )(y_flat, st)


# ------------------------------ JAX wrapper -------------------------------- #
def init_up_params(key, in_channels, out_channels):
    """Mirrors nn.Conv3d / nn.BatchNorm3d default init. Conv biases are created
    for parity but unused: they cancel exactly under training-mode BatchNorm."""
    mid_channels = in_channels // 2

    def conv_init(k, c_in, c_out):
        kw, kb = jax.random.split(k)
        fan_in = c_in * 27
        bound = 1.0 / (fan_in ** 0.5)
        w = jax.random.uniform(kw, (c_out, c_in, 3, 3, 3), jnp.float32,
                               minval=-bound, maxval=bound)
        b = jax.random.uniform(kb, (c_out,), jnp.float32,
                               minval=-bound, maxval=bound)
        return w, b

    k1, k2 = jax.random.split(key)
    w1, b1 = conv_init(k1, in_channels, mid_channels)
    w2, b2 = conv_init(k2, mid_channels, out_channels)
    return {
        "w1": w1, "b1": b1,
        "g1": jnp.ones((mid_channels,), jnp.float32),
        "beta1": jnp.zeros((mid_channels,), jnp.float32),
        "w2": w2, "b2": b2,
        "g2": jnp.ones((out_channels,), jnp.float32),
        "beta2": jnp.zeros((out_channels,), jnp.float32),
    }


def up_forward(params, x1, x2):
    """x1, x2: NCDHW float32 (PyTorch convention). Returns NCDHW float32."""
    # nn.Upsample(scale_factor=2, mode='nearest') on a 5-D tensor.
    x1 = jnp.repeat(jnp.repeat(jnp.repeat(x1, 2, axis=2), 2, axis=3), 2, axis=4)

    # Replicate the module's F.pad exactly (quirky axis mapping included):
    # diffY comes from dim 2, diffX from dim 3, diffZ from dim 4, but the pad
    # list applies diffX to W, diffY to H, diffZ to D.
    diffY = x2.shape[2] - x1.shape[2]
    diffX = x2.shape[3] - x1.shape[3]
    diffZ = x2.shape[4] - x1.shape[4]
    x1 = jnp.pad(x1, (
        (0, 0), (0, 0),
        (diffZ // 2, diffZ - diffZ // 2),
        (diffY // 2, diffY - diffY // 2),
        (diffX // 2, diffX - diffX // 2),
    ))

    x = jnp.concatenate([x2, x1], axis=1)             # channel concat (x2 first)
    # TODO(synk): upsample/pad/concat/transpose is pure HBM data movement left to
    # XLA; it could be folded into the first conv's LHS build via per-source
    # index_maps (x2 + strided/repeated reads of x1).
    xl = jnp.transpose(x, (0, 2, 3, 4, 1))            # NCDHW -> NDHWC
    N, D, H, W, Cin = xl.shape
    P = W + 2
    R = H * P

    count = float(N * D * H * W)
    mid = params["g1"].shape[0]
    c_out = params["g2"].shape[0]
    CPm = _round_up(mid, LANES)
    CPo = _round_up(c_out, LANES)

    # ---- stage 1: conv -> batch stats -> BN+ReLU fused with stage-2 padding ----
    xp1 = _pack_padded_planes(xl)
    w1 = _prep_weights(params["w1"], Cin, CPm)
    y1, s1 = _conv3d_stats(xp1, w1, H, W)
    st1 = _fold_bn(s1, count, params["g1"], params["beta1"], CPm)
    xp2 = _bn_relu_to_next_input(y1, st1, H, W)       # stage-2 conv input (bf16)

    # ---- stage 2: conv -> batch stats -> BN+ReLU ----
    # Stage-2 weights consume the lane-padded CPm input channels directly (the
    # extra channels are all zero), so there is no inter-stage slice/copy.
    w2 = _prep_weights(params["w2"], CPm, CPo)
    y2, s2 = _conv3d_stats(xp2, w2, H, W)
    st2 = _fold_bn(s2, count, params["g2"], params["beta2"], CPo)
    o_flat = _bn_relu_flat(y2.reshape(N * D * R, CPo), st2, jnp.float32)

    # Drop the over-computed wrap columns and the channel lane padding; NCDHW out.
    o = o_flat.reshape(N, D, H, P, CPo)[:, :, :, :W, :c_out]
    return jnp.transpose(o, (0, 4, 1, 2, 3))


# --------------------------------- main ------------------------------------ #
if __name__ == "__main__":
    key = jax.random.PRNGKey(0)
    k_x1, k_x2, k_p = jax.random.split(key, 3)

    # x1: decoder feature (to be upsampled), x2: skip connection.
    x1 = jax.random.normal(k_x1, (2, 4, 4, 4, 4), jnp.float32)   # N, C1, D, H, W
    x2 = jax.random.normal(k_x2, (2, 4, 8, 8, 8), jnp.float32)   # N, C2, 2D, 2H, 2W

    in_channels = x1.shape[1] + x2.shape[1]   # channels after concat = 8
    out_channels = 4
    params = init_up_params(k_p, in_channels, out_channels)

    out = jax.jit(up_forward)(params, x1, x2)
    out = jax.block_until_ready(out)

    assert out.shape == (2, out_channels, 8, 8, 8), out.shape
    assert out.dtype == jnp.float32
    assert bool(jnp.all(jnp.isfinite(out)))
    print("KERNEL_OK")
</pallas_src>

<mosaic_0001>
module attributes {stable_mosaic.version = 11 : i64} {
  func.func @_conv27_kernel(%arg0: i32, %arg1: i32, %arg2: memref<1x1x108x8xbf16, #tpu.memory_space<vmem>>, %arg3: memref<1x1x108x8xbf16, #tpu.memory_space<vmem>>, %arg4: memref<1x1x108x8xbf16, #tpu.memory_space<vmem>>, %arg5: memref<216x128xbf16, #tpu.memory_space<vmem>>, %arg6: memref<1x1x80x128xf32, #tpu.memory_space<vmem>>, %arg7: memref<1x1x2x128xf32, #tpu.memory_space<vmem>>, %arg8: memref<80x216xbf16, #tpu.memory_space<vmem>>) attributes {dimension_semantics = [#tpu.dimension_semantics<parallel>, #tpu.dimension_semantics<parallel>], iteration_bounds = array<i64: 2, 8>, scalar_prefetch = 0 : i64, scratch_operands = 1 : i64, tpu.core_type = #tpu.core_type<tc>, window_params = [{transform_indices = @transform_0, window_bounds = array<i64: 1, 1, 108, 8>}, {transform_indices = @transform_1, window_bounds = array<i64: 1, 1, 108, 8>}, {transform_indices = @transform_2, window_bounds = array<i64: 1, 1, 108, 8>}, {pipeline_mode = #tpu.pipeline_mode<synchronous>, transform_indices = @transform_3, window_bounds = array<i64: 216, 128>}, {transform_indices = @transform_4, window_bounds = array<i64: 1, 1, 80, 128>}, {transform_indices = @transform_5, window_bounds = array<i64: 1, 1, 2, 128>}]} {
    %c0 = arith.constant 0 : index
    %c0_0 = arith.constant 0 : index
    %c0_1 = arith.constant 0 : index
    %c0_2 = arith.constant 0 : index
    %0 = vector.load %arg2[%c0, %c0_0, %c0_1, %c0_2] : memref<1x1x108x8xbf16, #tpu.memory_space<vmem>>, vector<1x1x80x8xbf16>
    %1 = vector.shape_cast %0 : vector<1x1x80x8xbf16> to vector<80x8xbf16>
    %c0_3 = arith.constant 0 : index
    %c0_4 = arith.constant 0 : index
    %2 = vector.load %arg8[%c0_3, %c0_4] : memref<80x216xbf16, #tpu.memory_space<vmem>>, vector<80x8xbf16>
    tpu.vector_store %arg8[%c0_3, %c0_4], %1 {strides = array<i32>} : memref<80x216xbf16, #tpu.memory_space<vmem>>, vector<80x8xbf16>,
    %c0_5 = arith.constant 0 : index
    %c0_6 = arith.constant 0 : index
    %c1 = arith.constant 1 : index
    %c0_7 = arith.constant 0 : index
    %3 = vector.load %arg2[%c0_5, %c0_6, %c1, %c0_7] : memref<1x1x108x8xbf16, #tpu.memory_space<vmem>>, vector<1x1x80x8xbf16>
    %4 = vector.shape_cast %3 : vector<1x1x80x8xbf16> to vector<80x8xbf16>
    %c0_8 = arith.constant 0 : index
    %c8 = arith.constant 8 : index
    %5 = vector.load %arg8[%c0_8, %c8] : memref<80x216xbf16, #tpu.memory_space<vmem>>, vector<80x8xbf16>
    tpu.vector_store %arg8[%c0_8, %c8], %4 {strides = array<i32>} : memref<80x216xbf16, #tpu.memory_space<vmem>>, vector<80x8xbf16>,
    %c0_9 = arith.constant 0 : index
    %c0_10 = arith.constant 0 : index
    %c2 = arith.constant 2 : index
    %c0_11 = arith.constant 0 : index
    %6 = vector.load %arg2[%c0_9, %c0_10, %c2, %c0_11] : memref<1x1x108x8xbf16, #tpu.memory_space<vmem>>, vector<1x1x80x8xbf16>
    %7 = vector.shape_cast %6 : vector<1x1x80x8xbf16> to vector<80x8xbf16>
    %c0_12 = arith.constant 0 : index
    %c16 = arith.constant 16 : index
    %8 = vector.load %arg8[%c0_12, %c16] : memref<80x216xbf16, #tpu.memory_space<vmem>>, vector<80x8xbf16>
    tpu.vector_store %arg8[%c0_12, %c16], %7 {strides = array<i32>} : memref<80x216xbf16, #tpu.memory_space<vmem>>, vector<80x8xbf16>,
    %c0_13 = arith.constant 0 : index
    %c0_14 = arith.constant 0 : index
    %c10 = arith.constant 10 : index
    %c0_15 = arith.constant 0 : index
    %9 = vector.load %arg2[%c0_13, %c0_14, %c10, %c0_15] : memref<1x1x108x8xbf16, #tpu.memory_space<vmem>>, vector<1x1x80x8xbf16>
    %10 = vector.shape_cast %9 : vector<1x1x80x8xbf16> to vector<80x8xbf16>
    %c0_16 = arith.constant 0 : index
    %c24 = arith.constant 24 : index
    %11 = vector.load %arg8[%c0_16, %c24] : memref<80x216xbf16, #tpu.memory_space<vmem>>, vector<80x8xbf16>
    tpu.vector_store %arg8[%c0_16, %c24], %10 {strides = array<i32>} : memref<80x216xbf16, #tpu.memory_space<vmem>>, vector<80x8xbf16>,
    %c0_17 = arith.constant 0 : index
    %c0_18 = arith.constant 0 : index
    %c11 = arith.constant 11 : index
    %c0_19 = arith.constant 0 : index
    %12 = vector.load %arg2[%c0_17, %c0_18, %c11, %c0_19] : memref<1x1x108x8xbf16, #tpu.memory_space<vmem>>, vector<1x1x80x8xbf16>
    %13 = vector.shape_cast %12 : vector<1x1x80x8xbf16> to vector<80x8xbf16>
    %c0_20 = arith.constant 0 : index
    %c32 = arith.constant 32 : index
    %14 = vector.load %arg8[%c0_20, %c32] : memref<80x216xbf16, #tpu.memory_space<vmem>>, vector<80x8xbf16>
    tpu.vector_store %arg8[%c0_20, %c32], %13 {strides = array<i32>} : memref<80x216xbf16, #tpu.memory_space<vmem>>, vector<80x8xbf16>,
    %c0_21 = arith.constant 0 : index
    %c0_22 = arith.constant 0 : index
    %c12 = arith.constant 12 : index
    %c0_23 = arith.constant 0 : index
    %15 = vector.load %arg2[%c0_21, %c0_22, %c12, %c0_23] : memref<1x1x108x8xbf16, #tpu.memory_space<vmem>>, vector<1x1x80x8xbf16>
    %16 = vector.shape_cast %15 : vector<1x1x80x8xbf16> to vector<80x8xbf16>
    %c0_24 = arith.constant 0 : index
    %c40 = arith.constant 40 : index
    %17 = vector.load %arg8[%c0_24, %c40] : memref<80x216xbf16, #tpu.memory_space<vmem>>, vector<80x8xbf16>
    tpu.vector_store %arg8[%c0_24, %c40], %16 {strides = array<i32>} : memref<80x216xbf16, #tpu.memory_space<vmem>>, vector<80x8xbf16>,
    %c0_25 = arith.constant 0 : index
    %c0_26 = arith.constant 0 : index
    %c20 = arith.constant 20 : index
    %c0_27 = arith.constant 0 : index
    %18 = vector.load %arg2[%c0_25, %c0_26, %c20, %c0_27] : memref<1x1x108x8xbf16, #tpu.memory_space<vmem>>, vector<1x1x80x8xbf16>
    %19 = vector.shape_cast %18 : vector<1x1x80x8xbf16> to vector<80x8xbf16>
    %c0_28 = arith.constant 0 : index
    %c48 = arith.constant 48 : index
    %20 = vector.load %arg8[%c0_28, %c48] : memref<80x216xbf16, #tpu.memory_space<vmem>>, vector<80x8xbf16>
    tpu.vector_store %arg8[%c0_28, %c48], %19 {strides = array<i32>} : memref<80x216xbf16, #tpu.memory_space<vmem>>, vector<80x8xbf16>,
    %c0_29 = arith.constant 0 : index
    %c0_30 = arith.constant 0 : index
    %c21 = arith.constant 21 : index
    %c0_31 = arith.constant 0 : index
    %21 = vector.load %arg2[%c0_29, %c0_30, %c21, %c0_31] : memref<1x1x108x8xbf16, #tpu.memory_space<vmem>>, vector<1x1x80x8xbf16>
    %22 = vector.shape_cast %21 : vector<1x1x80x8xbf16> to vector<80x8xbf16>
    %c0_32 = arith.constant 0 : index
    %c56 = arith.constant 56 : index
    %23 = vector.load %arg8[%c0_32, %c56] : memref<80x216xbf16, #tpu.memory_space<vmem>>, vector<80x8xbf16>
    tpu.vector_store %arg8[%c0_32, %c56], %22 {strides = array<i32>} : memref<80x216xbf16, #tpu.memory_space<vmem>>, vector<80x8xbf16>,
    %c0_33 = arith.constant 0 : index
    %c0_34 = arith.constant 0 : index
    %c22 = arith.constant 22 : index
    %c0_35 = arith.constant 0 : index
    %24 = vector.load %arg2[%c0_33, %c0_34, %c22, %c0_35] : memref<1x1x108x8xbf16, #tpu.memory_space<vmem>>, vector<1x1x80x8xbf16>
    %25 = vector.shape_cast %24 : vector<1x1x80x8xbf16> to vector<80x8xbf16>
    %c0_36 = arith.constant 0 : index
    %c64 = arith.constant 64 : index
    %26 = vector.load %arg8[%c0_36, %c64] : memref<80x216xbf16, #tpu.memory_space<vmem>>, vector<80x8xbf16>
    tpu.vector_store %arg8[%c0_36, %c64], %25 {strides = array<i32>} : memref<80x216xbf16, #tpu.memory_space<vmem>>, vector<80x8xbf16>,
    %c0_37 = arith.constant 0 : index
    %c0_38 = arith.constant 0 : index
    %c0_39 = arith.constant 0 : index
    %c0_40 = arith.constant 0 : index
    %27 = vector.load %arg3[%c0_37, %c0_38, %c0_39, %c0_40] : memref<1x1x108x8xbf16, #tpu.memory_space<vmem>>, vector<1x1x80x8xbf16>
    %28 = vector.shape_cast %27 : vector<1x1x80x8xbf16> to vector<80x8xbf16>
    %c0_41 = arith.constant 0 : index
    %c72 = arith.constant 72 : index
    %29 = vector.load %arg8[%c0_41, %c72] : memref<80x216xbf16, #tpu.memory_space<vmem>>, vector<80x8xbf16>
    tpu.vector_store %arg8[%c0_41, %c72], %28 {strides = array<i32>} : memref<80x216xbf16, #tpu.memory_space<vmem>>, vector<80x8xbf16>,
    %c0_42 = arith.constant 0 : index
    %c0_43 = arith.constant 0 : index
    %c1_44 = arith.constant 1 : index
    %c0_45 = arith.constant 0 : index
    %30 = vector.load %arg3[%c0_42, %c0_43, %c1_44, %c0_45] : memref<1x1x108x8xbf16, #tpu.memory_space<vmem>>, vector<1x1x80x8xbf16>
    %31 = vector.shape_cast %30 : vector<1x1x80x8xbf16> to vector<80x8xbf16>
    %c0_46 = arith.constant 0 : index
    %c80 = arith.constant 80 : index
    %32 = vector.load %arg8[%c0_46, %c80] : memref<80x216xbf16, #tpu.memory_space<vmem>>, vector<80x8xbf16>
    tpu.vector_store %arg8[%c0_46, %c80], %31 {strides = array<i32>} : memref<80x216xbf16, #tpu.memory_space<vmem>>, vector<80x8xbf16>,
    %c0_47 = arith.constant 0 : index
    %c0_48 = arith.constant 0 : index
    %c2_49 = arith.constant 2 : index
    %c0_50 = arith.constant 0 : index
    %33 = vector.load %arg3[%c0_47, %c0_48, %c2_49, %c0_50] : memref<1x1x108x8xbf16, #tpu.memory_space<vmem>>, vector<1x1x80x8xbf16>
    %34 = vector.shape_cast %33 : vector<1x1x80x8xbf16> to vector<80x8xbf16>
    %c0_51 = arith.constant 0 : index
    %c88 = arith.constant 88 : index
    %35 = vector.load %arg8[%c0_51, %c88] : memref<80x216xbf16, #tpu.memory_space<vmem>>, vector<80x8xbf16>
    tpu.vector_store %arg8[%c0_51, %c88], %34 {strides = array<i32>} : memref<80x216xbf16, #tpu.memory_space<vmem>>, vector<80x8xbf16>,
    %c0_52 = arith.constant 0 : index
    %c0_53 = arith.constant 0 : index
    %c10_54 = arith.constant 10 : index
    %c0_55 = arith.constant 0 : index
    %36 = vector.load %arg3[%c0_52, %c0_53, %c10_54, %c0_55] : memref<1x1x108x8xbf16, #tpu.memory_space<vmem>>, vector<1x1x80x8xbf16>
    %37 = vector.shape_cast %36 : vector<1x1x80x8xbf16> to vector<80x8xbf16>
    %c0_56 = arith.constant 0 : index
    %c96 = arith.constant 96 : index
    %38 = vector.load %arg8[%c0_56, %c96] : memref<80x216xbf16, #tpu.memory_space<vmem>>, vector<80x8xbf16>
    tpu.vector_store %arg8[%c0_56, %c96], %37 {strides = array<i32>} : memref<80x216xbf16, #tpu.memory_space<vmem>>, vector<80x8xbf16>,
    %c0_57 = arith.constant 0 : index
    %c0_58 = arith.constant 0 : index
    %c11_59 = arith.constant 11 : index
    %c0_60 = arith.constant 0 : index
    %39 = vector.load %arg3[%c0_57, %c0_58, %c11_59, %c0_60] : memref<1x1x108x8xbf16, #tpu.memory_space<vmem>>, vector<1x1x80x8xbf16>
    %40 = vector.shape_cast %39 : vector<1x1x80x8xbf16> to vector<80x8xbf16>
    %c0_61 = arith.constant 0 : index
    %c104 = arith.constant 104 : index
    %41 = vector.load %arg8[%c0_61, %c104] : memref<80x216xbf16, #tpu.memory_space<vmem>>, vector<80x8xbf16>
    tpu.vector_store %arg8[%c0_61, %c104], %40 {strides = array<i32>} : memref<80x216xbf16, #tpu.memory_space<vmem>>, vector<80x8xbf16>,
    %c0_62 = arith.constant 0 : index
    %c0_63 = arith.constant 0 : index
    %c12_64 = arith.constant 12 : index
    %c0_65 = arith.constant 0 : index
    %42 = vector.load %arg3[%c0_62, %c0_63, %c12_64, %c0_65] : memref<1x1x108x8xbf16, #tpu.memory_space<vmem>>, vector<1x1x80x8xbf16>
    %43 = vector.shape_cast %42 : vector<1x1x80x8xbf16> to vector<80x8xbf16>
    %c0_66 = arith.constant 0 : index
    %c112 = arith.constant 112 : index
    %44 = vector.load %arg8[%c0_66, %c112] : memref<80x216xbf16, #tpu.memory_space<vmem>>, vector<80x8xbf16>
    tpu.vector_store %arg8[%c0_66, %c112], %43 {strides = array<i32>} : memref<80x216xbf16, #tpu.memory_space<vmem>>, vector<80x8xbf16>,
    %c0_67 = arith.constant 0 : index
    %c0_68 = arith.constant 0 : index
    %c20_69 = arith.constant 20 : index
    %c0_70 = arith.constant 0 : index
    %45 = vector.load %arg3[%c0_67, %c0_68, %c20_69, %c0_70] : memref<1x1x108x8xbf16, #tpu.memory_space<vmem>>, vector<1x1x80x8xbf16>
    %46 = vector.shape_cast %45 : vector<1x1x80x8xbf16> to vector<80x8xbf16>
    %c0_71 = arith.constant 0 : index
    %c120 = arith.constant 120 : index
    %47 = vector.load %arg8[%c0_71, %c120] : memref<80x216xbf16, #tpu.memory_space<vmem>>, vector<80x8xbf16>
    tpu.vector_store %arg8[%c0_71, %c120], %46 {strides = array<i32>} : memref<80x216xbf16, #tpu.memory_space<vmem>>, vector<80x8xbf16>,
    %c0_72 = arith.constant 0 : index
    %c0_73 = arith.constant 0 : index
    %c21_74 = arith.constant 21 : index
    %c0_75 = arith.constant 0 : index
    %48 = vector.load %arg3[%c0_72, %c0_73, %c21_74, %c0_75] : memref<1x1x108x8xbf16, #tpu.memory_space<vmem>>, vector<1x1x80x8xbf16>
    %49 = vector.shape_cast %48 : vector<1x1x80x8xbf16> to vector<80x8xbf16>
    %c0_76 = arith.constant 0 : index
    %c128 = arith.constant 128 : index
    %50 = vector.load %arg8[%c0_76, %c128] : memref<80x216xbf16, #tpu.memory_space<vmem>>, vector<80x8xbf16>
    tpu.vector_store %arg8[%c0_76, %c128], %49 {strides = array<i32>} : memref<80x216xbf16, #tpu.memory_space<vmem>>, vector<80x8xbf16>,
    %c0_77 = arith.constant 0 : index
    %c0_78 = arith.constant 0 : index
    %c22_79 = arith.constant 22 : index
    %c0_80 = arith.constant 0 : index
    %51 = vector.load %arg3[%c0_77, %c0_78, %c22_79, %c0_80] : memref<1x1x108x8xbf16, #tpu.memory_space<vmem>>, vector<1x1x80x8xbf16>
    %52 = vector.shape_cast %51 : vector<1x1x80x8xbf16> to vector<80x8xbf16>
    %c0_81 = arith.constant 0 : index
    %c136 = arith.constant 136 : index
    %53 = vector.load %arg8[%c0_81, %c136] : memref<80x216xbf16, #tpu.memory_space<vmem>>, vector<80x8xbf16>
    tpu.vector_store %arg8[%c0_81, %c136], %52 {strides = array<i32>} : memref<80x216xbf16, #tpu.memory_space<vmem>>, vector<80x8xbf16>,
    %c0_82 = arith.constant 0 : index
    %c0_83 = arith.constant 0 : index
    %c0_84 = arith.constant 0 : index
    %c0_85 = arith.constant 0 : index
    %54 = vector.load %arg4[%c0_82, %c0_83, %c0_84, %c0_85] : memref<1x1x108x8xbf16, #tpu.memory_space<vmem>>, vector<1x1x80x8xbf16>
    %55 = vector.shape_cast %54 : vector<1x1x80x8xbf16> to vector<80x8xbf16>
    %c0_86 = arith.constant 0 : index
    %c144 = arith.constant 144 : index
    %56 = vector.load %arg8[%c0_86, %c144] : memref<80x216xbf16, #tpu.memory_space<vmem>>, vector<80x8xbf16>
    tpu.vector_store %arg8[%c0_86, %c144], %55 {strides = array<i32>} : memref<80x216xbf16, #tpu.memory_space<vmem>>, vector<80x8xbf16>,
    %c0_87 = arith.constant 0 : index
    %c0_88 = arith.constant 0 : index
    %c1_89 = arith.constant 1 : index
    %c0_90 = arith.constant 0 : index
    %57 = vector.load %arg4[%c0_87, %c0_88, %c1_89, %c0_90] : memref<1x1x108x8xbf16, #tpu.memory_space<vmem>>, vector<1x1x80x8xbf16>
    %58 = vector.shape_cast %57 : vector<1x1x80x8xbf16> to vector<80x8xbf16>
    %c0_91 = arith.constant 0 : index
    %c152 = arith.constant 152 : index
    %59 = vector.load %arg8[%c0_91, %c152] : memref<80x216xbf16, #tpu.memory_space<vmem>>, vector<80x8xbf16>
    tpu.vector_store %arg8[%c0_91, %c152], %58 {strides = array<i32>} : memref<80x216xbf16, #tpu.memory_space<vmem>>, vector<80x8xbf16>,
    %c0_92 = arith.constant 0 : index
    %c0_93 = arith.constant 0 : index
    %c2_94 = arith.constant 2 : index
    %c0_95 = arith.constant 0 : index
    %60 = vector.load %arg4[%c0_92, %c0_93, %c2_94, %c0_95] : memref<1x1x108x8xbf16, #tpu.memory_space<vmem>>, vector<1x1x80x8xbf16>
    %61 = vector.shape_cast %60 : vector<1x1x80x8xbf16> to vector<80x8xbf16>
    %c0_96 = arith.constant 0 : index
    %c160 = arith.constant 160 : index
    %62 = vector.load %arg8[%c0_96, %c160] : memref<80x216xbf16, #tpu.memory_space<vmem>>, vector<80x8xbf16>
    tpu.vector_store %arg8[%c0_96, %c160], %61 {strides = array<i32>} : memref<80x216xbf16, #tpu.memory_space<vmem>>, vector<80x8xbf16>,
    %c0_97 = arith.constant 0 : index
    %c0_98 = arith.constant 0 : index
    %c10_99 = arith.constant 10 : index
    %c0_100 = arith.constant 0 : index
    %63 = vector.load %arg4[%c0_97, %c0_98, %c10_99, %c0_100] : memref<1x1x108x8xbf16, #tpu.memory_space<vmem>>, vector<1x1x80x8xbf16>
    %64 = vector.shape_cast %63 : vector<1x1x80x8xbf16> to vector<80x8xbf16>
    %c0_101 = arith.constant 0 : index
    %c168 = arith.constant 168 : index
    %65 = vector.load %arg8[%c0_101, %c168] : memref<80x216xbf16, #tpu.memory_space<vmem>>, vector<80x8xbf16>
    tpu.vector_store %arg8[%c0_101, %c168], %64 {strides = array<i32>} : memref<80x216xbf16, #tpu.memory_space<vmem>>, vector<80x8xbf16>,
    %c0_102 = arith.constant 0 : index
    %c0_103 = arith.constant 0 : index
    %c11_104 = arith.constant 11 : index
    %c0_105 = arith.constant 0 : index
    %66 = vector.load %arg4[%c0_102, %c0_103, %c11_104, %c0_105] : memref<1x1x108x8xbf16, #tpu.memory_space<vmem>>, vector<1x1x80x8xbf16>
    %67 = vector.shape_cast %66 : vector<1x1x80x8xbf16> to vector<80x8xbf16>
    %c0_106 = arith.constant 0 : index
    %c176 = arith.constant 176 : index
    %68 = vector.load %arg8[%c0_106, %c176] : memref<80x216xbf16, #tpu.memory_space<vmem>>, vector<80x8xbf16>
    tpu.vector_store %arg8[%c0_106, %c176], %67 {strides = array<i32>} : memref<80x216xbf16, #tpu.memory_space<vmem>>, vector<80x8xbf16>,
    %c0_107 = arith.constant 0 : index
    %c0_108 = arith.constant 0 : index
    %c12_109 = arith.constant 12 : index
    %c0_110 = arith.constant 0 : index
    %69 = vector.load %arg4[%c0_107, %c0_108, %c12_109, %c0_110] : memref<1x1x108x8xbf16, #tpu.memory_space<vmem>>, vector<1x1x80x8xbf16>
    %70 = vector.shape_cast %69 : vector<1x1x80x8xbf16> to vector<80x8xbf16>
    %c0_111 = arith.constant 0 : index
    %c184 = arith.constant 184 : index
    %71 = vector.load %arg8[%c0_111, %c184] : memref<80x216xbf16, #tpu.memory_space<vmem>>, vector<80x8xbf16>
    tpu.vector_store %arg8[%c0_111, %c184], %70 {strides = array<i32>} : memref<80x216xbf16, #tpu.memory_space<vmem>>, vector<80x8xbf16>,
    %c0_112 = arith.constant 0 : index
    %c0_113 = arith.constant 0 : index
    %c20_114 = arith.constant 20 : index
    %c0_115 = arith.constant 0 : index
    %72 = vector.load %arg4[%c0_112, %c0_113, %c20_114, %c0_115] : memref<1x1x108x8xbf16, #tpu.memory_space<vmem>>, vector<1x1x80x8xbf16>
    %73 = vector.shape_cast %72 : vector<1x1x80x8xbf16> to vector<80x8xbf16>
    %c0_116 = arith.constant 0 : index
    %c192 = arith.constant 192 : index
    %74 = vector.load %arg8[%c0_116, %c192] : memref<80x216xbf16, #tpu.memory_space<vmem>>, vector<80x8xbf16>
    tpu.vector_store %arg8[%c0_116, %c192], %73 {strides = array<i32>} : memref<80x216xbf16, #tpu.memory_space<vmem>>, vector<80x8xbf16>,
    %c0_117 = arith.constant 0 : index
    %c0_118 = arith.constant 0 : index
    %c21_119 = arith.constant 21 : index
    %c0_120 = arith.constant 0 : index
    %75 = vector.load %arg4[%c0_117, %c0_118, %c21_119, %c0_120] : memref<1x1x108x8xbf16, #tpu.memory_space<vmem>>, vector<1x1x80x8xbf16>
    %76 = vector.shape_cast %75 : vector<1x1x80x8xbf16> to vector<80x8xbf16>
    %c0_121 = arith.constant 0 : index
    %c200 = arith.constant 200 : index
    %77 = vector.load %arg8[%c0_121, %c200] : memref<80x216xbf16, #tpu.memory_space<vmem>>, vector<80x8xbf16>
    tpu.vector_store %arg8[%c0_121, %c200], %76 {strides = array<i32>} : memref<80x216xbf16, #tpu.memory_space<vmem>>, vector<80x8xbf16>,
    %c0_122 = arith.constant 0 : index
    %c0_123 = arith.constant 0 : index
    %c22_124 = arith.constant 22 : index
    %c0_125 = arith.constant 0 : index
    %78 = vector.load %arg4[%c0_122, %c0_123, %c22_124, %c0_125] : memref<1x1x108x8xbf16, #tpu.memory_space<vmem>>, vector<1x1x80x8xbf16>
    %79 = vector.shape_cast %78 : vector<1x1x80x8xbf16> to vector<80x8xbf16>
    %c0_126 = arith.constant 0 : index
    %c208 = arith.constant 208 : index
    %80 = vector.load %arg8[%c0_126, %c208] : memref<80x216xbf16, #tpu.memory_space<vmem>>, vector<80x8xbf16>
    tpu.vector_store %arg8[%c0_126, %c208], %79 {strides = array<i32>} : memref<80x216xbf16, #tpu.memory_space<vmem>>, vector<80x8xbf16>,
    %c0_127 = arith.constant 0 : index
    %c0_128 = arith.constant 0 : index
    %81 = vector.load %arg8[%c0_127, %c0_128] : memref<80x216xbf16, #tpu.memory_space<vmem>>, vector<80x216xbf16>
    %c0_129 = arith.constant 0 : index
    %c0_130 = arith.constant 0 : index
    %82 = vector.load %arg5[%c0_129, %c0_130] : memref<216x128xbf16, #tpu.memory_space<vmem>>, vector<216x128xbf16>
    %cst = arith.constant dense<0.000000e+00> : vector<80x128xf32>
    %83 = tpu.matmul %81, %82, %cst {dimension_numbers = #tpu.dot_dimension_numbers<[1], [0], [0], [1], [0, 0, 1, 1], [], []>} : vector<80x216xbf16>, vector<216x128xbf16>, vector<80x128xf32> -> vector<80x128xf32>
    %c0_131 = arith.constant 0 : index
    %c0_132 = arith.constant 0 : index
    %c0_133 = arith.constant 0 : index
    %c0_134 = arith.constant 0 : index
    %84 = vector.load %arg6[%c0_131, %c0_132, %c0_133, %c0_134] : memref<1x1x80x128xf32, #tpu.memory_space<vmem>>, vector<1x1x80x128xf32>
    %85 = vector.shape_cast %84 : vector<1x1x80x128xf32> to vector<80x128xf32>
    %86 = vector.shape_cast %83 : vector<80x128xf32> to vector<1x1x80x128xf32>
    tpu.vector_store %arg6[%c0_131, %c0_132, %c0_133, %c0_134], %86 {strides = array<i32>} : memref<1x1x80x128xf32, #tpu.memory_space<vmem>>, vector<1x1x80x128xf32>,
    %87 = tpu.iota {dimensions = array<i32: 0>} : vector<80x1xi32>
    %c10_i32 = arith.constant 10 : i32
    %c0_i32 = arith.constant 0 : i32
    %88 = arith.cmpi eq, %c10_i32, %c0_i32 : i32
    %c1_i32 = arith.constant 1 : i32
    %89 = arith.select %88, %c1_i32, %c10_i32 : i32
    %90 = vector.broadcast %89 : i32 to vector<80x1xi32>
    %91 = arith.remsi %87, %90 : vector<80x1xi32>
    %c0_i32_135 = arith.constant 0 : i32
    %92 = vector.broadcast %c0_i32_135 : i32 to vector<80x1xi32>
    %93 = arith.cmpi ne, %91, %92 : vector<80x1xi32>
    %c0_i32_136 = arith.constant 0 : i32
    %94 = vector.broadcast %c0_i32_136 : i32 to vector<80x1xi32>
    %95 = arith.cmpi slt, %91, %94 : vector<80x1xi32>
    %c0_i32_137 = arith.constant 0 : i32
    %96 = arith.cmpi slt, %89, %c0_i32_137 : i32
    %97 = vector.broadcast %96 : i1 to vector<80x1xi1>
    %98 = vector.broadcast %97 : vector<80x1xi1> to vector<80x1xi1>
    %99 = arith.xori %95, %98 : vector<80x1xi1>
    %100 = arith.andi %99, %93 : vector<80x1xi1>
    %101 = vector.broadcast %89 : i32 to vector<80x1xi32>
    %102 = arith.addi %91, %101 : vector<80x1xi32>
    %103 = arith.select %100, %102, %91 : vector<80x1xi1>, vector<80x1xi32>
    %c8_i32 = arith.constant 8 : i32
    %104 = vector.broadcast %c8_i32 : i32 to vector<80x1xi32>
    %105 = arith.cmpi slt, %103, %104 : vector<80x1xi32>
    %106 = arith.extui %105 : vector<80x1xi1> to vector<80x1xi32>
    %107 = arith.sitofp %106 : vector<80x1xi32> to vector<80x1xf32>
    %108 = vector.broadcast %107 : vector<80x1xf32> to vector<80x128xf32>
    %109 = arith.mulf %83, %108 : vector<80x128xf32>
    %cst_138 = arith.constant dense<0.000000e+00> : vector<128xf32>
    %110 = vector.multi_reduction <add>, %109, %cst_138 [0] : vector<80x128xf32> to vector<128xf32>
    %111 = vector.shape_cast %110 : vector<128xf32> to vector<1x128xf32>
    %112 = arith.mulf %109, %109 : vector<80x128xf32>
    %cst_139 = arith.constant dense<0.000000e+00> : vector<128xf32>
    %113 = vector.multi_reduction <add>, %112, %cst_139 [0] : vector<80x128xf32> to vector<128xf32>
    %114 = vector.shape_cast %113 : vector<128xf32> to vector<1x128xf32>
    %115 = tpu.concatenate %111, %114 in 0 : vector<1x128xf32>, vector<1x128xf32> -> vector<2x128xf32>
    %c0_140 = arith.constant 0 : index
    %c0_141 = arith.constant 0 : index
    %c0_142 = arith.constant 0 : index
    %c0_143 = arith.constant 0 : index
    %116 = vector.load %arg7[%c0_140, %c0_141, %c0_142, %c0_143] : memref<1x1x2x128xf32, #tpu.memory_space<vmem>>, vector<1x1x2x128xf32>
    %117 = vector.shape_cast %116 : vector<1x1x2x128xf32> to vector<2x128xf32>
    %118 = vector.shape_cast %115 : vector<2x128xf32> to vector<1x1x2x128xf32>
    tpu.vector_store %arg7[%c0_140, %c0_141, %c0_142, %c0_143], %118 {strides = array<i32>} : memref<1x1x2x128xf32, #tpu.memory_space<vmem>>, vector<1x1x2x128xf32>,
    return
  }
  func.func @transform_0(%arg0: i32, %arg1: i32) -> (i32, i32, i32, i32) {
    %c0_i32 = arith.constant 0 : i32
    %0 = arith.addi %arg1, %c0_i32 : i32
    %c0_i32_0 = arith.constant 0 : i32
    %c0_i32_1 = arith.constant 0 : i32
    %c0_i32_2 = arith.constant 0 : i32
    return %arg0, %0, %c0_i32_0, %c0_i32_1 : i32, i32, i32, i32
  }
  func.func @transform_1(%arg0: i32, %arg1: i32) -> (i32, i32, i32, i32) {
    %c1_i32 = arith.constant 1 : i32
    %0 = arith.addi %arg1, %c1_i32 : i32
    %c0_i32 = arith.constant 0 : i32
    %c0_i32_0 = arith.constant 0 : i32
    %c0_i32_1 = arith.constant 0 : i32
    return %arg0, %0, %c0_i32, %c0_i32_0 : i32, i32, i32, i32
  }
  func.func @transform_2(%arg0: i32, %arg1: i32) -> (i32, i32, i32, i32) {
    %c2_i32 = arith.constant 2 : i32
    %0 = arith.addi %arg1, %c2_i32 : i32
    %c0_i32 = arith.constant 0 : i32
    %c0_i32_0 = arith.constant 0 : i32
    %c0_i32_1 = arith.constant 0 : i32
    return %arg0, %0, %c0_i32, %c0_i32_0 : i32, i32, i32, i32
  }
  func.func @transform_3(%arg0: i32, %arg1: i32) -> (i32, i32) {
    %c0_i32 = arith.constant 0 : i32
    %c0_i32_0 = arith.constant 0 : i32
    %c0_i32_1 = arith.constant 0 : i32
    return %c0_i32, %c0_i32_0 : i32, i32
  }
  func.func @transform_4(%arg0: i32, %arg1: i32) -> (i32, i32, i32, i32) {
    %c0_i32 = arith.constant 0 : i32
    %c0_i32_0 = arith.constant 0 : i32
    %c0_i32_1 = arith.constant 0 : i32
    return %arg0, %arg1, %c0_i32, %c0_i32_0 : i32, i32, i32, i32
  }
  func.func @transform_5(%arg0: i32, %arg1: i32) -> (i32, i32, i32, i32) {
    %c0_i32 = arith.constant 0 : i32
    %c0_i32_0 = arith.constant 0 : i32
    %c0_i32_1 = arith.constant 0 : i32
    return %arg0, %arg1, %c0_i32, %c0_i32_0 : i32, i32, i32, i32
  }
}

module attributes {stable_mosaic.version = 11 : i64} {
  func.func @_bn_relu_pad_kernel(%arg0: i32, %arg1: i32, %arg2: memref<1x1x80x128xf32, #tpu.memory_space<vmem>>, %arg3: memref<2x128xf32, #tpu.memory_space<vmem>>, %arg4: memref<1x1x108x128xbf16, #tpu.memory_space<vmem>>) attributes {dimension_semantics = [#tpu.dimension_semantics<parallel>, #tpu.dimension_semantics<parallel>], iteration_bounds = array<i64: 2, 10>, scalar_prefetch = 0 : i64, scratch_operands = 0 : i64, tpu.core_type = #tpu.core_type<tc>, window_params = [{transform_indices = @transform_0, window_bounds = array<i64: 1, 1, 80, 128>}, {pipeline_mode = #tpu.pipeline_mode<synchronous>, transform_indices = @transform_1, window_bounds = array<i64: 2, 128>}, {transform_indices = @transform_2, window_bounds = array<i64: 1, 1, 108, 128>}]} {
    %c0_i32 = arith.constant 0 : i32
    %0 = arith.cmpi eq, %arg1, %c0_i32 : i32
    %c9_i32 = arith.constant 9 : i32
    %1 = arith.cmpi eq, %arg1, %c9_i32 : i32
    %2 = arith.ori %0, %1 : i1
    %3 = arith.extui %2 : i1 to i32
    %c0_i32_0 = arith.constant 0 : i32
    %4 = arith.cmpi ne, %3, %c0_i32_0 : i32
    scf.if %4 {
      %cst = arith.constant 0.000000e+00 : bf16
      %10 = vector.broadcast %cst : bf16 to vector<108x128xbf16>
      %c0 = arith.constant 0 : index
      %c0_4 = arith.constant 0 : index
      %c0_5 = arith.constant 0 : index
      %c0_6 = arith.constant 0 : index
      %11 = vector.load %arg4[%c0, %c0_4, %c0_5, %c0_6] : memref<1x1x108x128xbf16, #tpu.memory_space<vmem>>, vector<1x1x108x128xbf16>
      %12 = vector.shape_cast %11 : vector<1x1x108x128xbf16> to vector<108x128xbf16>
      %13 = vector.shape_cast %10 : vector<108x128xbf16> to vector<1x1x108x128xbf16>
      tpu.vector_store %arg4[%c0, %c0_4, %c0_5, %c0_6], %13 {strides = array<i32>} : memref<1x1x108x128xbf16, #tpu.memory_space<vmem>>, vector<1x1x108x128xbf16>,
    } else {
    }
    %c0_i32_1 = arith.constant 0 : i32
    %5 = arith.cmpi sgt, %arg1, %c0_i32_1 : i32
    %c9_i32_2 = arith.constant 9 : i32
    %6 = arith.cmpi slt, %arg1, %c9_i32_2 : i32
    %7 = arith.andi %5, %6 : i1
    %8 = arith.extui %7 : i1 to i32
    %c0_i32_3 = arith.constant 0 : i32
    %9 = arith.cmpi ne, %8, %c0_i32_3 : i32
    scf.if %9 {
      %c0 = arith.constant 0 : index
      %c0_4 = arith.constant 0 : index
      %10 = vector.load %arg3[%c0, %c0_4] : memref<2x128xf32, #tpu.memory_space<vmem>>, vector<1x128xf32>
      %c1 = arith.constant 1 : index
      %c0_5 = arith.constant 0 : index
      %11 = vector.load %arg3[%c1, %c0_5] : memref<2x128xf32, #tpu.memory_space<vmem>>, vector<1x128xf32>
      %12 = tpu.iota {dimensions = array<i32: 0>} : vector<80x1xi32>
      %c10_i32 = arith.constant 10 : i32
      %c0_i32_6 = arith.constant 0 : i32
      %13 = arith.cmpi eq, %c10_i32, %c0_i32_6 : i32
      %c1_i32 = arith.constant 1 : i32
      %14 = arith.select %13, %c1_i32, %c10_i32 : i32
      %15 = vector.broadcast %14 : i32 to vector<80x1xi32>
      %16 = arith.remsi %12, %15 : vector<80x1xi32>
      %c0_i32_7 = arith.constant 0 : i32
      %17 = vector.broadcast %c0_i32_7 : i32 to vector<80x1xi32>
      %18 = arith.cmpi ne, %16, %17 : vector<80x1xi32>
      %c0_i32_8 = arith.constant 0 : i32
      %19 = vector.broadcast %c0_i32_8 : i32 to vector<80x1xi32>
      %20 = arith.cmpi slt, %16, %19 : vector<80x1xi32>
      %c0_i32_9 = arith.constant 0 : i32
      %21 = arith.cmpi slt, %14, %c0_i32_9 : i32
      %22 = vector.broadcast %21 : i1 to vector<80x1xi1>
      %23 = vector.broadcast %22 : vector<80x1xi1> to vector<80x1xi1>
      %24 = arith.xori %20, %23 : vector<80x1xi1>
      %25 = arith.andi %24, %18 : vector<80x1xi1>
      %26 = vector.broadcast %14 : i32 to vector<80x1xi32>
      %27 = arith.addi %16, %26 : vector<80x1xi32>
      %28 = arith.select %25, %27, %16 : vector<80x1xi1>, vector<80x1xi32>
      %c0_10 = arith.constant 0 : index
      %c0_11 = arith.constant 0 : index
      %c0_12 = arith.constant 0 : index
      %c0_13 = arith.constant 0 : index
      %29 = vector.load %arg2[%c0_10, %c0_11, %c0_12, %c0_13] : memref<1x1x80x128xf32, #tpu.memory_space<vmem>>, vector<1x1x80x128xf32>
      %30 = vector.shape_cast %29 : vector<1x1x80x128xf32> to vector<80x128xf32>
      %31 = vector.broadcast %10 : vector<1x128xf32> to vector<80x128xf32>
      %32 = arith.mulf %30, %31 : vector<80x128xf32>
      %33 = vector.broadcast %11 : vector<1x128xf32> to vector<80x128xf32>
      %34 = arith.addf %32, %33 : vector<80x128xf32>
      %cst = arith.constant 0.000000e+00 : f32
      %35 = vector.broadcast %cst : f32 to vector<80x128xf32>
      %36 = arith.maximumf %34, %35 : vector<80x128xf32>
      %c8_i32 = arith.constant 8 : i32
      %37 = vector.broadcast %c8_i32 : i32 to vector<80x1xi32>
      %38 = arith.cmpi slt, %28, %37 : vector<80x1xi32>
      %cst_14 = arith.constant 0.000000e+00 : f32
      %39 = vector.shape_cast %38 : vector<80x1xi1> to vector<80x1xi1>
      %40 = vector.broadcast %39 : vector<80x1xi1> to vector<80x128xi1>
      %41 = vector.broadcast %cst_14 : f32 to vector<80x128xf32>
      %42 = arith.select %40, %36, %41 : vector<80x128xi1>, vector<80x128xf32>
      %cst_15 = arith.constant 0.000000e+00 : f32
      %43 = vector.broadcast %cst_15 : f32 to vector<11x128xf32>
      %cst_16 = arith.constant 0.000000e+00 : f32
      %44 = vector.broadcast %cst_16 : f32 to vector<17x128xf32>
      %45 = tpu.concatenate %43, %42, %44 in 0 : vector<11x128xf32>, vector<80x128xf32>, vector<17x128xf32> -> vector<108x128xf32>
      %46 = arith.truncf %45 : vector<108x128xf32> to vector<108x128xbf16>
      %c0_17 = arith.constant 0 : index
      %c0_18 = arith.constant 0 : index
      %c0_19 = arith.constant 0 : index
      %c0_20 = arith.constant 0 : index
      %47 = vector.load %arg4[%c0_17, %c0_18, %c0_19, %c0_20] : memref<1x1x108x128xbf16, #tpu.memory_space<vmem>>, vector<1x1x108x128xbf16>
      %48 = vector.shape_cast %47 : vector<1x1x108x128xbf16> to vector<108x128xbf16>
      %49 = vector.shape_cast %46 : vector<108x128xbf16> to vector<1x1x108x128xbf16>
      tpu.vector_store %arg4[%c0_17, %c0_18, %c0_19, %c0_20], %49 {strides = array<i32>} : memref<1x1x108x128xbf16, #tpu.memory_space<vmem>>, vector<1x1x108x128xbf16>,
    } else {
    }
    return
  }
  func.func @transform_0(%arg0: i32, %arg1: i32) -> (i32, i32, i32, i32) {
    %c1_i32 = arith.constant 1 : i32
    %0 = arith.subi %arg1, %c1_i32 : i32
    %c0_i32 = arith.constant 0 : i32
    %c7_i32 = arith.constant 7 : i32
    %1 = arith.maxsi %c0_i32, %0 : i32
    %2 = arith.minsi %c7_i32, %1 : i32
    %c0_i32_0 = arith.constant 0 : i32
    %c0_i32_1 = arith.constant 0 : i32
    %c0_i32_2 = arith.constant 0 : i32
    return %arg0, %2, %c0_i32_0, %c0_i32_1 : i32, i32, i32, i32
  }
  func.func @transform_1(%arg0: i32, %arg1: i32) -> (i32, i32) {
    %c0_i32 = arith.constant 0 : i32
    %c0_i32_0 = arith.constant 0 : i32
    %c0_i32_1 = arith.constant 0 : i32
    return %c0_i32, %c0_i32_0 : i32, i32
  }
  func.func @transform_2(%arg0: i32, %arg1: i32) -> (i32, i32, i32, i32) {
    %c0_i32 = arith.constant 0 : i32
    %c0_i32_0 = arith.constant 0 : i32
    %c0_i32_1 = arith.constant 0 : i32
    return %arg0, %arg1, %c0_i32, %c0_i32_0 : i32, i32, i32, i32
  }
}

module attributes {stable_mosaic.version = 11 : i64} {
  func.func @_conv27_kernel(%arg0: i32, %arg1: i32, %arg2: memref<1x1x108x128xbf16, #tpu.memory_space<vmem>>, %arg3: memref<1x1x108x128xbf16, #tpu.memory_space<vmem>>, %arg4: memref<1x1x108x128xbf16, #tpu.memory_space<vmem>>, %arg5: memref<3456x128xbf16, #tpu.memory_space<vmem>>, %arg6: memref<1x1x80x128xf32, #tpu.memory_space<vmem>>, %arg7: memref<1x1x2x128xf32, #tpu.memory_space<vmem>>, %arg8: memref<80x3456xbf16, #tpu.memory_space<vmem>>) attributes {dimension_semantics = [#tpu.dimension_semantics<parallel>, #tpu.dimension_semantics<parallel>], iteration_bounds = array<i64: 2, 8>, scalar_prefetch = 0 : i64, scratch_operands = 1 : i64, tpu.core_type = #tpu.core_type<tc>, window_params = [{transform_indices = @transform_0, window_bounds = array<i64: 1, 1, 108, 128>}, {transform_indices = @transform_1, window_bounds = array<i64: 1, 1, 108, 128>}, {transform_indices = @transform_2, window_bounds = array<i64: 1, 1, 108, 128>}, {pipeline_mode = #tpu.pipeline_mode<synchronous>, transform_indices = @transform_3, window_bounds = array<i64: 3456, 128>}, {transform_indices = @transform_4, window_bounds = array<i64: 1, 1, 80, 128>}, {transform_indices = @transform_5, window_bounds = array<i64: 1, 1, 2, 128>}]} {
    %c0 = arith.constant 0 : index
    %c0_0 = arith.constant 0 : index
    %c0_1 = arith.constant 0 : index
    %c0_2 = arith.constant 0 : index
    %0 = vector.load %arg2[%c0, %c0_0, %c0_1, %c0_2] : memref<1x1x108x128xbf16, #tpu.memory_space<vmem>>, vector<1x1x80x128xbf16>
    %1 = vector.shape_cast %0 : vector<1x1x80x128xbf16> to vector<80x128xbf16>
    %c0_3 = arith.constant 0 : index
    %c0_4 = arith.constant 0 : index
    %2 = vector.load %arg8[%c0_3, %c0_4] : memref<80x3456xbf16, #tpu.memory_space<vmem>>, vector<80x128xbf16>
    tpu.vector_store %arg8[%c0_3, %c0_4], %1 {strides = array<i32>} : memref<80x3456xbf16, #tpu.memory_space<vmem>>, vector<80x128xbf16>,
    %c0_5 = arith.constant 0 : index
    %c0_6 = arith.constant 0 : index
    %c1 = arith.constant 1 : index
    %c0_7 = arith.constant 0 : index
    %3 = vector.load %arg2[%c0_5, %c0_6, %c1, %c0_7] : memref<1x1x108x128xbf16, #tpu.memory_space<vmem>>, vector<1x1x80x128xbf16>
    %4 = vector.shape_cast %3 : vector<1x1x80x128xbf16> to vector<80x128xbf16>
    %c0_8 = arith.constant 0 : index
    %c128 = arith.constant 128 : index
    %5 = vector.load %arg8[%c0_8, %c128] : memref<80x3456xbf16, #tpu.memory_space<vmem>>, vector<80x128xbf16>
    tpu.vector_store %arg8[%c0_8, %c128], %4 {strides = array<i32>} : memref<80x3456xbf16, #tpu.memory_space<vmem>>, vector<80x128xbf16>,
    %c0_9 = arith.constant 0 : index
    %c0_10 = arith.constant 0 : index
    %c2 = arith.constant 2 : index
    %c0_11 = arith.constant 0 : index
    %6 = vector.load %arg2[%c0_9, %c0_10, %c2, %c0_11] : memref<1x1x108x128xbf16, #tpu.memory_space<vmem>>, vector<1x1x80x128xbf16>
    %7 = vector.shape_cast %6 : vector<1x1x80x128xbf16> to vector<80x128xbf16>
    %c0_12 = arith.constant 0 : index
    %c256 = arith.constant 256 : index
    %8 = vector.load %arg8[%c0_12, %c256] : memref<80x3456xbf16, #tpu.memory_space<vmem>>, vector<80x128xbf16>
    tpu.vector_store %arg8[%c0_12, %c256], %7 {strides = array<i32>} : memref<80x3456xbf16, #tpu.memory_space<vmem>>, vector<80x128xbf16>,
    %c0_13 = arith.constant 0 : index
    %c0_14 = arith.constant 0 : index
    %c10 = arith.constant 10 : index
    %c0_15 = arith.constant 0 : index
    %9 = vector.load %arg2[%c0_13, %c0_14, %c10, %c0_15] : memref<1x1x108x128xbf16, #tpu.memory_space<vmem>>, vector<1x1x80x128xbf16>
    %10 = vector.shape_cast %9 : vector<1x1x80x128xbf16> to vector<80x128xbf16>
    %c0_16 = arith.constant 0 : index
    %c384 = arith.constant 384 : index
    %11 = vector.load %arg8[%c0_16, %c384] : memref<80x3456xbf16, #tpu.memory_space<vmem>>, vector<80x128xbf16>
    tpu.vector_store %arg8[%c0_16, %c384], %10 {strides = array<i32>} : memref<80x3456xbf16, #tpu.memory_space<vmem>>, vector<80x128xbf16>,
    %c0_17 = arith.constant 0 : index
    %c0_18 = arith.constant 0 : index
    %c11 = arith.constant 11 : index
    %c0_19 = arith.constant 0 : index
    %12 = vector.load %arg2[%c0_17, %c0_18, %c11, %c0_19] : memref<1x1x108x128xbf16, #tpu.memory_space<vmem>>, vector<1x1x80x128xbf16>
    %13 = vector.shape_cast %12 : vector<1x1x80x128xbf16> to vector<80x128xbf16>
    %c0_20 = arith.constant 0 : index
    %c512 = arith.constant 512 : index
    %14 = vector.load %arg8[%c0_20, %c512] : memref<80x3456xbf16, #tpu.memory_space<vmem>>, vector<80x128xbf16>
    tpu.vector_store %arg8[%c0_20, %c512], %13 {strides = array<i32>} : memref<80x3456xbf16, #tpu.memory_space<vmem>>, vector<80x128xbf16>,
    %c0_21 = arith.constant 0 : index
    %c0_22 = arith.constant 0 : index
    %c12 = arith.constant 12 : index
    %c0_23 = arith.constant 0 : index
    %15 = vector.load %arg2[%c0_21, %c0_22, %c12, %c0_23] : memref<1x1x108x128xbf16, #tpu.memory_space<vmem>>, vector<1x1x80x128xbf16>
    %16 = vector.shape_cast %15 : vector<1x1x80x128xbf16> to vector<80x128xbf16>
    %c0_24 = arith.constant 0 : index
    %c640 = arith.constant 640 : index
    %17 = vector.load %arg8[%c0_24, %c640] : memref<80x3456xbf16, #tpu.memory_space<vmem>>, vector<80x128xbf16>
    tpu.vector_store %arg8[%c0_24, %c640], %16 {strides = array<i32>} : memref<80x3456xbf16, #tpu.memory_space<vmem>>, vector<80x128xbf16>,
    %c0_25 = arith.constant 0 : index
    %c0_26 = arith.constant 0 : index
    %c20 = arith.constant 20 : index
    %c0_27 = arith.constant 0 : index
    %18 = vector.load %arg2[%c0_25, %c0_26, %c20, %c0_27] : memref<1x1x108x128xbf16, #tpu.memory_space<vmem>>, vector<1x1x80x128xbf16>
    %19 = vector.shape_cast %18 : vector<1x1x80x128xbf16> to vector<80x128xbf16>
    %c0_28 = arith.constant 0 : index
    %c768 = arith.constant 768 : index
    %20 = vector.load %arg8[%c0_28, %c768] : memref<80x3456xbf16, #tpu.memory_space<vmem>>, vector<80x128xbf16>
    tpu.vector_store %arg8[%c0_28, %c768], %19 {strides = array<i32>} : memref<80x3456xbf16, #tpu.memory_space<vmem>>, vector<80x128xbf16>,
    %c0_29 = arith.constant 0 : index
    %c0_30 = arith.constant 0 : index
    %c21 = arith.constant 21 : index
    %c0_31 = arith.constant 0 : index
    %21 = vector.load %arg2[%c0_29, %c0_30, %c21, %c0_31] : memref<1x1x108x128xbf16, #tpu.memory_space<vmem>>, vector<1x1x80x128xbf16>
    %22 = vector.shape_cast %21 : vector<1x1x80x128xbf16> to vector<80x128xbf16>
    %c0_32 = arith.constant 0 : index
    %c896 = arith.constant 896 : index
    %23 = vector.load %arg8[%c0_32, %c896] : memref<80x3456xbf16, #tpu.memory_space<vmem>>, vector<80x128xbf16>
    tpu.vector_store %arg8[%c0_32, %c896], %22 {strides = array<i32>} : memref<80x3456xbf16, #tpu.memory_space<vmem>>, vector<80x128xbf16>,
    %c0_33 = arith.constant 0 : index
    %c0_34 = arith.constant 0 : index
    %c22 = arith.constant 22 : index
    %c0_35 = arith.constant 0 : index
    %24 = vector.load %arg2[%c0_33, %c0_34, %c22, %c0_35] : memref<1x1x108x128xbf16, #tpu.memory_space<vmem>>, vector<1x1x80x128xbf16>
    %25 = vector.shape_cast %24 : vector<1x1x80x128xbf16> to vector<80x128xbf16>
    %c0_36 = arith.constant 0 : index
    %c1024 = arith.constant 1024 : index
    %26 = vector.load %arg8[%c0_36, %c1024] : memref<80x3456xbf16, #tpu.memory_space<vmem>>, vector<80x128xbf16>
    tpu.vector_store %arg8[%c0_36, %c1024], %25 {strides = array<i32>} : memref<80x3456xbf16, #tpu.memory_space<vmem>>, vector<80x128xbf16>,
    %c0_37 = arith.constant 0 : index
    %c0_38 = arith.constant 0 : index
    %c0_39 = arith.constant 0 : index
    %c0_40 = arith.constant 0 : index
    %27 = vector.load %arg3[%c0_37, %c0_38, %c0_39, %c0_40] : memref<1x1x108x128xbf16, #tpu.memory_space<vmem>>, vector<1x1x80x128xbf16>
    %28 = vector.shape_cast %27 : vector<1x1x80x128xbf16> to vector<80x128xbf16>
    %c0_41 = arith.constant 0 : index
    %c1152 = arith.constant 1152 : index
    %29 = vector.load %arg8[%c0_41, %c1152] : memref<80x3456xbf16, #tpu.memory_space<vmem>>, vector<80x128xbf16>
    tpu.vector_store %arg8[%c0_41, %c1152], %28 {strides = array<i32>} : memref<80x3456xbf16, #tpu.memory_space<vmem>>, vector<80x128xbf16>,
    %c0_42 = arith.constant 0 : index
    %c0_43 = arith.constant 0 : index
    %c1_44 = arith.constant 1 : index
    %c0_45 = arith.constant 0 : index
    %30 = vector.load %arg3[%c0_42, %c0_43, %c1_44, %c0_45] : memref<1x1x108x128xbf16, #tpu.memory_space<vmem>>, vector<1x1x80x128xbf16>
    %31 = vector.shape_cast %30 : vector<1x1x80x128xbf16> to vector<80x128xbf16>
    %c0_46 = arith.constant 0 : index
    %c1280 = arith.constant 1280 : index
    %32 = vector.load %arg8[%c0_46, %c1280] : memref<80x3456xbf16, #tpu.memory_space<vmem>>, vector<80x128xbf16>
    tpu.vector_store %arg8[%c0_46, %c1280], %31 {strides = array<i32>} : memref<80x3456xbf16, #tpu.memory_space<vmem>>, vector<80x128xbf16>,
    %c0_47 = arith.constant 0 : index
    %c0_48 = arith.constant 0 : index
    %c2_49 = arith.constant 2 : index
    %c0_50 = arith.constant 0 : index
    %33 = vector.load %arg3[%c0_47, %c0_48, %c2_49, %c0_50] : memref<1x1x108x128xbf16, #tpu.memory_space<vmem>>, vector<1x1x80x128xbf16>
    %34 = vector.shape_cast %33 : vector<1x1x80x128xbf16> to vector<80x128xbf16>
    %c0_51 = arith.constant 0 : index
    %c1408 = arith.constant 1408 : index
    %35 = vector.load %arg8[%c0_51, %c1408] : memref<80x3456xbf16, #tpu.memory_space<vmem>>, vector<80x128xbf16>
    tpu.vector_store %arg8[%c0_51, %c1408], %34 {strides = array<i32>} : memref<80x3456xbf16, #tpu.memory_space<vmem>>, vector<80x128xbf16>,
    %c0_52 = arith.constant 0 : index
    %c0_53 = arith.constant 0 : index
    %c10_54 = arith.constant 10 : index
    %c0_55 = arith.constant 0 : index
    %36 = vector.load %arg3[%c0_52, %c0_53, %c10_54, %c0_55] : memref<1x1x108x128xbf16, #tpu.memory_space<vmem>>, vector<1x1x80x128xbf16>
    %37 = vector.shape_cast %36 : vector<1x1x80x128xbf16> to vector<80x128xbf16>
    %c0_56 = arith.constant 0 : index
    %c1536 = arith.constant 1536 : index
    %38 = vector.load %arg8[%c0_56, %c1536] : memref<80x3456xbf16, #tpu.memory_space<vmem>>, vector<80x128xbf16>
    tpu.vector_store %arg8[%c0_56, %c1536], %37 {strides = array<i32>} : memref<80x3456xbf16, #tpu.memory_space<vmem>>, vector<80x128xbf16>,
    %c0_57 = arith.constant 0 : index
    %c0_58 = arith.constant 0 : index
    %c11_59 = arith.constant 11 : index
    %c0_60 = arith.constant 0 : index
    %39 = vector.load %arg3[%c0_57, %c0_58, %c11_59, %c0_60] : memref<1x1x108x128xbf16, #tpu.memory_space<vmem>>, vector<1x1x80x128xbf16>
    %40 = vector.shape_cast %39 : vector<1x1x80x128xbf16> to vector<80x128xbf16>
    %c0_61 = arith.constant 0 : index
    %c1664 = arith.constant 1664 : index
    %41 = vector.load %arg8[%c0_61, %c1664] : memref<80x3456xbf16, #tpu.memory_space<vmem>>, vector<80x128xbf16>
    tpu.vector_store %arg8[%c0_61, %c1664], %40 {strides = array<i32>} : memref<80x3456xbf16, #tpu.memory_space<vmem>>, vector<80x128xbf16>,
    %c0_62 = arith.constant 0 : index
    %c0_63 = arith.constant 0 : index
    %c12_64 = arith.constant 12 : index
    %c0_65 = arith.constant 0 : index
    %42 = vector.load %arg3[%c0_62, %c0_63, %c12_64, %c0_65] : memref<1x1x108x128xbf16, #tpu.memory_space<vmem>>, vector<1x1x80x128xbf16>
    %43 = vector.shape_cast %42 : vector<1x1x80x128xbf16> to vector<80x128xbf16>
    %c0_66 = arith.constant 0 : index
    %c1792 = arith.constant 1792 : index
    %44 = vector.load %arg8[%c0_66, %c1792] : memref<80x3456xbf16, #tpu.memory_space<vmem>>, vector<80x128xbf16>
    tpu.vector_store %arg8[%c0_66, %c1792], %43 {strides = array<i32>} : memref<80x3456xbf16, #tpu.memory_space<vmem>>, vector<80x128xbf16>,
    %c0_67 = arith.constant 0 : index
    %c0_68 = arith.constant 0 : index
    %c20_69 = arith.constant 20 : index
    %c0_70 = arith.constant 0 : index
    %45 = vector.load %arg3[%c0_67, %c0_68, %c20_69, %c0_70] : memref<1x1x108x128xbf16, #tpu.memory_space<vmem>>, vector<1x1x80x128xbf16>
    %46 = vector.shape_cast %45 : vector<1x1x80x128xbf16> to vector<80x128xbf16>
    %c0_71 = arith.constant 0 : index
    %c1920 = arith.constant 1920 : index
    %47 = vector.load %arg8[%c0_71, %c1920] : memref<80x3456xbf16, #tpu.memory_space<vmem>>, vector<80x128xbf16>
    tpu.vector_store %arg8[%c0_71, %c1920], %46 {strides = array<i32>} : memref<80x3456xbf16, #tpu.memory_space<vmem>>, vector<80x128xbf16>,
    %c0_72 = arith.constant 0 : index
    %c0_73 = arith.constant 0 : index
    %c21_74 = arith.constant 21 : index
    %c0_75 = arith.constant 0 : index
    %48 = vector.load %arg3[%c0_72, %c0_73, %c21_74, %c0_75] : memref<1x1x108x128xbf16, #tpu.memory_space<vmem>>, vector<1x1x80x128xbf16>
    %49 = vector.shape_cast %48 : vector<1x1x80x128xbf16> to vector<80x128xbf16>
    %c0_76 = arith.constant 0 : index
    %c2048 = arith.constant 2048 : index
    %50 = vector.load %arg8[%c0_76, %c2048] : memref<80x3456xbf16, #tpu.memory_space<vmem>>, vector<80x128xbf16>
    tpu.vector_store %arg8[%c0_76, %c2048], %49 {strides = array<i32>} : memref<80x3456xbf16, #tpu.memory_space<vmem>>, vector<80x128xbf16>,
    %c0_77 = arith.constant 0 : index
    %c0_78 = arith.constant 0 : index
    %c22_79 = arith.constant 22 : index
    %c0_80 = arith.constant 0 : index
    %51 = vector.load %arg3[%c0_77, %c0_78, %c22_79, %c0_80] : memref<1x1x108x128xbf16, #tpu.memory_space<vmem>>, vector<1x1x80x128xbf16>
    %52 = vector.shape_cast %51 : vector<1x1x80x128xbf16> to vector<80x128xbf16>
    %c0_81 = arith.constant 0 : index
    %c2176 = arith.constant 2176 : index
    %53 = vector.load %arg8[%c0_81, %c2176] : memref<80x3456xbf16, #tpu.memory_space<vmem>>, vector<80x128xbf16>
    tpu.vector_store %arg8[%c0_81, %c2176], %52 {strides = array<i32>} : memref<80x3456xbf16, #tpu.memory_space<vmem>>, vector<80x128xbf16>,
    %c0_82 = arith.constant 0 : index
    %c0_83 = arith.constant 0 : index
    %c0_84 = arith.constant 0 : index
    %c0_85 = arith.constant 0 : index
    %54 = vector.load %arg4[%c0_82, %c0_83, %c0_84, %c0_85] : memref<1x1x108x128xbf16, #tpu.memory_space<vmem>>, vector<1x1x80x128xbf16>
    %55 = vector.shape_cast %54 : vector<1x1x80x128xbf16> to vector<80x128xbf16>
    %c0_86 = arith.constant 0 : index
    %c2304 = arith.constant 2304 : index
    %56 = vector.load %arg8[%c0_86, %c2304] : memref<80x3456xbf16, #tpu.memory_space<vmem>>, vector<80x128xbf16>
    tpu.vector_store %arg8[%c0_86, %c2304], %55 {strides = array<i32>} : memref<80x3456xbf16, #tpu.memory_space<vmem>>, vector<80x128xbf16>,
    %c0_87 = arith.constant 0 : index
    %c0_88 = arith.constant 0 : index
    %c1_89 = arith.constant 1 : index
    %c0_90 = arith.constant 0 : index
    %57 = vector.load %arg4[%c0_87, %c0_88, %c1_89, %c0_90] : memref<1x1x108x128xbf16, #tpu.memory_space<vmem>>, vector<1x1x80x128xbf16>
    %58 = vector.shape_cast %57 : vector<1x1x80x128xbf16> to vector<80x128xbf16>
    %c0_91 = arith.constant 0 : index
    %c2432 = arith.constant 2432 : index
    %59 = vector.load %arg8[%c0_91, %c2432] : memref<80x3456xbf16, #tpu.memory_space<vmem>>, vector<80x128xbf16>
    tpu.vector_store %arg8[%c0_91, %c2432], %58 {strides = array<i32>} : memref<80x3456xbf16, #tpu.memory_space<vmem>>, vector<80x128xbf16>,
    %c0_92 = arith.constant 0 : index
    %c0_93 = arith.constant 0 : index
    %c2_94 = arith.constant 2 : index
    %c0_95 = arith.constant 0 : index
    %60 = vector.load %arg4[%c0_92, %c0_93, %c2_94, %c0_95] : memref<1x1x108x128xbf16, #tpu.memory_space<vmem>>, vector<1x1x80x128xbf16>
    %61 = vector.shape_cast %60 : vector<1x1x80x128xbf16> to vector<80x128xbf16>
    %c0_96 = arith.constant 0 : index
    %c2560 = arith.constant 2560 : index
    %62 = vector.load %arg8[%c0_96, %c2560] : memref<80x3456xbf16, #tpu.memory_space<vmem>>, vector<80x128xbf16>
    tpu.vector_store %arg8[%c0_96, %c2560], %61 {strides = array<i32>} : memref<80x3456xbf16, #tpu.memory_space<vmem>>, vector<80x128xbf16>,
    %c0_97 = arith.constant 0 : index
    %c0_98 = arith.constant 0 : index
    %c10_99 = arith.constant 10 : index
    %c0_100 = arith.constant 0 : index
    %63 = vector.load %arg4[%c0_97, %c0_98, %c10_99, %c0_100] : memref<1x1x108x128xbf16, #tpu.memory_space<vmem>>, vector<1x1x80x128xbf16>
    %64 = vector.shape_cast %63 : vector<1x1x80x128xbf16> to vector<80x128xbf16>
    %c0_101 = arith.constant 0 : index
    %c2688 = arith.constant 2688 : index
    %65 = vector.load %arg8[%c0_101, %c2688] : memref<80x3456xbf16, #tpu.memory_space<vmem>>, vector<80x128xbf16>
    tpu.vector_store %arg8[%c0_101, %c2688], %64 {strides = array<i32>} : memref<80x3456xbf16, #tpu.memory_space<vmem>>, vector<80x128xbf16>,
    %c0_102 = arith.constant 0 : index
    %c0_103 = arith.constant 0 : index
    %c11_104 = arith.constant 11 : index
    %c0_105 = arith.constant 0 : index
    %66 = vector.load %arg4[%c0_102, %c0_103, %c11_104, %c0_105] : memref<1x1x108x128xbf16, #tpu.memory_space<vmem>>, vector<1x1x80x128xbf16>
    %67 = vector.shape_cast %66 : vector<1x1x80x128xbf16> to vector<80x128xbf16>
    %c0_106 = arith.constant 0 : index
    %c2816 = arith.constant 2816 : index
    %68 = vector.load %arg8[%c0_106, %c2816] : memref<80x3456xbf16, #tpu.memory_space<vmem>>, vector<80x128xbf16>
    tpu.vector_store %arg8[%c0_106, %c2816], %67 {strides = array<i32>} : memref<80x3456xbf16, #tpu.memory_space<vmem>>, vector<80x128xbf16>,
    %c0_107 = arith.constant 0 : index
    %c0_108 = arith.constant 0 : index
    %c12_109 = arith.constant 12 : index
    %c0_110 = arith.constant 0 : index
    %69 = vector.load %arg4[%c0_107, %c0_108, %c12_109, %c0_110] : memref<1x1x108x128xbf16, #tpu.memory_space<vmem>>, vector<1x1x80x128xbf16>
    %70 = vector.shape_cast %69 : vector<1x1x80x128xbf16> to vector<80x128xbf16>
    %c0_111 = arith.constant 0 : index
    %c2944 = arith.constant 2944 : index
    %71 = vector.load %arg8[%c0_111, %c2944] : memref<80x3456xbf16, #tpu.memory_space<vmem>>, vector<80x128xbf16>
    tpu.vector_store %arg8[%c0_111, %c2944], %70 {strides = array<i32>} : memref<80x3456xbf16, #tpu.memory_space<vmem>>, vector<80x128xbf16>,
    %c0_112 = arith.constant 0 : index
    %c0_113 = arith.constant 0 : index
    %c20_114 = arith.constant 20 : index
    %c0_115 = arith.constant 0 : index
    %72 = vector.load %arg4[%c0_112, %c0_113, %c20_114, %c0_115] : memref<1x1x108x128xbf16, #tpu.memory_space<vmem>>, vector<1x1x80x128xbf16>
    %73 = vector.shape_cast %72 : vector<1x1x80x128xbf16> to vector<80x128xbf16>
    %c0_116 = arith.constant 0 : index
    %c3072 = arith.constant 3072 : index
    %74 = vector.load %arg8[%c0_116, %c3072] : memref<80x3456xbf16, #tpu.memory_space<vmem>>, vector<80x128xbf16>
    tpu.vector_store %arg8[%c0_116, %c3072], %73 {strides = array<i32>} : memref<80x3456xbf16, #tpu.memory_space<vmem>>, vector<80x128xbf16>,
    %c0_117 = arith.constant 0 : index
    %c0_118 = arith.constant 0 : index
    %c21_119 = arith.constant 21 : index
    %c0_120 = arith.constant 0 : index
    %75 = vector.load %arg4[%c0_117, %c0_118, %c21_119, %c0_120] : memref<1x1x108x128xbf16, #tpu.memory_space<vmem>>, vector<1x1x80x128xbf16>
    %76 = vector.shape_cast %75 : vector<1x1x80x128xbf16> to vector<80x128xbf16>
    %c0_121 = arith.constant 0 : index
    %c3200 = arith.constant 3200 : index
    %77 = vector.load %arg8[%c0_121, %c3200] : memref<80x3456xbf16, #tpu.memory_space<vmem>>, vector<80x128xbf16>
    tpu.vector_store %arg8[%c0_121, %c3200], %76 {strides = array<i32>} : memref<80x3456xbf16, #tpu.memory_space<vmem>>, vector<80x128xbf16>,
    %c0_122 = arith.constant 0 : index
    %c0_123 = arith.constant 0 : index
    %c22_124 = arith.constant 22 : index
    %c0_125 = arith.constant 0 : index
    %78 = vector.load %arg4[%c0_122, %c0_123, %c22_124, %c0_125] : memref<1x1x108x128xbf16, #tpu.memory_space<vmem>>, vector<1x1x80x128xbf16>
    %79 = vector.shape_cast %78 : vector<1x1x80x128xbf16> to vector<80x128xbf16>
    %c0_126 = arith.constant 0 : index
    %c3328 = arith.constant 3328 : index
    %80 = vector.load %arg8[%c0_126, %c3328] : memref<80x3456xbf16, #tpu.memory_space<vmem>>, vector<80x128xbf16>
    tpu.vector_store %arg8[%c0_126, %c3328], %79 {strides = array<i32>} : memref<80x3456xbf16, #tpu.memory_space<vmem>>, vector<80x128xbf16>,
    %c0_127 = arith.constant 0 : index
    %c0_128 = arith.constant 0 : index
    %81 = vector.load %arg8[%c0_127, %c0_128] : memref<80x3456xbf16, #tpu.memory_space<vmem>>, vector<80x3456xbf16>
    %c0_129 = arith.constant 0 : index
    %c0_130 = arith.constant 0 : index
    %82 = vector.load %arg5[%c0_129, %c0_130] : memref<3456x128xbf16, #tpu.memory_space<vmem>>, vector<3456x128xbf16>
    %cst = arith.constant dense<0.000000e+00> : vector<80x128xf32>
    %83 = tpu.matmul %81, %82, %cst {dimension_numbers = #tpu.dot_dimension_numbers<[1], [0], [0], [1], [0, 0, 1, 1], [], []>} : vector<80x3456xbf16>, vector<3456x128xbf16>, vector<80x128xf32> -> vector<80x128xf32>
    %c0_131 = arith.constant 0 : index
    %c0_132 = arith.constant 0 : index
    %c0_133 = arith.constant 0 : index
    %c0_134 = arith.constant 0 : index
    %84 = vector.load %arg6[%c0_131, %c0_132, %c0_133, %c0_134] : memref<1x1x80x128xf32, #tpu.memory_space<vmem>>, vector<1x1x80x128xf32>
    %85 = vector.shape_cast %84 : vector<1x1x80x128xf32> to vector<80x128xf32>
    %86 = vector.shape_cast %83 : vector<80x128xf32> to vector<1x1x80x128xf32>
    tpu.vector_store %arg6[%c0_131, %c0_132, %c0_133, %c0_134], %86 {strides = array<i32>} : memref<1x1x80x128xf32, #tpu.memory_space<vmem>>, vector<1x1x80x128xf32>,
    %87 = tpu.iota {dimensions = array<i32: 0>} : vector<80x1xi32>
    %c10_i32 = arith.constant 10 : i32
    %c0_i32 = arith.constant 0 : i32
    %88 = arith.cmpi eq, %c10_i32, %c0_i32 : i32
    %c1_i32 = arith.constant 1 : i32
    %89 = arith.select %88, %c1_i32, %c10_i32 : i32
    %90 = vector.broadcast %89 : i32 to vector<80x1xi32>
    %91 = arith.remsi %87, %90 : vector<80x1xi32>
    %c0_i32_135 = arith.constant 0 : i32
    %92 = vector.broadcast %c0_i32_135 : i32 to vector<80x1xi32>
    %93 = arith.cmpi ne, %91, %92 : vector<80x1xi32>
    %c0_i32_136 = arith.constant 0 : i32
    %94 = vector.broadcast %c0_i32_136 : i32 to vector<80x1xi32>
    %95 = arith.cmpi slt, %91, %94 : vector<80x1xi32>
    %c0_i32_137 = arith.constant 0 : i32
    %96 = arith.cmpi slt, %89, %c0_i32_137 : i32
    %97 = vector.broadcast %96 : i1 to vector<80x1xi1>
    %98 = vector.broadcast %97 : vector<80x1xi1> to vector<80x1xi1>
    %99 = arith.xori %95, %98 : vector<80x1xi1>
    %100 = arith.andi %99, %93 : vector<80x1xi1>
    %101 = vector.broadcast %89 : i32 to vector<80x1xi32>
    %102 = arith.addi %91, %101 : vector<80x1xi32>
    %103 = arith.select %100, %102, %91 : vector<80x1xi1>, vector<80x1xi32>
    %c8_i32 = arith.constant 8 : i32
    %104 = vector.broadcast %c8_i32 : i32 to vector<80x1xi32>
    %105 = arith.cmpi slt, %103, %104 : vector<80x1xi32>
    %106 = arith.extui %105 : vector<80x1xi1> to vector<80x1xi32>
    %107 = arith.sitofp %106 : vector<80x1xi32> to vector<80x1xf32>
    %108 = vector.broadcast %107 : vector<80x1xf32> to vector<80x128xf32>
    %109 = arith.mulf %83, %108 : vector<80x128xf32>
    %cst_138 = arith.constant dense<0.000000e+00> : vector<128xf32>
    %110 = vector.multi_reduction <add>, %109, %cst_138 [0] : vector<80x128xf32> to vector<128xf32>
    %111 = vector.shape_cast %110 : vector<128xf32> to vector<1x128xf32>
    %112 = arith.mulf %109, %109 : vector<80x128xf32>
    %cst_139 = arith.constant dense<0.000000e+00> : vector<128xf32>
    %113 = vector.multi_reduction <add>, %112, %cst_139 [0] : vector<80x128xf32> to vector<128xf32>
    %114 = vector.shape_cast %113 : vector<128xf32> to vector<1x128xf32>
    %115 = tpu.concatenate %111, %114 in 0 : vector<1x128xf32>, vector<1x128xf32> -> vector<2x128xf32>
    %c0_140 = arith.constant 0 : index
    %c0_141 = arith.constant 0 : index
    %c0_142 = arith.constant 0 : index
    %c0_143 = arith.constant 0 : index
    %116 = vector.load %arg7[%c0_140, %c0_141, %c0_142, %c0_143] : memref<1x1x2x128xf32, #tpu.memory_space<vmem>>, vector<1x1x2x128xf32>
    %117 = vector.shape_cast %116 : vector<1x1x2x128xf32> to vector<2x128xf32>
    %118 = vector.shape_cast %115 : vector<2x128xf32> to vector<1x1x2x128xf32>
    tpu.vector_store %arg7[%c0_140, %c0_141, %c0_142, %c0_143], %118 {strides = array<i32>} : memref<1x1x2x128xf32, #tpu.memory_space<vmem>>, vector<1x1x2x128xf32>,
    return
  }
  func.func @transform_0(%arg0: i32, %arg1: i32) -> (i32, i32, i32, i32) {
    %c0_i32 = arith.constant 0 : i32
    %0 = arith.addi %arg1, %c0_i32 : i32
    %c0_i32_0 = arith.constant 0 : i32
    %c0_i32_1 = arith.constant 0 : i32
    %c0_i32_2 = arith.constant 0 : i32
    return %arg0, %0, %c0_i32_0, %c0_i32_1 : i32, i32, i32, i32
  }
  func.func @transform_1(%arg0: i32, %arg1: i32) -> (i32, i32, i32, i32) {
    %c1_i32 = arith.constant 1 : i32
    %0 = arith.addi %arg1, %c1_i32 : i32
    %c0_i32 = arith.constant 0 : i32
    %c0_i32_0 = arith.constant 0 : i32
    %c0_i32_1 = arith.constant 0 : i32
    return %arg0, %0, %c0_i32, %c0_i32_0 : i32, i32, i32, i32
  }
  func.func @transform_2(%arg0: i32, %arg1: i32) -> (i32, i32, i32, i32) {
    %c2_i32 = arith.constant 2 : i32
    %0 = arith.addi %arg1, %c2_i32 : i32
    %c0_i32 = arith.constant 0 : i32
    %c0_i32_0 = arith.constant 0 : i32
    %c0_i32_1 = arith.constant 0 : i32
    return %arg0, %0, %c0_i32, %c0_i32_0 : i32, i32, i32, i32
  }
  func.func @transform_3(%arg0: i32, %arg1: i32) -> (i32, i32) {
    %c0_i32 = arith.constant 0 : i32
    %c0_i32_0 = arith.constant 0 : i32
    %c0_i32_1 = arith.constant 0 : i32
    return %c0_i32, %c0_i32_0 : i32, i32
  }
  func.func @transform_4(%arg0: i32, %arg1: i32) -> (i32, i32, i32, i32) {
    %c0_i32 = arith.constant 0 : i32
    %c0_i32_0 = arith.constant 0 : i32
    %c0_i32_1 = arith.constant 0 : i32
    return %arg0, %arg1, %c0_i32, %c0_i32_0 : i32, i32, i32, i32
  }
  func.func @transform_5(%arg0: i32, %arg1: i32) -> (i32, i32, i32, i32) {
    %c0_i32 = arith.constant 0 : i32
    %c0_i32_0 = arith.constant 0 : i32
    %c0_i32_1 = arith.constant 0 : i32
    return %arg0, %arg1, %c0_i32, %c0_i32_0 : i32, i32, i32, i32
  }
}

module attributes {stable_mosaic.version = 11 : i64} {
  func.func @_bn_relu_kernel(%arg0: i32, %arg1: memref<1280x128xf32, #tpu.memory_space<vmem>>, %arg2: memref<2x128xf32, #tpu.memory_space<vmem>>, %arg3: memref<1280x128xf32, #tpu.memory_space<vmem>>) attributes {dimension_semantics = [#tpu.dimension_semantics<parallel>], iteration_bounds = array<i64: 1>, scalar_prefetch = 0 : i64, scratch_operands = 0 : i64, tpu.core_type = #tpu.core_type<tc>, window_params = [{transform_indices = @transform_0, window_bounds = array<i64: 1280, 128>}, {pipeline_mode = #tpu.pipeline_mode<synchronous>, transform_indices = @transform_1, window_bounds = array<i64: 2, 128>}, {transform_indices = @transform_2, window_bounds = array<i64: 1280, 128>}]} {
    %c0 = arith.constant 0 : index
    %c0_0 = arith.constant 0 : index
    %0 = vector.load %arg2[%c0, %c0_0] : memref<2x128xf32, #tpu.memory_space<vmem>>, vector<1x128xf32>
    %c1 = arith.constant 1 : index
    %c0_1 = arith.constant 0 : index
    %1 = vector.load %arg2[%c1, %c0_1] : memref<2x128xf32, #tpu.memory_space<vmem>>, vector<1x128xf32>
    %c0_2 = arith.constant 0 : index
    %c0_3 = arith.constant 0 : index
    %2 = vector.load %arg1[%c0_2, %c0_3] : memref<1280x128xf32, #tpu.memory_space<vmem>>, vector<1280x128xf32>
    %3 = vector.broadcast %0 : vector<1x128xf32> to vector<1280x128xf32>
    %4 = arith.mulf %2, %3 : vector<1280x128xf32>
    %5 = vector.broadcast %1 : vector<1x128xf32> to vector<1280x128xf32>
    %6 = arith.addf %4, %5 : vector<1280x128xf32>
    %cst = arith.constant 0.000000e+00 : f32
    %7 = vector.broadcast %cst : f32 to vector<1280x128xf32>
    %8 = arith.maximumf %6, %7 : vector<1280x128xf32>
    %c0_4 = arith.constant 0 : index
    %c0_5 = arith.constant 0 : index
    %9 = vector.load %arg3[%c0_4, %c0_5] : memref<1280x128xf32, #tpu.memory_space<vmem>>, vector<1280x128xf32>
    tpu.vector_store %arg3[%c0_4, %c0_5], %8 {strides = array<i32>} : memref<1280x128xf32, #tpu.memory_space<vmem>>, vector<1280x128xf32>,
    return
  }
  func.func @transform_0(%arg0: i32) -> (i32, i32) {
    %c0_i32 = arith.constant 0 : i32
    %c0_i32_0 = arith.constant 0 : i32
    return %arg0, %c0_i32 : i32, i32
  }
  func.func @transform_1(%arg0: i32) -> (i32, i32) {
    %c0_i32 = arith.constant 0 : i32
    %c0_i32_0 = arith.constant 0 : i32
    %c0_i32_1 = arith.constant 0 : i32
    return %c0_i32, %c0_i32_0 : i32, i32
  }
  func.func @transform_2(%arg0: i32) -> (i32, i32) {
    %c0_i32 = arith.constant 0 : i32
    %c0_i32_0 = arith.constant 0 : i32
    return %arg0, %c0_i32 : i32, i32
  }
}

</mosaic_0001>

<llo_original>
// kernel: up_forward.5
$region0: #{up_forward.5}
  #allocation0 [shape = 'u32[]', space=smem, size = 0x4, offset = 0x4, fixed_abs, tag = 'smem constant byte address 0x4 - core index']
  #allocation1 [shape = 'u32[144,128]{1,0:T(1,128)}', space=vmem, size = 0x12000, scoped, tag = 'internal scratch']
  %s0 = inlined_call_operand.vmem [shape: f32[2,8,80,128], index: 0, kind: input, shape index: {}]
  %s1 = inlined_call_operand.vmem [shape: f32[2,128], index: 1, kind: input, shape index: {}]
  %s2 = inlined_call_operand.vmem [shape: bf16[2,10,108,128], index: 2, kind: output, shape index: {}]
  %s3 = sld [smem:[#allocation0]]
  $region49: #{up_forward.5} parent=0
    _
  %s5 = ssub.s32 1, %s3
  %s6 = scalar_select 0, %s5, %s3
  loop: start=0, step=1, limit=22
  $region2: #{up_forward.5} parent=0 // loop_pre_header
    _
  $region3: #{up_forward.5} parent=0 // loop_header
    %s8 = sphi 0, %s12
    %p9 = scmp.ge.s32.totalorder %s8, 22
    %s15 = sphi 0, %s27
    %s16 = sphi 0, %s23
    %s17 = sphi 0, %s15
    %s18 = sphi 0, %s16
    %s19 = sphi 0, %s17
    %s20 = sphi 0, %s18
    %s42 = sphi 0, %s44
    %s45 = sphi 0, %s42
    %s46 = sphi 0, %s45
    %s62 = sphi 0, %s46
    %s66 = sphi 0, %s66
    %s68 = sphi 0, %s66
    %s69 = sphi 0, %s68
    %s83 = sphi 0, %s69
    %s91 = sphi 0, %s93
    %s94 = sphi 0, %s91
    %s95 = sphi 0, %s94
    %s111 = sphi 0, %s95
  $region4: #{up_forward.5} parent=0 // loop_header_branch
    %11 = sbr.rel (%p9) target = $region8
  $region5: #{up_forward.5} parent=0 // loop_body
    %s13 = ssub.s32 %s8, 1
    %s14 = ssub.s32 %s8, 2
    %s21 = sadd.s32 1, %s16
    %p22 = scmp.ge.s32.totalorder %s21, 10
    %s23 = scalar_select %p22, 0, %s21
    %s24 = sadd.s32 1, %s15
    %s25 = scalar_select %p22, %s24, %s15
    %p26 = scmp.ge.s32.totalorder %s25, 2
    %s27 = scalar_select %p26, 0, %s25
    %s28 = ssub.s32 %s16, 1
    %p29 = scmp.gt.s32.totalorder %s28, 0
    %s30 = scalar_select %p29, %s28, 0
    %p31 = scmp.lt.s32.totalorder %s30, 7
    %s32 = scalar_select %p31, %s30, 7
    %s33 = ssub.s32 %s23, 1
    %p34 = scmp.gt.s32.totalorder %s33, 0
    %s35 = scalar_select %p34, %s33, 0
    %p36 = scmp.lt.s32.totalorder %s35, 7
    %s37 = scalar_select %p36, %s35, 7
    %s38 = ssub.s32 %s15, %s27
    %s39 = ssub.s32 %s32, %s37
    %s40 = sor.u32 %s38, %s39
    %p41 = scmp.eq.s32.totalorder %s40, 0
    %s43 = sadd.s32 %s42, 1
    %s44 = scalar_select %p41, %s42, %s43
    %p47 = pneg %p41
    %p48 = scmp.eq.s32.totalorder %s8, 19
    %p49 = por %p47, %p48
    %p50 = scmp.ne.s32.totalorder %s42, %s45
    %p51 = scmp.eq.s32.totalorder %s8, 0
    %p52 = por %p50, %p51
    %p53 = scmp.ne.s32.totalorder %s42, %s45
    %p54 = scmp.eq.s32.totalorder %s13, 19
    %p55 = por %p53, %p54
    %p56 = scmp.ne.s32.totalorder %s45, %s46
    %p57 = scmp.eq.s32.totalorder %s13, 0
    %p58 = por %p56, %p57
    %p59 = scmp.ne.s32.totalorder %s45, %s46
    %p60 = scmp.eq.s32.totalorder %s14, 19
    %p61 = por %p59, %p60
    %p63 = scmp.ne.s32.totalorder %s46, %s62
    %p64 = scmp.eq.s32.totalorder %s14, 0
    %p65 = por %p63, %p64
    %s67 = sadd.s32 %s66, 1
    %p70 = scmp.eq.s32.totalorder %s8, 19
    %p71 = scmp.ne.s32.totalorder %s66, %s68
    %p72 = scmp.eq.s32.totalorder %s8, 0
    %p73 = por %p71, %p72
    %p74 = scmp.ne.s32.totalorder %s66, %s68
    %p75 = scmp.eq.s32.totalorder %s13, 19
    %p76 = por %p74, %p75
    %p77 = scmp.ne.s32.totalorder %s68, %s69
    %p78 = scmp.eq.s32.totalorder %s13, 0
    %p79 = por %p77, %p78
    %p80 = scmp.ne.s32.totalorder %s68, %s69
    %p81 = scmp.eq.s32.totalorder %s14, 19
    %p82 = por %p80, %p81
    %p84 = scmp.ne.s32.totalorder %s69, %s83
    %p85 = scmp.eq.s32.totalorder %s14, 0
    %p86 = por %p84, %p85
    %s87 = ssub.s32 %s15, %s27
    %s88 = ssub.s32 %s16, %s23
    %s89 = sor.u32 %s87, %s88
    %p90 = scmp.eq.s32.totalorder %s89, 0
    %s92 = sadd.s32 %s91, 1
    %s93 = scalar_select %p90, %s91, %s92
    %p96 = pneg %p90
    %p97 = scmp.eq.s32.totalorder %s8, 19
    %p98 = por %p96, %p97
    %p99 = scmp.ne.s32.totalorder %s91, %s94
    %p100 = scmp.eq.s32.totalorder %s8, 0
    %p101 = por %p99, %p100
    %p102 = scmp.ne.s32.totalorder %s91, %s94
    %p103 = scmp.eq.s32.totalorder %s13, 19
    %p104 = por %p102, %p103
    %p105 = scmp.ne.s32.totalorder %s94, %s95
    %p106 = scmp.eq.s32.totalorder %s13, 0
    %p107 = por %p105, %p106
    %p108 = scmp.ne.s32.totalorder %s94, %s95
    %p109 = scmp.eq.s32.totalorder %s14, 19
    %p110 = por %p108, %p109
    %p112 = scmp.ne.s32.totalorder %s95, %s111
    %p113 = scmp.eq.s32.totalorder %s14, 0
    %p114 = por %p112, %p113
    %p115 = scmp.le.s32.totalorder 1, %s8
    %p116 = scmp.lt.s32.totalorder %s8, 21
    %p117 = pnand %p115, %p116
    %p118 = pneg %p117
    // Predicated region
    $region9: #{up_forward.5} parent=5 // pred_check
      _
    $region10: #{up_forward.5} parent=5 // pred_check_branch
      %120 = sbr.rel (%p117) target = $region12
    $region11: #{up_forward.5} parent=5 // pred_region
      %s121 = ssub.s32 %s8, 1
      // Predicated region
      $region13: #{up_forward.5} parent=11 // pred_check
        %p122 = pneg %p79
      $region14: #{up_forward.5} parent=11 // pred_check_branch
        %124 = sbr.rel (%p122) target = $region16
      $region15: #{up_forward.5} parent=11 // pred_region
        _
      $region16: #{up_forward.5} parent=11 // pred_fallthru
        _
    $region12: #{up_forward.5} parent=5 // pred_fallthru
      _
    %p125 = scmp.lt.s32.totalorder %s8, 20
    // Predicated region
    $region17: #{up_forward.5} parent=5 // pred_check
      %p126 = pneg %p125
    $region18: #{up_forward.5} parent=5 // pred_check_branch
      %128 = sbr.rel (%p126) target = $region20
    $region19: #{up_forward.5} parent=5 // pred_region
      // Predicated region
      $region21: #{up_forward.5} parent=19 // pred_check
        %p129 = pneg %p52
      $region22: #{up_forward.5} parent=19 // pred_check_branch
        %131 = sbr.rel (%p129) target = $region24
      $region23: #{up_forward.5} parent=19 // pred_region
        %s132 = ssub.s32 %s16, 1
        %p133 = scmp.gt.s32.totalorder %s132, 0
        %s134 = scalar_select %p133, %s132, 0
        %p135 = scmp.lt.s32.totalorder %s134, 7
        %s136 = scalar_select %p135, %s134, 7
        %p137 = scmp.lt.s32.totalorder %s15, 1
        %s138 = scalar_select %p137, %s15, 1
        %p139 = scmp.lt.s32.totalorder %s136, 7
        %s140 = scalar_select %p139, %s136, 7
        %s141 = smul.addr %s140, 10
        %s142 = smul.addr %s138, 80
        %s143 = sadd.s32 %s141, %s142
        %s144 = smul.addr %s143, 8
        %s145 = scalar_lea.vmem %s0, %s144
        %s146 = ssub.s32 %s16, 1
        %p147 = scmp.gt.s32.totalorder %s146, 0
        %s148 = scalar_select %p147, %s146, 0
        %p149 = scmp.lt.s32.totalorder %s148, 7
        %s150 = scalar_select %p149, %s148, 7
      $region24: #{up_forward.5} parent=19 // pred_fallthru
        _
    $region20: #{up_forward.5} parent=5 // pred_fallthru
      _
    %p151 = scmp.le.s32.totalorder 1, %s8
    %p152 = scmp.lt.s32.totalorder %s8, 21
    %p153 = pnand %p151, %p152
    %p154 = pneg %p153
    // Predicated region
    $region25: #{up_forward.5} parent=5 // pred_check
      _
    $region26: #{up_forward.5} parent=5 // pred_check_branch
      %156 = sbr.rel (%p153) target = $region28
    $region27: #{up_forward.5} parent=5 // pred_region
      %s157 = ssub.s32 %s8, 1
      %s158 = ssub.s32 %s18, 1
      %p159 = scmp.gt.s32.totalorder %s158, 0
      %s160 = scalar_select %p159, %s158, 0
      %p161 = scmp.lt.s32.totalorder %s160, 7
      %s162 = scalar_select %p161, %s160, 7
      %p163 = scmp.lt.s32.totalorder %s17, 1
      %s164 = scalar_select %p163, %s17, 1
      %p165 = scmp.lt.s32.totalorder %s162, 7
      %s166 = scalar_select %p165, %s162, 7
      %s167 = smul.addr %s166, 10
      %s168 = smul.addr %s164, 80
      %s169 = sadd.s32 %s167, %s168
      %s170 = smul.addr %s169, 8
      %s171 = scalar_lea.vmem %s0, %s170
      %p172 = pneg %p58
      %p173 = pneg %p55
      %p174 = pneg %p79
      %p175 = pneg %p76
      %p176 = pneg %p107
      %p177 = pneg %p104
      %p178 = scmp.lt.s32.totalorder %s17, 1
      %s179 = scalar_select %p178, %s17, 1
      %p180 = scmp.lt.s32.totalorder %s18, 9
      %s181 = scalar_select %p180, %s18, 9
      %s182 = smul.addr %s181, 14
      %s183 = smul.addr %s179, 140
      %s184 = sadd.s32 %s182, %s183
      %s185 = smul.addr %s184, 4
      %s186 = scalar_lea.vmem %s2, %s185
      %s187 = ssub.s32 %s18, 1
      %p188 = scmp.gt.s32.totalorder %s187, 0
      %s189 = scalar_select %p188, %s187, 0
      %p190 = scmp.lt.s32.totalorder %s189, 7
      %s191 = scalar_select %p190, %s189, 7
      %p192 = scmp.lt.s32.totalorder %s17, 1
      %s193 = scalar_select %p192, %s17, 1
      %p194 = scmp.lt.s32.totalorder %s191, 7
      %s195 = scalar_select %p194, %s191, 7
      %s196 = smul.addr %s195, 10
      %s197 = smul.addr %s193, 80
      %s198 = sadd.s32 %s196, %s197
      %s199 = smul.addr %s198, 8
      %s200 = scalar_lea.vmem %s0, %s199
      %s201 = ssub.s32 %s18, 1
      %p202 = scmp.gt.s32.totalorder %s201, 0
      %s203 = scalar_select %p202, %s201, 0
      %p204 = scmp.lt.s32.totalorder %s203, 7
      %s205 = scalar_select %p204, %s203, 7
      %p206 = scmp.lt.s32.totalorder %s17, 1
      %s207 = scalar_select %p206, %s17, 1
      %p208 = scmp.lt.s32.totalorder %s18, 9
      %s209 = scalar_select %p208, %s18, 9
      %s210 = smul.addr %s209, 14
      %s211 = smul.addr %s207, 140
      %s212 = sadd.s32 %s210, %s211
      %s213 = smul.addr %s212, 4
      %s214 = scalar_lea.vmem %s2, %s213
      %p216 = scmp.eq.s32.totalorder %s18, 0
      %p217 = scmp.eq.s32.totalorder %s18, 9
      %p218 = por %p216, %p217
      // Predicated region
      $region29: #{up_forward.5} parent=27 // pred_check
        %p219 = pneg %p218
      $region30: #{up_forward.5} parent=27 // pred_check_branch
        %221 = sbr.rel (%p219) target = $region32
      $region31: #{up_forward.5} parent=27 // pred_region
        %222 = vst [vmem:[%s214] sm:$0xf] 0
        %223 = vst [vmem:[%s214 + $0x4] sm:$0xf] 0
        %224 = vst [vmem:[%s214 + $0x8] sm:$0xf] 0
        %225 = vst [vmem:[%s214 + $0xc] sm:$0xf] 0
        %226 = vst [vmem:[%s214 + $0x10] sm:$0xf] 0
        %227 = vst [vmem:[%s214 + $0x14] sm:$0xf] 0
        %228 = vst [vmem:[%s214 + $0x18] sm:$0xf] 0
        %229 = vst [vmem:[%s214 + $0x1c] sm:$0xf] 0
        %230 = vst [vmem:[%s214 + $0x20] sm:$0xf] 0
        %231 = vst [vmem:[%s214 + $0x24] sm:$0xf] 0
        %232 = vst [vmem:[%s214 + $0x28] sm:$0xf] 0
        %233 = vst [vmem:[%s214 + $0x2c] sm:$0xf] 0
        %234 = vst [vmem:[%s214 + $0x30] sm:$0xf] 0
        %235 = vst [vmem:[%s214 + $0x34] sm:$0x3] 0
      $region32: #{up_forward.5} parent=27 // pred_fallthru
        _
      %p236 = scmp.gt.s32.totalorder %s18, 0
      %p237 = scmp.lt.s32.totalorder %s18, 9
      %p238 = pnand %p236, %p237
      %p239 = pneg %p238
      // Predicated region
      $region33: #{up_forward.5} parent=27 // pred_check
        _
      $region34: #{up_forward.5} parent=27 // pred_check_branch
        %241 = sbr.rel (%p238) target = $region36
      $region35: #{up_forward.5} parent=27 // pred_region
        %v242 = vld [vmem:[%s1] sm:$0x1]
        %v243 = vld [vmem:[%s1 + $0x1] sm:$0x1]
        %v244 = vlaneseq
        %v245 = vshrl.u32 %v244, 7
        %v246 = vadd.s32 %v245, 8
        %v247 = vadd.s32 %v245, 16
        %v248 = vadd.s32 %v245, 24
        %v249 = vadd.s32 %v245, 32
        %v250 = vadd.s32 %v245, 40
        %v251 = vadd.s32 %v245, 48
        %v252 = vadd.s32 %v245, 56
        %v253 = vadd.s32 %v245, 64
        %v254 = vadd.s32 %v245, 72
        %vm255 = vcmp.lt.s32.totalorder %v245, 0
        %v256 = vsub.s32 0, %v245
        %v257 = vsel %vm255, %v256, %v245
        %v258 = vmul.u32.u64.compose %v257, 3435973837
        %v259 = vextract.low.u32 %v258
        %v260 = vextract.high.u32 %v258
        %v261 = vshrl.u32 %v260, 3
        %v262 = vmul.u32 %v261, 10
        %v263 = vsub.s32 %v257, %v262
        %v264 = vsub.s32 0, %v263
        %v265 = vsel %vm255, %v264, %v263
        %vm266 = vcmp.lt.s32.totalorder %v246, 0
        %v267 = vsub.s32 0, %v246
        %v268 = vsel %vm266, %v267, %v246
        %v269 = vmul.u32.u64.compose %v268, 3435973837
        %v270 = vextract.low.u32 %v269
        %v271 = vextract.high.u32 %v269
        %v272 = vshrl.u32 %v271, 3
        %v273 = vmul.u32 %v272, 10
        %v274 = vsub.s32 %v268, %v273
        %v275 = vsub.s32 0, %v274
        %v276 = vsel %vm266, %v275, %v274
        %vm277 = vcmp.lt.s32.totalorder %v247, 0
        %v278 = vsub.s32 0, %v247
        %v279 = vsel %vm277, %v278, %v247
        %v280 = vmul.u32.u64.compose %v279, 3435973837
        %v281 = vextract.low.u32 %v280
        %v282 = vextract.high.u32 %v280
        %v283 = vshrl.u32 %v282, 3
        %v284 = vmul.u32 %v283, 10
        %v285 = vsub.s32 %v279, %v284
        %v286 = vsub.s32 0, %v285
        %v287 = vsel %vm277, %v286, %v285
        %vm288 = vcmp.lt.s32.totalorder %v248, 0
        %v289 = vsub.s32 0, %v248
        %v290 = vsel %vm288, %v289, %v248
        %v291 = vmul.u32.u64.compose %v290, 3435973837
        %v292 = vextract.low.u32 %v291
        %v293 = vextract.high.u32 %v291
        %v294 = vshrl.u32 %v293, 3
        %v295 = vmul.u32 %v294, 10
        %v296 = vsub.s32 %v290, %v295
        %v297 = vsub.s32 0, %v296
        %v298 = vsel %vm288, %v297, %v296
        %vm299 = vcmp.lt.s32.totalorder %v249, 0
        %v300 = vsub.s32 0, %v249
        %v301 = vsel %vm299, %v300, %v249
        %v302 = vmul.u32.u64.compose %v301, 3435973837
        %v303 = vextract.low.u32 %v302
        %v304 = vextract.high.u32 %v302
        %v305 = vshrl.u32 %v304, 3
        %v306 = vmul.u32 %v305, 10
        %v307 = vsub.s32 %v301, %v306
        %v308 = vsub.s32 0, %v307
        %v309 = vsel %vm299, %v308, %v307
        %vm310 = vcmp.lt.s32.totalorder %v250, 0
        %v311 = vsub.s32 0, %v250
        %v312 = vsel %vm310, %v311, %v250
        %v313 = vmul.u32.u64.compose %v312, 3435973837
        %v314 = vextract.low.u32 %v313
        %v315 = vextract.high.u32 %v313
        %v316 = vshrl.u32 %v315, 3
        %v317 = vmul.u32 %v316, 10
        %v318 = vsub.s32 %v312, %v317
        %v319 = vsub.s32 0, %v318
        %v320 = vsel %vm310, %v319, %v318
        %vm321 = vcmp.lt.s32.totalorder %v251, 0
        %v322 = vsub.s32 0, %v251
        %v323 = vsel %vm321, %v322, %v251
        %v324 = vmul.u32.u64.compose %v323, 3435973837
        %v325 = vextract.low.u32 %v324
        %v326 = vextract.high.u32 %v324
        %v327 = vshrl.u32 %v326, 3
        %v328 = vmul.u32 %v327, 10
        %v329 = vsub.s32 %v323, %v328
        %v330 = vsub.s32 0, %v329
        %v331 = vsel %vm321, %v330, %v329
        %vm332 = vcmp.lt.s32.totalorder %v252, 0
        %v333 = vsub.s32 0, %v252
        %v334 = vsel %vm332, %v333, %v252
        %v335 = vmul.u32.u64.compose %v334, 3435973837
        %v336 = vextract.low.u32 %v335
        %v337 = vextract.high.u32 %v335
        %v338 = vshrl.u32 %v337, 3
        %v339 = vmul.u32 %v338, 10
        %v340 = vsub.s32 %v334, %v339
        %v341 = vsub.s32 0, %v340
        %v342 = vsel %vm332, %v341, %v340
        %vm343 = vcmp.lt.s32.totalorder %v253, 0
        %v344 = vsub.s32 0, %v253
        %v345 = vsel %vm343, %v344, %v253
        %v346 = vmul.u32.u64.compose %v345, 3435973837
        %v347 = vextract.low.u32 %v346
        %v348 = vextract.high.u32 %v346
        %v349 = vshrl.u32 %v348, 3
        %v350 = vmul.u32 %v349, 10
        %v351 = vsub.s32 %v345, %v350
        %v352 = vsub.s32 0, %v351
        %v353 = vsel %vm343, %v352, %v351
        %vm354 = vcmp.lt.s32.totalorder %v254, 0
        %v355 = vsub.s32 0, %v254
        %v356 = vsel %vm354, %v355, %v254
        %v357 = vmul.u32.u64.compose %v356, 3435973837
        %v358 = vextract.low.u32 %v357
        %v359 = vextract.high.u32 %v357
        %v360 = vshrl.u32 %v359, 3
        %v361 = vmul.u32 %v360, 10
        %v362 = vsub.s32 %v356, %v361
        %v363 = vsub.s32 0, %v362
        %v364 = vsel %vm354, %v363, %v362
        %vm365 = vcmp.ne.s32.totalorder %v265, 0
        %vm366 = vcmp.ne.s32.totalorder %v276, 0
        %vm367 = vcmp.ne.s32.totalorder %v287, 0
        %vm368 = vcmp.ne.s32.totalorder %v298, 0
        %vm369 = vcmp.ne.s32.totalorder %v309, 0
        %vm370 = vcmp.ne.s32.totalorder %v320, 0
        %vm371 = vcmp.ne.s32.totalorder %v331, 0
        %vm372 = vcmp.ne.s32.totalorder %v342, 0
        %vm373 = vcmp.ne.s32.totalorder %v353, 0
        %vm374 = vcmp.ne.s32.totalorder %v364, 0
        %vm375 = vcmp.lt.s32.totalorder %v265, 0
        %vm376 = vcmp.lt.s32.totalorder %v276, 0
        %vm377 = vcmp.lt.s32.totalorder %v287, 0
        %vm378 = vcmp.lt.s32.totalorder %v298, 0
        %vm379 = vcmp.lt.s32.totalorder %v309, 0
        %vm380 = vcmp.lt.s32.totalorder %v320, 0
        %vm381 = vcmp.lt.s32.totalorder %v331, 0
        %vm382 = vcmp.lt.s32.totalorder %v342, 0
        %vm383 = vcmp.lt.s32.totalorder %v353, 0
        %vm384 = vcmp.lt.s32.totalorder %v364, 0
        %vm385 = vmand %vm375, %vm365
        %vm386 = vmand %vm376, %vm366
        %vm387 = vmand %vm377, %vm367
        %vm388 = vmand %vm378, %vm368
        %vm389 = vmand %vm379, %vm369
        %vm390 = vmand %vm380, %vm370
        %vm391 = vmand %vm381, %vm371
        %vm392 = vmand %vm382, %vm372
        %vm393 = vmand %vm383, %vm373
        %vm394 = vmand %vm384, %vm374
        %v395 = vadd.s32 %v265, 10
        %v396 = vadd.s32 %v276, 10
        %v397 = vadd.s32 %v287, 10
        %v398 = vadd.s32 %v298, 10
        %v399 = vadd.s32 %v309, 10
        %v400 = vadd.s32 %v320, 10
        %v401 = vadd.s32 %v331, 10
        %v402 = vadd.s32 %v342, 10
        %v403 = vadd.s32 %v353, 10
        %v404 = vadd.s32 %v364, 10
        %v405 = vsel %vm385, %v395, %v265
        %v406 = vsel %vm386, %v396, %v276
        %v407 = vsel %vm387, %v397, %v287
        %v408 = vsel %vm388, %v398, %v298
        %v409 = vsel %vm389, %v399, %v309
        %v410 = vsel %vm390, %v400, %v320
        %v411 = vsel %vm391, %v401, %v331
        %v412 = vsel %vm392, %v402, %v342
        %v413 = vsel %vm393, %v403, %v353
        %v414 = vsel %vm394, %v404, %v364
        %v415 = vld [vmem:[%s200] sm:$0xff]
        %v416 = vld [vmem:[%s200 + $0x8] sm:$0xff]
        %v417 = vld [vmem:[%s200 + $0x10] sm:$0xff]
        %v418 = vld [vmem:[%s200 + $0x18] sm:$0xff]
        %v419 = vld [vmem:[%s200 + $0x20] sm:$0xff]
        %v420 = vld [vmem:[%s200 + $0x28] sm:$0xff]
        %v421 = vld [vmem:[%s200 + $0x30] sm:$0xff]
        %v422 = vld [vmem:[%s200 + $0x38] sm:$0xff]
        %v423 = vld [vmem:[%s200 + $0x40] sm:$0xff]
        %v424 = vld [vmem:[%s200 + $0x48] sm:$0xff]
        %v425 = vlaneseq
        %v426 = vshrl.u32 %v425, 7
        %v427 = vsub.s32 0, %v426
        %v428 = vrot.slane %v242, %v427
        %v429 = vmul.f32 %v415, %v428
        %v430 = vmul.f32 %v416, %v428
        %v431 = vmul.f32 %v417, %v428
        %v432 = vmul.f32 %v418, %v428
        %v433 = vmul.f32 %v419, %v428
        %v434 = vmul.f32 %v420, %v428
        %v435 = vmul.f32 %v421, %v428
        %v436 = vmul.f32 %v422, %v428
        %v437 = vmul.f32 %v423, %v428
        %v438 = vmul.f32 %v424, %v428
        %v439 = vlaneseq
        %v440 = vshrl.u32 %v439, 7
        %v441 = vsub.s32 0, %v440
        %v442 = vrot.slane %v243, %v441
        %v443 = vadd.f32 %v429, %v442
        %v444 = vadd.f32 %v430, %v442
        %v445 = vadd.f32 %v431, %v442
        %v446 = vadd.f32 %v432, %v442
        %v447 = vadd.f32 %v433, %v442
        %v448 = vadd.f32 %v434, %v442
        %v449 = vadd.f32 %v435, %v442
        %v450 = vadd.f32 %v436, %v442
        %v451 = vadd.f32 %v437, %v442
        %v452 = vadd.f32 %v438, %v442
        %v453 = vmax.f32 %v443, 0.0
        %v454 = vmax.f32 %v444, 0.0
        %v455 = vmax.f32 %v445, 0.0
        %v456 = vmax.f32 %v446, 0.0
        %v457 = vmax.f32 %v447, 0.0
        %v458 = vmax.f32 %v448, 0.0
        %v459 = vmax.f32 %v449, 0.0
        %v460 = vmax.f32 %v450, 0.0
        %v461 = vmax.f32 %v451, 0.0
        %v462 = vmax.f32 %v452, 0.0
        %vm463 = vcmp.lt.s32.totalorder %v405, 8
        %vm464 = vcmp.lt.s32.totalorder %v406, 8
        %vm465 = vcmp.lt.s32.totalorder %v407, 8
        %vm466 = vcmp.lt.s32.totalorder %v408, 8
        %vm467 = vcmp.lt.s32.totalorder %v409, 8
        %vm468 = vcmp.lt.s32.totalorder %v410, 8
        %vm469 = vcmp.lt.s32.totalorder %v411, 8
        %vm470 = vcmp.lt.s32.totalorder %v412, 8
        %vm471 = vcmp.lt.s32.totalorder %v413, 8
        %vm472 = vcmp.lt.s32.totalorder %v414, 8
        %v473 = vsel %vm463, 1, 0
        %v474 = vsel %vm464, 1, 0
        %v475 = vsel %vm465, 1, 0
        %v476 = vsel %vm466, 1, 0
        %v477 = vsel %vm467, 1, 0
        %v478 = vsel %vm468, 1, 0
        %v479 = vsel %vm469, 1, 0
        %v480 = vsel %vm470, 1, 0
        %v481 = vsel %vm471, 1, 0
        %v482 = vsel %vm472, 1, 0
        %vm483 = vcmp.eq.s32.totalorder %v473, 1
        %vm484 = vcmp.eq.s32.totalorder %v474, 1
        %vm485 = vcmp.eq.s32.totalorder %v475, 1
        %vm486 = vcmp.eq.s32.totalorder %v476, 1
        %vm487 = vcmp.eq.s32.totalorder %v477, 1
        %vm488 = vcmp.eq.s32.totalorder %v478, 1
        %vm489 = vcmp.eq.s32.totalorder %v479, 1
        %vm490 = vcmp.eq.s32.totalorder %v480, 1
        %vm491 = vcmp.eq.s32.totalorder %v481, 1
        %vm492 = vcmp.eq.s32.totalorder %v482, 1
        %v493 = vsel %vm483, %v453, 0.0
        %v494 = vsel %vm484, %v454, 0.0
        %v495 = vsel %vm485, %v455, 0.0
        %v496 = vsel %vm486, %v456, 0.0
        %v497 = vsel %vm487, %v457, 0.0
        %v498 = vsel %vm488, %v458, 0.0
        %v499 = vsel %vm489, %v459, 0.0
        %v500 = vsel %vm490, %v460, 0.0
        %v501 = vsel %vm491, %v461, 0.0
        %v502 = vsel %vm492, %v462, 0.0
        %vm513 = vcmask 1042432
        %v514 = vrot.slane %v493, 5
        %v515 = vrot.slane %v494, 5
        %v516 = vsel %vm513, %v514, %v515
        %v517 = vrot.slane %v495, 5
        %v518 = vsel %vm513, %v515, %v517
        %v519 = vrot.slane %v496, 5
        %v520 = vsel %vm513, %v517, %v519
        %v521 = vrot.slane %v497, 5
        %v522 = vsel %vm513, %v519, %v521
        %v523 = vrot.slane %v498, 5
        %v524 = vsel %vm513, %v521, %v523
        %v525 = vrot.slane %v499, 5
        %v526 = vsel %vm513, %v523, %v525
        %v527 = vrot.slane %v500, 5
        %v528 = vsel %vm513, %v525, %v527
        %v529 = vrot.slane %v501, 5
        %v530 = vsel %vm513, %v527, %v529
        %v531 = vrot.slane %v502, 5
        %v532 = vsel %vm513, %v529, %v531
        %v544 = vsel %vm513, 0.0, %v514
        %v545 = vsel %vm513, %v531, 0.0
        %v546 = vpack.c.bf16 %v544, 0.0
        %v547 = vpack.c.bf16 %v518, %v516
        %v548 = vpack.c.bf16 %v522, %v520
        %v549 = vpack.c.bf16 %v526, %v524
        %v550 = vpack.c.bf16 %v530, %v528
        %v551 = vpack.c.bf16 %v545, %v532
        %v552 = vpack.c.bf16 0.0, 0.0
        %v560 = vunpack.c.l.b16 %v546
        %v561 = vunpack.c.h.b16 %v546
        %v562 = vunpack.c.l.b16 %v547
        %v563 = vunpack.c.h.b16 %v547
        %v564 = vunpack.c.l.b16 %v548
        %v565 = vunpack.c.h.b16 %v548
        %v566 = vunpack.c.l.b16 %v549
        %v567 = vunpack.c.h.b16 %v549
        %v568 = vunpack.c.l.b16 %v550
        %v569 = vunpack.c.h.b16 %v550
        %v570 = vunpack.c.l.b16 %v551
        %v571 = vunpack.c.h.b16 %v551
        %v572 = vunpack.c.l.b16 %v552
        %v573 = vunpack.c.h.b16 %v552
        %v574 = vpack.c.b16 %v560, %v560
        %v575 = vpack.c.b16 %v561, %v561
        %v576 = vpack.c.b16 %v562, %v562
        %v577 = vpack.c.b16 %v563, %v563
        %v578 = vpack.c.b16 %v564, %v564
        %v579 = vpack.c.b16 %v565, %v565
        %v580 = vpack.c.b16 %v566, %v566
        %v581 = vpack.c.b16 %v567, %v567
        %v582 = vpack.c.b16 %v568, %v568
        %v583 = vpack.c.b16 %v569, %v569
        %v584 = vpack.c.b16 %v570, %v570
        %v585 = vpack.c.b16 %v571, %v571
        %v586 = vpack.c.b16 %v572, %v572
        %v587 = vpack.c.b16 %v573, %v573
        %602 = vst [vmem:[%s214] sm:$0xf] %v574
        %603 = vst [vmem:[%s214 + $0x4] sm:$0xf] %v575
        %604 = vst [vmem:[%s214 + $0x8] sm:$0xf] %v576
        %605 = vst [vmem:[%s214 + $0xc] sm:$0xf] %v577
        %606 = vst [vmem:[%s214 + $0x10] sm:$0xf] %v578
        %607 = vst [vmem:[%s214 + $0x14] sm:$0xf] %v579
        %608 = vst [vmem:[%s214 + $0x18] sm:$0xf] %v580
        %609 = vst [vmem:[%s214 + $0x1c] sm:$0xf] %v581
        %610 = vst [vmem:[%s214 + $0x20] sm:$0xf] %v582
        %611 = vst [vmem:[%s214 + $0x24] sm:$0xf] %v583
        %612 = vst [vmem:[%s214 + $0x28] sm:$0xf] %v584
        %613 = vst [vmem:[%s214 + $0x2c] sm:$0xf] %v585
        %614 = vst [vmem:[%s214 + $0x30] sm:$0xf] %v586
        %615 = vst [vmem:[%s214 + $0x34] sm:$0x3] %v587
      $region36: #{up_forward.5} parent=27 // pred_fallthru
        _
      %p616 = scmp.lt.s32.totalorder %s17, 1
      %s617 = scalar_select %p616, %s17, 1
      %p618 = scmp.lt.s32.totalorder %s18, 9
      %s619 = scalar_select %p618, %s18, 9
      %s620 = smul.addr %s619, 14
      %s621 = smul.addr %s617, 140
      %s622 = sadd.s32 %s620, %s621
      %s623 = smul.addr %s622, 4
      %s624 = scalar_lea.vmem %s2, %s623
      // Predicated region
      $region37: #{up_forward.5} parent=27 // pred_check
        %p625 = pneg %p104
      $region38: #{up_forward.5} parent=27 // pred_check_branch
        %627 = sbr.rel (%p625) target = $region40
      $region39: #{up_forward.5} parent=27 // pred_region
        _
      $region40: #{up_forward.5} parent=27 // pred_fallthru
        _
    $region28: #{up_forward.5} parent=5 // pred_fallthru
      _
    %p628 = scmp.le.s32.totalorder 2, %s8
    // Predicated region
    $region41: #{up_forward.5} parent=5 // pred_check
      %p629 = pneg %p628
    $region42: #{up_forward.5} parent=5 // pred_check_branch
      %631 = sbr.rel (%p629) target = $region44
    $region43: #{up_forward.5} parent=5 // pred_region
      %s632 = ssub.s32 %s8, 2
      // Predicated region
      $region45: #{up_forward.5} parent=43 // pred_check
        %p633 = pneg %p110
      $region46: #{up_forward.5} parent=43 // pred_check_branch
        %635 = sbr.rel (%p633) target = $region48
      $region47: #{up_forward.5} parent=43 // pred_region
        %p636 = scmp.lt.s32.totalorder %s19, 1
        %s637 = scalar_select %p636, %s19, 1
        %p638 = scmp.lt.s32.totalorder %s20, 9
        %s639 = scalar_select %p638, %s20, 9
        %s640 = smul.addr %s639, 14
        %s641 = smul.addr %s637, 140
        %s642 = sadd.s32 %s640, %s641
        %s643 = smul.addr %s642, 4
        %s644 = scalar_lea.vmem %s2, %s643
      $region48: #{up_forward.5} parent=43 // pred_fallthru
        _
    $region44: #{up_forward.5} parent=5 // pred_fallthru
      _
  $region6: #{up_forward.5} parent=0 // loop_footer
    %s12 = sadd.s32 1, %s8
  $region7: #{up_forward.5} parent=0 // loop_footer_branch
    %7 = sbr.rel target = $region3
  $region8: #{up_forward.5} parent=0 // loop_exit
    _

// kernel: up_forward.4
$region0: #{up_forward.4}
  #allocation0 [shape = 'u32[]', space=smem, size = 0x4, offset = 0x4, fixed_abs, tag = 'smem constant byte address 0x4 - core index']
  #allocation1 [shape = 'u32[144,128]{1,0:T(1,128)}', space=vmem, size = 0x12000, scoped, tag = 'internal scratch']
  #allocation2 [shape = 'bf16[80,216]{1,0:T(16,128)(2,1)}', space=vmem, size = 0xa000, scoped, tag = 'scratch operand']
  %s0 = inlined_call_operand.vmem [shape: bf16[2,10,108,8], index: 0, kind: input, shape index: {}, may-alias: {0,1,2}]
  %s1 = inlined_call_operand.vmem [shape: bf16[2,10,108,8], index: 1, kind: input, shape index: {}, may-alias: {0,1,2}]
  %s2 = inlined_call_operand.vmem [shape: bf16[2,10,108,8], index: 2, kind: input, shape index: {}, may-alias: {0,1,2}]
  %s3 = inlined_call_operand.vmem [shape: bf16[216,128], index: 3, kind: input, shape index: {}]
  %s4 = inlined_call_operand.vmem [shape: f32[2,8,80,128], index: 4, kind: output, shape index: {0}]
  %s5 = inlined_call_operand.vmem [shape: f32[2,8,2,128], index: 5, kind: output, shape index: {1}]
  %6 = xla_tuple %s4, %s5
  %s7 = sld [smem:[#allocation0]]
  $region57: #{up_forward.4} parent=0
    _
  %s9 = ssub.s32 1, %s7
  %s10 = scalar_select 0, %s9, %s7
  loop: start=0, step=1, limit=18
  $region2: #{up_forward.4} parent=0 // loop_pre_header
    _
  $region3: #{up_forward.4} parent=0 // loop_header
    %s12 = sphi 0, %s16
    %p13 = scmp.ge.s32.totalorder %s12, 18
    %s19 = sphi 0, %s31
    %s20 = sphi 0, %s27
    %s21 = sphi 0, %s19
    %s22 = sphi 0, %s20
    %s23 = sphi 0, %s21
    %s24 = sphi 0, %s22
    %s36 = sphi 0, %s38
    %s39 = sphi 0, %s36
    %s40 = sphi 0, %s39
    %s56 = sphi 0, %s40
    %s66 = sphi 0, %s68
    %s69 = sphi 0, %s66
    %s70 = sphi 0, %s69
    %s86 = sphi 0, %s70
    %s96 = sphi 0, %s98
    %s99 = sphi 0, %s96
    %s100 = sphi 0, %s99
    %s116 = sphi 0, %s100
    %s120 = sphi 0, %s120
    %s122 = sphi 0, %s120
    %s123 = sphi 0, %s122
    %s137 = sphi 0, %s123
    %s145 = sphi 0, %s147
    %s148 = sphi 0, %s145
    %s149 = sphi 0, %s148
    %s165 = sphi 0, %s149
    %s173 = sphi 0, %s175
    %s176 = sphi 0, %s173
    %s177 = sphi 0, %s176
    %s193 = sphi 0, %s177
  $region4: #{up_forward.4} parent=0 // loop_header_branch
    %15 = sbr.rel (%p13) target = $region8
  $region5: #{up_forward.4} parent=0 // loop_body
    %s17 = ssub.s32 %s12, 1
    %s18 = ssub.s32 %s12, 2
    %s25 = sadd.s32 1, %s20
    %p26 = scmp.ge.s32.totalorder %s25, 8
    %s27 = scalar_select %p26, 0, %s25
    %s28 = sadd.s32 1, %s19
    %s29 = scalar_select %p26, %s28, %s19
    %p30 = scmp.ge.s32.totalorder %s29, 2
    %s31 = scalar_select %p30, 0, %s29
    %s32 = ssub.s32 %s19, %s31
    %s33 = ssub.s32 %s20, %s27
    %s34 = sor.u32 %s32, %s33
    %p35 = scmp.eq.s32.totalorder %s34, 0
    %s37 = sadd.s32 %s36, 1
    %s38 = scalar_select %p35, %s36, %s37
    %p41 = pneg %p35
    %p42 = scmp.eq.s32.totalorder %s12, 15
    %p43 = por %p41, %p42
    %p44 = scmp.ne.s32.totalorder %s36, %s39
    %p45 = scmp.eq.s32.totalorder %s12, 0
    %p46 = por %p44, %p45
    %p47 = scmp.ne.s32.totalorder %s36, %s39
    %p48 = scmp.eq.s32.totalorder %s17, 15
    %p49 = por %p47, %p48
    %p50 = scmp.ne.s32.totalorder %s39, %s40
    %p51 = scmp.eq.s32.totalorder %s17, 0
    %p52 = por %p50, %p51
    %p53 = scmp.ne.s32.totalorder %s39, %s40
    %p54 = scmp.eq.s32.totalorder %s18, 15
    %p55 = por %p53, %p54
    %p57 = scmp.ne.s32.totalorder %s40, %s56
    %p58 = scmp.eq.s32.totalorder %s18, 0
    %p59 = por %p57, %p58
    %s60 = sadd.s32 %s20, 1
    %s61 = sadd.s32 %s27, 1
    %s62 = ssub.s32 %s19, %s31
    %s63 = ssub.s32 %s60, %s61
    %s64 = sor.u32 %s62, %s63
    %p65 = scmp.eq.s32.totalorder %s64, 0
    %s67 = sadd.s32 %s66, 1
    %s68 = scalar_select %p65, %s66, %s67
    %p71 = pneg %p65
    %p72 = scmp.eq.s32.totalorder %s12, 15
    %p73 = por %p71, %p72
    %p74 = scmp.ne.s32.totalorder %s66, %s69
    %p75 = scmp.eq.s32.totalorder %s12, 0
    %p76 = por %p74, %p75
    %p77 = scmp.ne.s32.totalorder %s66, %s69
    %p78 = scmp.eq.s32.totalorder %s17, 15
    %p79 = por %p77, %p78
    %p80 = scmp.ne.s32.totalorder %s69, %s70
    %p81 = scmp.eq.s32.totalorder %s17, 0
    %p82 = por %p80, %p81
    %p83 = scmp.ne.s32.totalorder %s69, %s70
    %p84 = scmp.eq.s32.totalorder %s18, 15
    %p85 = por %p83, %p84
    %p87 = scmp.ne.s32.totalorder %s70, %s86
    %p88 = scmp.eq.s32.totalorder %s18, 0
    %p89 = por %p87, %p88
    %s90 = sadd.s32 %s20, 2
    %s91 = sadd.s32 %s27, 2
    %s92 = ssub.s32 %s19, %s31
    %s93 = ssub.s32 %s90, %s91
    %s94 = sor.u32 %s92, %s93
    %p95 = scmp.eq.s32.totalorder %s94, 0
    %s97 = sadd.s32 %s96, 1
    %s98 = scalar_select %p95, %s96, %s97
    %p101 = pneg %p95
    %p102 = scmp.eq.s32.totalorder %s12, 15
    %p103 = por %p101, %p102
    %p104 = scmp.ne.s32.totalorder %s96, %s99
    %p105 = scmp.eq.s32.totalorder %s12, 0
    %p106 = por %p104, %p105
    %p107 = scmp.ne.s32.totalorder %s96, %s99
    %p108 = scmp.eq.s32.totalorder %s17, 15
    %p109 = por %p107, %p108
    %p110 = scmp.ne.s32.totalorder %s99, %s100
    %p111 = scmp.eq.s32.totalorder %s17, 0
    %p112 = por %p110, %p111
    %p113 = scmp.ne.s32.totalorder %s99, %s100
    %p114 = scmp.eq.s32.totalorder %s18, 15
    %p115 = por %p113, %p114
    %p117 = scmp.ne.s32.totalorder %s100, %s116
    %p118 = scmp.eq.s32.totalorder %s18, 0
    %p119 = por %p117, %p118
    %s121 = sadd.s32 %s120, 1
    %p124 = scmp.eq.s32.totalorder %s12, 15
    %p125 = scmp.ne.s32.totalorder %s120, %s122
    %p126 = scmp.eq.s32.totalorder %s12, 0
    %p127 = por %p125, %p126
    %p128 = scmp.ne.s32.totalorder %s120, %s122
    %p129 = scmp.eq.s32.totalorder %s17, 15
    %p130 = por %p128, %p129
    %p131 = scmp.ne.s32.totalorder %s122, %s123
    %p132 = scmp.eq.s32.totalorder %s17, 0
    %p133 = por %p131, %p132
    %p134 = scmp.ne.s32.totalorder %s122, %s123
    %p135 = scmp.eq.s32.totalorder %s18, 15
    %p136 = por %p134, %p135
    %p138 = scmp.ne.s32.totalorder %s123, %s137
    %p139 = scmp.eq.s32.totalorder %s18, 0
    %p140 = por %p138, %p139
    %s141 = ssub.s32 %s19, %s31
    %s142 = ssub.s32 %s20, %s27
    %s143 = sor.u32 %s141, %s142
    %p144 = scmp.eq.s32.totalorder %s143, 0
    %s146 = sadd.s32 %s145, 1
    %s147 = scalar_select %p144, %s145, %s146
    %p150 = pneg %p144
    %p151 = scmp.eq.s32.totalorder %s12, 15
    %p152 = por %p150, %p151
    %p153 = scmp.ne.s32.totalorder %s145, %s148
    %p154 = scmp.eq.s32.totalorder %s12, 0
    %p155 = por %p153, %p154
    %p156 = scmp.ne.s32.totalorder %s145, %s148
    %p157 = scmp.eq.s32.totalorder %s17, 15
    %p158 = por %p156, %p157
    %p159 = scmp.ne.s32.totalorder %s148, %s149
    %p160 = scmp.eq.s32.totalorder %s17, 0
    %p161 = por %p159, %p160
    %p162 = scmp.ne.s32.totalorder %s148, %s149
    %p163 = scmp.eq.s32.totalorder %s18, 15
    %p164 = por %p162, %p163
    %p166 = scmp.ne.s32.totalorder %s149, %s165
    %p167 = scmp.eq.s32.totalorder %s18, 0
    %p168 = por %p166, %p167
    %s169 = ssub.s32 %s19, %s31
    %s170 = ssub.s32 %s20, %s27
    %s171 = sor.u32 %s169, %s170
    %p172 = scmp.eq.s32.totalorder %s171, 0
    %s174 = sadd.s32 %s173, 1
    %s175 = scalar_select %p172, %s173, %s174
    %p178 = pneg %p172
    %p179 = scmp.eq.s32.totalorder %s12, 15
    %p180 = por %p178, %p179
    %p181 = scmp.ne.s32.totalorder %s173, %s176
    %p182 = scmp.eq.s32.totalorder %s12, 0
    %p183 = por %p181, %p182
    %p184 = scmp.ne.s32.totalorder %s173, %s176
    %p185 = scmp.eq.s32.totalorder %s17, 15
    %p186 = por %p184, %p185
    %p187 = scmp.ne.s32.totalorder %s176, %s177
    %p188 = scmp.eq.s32.totalorder %s17, 0
    %p189 = por %p187, %p188
    %p190 = scmp.ne.s32.totalorder %s176, %s177
    %p191 = scmp.eq.s32.totalorder %s18, 15
    %p192 = por %p190, %p191
    %p194 = scmp.ne.s32.totalorder %s177, %s193
    %p195 = scmp.eq.s32.totalorder %s18, 0
    %p196 = por %p194, %p195
    %p197 = scmp.le.s32.totalorder 1, %s12
    %p198 = scmp.lt.s32.totalorder %s12, 17
    %p199 = pnand %p197, %p198
    %p200 = pneg %p199
    // Predicated region
    $region9: #{up_forward.4} parent=5 // pred_check
      _
    $region10: #{up_forward.4} parent=5 // pred_check_branch
      %202 = sbr.rel (%p199) target = $region12
    $region11: #{up_forward.4} parent=5 // pred_region
      %s203 = ssub.s32 %s12, 1
      // Predicated region
      $region13: #{up_forward.4} parent=11 // pred_check
        %p204 = pneg %p133
      $region14: #{up_forward.4} parent=11 // pred_check_branch
        %206 = sbr.rel (%p204) target = $region16
      $region15: #{up_forward.4} parent=11 // pred_region
        _
      $region16: #{up_forward.4} parent=11 // pred_fallthru
        _
    $region12: #{up_forward.4} parent=5 // pred_fallthru
      _
    %p207 = scmp.lt.s32.totalorder %s12, 16
    // Predicated region
    $region17: #{up_forward.4} parent=5 // pred_check
      %p208 = pneg %p207
    $region18: #{up_forward.4} parent=5 // pred_check_branch
      %210 = sbr.rel (%p208) target = $region20
    $region19: #{up_forward.4} parent=5 // pred_region
      // Predicated region
      $region21: #{up_forward.4} parent=19 // pred_check
        %p211 = pneg %p46
      $region22: #{up_forward.4} parent=19 // pred_check_branch
        %213 = sbr.rel (%p211) target = $region24
      $region23: #{up_forward.4} parent=19 // pred_region
        %p214 = scmp.lt.s32.totalorder %s19, 1
        %s215 = scalar_select %p214, %s19, 1
        %p216 = scmp.lt.s32.totalorder %s20, 9
        %s217 = scalar_select %p216, %s20, 9
        %s218 = smul.addr %s217, 14
        %s219 = smul.addr %s215, 140
        %s220 = sadd.s32 %s218, %s219
        %s221 = smul.addr %s220, 4
        %s222 = scalar_lea.vmem %s0, %s221
      $region24: #{up_forward.4} parent=19 // pred_fallthru
        _
      // Predicated region
      $region25: #{up_forward.4} parent=19 // pred_check
        %p223 = pneg %p76
      $region26: #{up_forward.4} parent=19 // pred_check_branch
        %225 = sbr.rel (%p223) target = $region28
      $region27: #{up_forward.4} parent=19 // pred_region
        %s226 = sadd.s32 %s20, 1
        %p227 = scmp.lt.s32.totalorder %s19, 1
        %s228 = scalar_select %p227, %s19, 1
        %p229 = scmp.lt.s32.totalorder %s226, 9
        %s230 = scalar_select %p229, %s226, 9
        %s231 = smul.addr %s230, 14
        %s232 = smul.addr %s228, 140
        %s233 = sadd.s32 %s231, %s232
        %s234 = smul.addr %s233, 4
        %s235 = scalar_lea.vmem %s1, %s234
        %s236 = sadd.s32 %s20, 1
      $region28: #{up_forward.4} parent=19 // pred_fallthru
        _
      // Predicated region
      $region29: #{up_forward.4} parent=19 // pred_check
        %p237 = pneg %p106
      $region30: #{up_forward.4} parent=19 // pred_check_branch
        %239 = sbr.rel (%p237) target = $region32
      $region31: #{up_forward.4} parent=19 // pred_region
        %s240 = sadd.s32 %s20, 2
        %p241 = scmp.lt.s32.totalorder %s19, 1
        %s242 = scalar_select %p241, %s19, 1
        %p243 = scmp.lt.s32.totalorder %s240, 9
        %s244 = scalar_select %p243, %s240, 9
        %s245 = smul.addr %s244, 14
        %s246 = smul.addr %s242, 140
        %s247 = sadd.s32 %s245, %s246
        %s248 = smul.addr %s247, 4
        %s249 = scalar_lea.vmem %s2, %s248
        %s250 = sadd.s32 %s20, 2
      $region32: #{up_forward.4} parent=19 // pred_fallthru
        _
    $region20: #{up_forward.4} parent=5 // pred_fallthru
      _
    %p251 = scmp.le.s32.totalorder 1, %s12
    %p252 = scmp.lt.s32.totalorder %s12, 17
    %p253 = pnand %p251, %p252
    %p254 = pneg %p253
    // Predicated region
    $region33: #{up_forward.4} parent=5 // pred_check
      _
    $region34: #{up_forward.4} parent=5 // pred_check_branch
      %256 = sbr.rel (%p253) target = $region36
    $region35: #{up_forward.4} parent=5 // pred_region
      %s257 = ssub.s32 %s12, 1
      %p258 = scmp.lt.s32.totalorder %s21, 1
      %s259 = scalar_select %p258, %s21, 1
      %p260 = scmp.lt.s32.totalorder %s22, 9
      %s261 = scalar_select %p260, %s22, 9
      %s262 = smul.addr %s261, 14
      %s263 = smul.addr %s259, 140
      %s264 = sadd.s32 %s262, %s263
      %s265 = smul.addr %s264, 4
      %s266 = scalar_lea.vmem %s0, %s265
      %p267 = pneg %p52
      %p268 = pneg %p49
      %s269 = sadd.s32 %s22, 1
      %p270 = scmp.lt.s32.totalorder %s21, 1
      %s271 = scalar_select %p270, %s21, 1
      %p272 = scmp.lt.s32.totalorder %s269, 9
      %s273 = scalar_select %p272, %s269, 9
      %s274 = smul.addr %s273, 14
      %s275 = smul.addr %s271, 140
      %s276 = sadd.s32 %s274, %s275
      %s277 = smul.addr %s276, 4
      %s278 = scalar_lea.vmem %s1, %s277
      %p279 = pneg %p82
      %p280 = pneg %p79
      %s281 = sadd.s32 %s22, 2
      %p282 = scmp.lt.s32.totalorder %s21, 1
      %s283 = scalar_select %p282, %s21, 1
      %p284 = scmp.lt.s32.totalorder %s281, 9
      %s285 = scalar_select %p284, %s281, 9
      %s286 = smul.addr %s285, 14
      %s287 = smul.addr %s283, 140
      %s288 = sadd.s32 %s286, %s287
      %s289 = smul.addr %s288, 4
      %s290 = scalar_lea.vmem %s2, %s289
      %p291 = pneg %p112
      %p292 = pneg %p109
      %p293 = pneg %p133
      %p294 = pneg %p130
      %p295 = pneg %p161
      %p296 = pneg %p158
      %p297 = scmp.lt.s32.totalorder %s21, 1
      %s298 = scalar_select %p297, %s21, 1
      %p299 = scmp.lt.s32.totalorder %s22, 7
      %s300 = scalar_select %p299, %s22, 7
      %s301 = smul.addr %s300, 10
      %s302 = smul.addr %s298, 80
      %s303 = sadd.s32 %s301, %s302
      %s304 = smul.addr %s303, 8
      %s305 = scalar_lea.vmem %s4, %s304
      %p306 = pneg %p189
      %p307 = pneg %p186
      %p308 = scmp.lt.s32.totalorder %s21, 1
      %s309 = scalar_select %p308, %s21, 1
      %p310 = scmp.lt.s32.totalorder %s22, 7
      %s311 = scalar_select %p310, %s22, 7
      %s312 = smul.addr %s309, 8
      %s313 = sadd.s32 %s311, %s312
      %s314 = smul.addr %s313, 2
      %s315 = scalar_lea.vmem %s5, %s314
      %p316 = scmp.lt.s32.totalorder %s21, 1
      %s317 = scalar_select %p316, %s21, 1
      %p318 = scmp.lt.s32.totalorder %s22, 9
      %s319 = scalar_select %p318, %s22, 9
      %s320 = smul.addr %s319, 14
      %s321 = smul.addr %s317, 140
      %s322 = sadd.s32 %s320, %s321
      %s323 = smul.addr %s322, 4
      %s324 = scalar_lea.vmem %s0, %s323
      %s325 = sadd.s32 %s22, 1
      %p326 = scmp.lt.s32.totalorder %s21, 1
      %s327 = scalar_select %p326, %s21, 1
      %p328 = scmp.lt.s32.totalorder %s325, 9
      %s329 = scalar_select %p328, %s325, 9
      %s330 = smul.addr %s329, 14
      %s331 = smul.addr %s327, 140
      %s332 = sadd.s32 %s330, %s331
      %s333 = smul.addr %s332, 4
      %s334 = scalar_lea.vmem %s1, %s333
      %s335 = sadd.s32 %s22, 1
      %s336 = sadd.s32 %s22, 2
      %p337 = scmp.lt.s32.totalorder %s21, 1
      %s338 = scalar_select %p337, %s21, 1
      %p339 = scmp.lt.s32.totalorder %s336, 9
      %s340 = scalar_select %p339, %s336, 9
      %s341 = smul.addr %s340, 14
      %s342 = smul.addr %s338, 140
      %s343 = sadd.s32 %s341, %s342
      %s344 = smul.addr %s343, 4
      %s345 = scalar_lea.vmem %s2, %s344
      %s346 = sadd.s32 %s22, 2
      %p347 = scmp.lt.s32.totalorder %s21, 1
      %s348 = scalar_select %p347, %s21, 1
      %p349 = scmp.lt.s32.totalorder %s22, 7
      %s350 = scalar_select %p349, %s22, 7
      %s351 = smul.addr %s350, 10
      %s352 = smul.addr %s348, 80
      %s353 = sadd.s32 %s351, %s352
      %s354 = smul.addr %s353, 8
      %s355 = scalar_lea.vmem %s4, %s354
      %p356 = scmp.lt.s32.totalorder %s21, 1
      %s357 = scalar_select %p356, %s21, 1
      %p358 = scmp.lt.s32.totalorder %s22, 7
      %s359 = scalar_select %p358, %s22, 7
      %s360 = smul.addr %s357, 8
      %s361 = sadd.s32 %s359, %s360
      %s362 = smul.addr %s361, 2
      %s363 = scalar_lea.vmem %s5, %s362
      %v365 = vld [vmem:[%s324] sm:$0xf]
      %v366 = vld [vmem:[%s324 + $0x4] sm:$0xf]
      %v367 = vld [vmem:[%s324 + $0x8] sm:$0xf]
      %v368 = vld [vmem:[%s324 + $0xc] sm:$0xf]
      %v369 = vld [vmem:[%s324 + $0x10] sm:$0xf]
      %v370 = vld [vmem:[%s324 + $0x14] sm:$0xf]
      %v371 = vld [vmem:[%s324 + $0x18] sm:$0xf]
      %v372 = vld [vmem:[%s324 + $0x1c] sm:$0xf]
      %v373 = vld [vmem:[%s324 + $0x20] sm:$0xf]
      %v374 = vld [vmem:[%s324 + $0x24] sm:$0xf]
      %v385 = vunpack.c.l.b16 %v365
      %v386 = vunpack.c.l.b16 %v366
      %v387 = vunpack.c.l.b16 %v367
      %v388 = vunpack.c.l.b16 %v368
      %v389 = vunpack.c.l.b16 %v369
      %v390 = vunpack.c.l.b16 %v370
      %v391 = vunpack.c.l.b16 %v371
      %v392 = vunpack.c.l.b16 %v372
      %v393 = vunpack.c.l.b16 %v373
      %v394 = vunpack.c.l.b16 %v374
      %v395 = vpack.c.b16 %v386, %v385
      %v396 = vpack.c.b16 %v388, %v387
      %v397 = vpack.c.b16 %v390, %v389
      %v398 = vpack.c.b16 %v392, %v391
      %v399 = vpack.c.b16 %v394, %v393
      %vm405 = vcmask 64512
      %406 = vst.msk [vmem:[#allocation2] sm:$0xff] %vm405, %v395
      %407 = vst.msk [vmem:[#allocation2 + $0x10] sm:$0xff] %vm405, %v396
      %408 = vst.msk [vmem:[#allocation2 + $0x20] sm:$0xff] %vm405, %v397
      %409 = vst.msk [vmem:[#allocation2 + $0x30] sm:$0xff] %vm405, %v398
      %410 = vst.msk [vmem:[#allocation2 + $0x40] sm:$0xff] %vm405, %v399
      %v411 = vld [vmem:[%s324] sm:$0xf]
      %v412 = vld [vmem:[%s324 + $0x4] sm:$0xf]
      %v413 = vld [vmem:[%s324 + $0x8] sm:$0xf]
      %v414 = vld [vmem:[%s324 + $0xc] sm:$0xf]
      %v415 = vld [vmem:[%s324 + $0x10] sm:$0xf]
      %v416 = vld [vmem:[%s324 + $0x14] sm:$0xf]
      %v417 = vld [vmem:[%s324 + $0x18] sm:$0xf]
      %v418 = vld [vmem:[%s324 + $0x1c] sm:$0xf]
      %v419 = vld [vmem:[%s324 + $0x20] sm:$0xf]
      %v420 = vld [vmem:[%s324 + $0x24] sm:$0xf]
      %v421 = vld [vmem:[%s324 + $0x28] sm:$0x1]
      %v433 = vunpack.c.l.b16 %v411
      %v434 = vunpack.c.l.b16 %v412
      %v435 = vunpack.c.l.b16 %v413
      %v436 = vunpack.c.l.b16 %v414
      %v437 = vunpack.c.l.b16 %v415
      %v438 = vunpack.c.l.b16 %v416
      %v439 = vunpack.c.l.b16 %v417
      %v440 = vunpack.c.l.b16 %v418
      %v441 = vunpack.c.l.b16 %v419
      %v442 = vunpack.c.l.b16 %v420
      %v443 = vunpack.c.l.b16 %v421
      %v444 = vpack.c.b16 %v434, %v433
      %v445 = vpack.c.b16 %v436, %v435
      %v446 = vpack.c.b16 %v438, %v437
      %v447 = vpack.c.b16 %v440, %v439
      %v448 = vpack.c.b16 %v442, %v441
      %v449 = vpack.c.b16 %v443, %v443
      %vm450 = vsmask.f32 7424
      %v452 = vshrl.u32 %v444, 16
      %v454 = vshll.u32 %v444, 16
      %v456 = vrot.slane %v454, 1
      %v457 = vor.u32 %v452, %v456
      %v459 = vshll.u32 %v445, 16
      %v461 = vrot.slane %v459, 1
      %v462 = vsel %vm450, %v457, %v461
      %v463 = vshrl.u32 %v445, 16
      %v465 = vor.u32 %v463, %v461
      %v467 = vshll.u32 %v446, 16
      %v469 = vrot.slane %v467, 1
      %v470 = vsel %vm450, %v465, %v469
      %v471 = vshrl.u32 %v446, 16
      %v473 = vor.u32 %v471, %v469
      %v475 = vshll.u32 %v447, 16
      %v477 = vrot.slane %v475, 1
      %v478 = vsel %vm450, %v473, %v477
      %v479 = vshrl.u32 %v447, 16
      %v481 = vor.u32 %v479, %v477
      %v483 = vshll.u32 %v448, 16
      %v485 = vrot.slane %v483, 1
      %v486 = vsel %vm450, %v481, %v485
      %v487 = vshrl.u32 %v448, 16
      %v489 = vor.u32 %v487, %v485
      %v491 = vshll.u32 %v449, 16
      %v493 = vrot.slane %v491, 1
      %v494 = vsel %vm450, %v489, %v493
      %495 = vrot.lane.b32.xlu0 %v462, 8
      %v496 = vpop.permute.xlu0 %495
      %497 = vrot.lane.b32.xlu0 %v470, 8
      %v498 = vpop.permute.xlu0 %497
      %499 = vrot.lane.b32.xlu0 %v478, 8
      %v500 = vpop.permute.xlu0 %499
      %501 = vrot.lane.b32.xlu0 %v486, 8
      %v502 = vpop.permute.xlu0 %501
      %503 = vrot.lane.b32.xlu0 %v494, 8
      %v504 = vpop.permute.xlu0 %503
      %vm510 = vcmask 130112
      %511 = vst.msk [vmem:[#allocation2] sm:$0xff] %vm510, %v496
      %512 = vst.msk [vmem:[#allocation2 + $0x10] sm:$0xff] %vm510, %v498
      %513 = vst.msk [vmem:[#allocation2 + $0x20] sm:$0xff] %vm510, %v500
      %514 = vst.msk [vmem:[#allocation2 + $0x30] sm:$0xff] %vm510, %v502
      %515 = vst.msk [vmem:[#allocation2 + $0x40] sm:$0xff] %vm510, %v504
      %v516 = vld [vmem:[%s324] sm:$0xe]
      %v517 = vld [vmem:[%s324 + $0x4] sm:$0xf]
      %v518 = vld [vmem:[%s324 + $0x8] sm:$0xf]
      %v519 = vld [vmem:[%s324 + $0xc] sm:$0xf]
      %v520 = vld [vmem:[%s324 + $0x10] sm:$0xf]
      %v521 = vld [vmem:[%s324 + $0x14] sm:$0xf]
      %v522 = vld [vmem:[%s324 + $0x18] sm:$0xf]
      %v523 = vld [vmem:[%s324 + $0x1c] sm:$0xf]
      %v524 = vld [vmem:[%s324 + $0x20] sm:$0xf]
      %v525 = vld [vmem:[%s324 + $0x24] sm:$0xf]
      %v526 = vld [vmem:[%s324 + $0x28] sm:$0x1]
      %v538 = vunpack.c.l.b16 %v516
      %v539 = vunpack.c.l.b16 %v517
      %v540 = vunpack.c.l.b16 %v518
      %v541 = vunpack.c.l.b16 %v519
      %v542 = vunpack.c.l.b16 %v520
      %v543 = vunpack.c.l.b16 %v521
      %v544 = vunpack.c.l.b16 %v522
      %v545 = vunpack.c.l.b16 %v523
      %v546 = vunpack.c.l.b16 %v524
      %v547 = vunpack.c.l.b16 %v525
      %v548 = vunpack.c.l.b16 %v526
      %v549 = vpack.c.b16 %v539, %v538
      %v550 = vpack.c.b16 %v541, %v540
      %v551 = vpack.c.b16 %v543, %v542
      %v552 = vpack.c.b16 %v545, %v544
      %v553 = vpack.c.b16 %v547, %v546
      %v554 = vpack.c.b16 %v548, %v548
      %vm555 = vcmask 1046528
      %v556 = vrot.slane %v549, 1
      %v557 = vrot.slane %v550, 1
      %v558 = vsel %vm555, %v556, %v557
      %v559 = vrot.slane %v551, 1
      %v560 = vsel %vm555, %v557, %v559
      %v561 = vrot.slane %v552, 1
      %v562 = vsel %vm555, %v559, %v561
      %v563 = vrot.slane %v553, 1
      %v564 = vsel %vm555, %v561, %v563
      %v565 = vrot.slane %v554, 1
      %v566 = vsel %vm555, %v563, %v565
      %567 = vrot.lane.b32.xlu0 %v558, 16
      %v568 = vpop.permute.xlu0 %567
      %569 = vrot.lane.b32.xlu0 %v560, 16
      %v570 = vpop.permute.xlu0 %569
      %571 = vrot.lane.b32.xlu0 %v562, 16
      %v572 = vpop.permute.xlu0 %571
      %573 = vrot.lane.b32.xlu0 %v564, 16
      %v574 = vpop.permute.xlu0 %573
      %575 = vrot.lane.b32.xlu0 %v566, 16
      %v576 = vpop.permute.xlu0 %575
      %vm582 = vcmask 195712
      %583 = vst.msk [vmem:[#allocation2] sm:$0xff] %vm582, %v568
      %584 = vst.msk [vmem:[#allocation2 + $0x10] sm:$0xff] %vm582, %v570
      %585 = vst.msk [vmem:[#allocation2 + $0x20] sm:$0xff] %vm582, %v572
      %586 = vst.msk [vmem:[#allocation2 + $0x30] sm:$0xff] %vm582, %v574
      %587 = vst.msk [vmem:[#allocation2 + $0x40] sm:$0xff] %vm582, %v576
      %v588 = vld [vmem:[%s324 + $0x4] sm:$0xe]
      %v589 = vld [vmem:[%s324 + $0x8] sm:$0xf]
      %v590 = vld [vmem:[%s324 + $0xc] sm:$0xf]
      %v591 = vld [vmem:[%s324 + $0x10] sm:$0xf]
      %v592 = vld [vmem:[%s324 + $0x14] sm:$0xf]
      %v593 = vld [vmem:[%s324 + $0x18] sm:$0xf]
      %v594 = vld [vmem:[%s324 + $0x1c] sm:$0xf]
      %v595 = vld [vmem:[%s324 + $0x20] sm:$0xf]
      %v596 = vld [vmem:[%s324 + $0x24] sm:$0xf]
      %v597 = vld [vmem:[%s324 + $0x28] sm:$0xf]
      %v598 = vld [vmem:[%s324 + $0x2c] sm:$0x1]
      %v610 = vunpack.c.l.b16 %v588
      %v611 = vunpack.c.l.b16 %v589
      %v612 = vunpack.c.l.b16 %v590
      %v613 = vunpack.c.l.b16 %v591
      %v614 = vunpack.c.l.b16 %v592
      %v615 = vunpack.c.l.b16 %v593
      %v616 = vunpack.c.l.b16 %v594
      %v617 = vunpack.c.l.b16 %v595
      %v618 = vunpack.c.l.b16 %v596
      %v619 = vunpack.c.l.b16 %v597
      %v620 = vunpack.c.l.b16 %v598
      %v621 = vpack.c.b16 %v611, %v610
      %v622 = vpack.c.b16 %v613, %v612
      %v623 = vpack.c.b16 %v615, %v614
      %v624 = vpack.c.b16 %v617, %v616
      %v625 = vpack.c.b16 %v619, %v618
      %v626 = vpack.c.b16 %v620, %v620
      %v627 = vrot.slane %v621, 1
      %v628 = vrot.slane %v622, 1
      %v629 = vsel %vm555, %v627, %v628
      %v630 = vrot.slane %v623, 1
      %v631 = vsel %vm555, %v628, %v630
      %v632 = vrot.slane %v624, 1
      %v633 = vsel %vm555, %v630, %v632
      %v634 = vrot.slane %v625, 1
      %v635 = vsel %vm555, %v632, %v634
      %v636 = vrot.slane %v626, 1
      %v637 = vsel %vm555, %v634, %v636
      %638 = vrot.lane.b32.xlu0 %v629, 24
      %v639 = vpop.permute.xlu0 %638
      %640 = vrot.lane.b32.xlu0 %v631, 24
      %v641 = vpop.permute.xlu0 %640
      %642 = vrot.lane.b32.xlu0 %v633, 24
      %v643 = vpop.permute.xlu0 %642
      %644 = vrot.lane.b32.xlu0 %v635, 24
      %v645 = vpop.permute.xlu0 %644
      %646 = vrot.lane.b32.xlu0 %v637, 24
      %v647 = vpop.permute.xlu0 %646
      %vm653 = vcmask 261312
      %654 = vst.msk [vmem:[#allocation2] sm:$0xff] %vm653, %v639
      %655 = vst.msk [vmem:[#allocation2 + $0x10] sm:$0xff] %vm653, %v641
      %656 = vst.msk [vmem:[#allocation2 + $0x20] sm:$0xff] %vm653, %v643
      %657 = vst.msk [vmem:[#allocation2 + $0x30] sm:$0xff] %vm653, %v645
      %658 = vst.msk [vmem:[#allocation2 + $0x40] sm:$0xff] %vm653, %v647
      %v659 = vld [vmem:[%s324 + $0x4] sm:$0xe]
      %v660 = vld [vmem:[%s324 + $0x8] sm:$0xf]
      %v661 = vld [vmem:[%s324 + $0xc] sm:$0xf]
      %v662 = vld [vmem:[%s324 + $0x10] sm:$0xf]
      %v663 = vld [vmem:[%s324 + $0x14] sm:$0xf]
      %v664 = vld [vmem:[%s324 + $0x18] sm:$0xf]
      %v665 = vld [vmem:[%s324 + $0x1c] sm:$0xf]
      %v666 = vld [vmem:[%s324 + $0x20] sm:$0xf]
      %v667 = vld [vmem:[%s324 + $0x24] sm:$0xf]
      %v668 = vld [vmem:[%s324 + $0x28] sm:$0xf]
      %v669 = vld [vmem:[%s324 + $0x2c] sm:$0x3]
      %v681 = vunpack.c.l.b16 %v659
      %v682 = vunpack.c.l.b16 %v660
      %v683 = vunpack.c.l.b16 %v661
      %v684 = vunpack.c.l.b16 %v662
      %v685 = vunpack.c.l.b16 %v663
      %v686 = vunpack.c.l.b16 %v664
      %v687 = vunpack.c.l.b16 %v665
      %v688 = vunpack.c.l.b16 %v666
      %v689 = vunpack.c.l.b16 %v667
      %v690 = vunpack.c.l.b16 %v668
      %v691 = vunpack.c.l.b16 %v669
      %v692 = vpack.c.b16 %v682, %v681
      %v693 = vpack.c.b16 %v684, %v683
      %v694 = vpack.c.b16 %v686, %v685
      %v695 = vpack.c.b16 %v688, %v687
      %v696 = vpack.c.b16 %v690, %v689
      %v697 = vpack.c.b16 %v691, %v691
      %vm698 = vsmask.f32 6400
      %v700 = vshrl.u32 %v692, 16
      %v702 = vrot.slane %v700, 1
      %v703 = vshll.u32 %v692, 16
      %v705 = vrot.slane %v703, 2
      %v706 = vor.u32 %v702, %v705
      %v708 = vshrl.u32 %v693, 16
      %v710 = vrot.slane %v708, 1
      %v711 = vshll.u32 %v693, 16
      %v713 = vrot.slane %v711, 2
      %v714 = vor.u32 %v710, %v713
      %v715 = vsel %vm698, %v706, %v714
      %v717 = vshrl.u32 %v694, 16
      %v719 = vrot.slane %v717, 1
      %v720 = vshll.u32 %v694, 16
      %v722 = vrot.slane %v720, 2
      %v723 = vor.u32 %v719, %v722
      %v724 = vsel %vm698, %v714, %v723
      %v726 = vshrl.u32 %v695, 16
      %v728 = vrot.slane %v726, 1
      %v729 = vshll.u32 %v695, 16
      %v731 = vrot.slane %v729, 2
      %v732 = vor.u32 %v728, %v731
      %v733 = vsel %vm698, %v723, %v732
      %v735 = vshrl.u32 %v696, 16
      %v737 = vrot.slane %v735, 1
      %v738 = vshll.u32 %v696, 16
      %v740 = vrot.slane %v738, 2
      %v741 = vor.u32 %v737, %v740
      %v742 = vsel %vm698, %v732, %v741
      %v744 = vshrl.u32 %v697, 16
      %v746 = vrot.slane %v744, 1
      %v747 = vshll.u32 %v697, 16
      %v749 = vrot.slane %v747, 2
      %v750 = vor.u32 %v746, %v749
      %v751 = vsel %vm698, %v741, %v750
      %752 = vrot.lane.b32.xlu0 %v715, 32
      %v753 = vpop.permute.xlu0 %752
      %754 = vrot.lane.b32.xlu0 %v724, 32
      %v755 = vpop.permute.xlu0 %754
      %756 = vrot.lane.b32.xlu0 %v733, 32
      %v757 = vpop.permute.xlu0 %756
      %758 = vrot.lane.b32.xlu0 %v742, 32
      %v759 = vpop.permute.xlu0 %758
      %760 = vrot.lane.b32.xlu0 %v751, 32
      %v761 = vpop.permute.xlu0 %760
      %vm767 = vcmask 326912
      %768 = vst.msk [vmem:[#allocation2] sm:$0xff] %vm767, %v753
      %769 = vst.msk [vmem:[#allocation2 + $0x10] sm:$0xff] %vm767, %v755
      %770 = vst.msk [vmem:[#allocation2 + $0x20] sm:$0xff] %vm767, %v757
      %771 = vst.msk [vmem:[#allocation2 + $0x30] sm:$0xff] %vm767, %v759
      %772 = vst.msk [vmem:[#allocation2 + $0x40] sm:$0xff] %vm767, %v761
      %v773 = vld [vmem:[%s324 + $0x4] sm:$0xc]
      %v774 = vld [vmem:[%s324 + $0x8] sm:$0xf]
      %v775 = vld [vmem:[%s324 + $0xc] sm:$0xf]
      %v776 = vld [vmem:[%s324 + $0x10] sm:$0xf]
      %v777 = vld [vmem:[%s324 + $0x14] sm:$0xf]
      %v778 = vld [vmem:[%s324 + $0x18] sm:$0xf]
      %v779 = vld [vmem:[%s324 + $0x1c] sm:$0xf]
      %v780 = vld [vmem:[%s324 + $0x20] sm:$0xf]
      %v781 = vld [vmem:[%s324 + $0x24] sm:$0xf]
      %v782 = vld [vmem:[%s324 + $0x28] sm:$0xf]
      %v783 = vld [vmem:[%s324 + $0x2c] sm:$0x3]
      %v795 = vunpack.c.l.b16 %v773
      %v796 = vunpack.c.l.b16 %v774
      %v797 = vunpack.c.l.b16 %v775
      %v798 = vunpack.c.l.b16 %v776
      %v799 = vunpack.c.l.b16 %v777
      %v800 = vunpack.c.l.b16 %v778
      %v801 = vunpack.c.l.b16 %v779
      %v802 = vunpack.c.l.b16 %v780
      %v803 = vunpack.c.l.b16 %v781
      %v804 = vunpack.c.l.b16 %v782
      %v805 = vunpack.c.l.b16 %v783
      %v806 = vpack.c.b16 %v796, %v795
      %v807 = vpack.c.b16 %v798, %v797
      %v808 = vpack.c.b16 %v800, %v799
      %v809 = vpack.c.b16 %v802, %v801
      %v810 = vpack.c.b16 %v804, %v803
      %v811 = vpack.c.b16 %v805, %v805
      %vm812 = vcmask 1045504
      %v813 = vrot.slane %v806, 2
      %v814 = vrot.slane %v807, 2
      %v815 = vsel %vm812, %v813, %v814
      %v816 = vrot.slane %v808, 2
      %v817 = vsel %vm812, %v814, %v816
      %v818 = vrot.slane %v809, 2
      %v819 = vsel %vm812, %v816, %v818
      %v820 = vrot.slane %v810, 2
      %v821 = vsel %vm812, %v818, %v820
      %v822 = vrot.slane %v811, 2
      %v823 = vsel %vm812, %v820, %v822
      %824 = vrot.lane.b32.xlu0 %v815, 40
      %v825 = vpop.permute.xlu0 %824
      %826 = vrot.lane.b32.xlu0 %v817, 40
      %v827 = vpop.permute.xlu0 %826
      %828 = vrot.lane.b32.xlu0 %v819, 40
      %v829 = vpop.permute.xlu0 %828
      %830 = vrot.lane.b32.xlu0 %v821, 40
      %v831 = vpop.permute.xlu0 %830
      %832 = vrot.lane.b32.xlu0 %v823, 40
      %v833 = vpop.permute.xlu0 %832
      %vm839 = vcmask 392512
      %840 = vst.msk [vmem:[#allocation2] sm:$0xff] %vm839, %v825
      %841 = vst.msk [vmem:[#allocation2 + $0x10] sm:$0xff] %vm839, %v827
      %842 = vst.msk [vmem:[#allocation2 + $0x20] sm:$0xff] %vm839, %v829
      %843 = vst.msk [vmem:[#allocation2 + $0x30] sm:$0xff] %vm839, %v831
      %844 = vst.msk [vmem:[#allocation2 + $0x40] sm:$0xff] %vm839, %v833
      %v845 = vld [vmem:[%s324 + $0x8] sm:$0xc]
      %v846 = vld [vmem:[%s324 + $0xc] sm:$0xf]
      %v847 = vld [vmem:[%s324 + $0x10] sm:$0xf]
      %v848 = vld [vmem:[%s324 + $0x14] sm:$0xf]
      %v849 = vld [vmem:[%s324 + $0x18] sm:$0xf]
      %v850 = vld [vmem:[%s324 + $0x1c] sm:$0xf]
      %v851 = vld [vmem:[%s324 + $0x20] sm:$0xf]
      %v852 = vld [vmem:[%s324 + $0x24] sm:$0xf]
      %v853 = vld [vmem:[%s324 + $0x28] sm:$0xf]
      %v854 = vld [vmem:[%s324 + $0x2c] sm:$0xf]
      %v855 = vld [vmem:[%s324 + $0x30] sm:$0x3]
      %v867 = vunpack.c.l.b16 %v845
      %v868 = vunpack.c.l.b16 %v846
      %v869 = vunpack.c.l.b16 %v847
      %v870 = vunpack.c.l.b16 %v848
      %v871 = vunpack.c.l.b16 %v849
      %v872 = vunpack.c.l.b16 %v850
      %v873 = vunpack.c.l.b16 %v851
      %v874 = vunpack.c.l.b16 %v852
      %v875 = vunpack.c.l.b16 %v853
      %v876 = vunpack.c.l.b16 %v854
      %v877 = vunpack.c.l.b16 %v855
      %v878 = vpack.c.b16 %v868, %v867
      %v879 = vpack.c.b16 %v870, %v869
      %v880 = vpack.c.b16 %v872, %v871
      %v881 = vpack.c.b16 %v874, %v873
      %v882 = vpack.c.b16 %v876, %v875
      %v883 = vpack.c.b16 %v877, %v877
      %v884 = vrot.slane %v878, 2
      %v885 = vrot.slane %v879, 2
      %v886 = vsel %vm812, %v884, %v885
      %v887 = vrot.slane %v880, 2
      %v888 = vsel %vm812, %v885, %v887
      %v889 = vrot.slane %v881, 2
      %v890 = vsel %vm812, %v887, %v889
      %v891 = vrot.slane %v882, 2
      %v892 = vsel %vm812, %v889, %v891
      %v893 = vrot.slane %v883, 2
      %v894 = vsel %vm812, %v891, %v893
      %895 = vrot.lane.b32.xlu0 %v886, 48
      %v896 = vpop.permute.xlu0 %895
      %897 = vrot.lane.b32.xlu0 %v888, 48
      %v898 = vpop.permute.xlu0 %897
      %899 = vrot.lane.b32.xlu0 %v890, 48
      %v900 = vpop.permute.xlu0 %899
      %901 = vrot.lane.b32.xlu0 %v892, 48
      %v902 = vpop.permute.xlu0 %901
      %903 = vrot.lane.b32.xlu0 %v894, 48
      %v904 = vpop.permute.xlu0 %903
      %vm910 = vcmask 458112
      %911 = vst.msk [vmem:[#allocation2] sm:$0xff] %vm910, %v896
      %912 = vst.msk [vmem:[#allocation2 + $0x10] sm:$0xff] %vm910, %v898
      %913 = vst.msk [vmem:[#allocation2 + $0x20] sm:$0xff] %vm910, %v900
      %914 = vst.msk [vmem:[#allocation2 + $0x30] sm:$0xff] %vm910, %v902
      %915 = vst.msk [vmem:[#allocation2 + $0x40] sm:$0xff] %vm910, %v904
      %v916 = vld [vmem:[%s324 + $0x8] sm:$0xc]
      %v917 = vld [vmem:[%s324 + $0xc] sm:$0xf]
      %v918 = vld [vmem:[%s324 + $0x10] sm:$0xf]
      %v919 = vld [vmem:[%s324 + $0x14] sm:$0xf]
      %v920 = vld [vmem:[%s324 + $0x18] sm:$0xf]
      %v921 = vld [vmem:[%s324 + $0x1c] sm:$0xf]
      %v922 = vld [vmem:[%s324 + $0x20] sm:$0xf]
      %v923 = vld [vmem:[%s324 + $0x24] sm:$0xf]
      %v924 = vld [vmem:[%s324 + $0x28] sm:$0xf]
      %v925 = vld [vmem:[%s324 + $0x2c] sm:$0xf]
      %v926 = vld [vmem:[%s324 + $0x30] sm:$0x7]
      %v938 = vunpack.c.l.b16 %v916
      %v939 = vunpack.c.l.b16 %v917
      %v940 = vunpack.c.l.b16 %v918
      %v941 = vunpack.c.l.b16 %v919
      %v942 = vunpack.c.l.b16 %v920
      %v943 = vunpack.c.l.b16 %v921
      %v944 = vunpack.c.l.b16 %v922
      %v945 = vunpack.c.l.b16 %v923
      %v946 = vunpack.c.l.b16 %v924
      %v947 = vunpack.c.l.b16 %v925
      %v948 = vunpack.c.l.b16 %v926
      %v949 = vpack.c.b16 %v939, %v938
      %v950 = vpack.c.b16 %v941, %v940
      %v951 = vpack.c.b16 %v943, %v942
      %v952 = vpack.c.b16 %v945, %v944
      %v953 = vpack.c.b16 %v947, %v946
      %v954 = vpack.c.b16 %v948, %v948
      %vm955 = vsmask.f32 5376
      %v957 = vshrl.u32 %v949, 16
      %v959 = vrot.slane %v957, 2
      %v960 = vshll.u32 %v949, 16
      %v962 = vrot.slane %v960, 3
      %v963 = vor.u32 %v959, %v962
      %v965 = vshrl.u32 %v950, 16
      %v967 = vrot.slane %v965, 2
      %v968 = vshll.u32 %v950, 16
      %v970 = vrot.slane %v968, 3
      %v971 = vor.u32 %v967, %v970
      %v972 = vsel %vm955, %v963, %v971
      %v974 = vshrl.u32 %v951, 16
      %v976 = vrot.slane %v974, 2
      %v977 = vshll.u32 %v951, 16
      %v979 = vrot.slane %v977, 3
      %v980 = vor.u32 %v976, %v979
      %v981 = vsel %vm955, %v971, %v980
      %v983 = vshrl.u32 %v952, 16
      %v985 = vrot.slane %v983, 2
      %v986 = vshll.u32 %v952, 16
      %v988 = vrot.slane %v986, 3
      %v989 = vor.u32 %v985, %v988
      %v990 = vsel %vm955, %v980, %v989
      %v992 = vshrl.u32 %v953, 16
      %v994 = vrot.slane %v992, 2
      %v995 = vshll.u32 %v953, 16
      %v997 = vrot.slane %v995, 3
      %v998 = vor.u32 %v994, %v997
      %v999 = vsel %vm955, %v989, %v998
      %v1001 = vshrl.u32 %v954, 16
      %v1003 = vrot.slane %v1001, 2
      %v1004 = vshll.u32 %v954, 16
      %v1006 = vrot.slane %v1004, 3
      %v1007 = vor.u32 %v1003, %v1006
      %v1008 = vsel %vm955, %v998, %v1007
      %1009 = vrot.lane.b32.xlu0 %v972, 56
      %v1010 = vpop.permute.xlu0 %1009
      %1011 = vrot.lane.b32.xlu0 %v981, 56
      %v1012 = vpop.permute.xlu0 %1011
      %1013 = vrot.lane.b32.xlu0 %v990, 56
      %v1014 = vpop.permute.xlu0 %1013
      %1015 = vrot.lane.b32.xlu0 %v999, 56
      %v1016 = vpop.permute.xlu0 %1015
      %1017 = vrot.lane.b32.xlu0 %v1008, 56
      %v1018 = vpop.permute.xlu0 %1017
      %vm1024 = vcmask 523712
      %1025 = vst.msk [vmem:[#allocation2] sm:$0xff] %vm1024, %v1010
      %1026 = vst.msk [vmem:[#allocation2 + $0x10] sm:$0xff] %vm1024, %v1012
      %1027 = vst.msk [vmem:[#allocation2 + $0x20] sm:$0xff] %vm1024, %v1014
      %1028 = vst.msk [vmem:[#allocation2 + $0x30] sm:$0xff] %vm1024, %v1016
      %1029 = vst.msk [vmem:[#allocation2 + $0x40] sm:$0xff] %vm1024, %v1018
      %v1030 = vld [vmem:[%s324 + $0x8] sm:$0x8]
      %v1031 = vld [vmem:[%s324 + $0xc] sm:$0xf]
      %v1032 = vld [vmem:[%s324 + $0x10] sm:$0xf]
      %v1033 = vld [vmem:[%s324 + $0x14] sm:$0xf]
      %v1034 = vld [vmem:[%s324 + $0x18] sm:$0xf]
      %v1035 = vld [vmem:[%s324 + $0x1c] sm:$0xf]
      %v1036 = vld [vmem:[%s324 + $0x20] sm:$0xf]
      %v1037 = vld [vmem:[%s324 + $0x24] sm:$0xf]
      %v1038 = vld [vmem:[%s324 + $0x28] sm:$0xf]
      %v1039 = vld [vmem:[%s324 + $0x2c] sm:$0xf]
      %v1040 = vld [vmem:[%s324 + $0x30] sm:$0x7]
      %v1052 = vunpack.c.l.b16 %v1030
      %v1053 = vunpack.c.l.b16 %v1031
      %v1054 = vunpack.c.l.b16 %v1032
      %v1055 = vunpack.c.l.b16 %v1033
      %v1056 = vunpack.c.l.b16 %v1034
      %v1057 = vunpack.c.l.b16 %v1035
      %v1058 = vunpack.c.l.b16 %v1036
      %v1059 = vunpack.c.l.b16 %v1037
      %v1060 = vunpack.c.l.b16 %v1038
      %v1061 = vunpack.c.l.b16 %v1039
      %v1062 = vunpack.c.l.b16 %v1040
      %v1063 = vpack.c.b16 %v1053, %v1052
      %v1064 = vpack.c.b16 %v1055, %v1054
      %v1065 = vpack.c.b16 %v1057, %v1056
      %v1066 = vpack.c.b16 %v1059, %v1058
      %v1067 = vpack.c.b16 %v1061, %v1060
      %v1068 = vpack.c.b16 %v1062, %v1062
      %vm1069 = vcmask 1044480
      %v1070 = vrot.slane %v1063, 3
      %v1071 = vrot.slane %v1064, 3
      %v1072 = vsel %vm1069, %v1070, %v1071
      %v1073 = vrot.slane %v1065, 3
      %v1074 = vsel %vm1069, %v1071, %v1073
      %v1075 = vrot.slane %v1066, 3
      %v1076 = vsel %vm1069, %v1073, %v1075
      %v1077 = vrot.slane %v1067, 3
      %v1078 = vsel %vm1069, %v1075, %v1077
      %v1079 = vrot.slane %v1068, 3
      %v1080 = vsel %vm1069, %v1077, %v1079
      %1081 = vrot.lane.b32.xlu0 %v1072, 64
      %v1082 = vpop.permute.xlu0 %1081
      %1083 = vrot.lane.b32.xlu0 %v1074, 64
      %v1084 = vpop.permute.xlu0 %1083
      %1085 = vrot.lane.b32.xlu0 %v1076, 64
      %v1086 = vpop.permute.xlu0 %1085
      %1087 = vrot.lane.b32.xlu0 %v1078, 64
      %v1088 = vpop.permute.xlu0 %1087
      %1089 = vrot.lane.b32.xlu0 %v1080, 64
      %v1090 = vpop.permute.xlu0 %1089
      %vm1096 = vcmask 589312
      %1097 = vst.msk [vmem:[#allocation2] sm:$0xff] %vm1096, %v1082
      %1098 = vst.msk [vmem:[#allocation2 + $0x10] sm:$0xff] %vm1096, %v1084
      %1099 = vst.msk [vmem:[#allocation2 + $0x20] sm:$0xff] %vm1096, %v1086
      %1100 = vst.msk [vmem:[#allocation2 + $0x30] sm:$0xff] %vm1096, %v1088
      %1101 = vst.msk [vmem:[#allocation2 + $0x40] sm:$0xff] %vm1096, %v1090
      %v1102 = vld [vmem:[%s334] sm:$0xf]
      %v1103 = vld [vmem:[%s334 + $0x4] sm:$0xf]
      %v1104 = vld [vmem:[%s334 + $0x8] sm:$0xf]
      %v1105 = vld [vmem:[%s334 + $0xc] sm:$0xf]
      %v1106 = vld [vmem:[%s334 + $0x10] sm:$0xf]
      %v1107 = vld [vmem:[%s334 + $0x14] sm:$0xf]
      %v1108 = vld [vmem:[%s334 + $0x18] sm:$0xf]
      %v1109 = vld [vmem:[%s334 + $0x1c] sm:$0xf]
      %v1110 = vld [vmem:[%s334 + $0x20] sm:$0xf]
      %v1111 = vld [vmem:[%s334 + $0x24] sm:$0xf]
      %v1122 = vunpack.c.l.b16 %v1102
      %v1123 = vunpack.c.l.b16 %v1103
      %v1124 = vunpack.c.l.b16 %v1104
      %v1125 = vunpack.c.l.b16 %v1105
      %v1126 = vunpack.c.l.b16 %v1106
      %v1127 = vunpack.c.l.b16 %v1107
      %v1128 = vunpack.c.l.b16 %v1108
      %v1129 = vunpack.c.l.b16 %v1109
      %v1130 = vunpack.c.l.b16 %v1110
      %v1131 = vunpack.c.l.b16 %v1111
      %v1132 = vpack.c.b16 %v1123, %v1122
      %v1133 = vpack.c.b16 %v1125, %v1124
      %v1134 = vpack.c.b16 %v1127, %v1126
      %v1135 = vpack.c.b16 %v1129, %v1128
      %v1136 = vpack.c.b16 %v1131, %v1130
      %1137 = vrot.lane.b32.xlu0 %v1132, 72
      %v1138 = vpop.permute.xlu0 %1137
      %1139 = vrot.lane.b32.xlu0 %v1133, 72
      %v1140 = vpop.permute.xlu0 %1139
      %1141 = vrot.lane.b32.xlu0 %v1134, 72
      %v1142 = vpop.permute.xlu0 %1141
      %1143 = vrot.lane.b32.xlu0 %v1135, 72
      %v1144 = vpop.permute.xlu0 %1143
      %1145 = vrot.lane.b32.xlu0 %v1136, 72
      %v1146 = vpop.permute.xlu0 %1145
      %vm1152 = vcmask 654912
      %1153 = vst.msk [vmem:[#allocation2] sm:$0xff] %vm1152, %v1138
      %1154 = vst.msk [vmem:[#allocation2 + $0x10] sm:$0xff] %vm1152, %v1140
      %1155 = vst.msk [vmem:[#allocation2 + $0x20] sm:$0xff] %vm1152, %v1142
      %1156 = vst.msk [vmem:[#allocation2 + $0x30] sm:$0xff] %vm1152, %v1144
      %1157 = vst.msk [vmem:[#allocation2 + $0x40] sm:$0xff] %vm1152, %v1146
      %v1158 = vld [vmem:[%s334] sm:$0xf]
      %v1159 = vld [vmem:[%s334 + $0x4] sm:$0xf]
      %v1160 = vld [vmem:[%s334 + $0x8] sm:$0xf]
      %v1161 = vld [vmem:[%s334 + $0xc] sm:$0xf]
      %v1162 = vld [vmem:[%s334 + $0x10] sm:$0xf]
      %v1163 = vld [vmem:[%s334 + $0x14] sm:$0xf]
      %v1164 = vld [vmem:[%s334 + $0x18] sm:$0xf]
      %v1165 = vld [vmem:[%s334 + $0x1c] sm:$0xf]
      %v1166 = vld [vmem:[%s334 + $0x20] sm:$0xf]
      %v1167 = vld [vmem:[%s334 + $0x24] sm:$0xf]
      %v1168 = vld [vmem:[%s334 + $0x28] sm:$0x1]
      %v1180 = vunpack.c.l.b16 %v1158
      %v1181 = vunpack.c.l.b16 %v1159
      %v1182 = vunpack.c.l.b16 %v1160
      %v1183 = vunpack.c.l.b16 %v1161
      %v1184 = vunpack.c.l.b16 %v1162
      %v1185 = vunpack.c.l.b16 %v1163
      %v1186 = vunpack.c.l.b16 %v1164
      %v1187 = vunpack.c.l.b16 %v1165
      %v1188 = vunpack.c.l.b16 %v1166
      %v1189 = vunpack.c.l.b16 %v1167
      %v1190 = vunpack.c.l.b16 %v1168
      %v1191 = vpack.c.b16 %v1181, %v1180
      %v1192 = vpack.c.b16 %v1183, %v1182
      %v1193 = vpack.c.b16 %v1185, %v1184
      %v1194 = vpack.c.b16 %v1187, %v1186
      %v1195 = vpack.c.b16 %v1189, %v1188
      %v1196 = vpack.c.b16 %v1190, %v1190
      %v1198 = vshrl.u32 %v1191, 16
      %v1200 = vshll.u32 %v1191, 16
      %v1202 = vrot.slane %v1200, 1
      %v1203 = vor.u32 %v1198, %v1202
      %v1205 = vshll.u32 %v1192, 16
      %v1207 = vrot.slane %v1205, 1
      %v1208 = vsel %vm450, %v1203, %v1207
      %v1209 = vshrl.u32 %v1192, 16
      %v1211 = vor.u32 %v1209, %v1207
      %v1213 = vshll.u32 %v1193, 16
      %v1215 = vrot.slane %v1213, 1
      %v1216 = vsel %vm450, %v1211, %v1215
      %v1217 = vshrl.u32 %v1193, 16
      %v1219 = vor.u32 %v1217, %v1215
      %v1221 = vshll.u32 %v1194, 16
      %v1223 = vrot.slane %v1221, 1
      %v1224 = vsel %vm450, %v1219, %v1223
      %v1225 = vshrl.u32 %v1194, 16
      %v1227 = vor.u32 %v1225, %v1223
      %v1229 = vshll.u32 %v1195, 16
      %v1231 = vrot.slane %v1229, 1
      %v1232 = vsel %vm450, %v1227, %v1231
      %v1233 = vshrl.u32 %v1195, 16
      %v1235 = vor.u32 %v1233, %v1231
      %v1237 = vshll.u32 %v1196, 16
      %v1239 = vrot.slane %v1237, 1
      %v1240 = vsel %vm450, %v1235, %v1239
      %1241 = vrot.lane.b32.xlu0 %v1208, 80
      %v1242 = vpop.permute.xlu0 %1241
      %1243 = vrot.lane.b32.xlu0 %v1216, 80
      %v1244 = vpop.permute.xlu0 %1243
      %1245 = vrot.lane.b32.xlu0 %v1224, 80
      %v1246 = vpop.permute.xlu0 %1245
      %1247 = vrot.lane.b32.xlu0 %v1232, 80
      %v1248 = vpop.permute.xlu0 %1247
      %1249 = vrot.lane.b32.xlu0 %v1240, 80
      %v1250 = vpop.permute.xlu0 %1249
      %vm1256 = vcmask 720512
      %1257 = vst.msk [vmem:[#allocation2] sm:$0xff] %vm1256, %v1242
      %1258 = vst.msk [vmem:[#allocation2 + $0x10] sm:$0xff] %vm1256, %v1244
      %1259 = vst.msk [vmem:[#allocation2 + $0x20] sm:$0xff] %vm1256, %v1246
      %1260 = vst.msk [vmem:[#allocation2 + $0x30] sm:$0xff] %vm1256, %v1248
      %1261 = vst.msk [vmem:[#allocation2 + $0x40] sm:$0xff] %vm1256, %v1250
      %v1262 = vld [vmem:[%s334] sm:$0xe]
      %v1263 = vld [vmem:[%s334 + $0x4] sm:$0xf]
      %v1264 = vld [vmem:[%s334 + $0x8] sm:$0xf]
      %v1265 = vld [vmem:[%s334 + $0xc] sm:$0xf]
      %v1266 = vld [vmem:[%s334 + $0x10] sm:$0xf]
      %v1267 = vld [vmem:[%s334 + $0x14] sm:$0xf]
      %v1268 = vld [vmem:[%s334 + $0x18] sm:$0xf]
      %v1269 = vld [vmem:[%s334 + $0x1c] sm:$0xf]
      %v1270 = vld [vmem:[%s334 + $0x20] sm:$0xf]
      %v1271 = vld [vmem:[%s334 + $0x24] sm:$0xf]
      %v1272 = vld [vmem:[%s334 + $0x28] sm:$0x1]
      %v1284 = vunpack.c.l.b16 %v1262
      %v1285 = vunpack.c.l.b16 %v1263
      %v1286 = vunpack.c.l.b16 %v1264
      %v1287 = vunpack.c.l.b16 %v1265
      %v1288 = vunpack.c.l.b16 %v1266
      %v1289 = vunpack.c.l.b16 %v1267
      %v1290 = vunpack.c.l.b16 %v1268
      %v1291 = vunpack.c.l.b16 %v1269
      %v1292 = vunpack.c.l.b16 %v1270
      %v1293 = vunpack.c.l.b16 %v1271
      %v1294 = vunpack.c.l.b16 %v1272
      %v1295 = vpack.c.b16 %v1285, %v1284
      %v1296 = vpack.c.b16 %v1287, %v1286
      %v1297 = vpack.c.b16 %v1289, %v1288
      %v1298 = vpack.c.b16 %v1291, %v1290
      %v1299 = vpack.c.b16 %v1293, %v1292
      %v1300 = vpack.c.b16 %v1294, %v1294
      %v1301 = vrot.slane %v1295, 1
      %v1302 = vrot.slane %v1296, 1
      %v1303 = vsel %vm555, %v1301, %v1302
      %v1304 = vrot.slane %v1297, 1
      %v1305 = vsel %vm555, %v1302, %v1304
      %v1306 = vrot.slane %v1298, 1
      %v1307 = vsel %vm555, %v1304, %v1306
      %v1308 = vrot.slane %v1299, 1
      %v1309 = vsel %vm555, %v1306, %v1308
      %v1310 = vrot.slane %v1300, 1
      %v1311 = vsel %vm555, %v1308, %v1310
      %1312 = vrot.lane.b32.xlu0 %v1303, 88
      %v1313 = vpop.permute.xlu0 %1312
      %1314 = vrot.lane.b32.xlu0 %v1305, 88
      %v1315 = vpop.permute.xlu0 %1314
      %1316 = vrot.lane.b32.xlu0 %v1307, 88
      %v1317 = vpop.permute.xlu0 %1316
      %1318 = vrot.lane.b32.xlu0 %v1309, 88
      %v1319 = vpop.permute.xlu0 %1318
      %1320 = vrot.lane.b32.xlu0 %v1311, 88
      %v1321 = vpop.permute.xlu0 %1320
      %vm1327 = vcmask 786112
      %1328 = vst.msk [vmem:[#allocation2] sm:$0xff] %vm1327, %v1313
      %1329 = vst.msk [vmem:[#allocation2 + $0x10] sm:$0xff] %vm1327, %v1315
      %1330 = vst.msk [vmem:[#allocation2 + $0x20] sm:$0xff] %vm1327, %v1317
      %1331 = vst.msk [vmem:[#allocation2 + $0x30] sm:$0xff] %vm1327, %v1319
      %1332 = vst.msk [vmem:[#allocation2 + $0x40] sm:$0xff] %vm1327, %v1321
      %v1333 = vld [vmem:[%s334 + $0x4] sm:$0xe]
      %v1334 = vld [vmem:[%s334 + $0x8] sm:$0xf]
      %v1335 = vld [vmem:[%s334 + $0xc] sm:$0xf]
      %v1336 = vld [vmem:[%s334 + $0x10] sm:$0xf]
      %v1337 = vld [vmem:[%s334 + $0x14] sm:$0xf]
      %v1338 = vld [vmem:[%s334 + $0x18] sm:$0xf]
      %v1339 = vld [vmem:[%s334 + $0x1c] sm:$0xf]
      %v1340 = vld [vmem:[%s334 + $0x20] sm:$0xf]
      %v1341 = vld [vmem:[%s334 + $0x24] sm:$0xf]
      %v1342 = vld [vmem:[%s334 + $0x28] sm:$0xf]
      %v1343 = vld [vmem:[%s334 + $0x2c] sm:$0x1]
      %v1355 = vunpack.c.l.b16 %v1333
      %v1356 = vunpack.c.l.b16 %v1334
      %v1357 = vunpack.c.l.b16 %v1335
      %v1358 = vunpack.c.l.b16 %v1336
      %v1359 = vunpack.c.l.b16 %v1337
      %v1360 = vunpack.c.l.b16 %v1338
      %v1361 = vunpack.c.l.b16 %v1339
      %v1362 = vunpack.c.l.b16 %v1340
      %v1363 = vunpack.c.l.b16 %v1341
      %v1364 = vunpack.c.l.b16 %v1342
      %v1365 = vunpack.c.l.b16 %v1343
      %v1366 = vpack.c.b16 %v1356, %v1355
      %v1367 = vpack.c.b16 %v1358, %v1357
      %v1368 = vpack.c.b16 %v1360, %v1359
      %v1369 = vpack.c.b16 %v1362, %v1361
      %v1370 = vpack.c.b16 %v1364, %v1363
      %v1371 = vpack.c.b16 %v1365, %v1365
      %v1372 = vrot.slane %v1366, 1
      %v1373 = vrot.slane %v1367, 1
      %v1374 = vsel %vm555, %v1372, %v1373
      %v1375 = vrot.slane %v1368, 1
      %v1376 = vsel %vm555, %v1373, %v1375
      %v1377 = vrot.slane %v1369, 1
      %v1378 = vsel %vm555, %v1375, %v1377
      %v1379 = vrot.slane %v1370, 1
      %v1380 = vsel %vm555, %v1377, %v1379
      %v1381 = vrot.slane %v1371, 1
      %v1382 = vsel %vm555, %v1379, %v1381
      %1383 = vrot.lane.b32.xlu0 %v1374, 96
      %v1384 = vpop.permute.xlu0 %1383
      %1385 = vrot.lane.b32.xlu0 %v1376, 96
      %v1386 = vpop.permute.xlu0 %1385
      %1387 = vrot.lane.b32.xlu0 %v1378, 96
      %v1388 = vpop.permute.xlu0 %1387
      %1389 = vrot.lane.b32.xlu0 %v1380, 96
      %v1390 = vpop.permute.xlu0 %1389
      %1391 = vrot.lane.b32.xlu0 %v1382, 96
      %v1392 = vpop.permute.xlu0 %1391
      %vm1398 = vcmask 851712
      %1399 = vst.msk [vmem:[#allocation2] sm:$0xff] %vm1398, %v1384
      %1400 = vst.msk [vmem:[#allocation2 + $0x10] sm:$0xff] %vm1398, %v1386
      %1401 = vst.msk [vmem:[#allocation2 + $0x20] sm:$0xff] %vm1398, %v1388
      %1402 = vst.msk [vmem:[#allocation2 + $0x30] sm:$0xff] %vm1398, %v1390
      %1403 = vst.msk [vmem:[#allocation2 + $0x40] sm:$0xff] %vm1398, %v1392
      %v1404 = vld [vmem:[%s334 + $0x4] sm:$0xe]
      %v1405 = vld [vmem:[%s334 + $0x8] sm:$0xf]
      %v1406 = vld [vmem:[%s334 + $0xc] sm:$0xf]
      %v1407 = vld [vmem:[%s334 + $0x10] sm:$0xf]
      %v1408 = vld [vmem:[%s334 + $0x14] sm:$0xf]
      %v1409 = vld [vmem:[%s334 + $0x18] sm:$0xf]
      %v1410 = vld [vmem:[%s334 + $0x1c] sm:$0xf]
      %v1411 = vld [vmem:[%s334 + $0x20] sm:$0xf]
      %v1412 = vld [vmem:[%s334 + $0x24] sm:$0xf]
      %v1413 = vld [vmem:[%s334 + $0x28] sm:$0xf]
      %v1414 = vld [vmem:[%s334 + $0x2c] sm:$0x3]
      %v1426 = vunpack.c.l.b16 %v1404
      %v1427 = vunpack.c.l.b16 %v1405
      %v1428 = vunpack.c.l.b16 %v1406
      %v1429 = vunpack.c.l.b16 %v1407
      %v1430 = vunpack.c.l.b16 %v1408
      %v1431 = vunpack.c.l.b16 %v1409
      %v1432 = vunpack.c.l.b16 %v1410
      %v1433 = vunpack.c.l.b16 %v1411
      %v1434 = vunpack.c.l.b16 %v1412
      %v1435 = vunpack.c.l.b16 %v1413
      %v1436 = vunpack.c.l.b16 %v1414
      %v1437 = vpack.c.b16 %v1427, %v1426
      %v1438 = vpack.c.b16 %v1429, %v1428
      %v1439 = vpack.c.b16 %v1431, %v1430
      %v1440 = vpack.c.b16 %v1433, %v1432
      %v1441 = vpack.c.b16 %v1435, %v1434
      %v1442 = vpack.c.b16 %v1436, %v1436
      %v1444 = vshrl.u32 %v1437, 16
      %v1446 = vrot.slane %v1444, 1
      %v1447 = vshll.u32 %v1437, 16
      %v1449 = vrot.slane %v1447, 2
      %v1450 = vor.u32 %v1446, %v1449
      %v1452 = vshrl.u32 %v1438, 16
      %v1454 = vrot.slane %v1452, 1
      %v1455 = vshll.u32 %v1438, 16
      %v1457 = vrot.slane %v1455, 2
      %v1458 = vor.u32 %v1454, %v1457
      %v1459 = vsel %vm698, %v1450, %v1458
      %v1461 = vshrl.u32 %v1439, 16
      %v1463 = vrot.slane %v1461, 1
      %v1464 = vshll.u32 %v1439, 16
      %v1466 = vrot.slane %v1464, 2
      %v1467 = vor.u32 %v1463, %v1466
      %v1468 = vsel %vm698, %v1458, %v1467
      %v1470 = vshrl.u32 %v1440, 16
      %v1472 = vrot.slane %v1470, 1
      %v1473 = vshll.u32 %v1440, 16
      %v1475 = vrot.slane %v1473, 2
      %v1476 = vor.u32 %v1472, %v1475
      %v1477 = vsel %vm698, %v1467, %v1476
      %v1479 = vshrl.u32 %v1441, 16
      %v1481 = vrot.slane %v1479, 1
      %v1482 = vshll.u32 %v1441, 16
      %v1484 = vrot.slane %v1482, 2
      %v1485 = vor.u32 %v1481, %v1484
      %v1486 = vsel %vm698, %v1476, %v1485
      %v1488 = vshrl.u32 %v1442, 16
      %v1490 = vrot.slane %v1488, 1
      %v1491 = vshll.u32 %v1442, 16
      %v1493 = vrot.slane %v1491, 2
      %v1494 = vor.u32 %v1490, %v1493
      %v1495 = vsel %vm698, %v1485, %v1494
      %1496 = vrot.lane.b32.xlu0 %v1459, 104
      %v1497 = vpop.permute.xlu0 %1496
      %1498 = vrot.lane.b32.xlu0 %v1468, 104
      %v1499 = vpop.permute.xlu0 %1498
      %1500 = vrot.lane.b32.xlu0 %v1477, 104
      %v1501 = vpop.permute.xlu0 %1500
      %1502 = vrot.lane.b32.xlu0 %v1486, 104
      %v1503 = vpop.permute.xlu0 %1502
      %1504 = vrot.lane.b32.xlu0 %v1495, 104
      %v1505 = vpop.permute.xlu0 %1504
      %vm1511 = vcmask 917312
      %1512 = vst.msk [vmem:[#allocation2] sm:$0xff] %vm1511, %v1497
      %1513 = vst.msk [vmem:[#allocation2 + $0x10] sm:$0xff] %vm1511, %v1499
      %1514 = vst.msk [vmem:[#allocation2 + $0x20] sm:$0xff] %vm1511, %v1501
      %1515 = vst.msk [vmem:[#allocation2 + $0x30] sm:$0xff] %vm1511, %v1503
      %1516 = vst.msk [vmem:[#allocation2 + $0x40] sm:$0xff] %vm1511, %v1505
      %v1517 = vld [vmem:[%s334 + $0x4] sm:$0xc]
      %v1518 = vld [vmem:[%s334 + $0x8] sm:$0xf]
      %v1519 = vld [vmem:[%s334 + $0xc] sm:$0xf]
      %v1520 = vld [vmem:[%s334 + $0x10] sm:$0xf]
      %v1521 = vld [vmem:[%s334 + $0x14] sm:$0xf]
      %v1522 = vld [vmem:[%s334 + $0x18] sm:$0xf]
      %v1523 = vld [vmem:[%s334 + $0x1c] sm:$0xf]
      %v1524 = vld [vmem:[%s334 + $0x20] sm:$0xf]
      %v1525 = vld [vmem:[%s334 + $0x24] sm:$0xf]
      %v1526 = vld [vmem:[%s334 + $0x28] sm:$0xf]
      %v1527 = vld [vmem:[%s334 + $0x2c] sm:$0x3]
      %v1539 = vunpack.c.l.b16 %v1517
      %v1540 = vunpack.c.l.b16 %v1518
      %v1541 = vunpack.c.l.b16 %v1519
      %v1542 = vunpack.c.l.b16 %v1520
      %v1543 = vunpack.c.l.b16 %v1521
      %v1544 = vunpack.c.l.b16 %v1522
      %v1545 = vunpack.c.l.b16 %v1523
      %v1546 = vunpack.c.l.b16 %v1524
      %v1547 = vunpack.c.l.b16 %v1525
      %v1548 = vunpack.c.l.b16 %v1526
      %v1549 = vunpack.c.l.b16 %v1527
      %v1550 = vpack.c.b16 %v1540, %v1539
      %v1551 = vpack.c.b16 %v1542, %v1541
      %v1552 = vpack.c.b16 %v1544, %v1543
      %v1553 = vpack.c.b16 %v1546, %v1545
      %v1554 = vpack.c.b16 %v1548, %v1547
      %v1555 = vpack.c.b16 %v1549, %v1549
      %v1556 = vrot.slane %v1550, 2
      %v1557 = vrot.slane %v1551, 2
      %v1558 = vsel %vm812, %v1556, %v1557
      %v1559 = vrot.slane %v1552, 2
      %v1560 = vsel %vm812, %v1557, %v1559
      %v1561 = vrot.slane %v1553, 2
      %v1562 = vsel %vm812, %v1559, %v1561
      %v1563 = vrot.slane %v1554, 2
      %v1564 = vsel %vm812, %v1561, %v1563
      %v1565 = vrot.slane %v1555, 2
      %v1566 = vsel %vm812, %v1563, %v1565
      %1567 = vrot.lane.b32.xlu0 %v1558, 112
      %v1568 = vpop.permute.xlu0 %1567
      %1569 = vrot.lane.b32.xlu0 %v1560, 112
      %v1570 = vpop.permute.xlu0 %1569
      %1571 = vrot.lane.b32.xlu0 %v1562, 112
      %v1572 = vpop.permute.xlu0 %1571
      %1573 = vrot.lane.b32.xlu0 %v1564, 112
      %v1574 = vpop.permute.xlu0 %1573
      %1575 = vrot.lane.b32.xlu0 %v1566, 112
      %v1576 = vpop.permute.xlu0 %1575
      %vm1582 = vcmask 982912
      %1583 = vst.msk [vmem:[#allocation2] sm:$0xff] %vm1582, %v1568
      %1584 = vst.msk [vmem:[#allocation2 + $0x10] sm:$0xff] %vm1582, %v1570
      %1585 = vst.msk [vmem:[#allocation2 + $0x20] sm:$0xff] %vm1582, %v1572
      %1586 = vst.msk [vmem:[#allocation2 + $0x30] sm:$0xff] %vm1582, %v1574
      %1587 = vst.msk [vmem:[#allocation2 + $0x40] sm:$0xff] %vm1582, %v1576
      %v1588 = vld [vmem:[%s334 + $0x8] sm:$0xc]
      %v1589 = vld [vmem:[%s334 + $0xc] sm:$0xf]
      %v1590 = vld [vmem:[%s334 + $0x10] sm:$0xf]
      %v1591 = vld [vmem:[%s334 + $0x14] sm:$0xf]
      %v1592 = vld [vmem:[%s334 + $0x18] sm:$0xf]
      %v1593 = vld [vmem:[%s334 + $0x1c] sm:$0xf]
      %v1594 = vld [vmem:[%s334 + $0x20] sm:$0xf]
      %v1595 = vld [vmem:[%s334 + $0x24] sm:$0xf]
      %v1596 = vld [vmem:[%s334 + $0x28] sm:$0xf]
      %v1597 = vld [vmem:[%s334 + $0x2c] sm:$0xf]
      %v1598 = vld [vmem:[%s334 + $0x30] sm:$0x3]
      %v1610 = vunpack.c.l.b16 %v1588
      %v1611 = vunpack.c.l.b16 %v1589
      %v1612 = vunpack.c.l.b16 %v1590
      %v1613 = vunpack.c.l.b16 %v1591
      %v1614 = vunpack.c.l.b16 %v1592
      %v1615 = vunpack.c.l.b16 %v1593
      %v1616 = vunpack.c.l.b16 %v1594
      %v1617 = vunpack.c.l.b16 %v1595
      %v1618 = vunpack.c.l.b16 %v1596
      %v1619 = vunpack.c.l.b16 %v1597
      %v1620 = vunpack.c.l.b16 %v1598
      %v1621 = vpack.c.b16 %v1611, %v1610
      %v1622 = vpack.c.b16 %v1613, %v1612
      %v1623 = vpack.c.b16 %v1615, %v1614
      %v1624 = vpack.c.b16 %v1617, %v1616
      %v1625 = vpack.c.b16 %v1619, %v1618
      %v1626 = vpack.c.b16 %v1620, %v1620
      %v1627 = vrot.slane %v1621, 2
      %v1628 = vrot.slane %v1622, 2
      %v1629 = vsel %vm812, %v1627, %v1628
      %v1630 = vrot.slane %v1623, 2
      %v1631 = vsel %vm812, %v1628, %v1630
      %v1632 = vrot.slane %v1624, 2
      %v1633 = vsel %vm812, %v1630, %v1632
      %v1634 = vrot.slane %v1625, 2
      %v1635 = vsel %vm812, %v1632, %v1634
      %v1636 = vrot.slane %v1626, 2
      %v1637 = vsel %vm812, %v1634, %v1636
      %1638 = vrot.lane.b32.xlu0 %v1629, 120
      %v1639 = vpop.permute.xlu0 %1638
      %1640 = vrot.lane.b32.xlu0 %v1631, 120
      %v1641 = vpop.permute.xlu0 %1640
      %1642 = vrot.lane.b32.xlu0 %v1633, 120
      %v1643 = vpop.permute.xlu0 %1642
      %1644 = vrot.lane.b32.xlu0 %v1635, 120
      %v1645 = vpop.permute.xlu0 %1644
      %1646 = vrot.lane.b32.xlu0 %v1637, 120
      %v1647 = vpop.permute.xlu0 %1646
      %vm1653 = vcmask 1048512
      %1654 = vst.msk [vmem:[#allocation2] sm:$0xff] %vm1653, %v1639
      %1655 = vst.msk [vmem:[#allocation2 + $0x10] sm:$0xff] %vm1653, %v1641
      %1656 = vst.msk [vmem:[#allocation2 + $0x20] sm:$0xff] %vm1653, %v1643
      %1657 = vst.msk [vmem:[#allocation2 + $0x30] sm:$0xff] %vm1653, %v1645
      %1658 = vst.msk [vmem:[#allocation2 + $0x40] sm:$0xff] %vm1653, %v1647
      %v1659 = vld [vmem:[%s334 + $0x8] sm:$0xc]
      %v1660 = vld [vmem:[%s334 + $0xc] sm:$0xf]
      %v1661 = vld [vmem:[%s334 + $0x10] sm:$0xf]
      %v1662 = vld [vmem:[%s334 + $0x14] sm:$0xf]
      %v1663 = vld [vmem:[%s334 + $0x18] sm:$0xf]
      %v1664 = vld [vmem:[%s334 + $0x1c] sm:$0xf]
      %v1665 = vld [vmem:[%s334 + $0x20] sm:$0xf]
      %v1666 = vld [vmem:[%s334 + $0x24] sm:$0xf]
      %v1667 = vld [vmem:[%s334 + $0x28] sm:$0xf]
      %v1668 = vld [vmem:[%s334 + $0x2c] sm:$0xf]
      %v1669 = vld [vmem:[%s334 + $0x30] sm:$0x7]
      %v1681 = vunpack.c.l.b16 %v1659
      %v1682 = vunpack.c.l.b16 %v1660
      %v1683 = vunpack.c.l.b16 %v1661
      %v1684 = vunpack.c.l.b16 %v1662
      %v1685 = vunpack.c.l.b16 %v1663
      %v1686 = vunpack.c.l.b16 %v1664
      %v1687 = vunpack.c.l.b16 %v1665
      %v1688 = vunpack.c.l.b16 %v1666
      %v1689 = vunpack.c.l.b16 %v1667
      %v1690 = vunpack.c.l.b16 %v1668
      %v1691 = vunpack.c.l.b16 %v1669
      %v1692 = vpack.c.b16 %v1682, %v1681
      %v1693 = vpack.c.b16 %v1684, %v1683
      %v1694 = vpack.c.b16 %v1686, %v1685
      %v1695 = vpack.c.b16 %v1688, %v1687
      %v1696 = vpack.c.b16 %v1690, %v1689
      %v1697 = vpack.c.b16 %v1691, %v1691
      %v1699 = vshrl.u32 %v1692, 16
      %v1701 = vrot.slane %v1699, 2
      %v1702 = vshll.u32 %v1692, 16
      %v1704 = vrot.slane %v1702, 3
      %v1705 = vor.u32 %v1701, %v1704
      %v1707 = vshrl.u32 %v1693, 16
      %v1709 = vrot.slane %v1707, 2
      %v1710 = vshll.u32 %v1693, 16
      %v1712 = vrot.slane %v1710, 3
      %v1713 = vor.u32 %v1709, %v1712
      %v1714 = vsel %vm955, %v1705, %v1713
      %v1716 = vshrl.u32 %v1694, 16
      %v1718 = vrot.slane %v1716, 2
      %v1719 = vshll.u32 %v1694, 16
      %v1721 = vrot.slane %v1719, 3
      %v1722 = vor.u32 %v1718, %v1721
      %v1723 = vsel %vm955, %v1713, %v1722
      %v1725 = vshrl.u32 %v1695, 16
      %v1727 = vrot.slane %v1725, 2
      %v1728 = vshll.u32 %v1695, 16
      %v1730 = vrot.slane %v1728, 3
      %v1731 = vor.u32 %v1727, %v1730
      %v1732 = vsel %vm955, %v1722, %v1731
      %v1734 = vshrl.u32 %v1696, 16
      %v1736 = vrot.slane %v1734, 2
      %v1737 = vshll.u32 %v1696, 16
      %v1739 = vrot.slane %v1737, 3
      %v1740 = vor.u32 %v1736, %v1739
      %v1741 = vsel %vm955, %v1731, %v1740
      %v1743 = vshrl.u32 %v1697, 16
      %v1745 = vrot.slane %v1743, 2
      %v1746 = vshll.u32 %v1697, 16
      %v1748 = vrot.slane %v1746, 3
      %v1749 = vor.u32 %v1745, %v1748
      %v1750 = vsel %vm955, %v1740, %v1749
      %1756 = vst.msk [vmem:[#allocation2 + $0x8] sm:$0xff] %vm405, %v1714
      %1757 = vst.msk [vmem:[#allocation2 + $0x18] sm:$0xff] %vm405, %v1723
      %1758 = vst.msk [vmem:[#allocation2 + $0x28] sm:$0xff] %vm405, %v1732
      %1759 = vst.msk [vmem:[#allocation2 + $0x38] sm:$0xff] %vm405, %v1741
      %1760 = vst.msk [vmem:[#allocation2 + $0x48] sm:$0xff] %vm405, %v1750
      %v1761 = vld [vmem:[%s334 + $0x8] sm:$0x8]
      %v1762 = vld [vmem:[%s334 + $0xc] sm:$0xf]
      %v1763 = vld [vmem:[%s334 + $0x10] sm:$0xf]
      %v1764 = vld [vmem:[%s334 + $0x14] sm:$0xf]
      %v1765 = vld [vmem:[%s334 + $0x18] sm:$0xf]
      %v1766 = vld [vmem:[%s334 + $0x1c] sm:$0xf]
      %v1767 = vld [vmem:[%s334 + $0x20] sm:$0xf]
      %v1768 = vld [vmem:[%s334 + $0x24] sm:$0xf]
      %v1769 = vld [vmem:[%s334 + $0x28] sm:$0xf]
      %v1770 = vld [vmem:[%s334 + $0x2c] sm:$0xf]
      %v1771 = vld [vmem:[%s334 + $0x30] sm:$0x7]
      %v1783 = vunpack.c.l.b16 %v1761
      %v1784 = vunpack.c.l.b16 %v1762
      %v1785 = vunpack.c.l.b16 %v1763
      %v1786 = vunpack.c.l.b16 %v1764
      %v1787 = vunpack.c.l.b16 %v1765
      %v1788 = vunpack.c.l.b16 %v1766
      %v1789 = vunpack.c.l.b16 %v1767
      %v1790 = vunpack.c.l.b16 %v1768
      %v1791 = vunpack.c.l.b16 %v1769
      %v1792 = vunpack.c.l.b16 %v1770
      %v1793 = vunpack.c.l.b16 %v1771
      %v1794 = vpack.c.b16 %v1784, %v1783
      %v1795 = vpack.c.b16 %v1786, %v1785
      %v1796 = vpack.c.b16 %v1788, %v1787
      %v1797 = vpack.c.b16 %v1790, %v1789
      %v1798 = vpack.c.b16 %v1792, %v1791
      %v1799 = vpack.c.b16 %v1793, %v1793
      %v1800 = vrot.slane %v1794, 3
      %v1801 = vrot.slane %v1795, 3
      %v1802 = vsel %vm1069, %v1800, %v1801
      %v1803 = vrot.slane %v1796, 3
      %v1804 = vsel %vm1069, %v1801, %v1803
      %v1805 = vrot.slane %v1797, 3
      %v1806 = vsel %vm1069, %v1803, %v1805
      %v1807 = vrot.slane %v1798, 3
      %v1808 = vsel %vm1069, %v1805, %v1807
      %v1809 = vrot.slane %v1799, 3
      %v1810 = vsel %vm1069, %v1807, %v1809
      %1811 = vrot.lane.b32.xlu0 %v1802, 8
      %v1812 = vpop.permute.xlu0 %1811
      %1813 = vrot.lane.b32.xlu0 %v1804, 8
      %v1814 = vpop.permute.xlu0 %1813
      %1815 = vrot.lane.b32.xlu0 %v1806, 8
      %v1816 = vpop.permute.xlu0 %1815
      %1817 = vrot.lane.b32.xlu0 %v1808, 8
      %v1818 = vpop.permute.xlu0 %1817
      %1819 = vrot.lane.b32.xlu0 %v1810, 8
      %v1820 = vpop.permute.xlu0 %1819
      %1826 = vst.msk [vmem:[#allocation2 + $0x8] sm:$0xff] %vm510, %v1812
      %1827 = vst.msk [vmem:[#allocation2 + $0x18] sm:$0xff] %vm510, %v1814
      %1828 = vst.msk [vmem:[#allocation2 + $0x28] sm:$0xff] %vm510, %v1816
      %1829 = vst.msk [vmem:[#allocation2 + $0x38] sm:$0xff] %vm510, %v1818
      %1830 = vst.msk [vmem:[#allocation2 + $0x48] sm:$0xff] %vm510, %v1820
      %v1831 = vld [vmem:[%s345] sm:$0xf]
      %v1832 = vld [vmem:[%s345 + $0x4] sm:$0xf]
      %v1833 = vld [vmem:[%s345 + $0x8] sm:$0xf]
      %v1834 = vld [vmem:[%s345 + $0xc] sm:$0xf]
      %v1835 = vld [vmem:[%s345 + $0x10] sm:$0xf]
      %v1836 = vld [vmem:[%s345 + $0x14] sm:$0xf]
      %v1837 = vld [vmem:[%s345 + $0x18] sm:$0xf]
      %v1838 = vld [vmem:[%s345 + $0x1c] sm:$0xf]
      %v1839 = vld [vmem:[%s345 + $0x20] sm:$0xf]
      %v1840 = vld [vmem:[%s345 + $0x24] sm:$0xf]
      %v1851 = vunpack.c.l.b16 %v1831
      %v1852 = vunpack.c.l.b16 %v1832
      %v1853 = vunpack.c.l.b16 %v1833
      %v1854 = vunpack.c.l.b16 %v1834
      %v1855 = vunpack.c.l.b16 %v1835
      %v1856 = vunpack.c.l.b16 %v1836
      %v1857 = vunpack.c.l.b16 %v1837
      %v1858 = vunpack.c.l.b16 %v1838
      %v1859 = vunpack.c.l.b16 %v1839
      %v1860 = vunpack.c.l.b16 %v1840
      %v1861 = vpack.c.b16 %v1852, %v1851
      %v1862 = vpack.c.b16 %v1854, %v1853
      %v1863 = vpack.c.b16 %v1856, %v1855
      %v1864 = vpack.c.b16 %v1858, %v1857
      %v1865 = vpack.c.b16 %v1860, %v1859
      %1866 = vrot.lane.b32.xlu0 %v1861, 16
      %v1867 = vpop.permute.xlu0 %1866
      %1868 = vrot.lane.b32.xlu0 %v1862, 16
      %v1869 = vpop.permute.xlu0 %1868
      %1870 = vrot.lane.b32.xlu0 %v1863, 16
      %v1871 = vpop.permute.xlu0 %1870
      %1872 = vrot.lane.b32.xlu0 %v1864, 16
      %v1873 = vpop.permute.xlu0 %1872
      %1874 = vrot.lane.b32.xlu0 %v1865, 16
      %v1875 = vpop.permute.xlu0 %1874
      %1881 = vst.msk [vmem:[#allocation2 + $0x8] sm:$0xff] %vm582, %v1867
      %1882 = vst.msk [vmem:[#allocation2 + $0x18] sm:$0xff] %vm582, %v1869
      %1883 = vst.msk [vmem:[#allocation2 + $0x28] sm:$0xff] %vm582, %v1871
      %1884 = vst.msk [vmem:[#allocation2 + $0x38] sm:$0xff] %vm582, %v1873
      %1885 = vst.msk [vmem:[#allocation2 + $0x48] sm:$0xff] %vm582, %v1875
      %v1886 = vld [vmem:[%s345] sm:$0xf]
      %v1887 = vld [vmem:[%s345 + $0x4] sm:$0xf]
      %v1888 = vld [vmem:[%s345 + $0x8] sm:$0xf]
      %v1889 = vld [vmem:[%s345 + $0xc] sm:$0xf]
      %v1890 = vld [vmem:[%s345 + $0x10] sm:$0xf]
      %v1891 = vld [vmem:[%s345 + $0x14] sm:$0xf]
      %v1892 = vld [vmem:[%s345 + $0x18] sm:$0xf]
      %v1893 = vld [vmem:[%s345 + $0x1c] sm:$0xf]
      %v1894 = vld [vmem:[%s345 + $0x20] sm:$0xf]
      %v1895 = vld [vmem:[%s345 + $0x24] sm:$0xf]
      %v1896 = vld [vmem:[%s345 + $0x28] sm:$0x1]
      %v1908 = vunpack.c.l.b16 %v1886
      %v1909 = vunpack.c.l.b16 %v1887
      %v1910 = vunpack.c.l.b16 %v1888
      %v1911 = vunpack.c.l.b16 %v1889
      %v1912 = vunpack.c.l.b16 %v1890
      %v1913 = vunpack.c.l.b16 %v1891
      %v1914 = vunpack.c.l.b16 %v1892
      %v1915 = vunpack.c.l.b16 %v1893
      %v1916 = vunpack.c.l.b16 %v1894
      %v1917 = vunpack.c.l.b16 %v1895
      %v1918 = vunpack.c.l.b16 %v1896
      %v1919 = vpack.c.b16 %v1909, %v1908
      %v1920 = vpack.c.b16 %v1911, %v1910
      %v1921 = vpack.c.b16 %v1913, %v1912
      %v1922 = vpack.c.b16 %v1915, %v1914
      %v1923 = vpack.c.b16 %v1917, %v1916
      %v1924 = vpack.c.b16 %v1918, %v1918
      %v1926 = vshrl.u32 %v1919, 16
      %v1928 = vshll.u32 %v1919, 16
      %v1930 = vrot.slane %v1928, 1
      %v1931 = vor.u32 %v1926, %v1930
      %v1933 = vshll.u32 %v1920, 16
      %v1935 = vrot.slane %v1933, 1
      %v1936 = vsel %vm450, %v1931, %v1935
      %v1937 = vshrl.u32 %v1920, 16
      %v1939 = vor.u32 %v1937, %v1935
      %v1941 = vshll.u32 %v1921, 16
      %v1943 = vrot.slane %v1941, 1
      %v1944 = vsel %vm450, %v1939, %v1943
      %v1945 = vshrl.u32 %v1921, 16
      %v1947 = vor.u32 %v1945, %v1943
      %v1949 = vshll.u32 %v1922, 16
      %v1951 = vrot.slane %v1949, 1
      %v1952 = vsel %vm450, %v1947, %v1951
      %v1953 = vshrl.u32 %v1922, 16
      %v1955 = vor.u32 %v1953, %v1951
      %v1957 = vshll.u32 %v1923, 16
      %v1959 = vrot.slane %v1957, 1
      %v1960 = vsel %vm450, %v1955, %v1959
      %v1961 = vshrl.u32 %v1923, 16
      %v1963 = vor.u32 %v1961, %v1959
      %v1965 = vshll.u32 %v1924, 16
      %v1967 = vrot.slane %v1965, 1
      %v1968 = vsel %vm450, %v1963, %v1967
      %1969 = vrot.lane.b32.xlu0 %v1936, 24
      %v1970 = vpop.permute.xlu0 %1969
      %1971 = vrot.lane.b32.xlu0 %v1944, 24
      %v1972 = vpop.permute.xlu0 %1971
      %1973 = vrot.lane.b32.xlu0 %v1952, 24
      %v1974 = vpop.permute.xlu0 %1973
      %1975 = vrot.lane.b32.xlu0 %v1960, 24
      %v1976 = vpop.permute.xlu0 %1975
      %1977 = vrot.lane.b32.xlu0 %v1968, 24
      %v1978 = vpop.permute.xlu0 %1977
      %1984 = vst.msk [vmem:[#allocation2 + $0x8] sm:$0xff] %vm653, %v1970
      %1985 = vst.msk [vmem:[#allocation2 + $0x18] sm:$0xff] %vm653, %v1972
      %1986 = vst.msk [vmem:[#allocation2 + $0x28] sm:$0xff] %vm653, %v1974
      %1987 = vst.msk [vmem:[#allocation2 + $0x38] sm:$0xff] %vm653, %v1976
      %1988 = vst.msk [vmem:[#allocation2 + $0x48] sm:$0xff] %vm653, %v1978
      %v1989 = vld [vmem:[%s345] sm:$0xe]
      %v1990 = vld [vmem:[%s345 + $0x4] sm:$0xf]
      %v1991 = vld [vmem:[%s345 + $0x8] sm:$0xf]
      %v1992 = vld [vmem:[%s345 + $0xc] sm:$0xf]
      %v1993 = vld [vmem:[%s345 + $0x10] sm:$0xf]
      %v1994 = vld [vmem:[%s345 + $0x14] sm:$0xf]
      %v1995 = vld [vmem:[%s345 + $0x18] sm:$0xf]
      %v1996 = vld [vmem:[%s345 + $0x1c] sm:$0xf]
      %v1997 = vld [vmem:[%s345 + $0x20] sm:$0xf]
      %v1998 = vld [vmem:[%s345 + $0x24] sm:$0xf]
      %v1999 = vld [vmem:[%s345 + $0x28] sm:$0x1]
      %v2011 = vunpack.c.l.b16 %v1989
      %v2012 = vunpack.c.l.b16 %v1990
      %v2013 = vunpack.c.l.b16 %v1991
      %v2014 = vunpack.c.l.b16 %v1992
      %v2015 = vunpack.c.l.b16 %v1993
      %v2016 = vunpack.c.l.b16 %v1994
      %v2017 = vunpack.c.l.b16 %v1995
      %v2018 = vunpack.c.l.b16 %v1996
      %v2019 = vunpack.c.l.b16 %v1997
      %v2020 = vunpack.c.l.b16 %v1998
      %v2021 = vunpack.c.l.b16 %v1999
      %v2022 = vpack.c.b16 %v2012, %v2011
      %v2023 = vpack.c.b16 %v2014, %v2013
      %v2024 = vpack.c.b16 %v2016, %v2015
      %v2025 = vpack.c.b16 %v2018, %v2017
      %v2026 = vpack.c.b16 %v2020, %v2019
      %v2027 = vpack.c.b16 %v2021, %v2021
      %v2028 = vrot.slane %v2022, 1
      %v2029 = vrot.slane %v2023, 1
      %v2030 = vsel %vm555, %v2028, %v2029
      %v2031 = vrot.slane %v2024, 1
      %v2032 = vsel %vm555, %v2029, %v2031
      %v2033 = vrot.slane %v2025, 1
      %v2034 = vsel %vm555, %v2031, %v2033
      %v2035 = vrot.slane %v2026, 1
      %v2036 = vsel %vm555, %v2033, %v2035
      %v2037 = vrot.slane %v2027, 1
      %v2038 = vsel %vm555, %v2035, %v2037
      %2039 = vrot.lane.b32.xlu0 %v2030, 32
      %v2040 = vpop.permute.xlu0 %2039
      %2041 = vrot.lane.b32.xlu0 %v2032, 32
      %v2042 = vpop.permute.xlu0 %2041
      %2043 = vrot.lane.b32.xlu0 %v2034, 32
      %v2044 = vpop.permute.xlu0 %2043
      %2045 = vrot.lane.b32.xlu0 %v2036, 32
      %v2046 = vpop.permute.xlu0 %2045
      %2047 = vrot.lane.b32.xlu0 %v2038, 32
      %v2048 = vpop.permute.xlu0 %2047
      %2054 = vst.msk [vmem:[#allocation2 + $0x8] sm:$0xff] %vm767, %v2040
      %2055 = vst.msk [vmem:[#allocation2 + $0x18] sm:$0xff] %vm767, %v2042
      %2056 = vst.msk [vmem:[#allocation2 + $0x28] sm:$0xff] %vm767, %v2044
      %2057 = vst.msk [vmem:[#allocation2 + $0x38] sm:$0xff] %vm767, %v2046
      %2058 = vst.msk [vmem:[#allocation2 + $0x48] sm:$0xff] %vm767, %v2048
      %v2059 = vld [vmem:[%s345 + $0x4] sm:$0xe]
      %v2060 = vld [vmem:[%s345 + $0x8] sm:$0xf]
      %v2061 = vld [vmem:[%s345 + $0xc] sm:$0xf]
      %v2062 = vld [vmem:[%s345 + $0x10] sm:$0xf]
      %v2063 = vld [vmem:[%s345 + $0x14] sm:$0xf]
      %v2064 = vld [vmem:[%s345 + $0x18] sm:$0xf]
      %v2065 = vld [vmem:[%s345 + $0x1c] sm:$0xf]
      %v2066 = vld [vmem:[%s345 + $0x20] sm:$0xf]
      %v2067 = vld [vmem:[%s345 + $0x24] sm:$0xf]
      %v2068 = vld [vmem:[%s345 + $0x28] sm:$0xf]
      %v2069 = vld [vmem:[%s345 + $0x2c] sm:$0x1]
      %v2081 = vunpack.c.l.b16 %v2059
      %v2082 = vunpack.c.l.b16 %v2060
      %v2083 = vunpack.c.l.b16 %v2061
      %v2084 = vunpack.c.l.b16 %v2062
      %v2085 = vunpack.c.l.b16 %v2063
      %v2086 = vunpack.c.l.b16 %v2064
      %v2087 = vunpack.c.l.b16 %v2065
      %v2088 = vunpack.c.l.b16 %v2066
      %v2089 = vunpack.c.l.b16 %v2067
      %v2090 = vunpack.c.l.b16 %v2068
      %v2091 = vunpack.c.l.b16 %v2069
      %v2092 = vpack.c.b16 %v2082, %v2081
      %v2093 = vpack.c.b16 %v2084, %v2083
      %v2094 = vpack.c.b16 %v2086, %v2085
      %v2095 = vpack.c.b16 %v2088, %v2087
      %v2096 = vpack.c.b16 %v2090, %v2089
      %v2097 = vpack.c.b16 %v2091, %v2091
      %v2098 = vrot.slane %v2092, 1
      %v2099 = vrot.slane %v2093, 1
      %v2100 = vsel %vm555, %v2098, %v2099
      %v2101 = vrot.slane %v2094, 1
      %v2102 = vsel %vm555, %v2099, %v2101
      %v2103 = vrot.slane %v2095, 1
      %v2104 = vsel %vm555, %v2101, %v2103
      %v2105 = vrot.slane %v2096, 1
      %v2106 = vsel %vm555, %v2103, %v2105
      %v2107 = vrot.slane %v2097, 1
      %v2108 = vsel %vm555, %v2105, %v2107
      %2109 = vrot.lane.b32.xlu0 %v2100, 40
      %v2110 = vpop.permute.xlu0 %2109
      %2111 = vrot.lane.b32.xlu0 %v2102, 40
      %v2112 = vpop.permute.xlu0 %2111
      %2113 = vrot.lane.b32.xlu0 %v2104, 40
      %v2114 = vpop.permute.xlu0 %2113
      %2115 = vrot.lane.b32.xlu0 %v2106, 40
      %v2116 = vpop.permute.xlu0 %2115
      %2117 = vrot.lane.b32.xlu0 %v2108, 40
      %v2118 = vpop.permute.xlu0 %2117
      %2124 = vst.msk [vmem:[#allocation2 + $0x8] sm:$0xff] %vm839, %v2110
      %2125 = vst.msk [vmem:[#allocation2 + $0x18] sm:$0xff] %vm839, %v2112
      %2126 = vst.msk [vmem:[#allocation2 + $0x28] sm:$0xff] %vm839, %v2114
      %2127 = vst.msk [vmem:[#allocation2 + $0x38] sm:$0xff] %vm839, %v2116
      %2128 = vst.msk [vmem:[#allocation2 + $0x48] sm:$0xff] %vm839, %v2118
      %v2129 = vld [vmem:[%s345 + $0x4] sm:$0xe]
      %v2130 = vld [vmem:[%s345 + $0x8] sm:$0xf]
      %v2131 = vld [vmem:[%s345 + $0xc] sm:$0xf]
      %v2132 = vld [vmem:[%s345 + $0x10] sm:$0xf]
      %v2133 = vld [vmem:[%s345 + $0x14] sm:$0xf]
      %v2134 = vld [vmem:[%s345 + $0x18] sm:$0xf]
      %v2135 = vld [vmem:[%s345 + $0x1c] sm:$0xf]
      %v2136 = vld [vmem:[%s345 + $0x20] sm:$0xf]
      %v2137 = vld [vmem:[%s345 + $0x24] sm:$0xf]
      %v2138 = vld [vmem:[%s345 + $0x28] sm:$0xf]
      %v2139 = vld [vmem:[%s345 + $0x2c] sm:$0x3]
      %v2151 = vunpack.c.l.b16 %v2129
      %v2152 = vunpack.c.l.b16 %v2130
      %v2153 = vunpack.c.l.b16 %v2131
      %v2154 = vunpack.c.l.b16 %v2132
      %v2155 = vunpack.c.l.b16 %v2133
      %v2156 = vunpack.c.l.b16 %v2134
      %v2157 = vunpack.c.l.b16 %v2135
      %v2158 = vunpack.c.l.b16 %v2136
      %v2159 = vunpack.c.l.b16 %v2137
      %v2160 = vunpack.c.l.b16 %v2138
      %v2161 = vunpack.c.l.b16 %v2139
      %v2162 = vpack.c.b16 %v2152, %v2151
      %v2163 = vpack.c.b16 %v2154, %v2153
      %v2164 = vpack.c.b16 %v2156, %v2155
      %v2165 = vpack.c.b16 %v2158, %v2157
      %v2166 = vpack.c.b16 %v2160, %v2159
      %v2167 = vpack.c.b16 %v2161, %v2161
      %v2169 = vshrl.u32 %v2162, 16
      %v2171 = vrot.slane %v2169, 1
      %v2172 = vshll.u32 %v2162, 16
      %v2174 = vrot.slane %v2172, 2
      %v2175 = vor.u32 %v2171, %v2174
      %v2177 = vshrl.u32 %v2163, 16
      %v2179 = vrot.slane %v2177, 1
      %v2180 = vshll.u32 %v2163, 16
      %v2182 = vrot.slane %v2180, 2
      %v2183 = vor.u32 %v2179, %v2182
      %v2184 = vsel %vm698, %v2175, %v2183
      %v2186 = vshrl.u32 %v2164, 16
      %v2188 = vrot.slane %v2186, 1
      %v2189 = vshll.u32 %v2164, 16
      %v2191 = vrot.slane %v2189, 2
      %v2192 = vor.u32 %v2188, %v2191
      %v2193 = vsel %vm698, %v2183, %v2192
      %v2195 = vshrl.u32 %v2165, 16
      %v2197 = vrot.slane %v2195, 1
      %v2198 = vshll.u32 %v2165, 16
      %v2200 = vrot.slane %v2198, 2
      %v2201 = vor.u32 %v2197, %v2200
      %v2202 = vsel %vm698, %v2192, %v2201
      %v2204 = vshrl.u32 %v2166, 16
      %v2206 = vrot.slane %v2204, 1
      %v2207 = vshll.u32 %v2166, 16
      %v2209 = vrot.slane %v2207, 2
      %v2210 = vor.u32 %v2206, %v2209
      %v2211 = vsel %vm698, %v2201, %v2210
      %v2213 = vshrl.u32 %v2167, 16
      %v2215 = vrot.slane %v2213, 1
      %v2216 = vshll.u32 %v2167, 16
      %v2218 = vrot.slane %v2216, 2
      %v2219 = vor.u32 %v2215, %v2218
      %v2220 = vsel %vm698, %v2210, %v2219
      %2221 = vrot.lane.b32.xlu0 %v2184, 48
      %v2222 = vpop.permute.xlu0 %2221
      %2223 = vrot.lane.b32.xlu0 %v2193, 48
      %v2224 = vpop.permute.xlu0 %2223
      %2225 = vrot.lane.b32.xlu0 %v2202, 48
      %v2226 = vpop.permute.xlu0 %2225
      %2227 = vrot.lane.b32.xlu0 %v2211, 48
      %v2228 = vpop.permute.xlu0 %2227
      %2229 = vrot.lane.b32.xlu0 %v2220, 48
      %v2230 = vpop.permute.xlu0 %2229
      %2236 = vst.msk [vmem:[#allocation2 + $0x8] sm:$0xff] %vm910, %v2222
      %2237 = vst.msk [vmem:[#allocation2 + $0x18] sm:$0xff] %vm910, %v2224
      %2238 = vst.msk [vmem:[#allocation2 + $0x28] sm:$0xff] %vm910, %v2226
      %2239 = vst.msk [vmem:[#allocation2 + $0x38] sm:$0xff] %vm910, %v2228
      %2240 = vst.msk [vmem:[#allocation2 + $0x48] sm:$0xff] %vm910, %v2230
      %v2241 = vld [vmem:[%s345 + $0x4] sm:$0xc]
      %v2242 = vld [vmem:[%s345 + $0x8] sm:$0xf]
      %v2243 = vld [vmem:[%s345 + $0xc] sm:$0xf]
      %v2244 = vld [vmem:[%s345 + $0x10] sm:$0xf]
      %v2245 = vld [vmem:[%s345 + $0x14] sm:$0xf]
      %v2246 = vld [vmem:[%s345 + $0x18] sm:$0xf]
      %v2247 = vld [vmem:[%s345 + $0x1c] sm:$0xf]
      %v2248 = vld [vmem:[%s345 + $0x20] sm:$0xf]
      %v2249 = vld [vmem:[%s345 + $0x24] sm:$0xf]
      %v2250 = vld [vmem:[%s345 + $0x28] sm:$0xf]
      %v2251 = vld [vmem:[%s345 + $0x2c] sm:$0x3]
      %v2263 = vunpack.c.l.b16 %v2241
      %v2264 = vunpack.c.l.b16 %v2242
      %v2265 = vunpack.c.l.b16 %v2243
      %v2266 = vunpack.c.l.b16 %v2244
      %v2267 = vunpack.c.l.b16 %v2245
      %v2268 = vunpack.c.l.b16 %v2246
      %v2269 = vunpack.c.l.b16 %v2247
      %v2270 = vunpack.c.l.b16 %v2248
      %v2271 = vunpack.c.l.b16 %v2249
      %v2272 = vunpack.c.l.b16 %v2250
      %v2273 = vunpack.c.l.b16 %v2251
      %v2274 = vpack.c.b16 %v2264, %v2263
      %v2275 = vpack.c.b16 %v2266, %v2265
      %v2276 = vpack.c.b16 %v2268, %v2267
      %v2277 = vpack.c.b16 %v2270, %v2269
      %v2278 = vpack.c.b16 %v2272, %v2271
      %v2279 = vpack.c.b16 %v2273, %v2273
      %v2280 = vrot.slane %v2274, 2
      %v2281 = vrot.slane %v2275, 2
      %v2282 = vsel %vm812, %v2280, %v2281
      %v2283 = vrot.slane %v2276, 2
      %v2284 = vsel %vm812, %v2281, %v2283
      %v2285 = vrot.slane %v2277, 2
      %v2286 = vsel %vm812, %v2283, %v2285
      %v2287 = vrot.slane %v2278, 2
      %v2288 = vsel %vm812, %v2285, %v2287
      %v2289 = vrot.slane %v2279, 2
      %v2290 = vsel %vm812, %v2287, %v2289
      %2291 = vrot.lane.b32.xlu0 %v2282, 56
      %v2292 = vpop.permute.xlu0 %2291
      %2293 = vrot.lane.b32.xlu0 %v2284, 56
      %v2294 = vpop.permute.xlu0 %2293
      %2295 = vrot.lane.b32.xlu0 %v2286, 56
      %v2296 = vpop.permute.xlu0 %2295
      %2297 = vrot.lane.b32.xlu0 %v2288, 56
      %v2298 = vpop.permute.xlu0 %2297
      %2299 = vrot.lane.b32.xlu0 %v2290, 56
      %v2300 = vpop.permute.xlu0 %2299
      %2306 = vst.msk [vmem:[#allocation2 + $0x8] sm:$0xff] %vm1024, %v2292
      %2307 = vst.msk [vmem:[#allocation2 + $0x18] sm:$0xff] %vm1024, %v2294
      %2308 = vst.msk [vmem:[#allocation2 + $0x28] sm:$0xff] %vm1024, %v2296
      %2309 = vst.msk [vmem:[#allocation2 + $0x38] sm:$0xff] %vm1024, %v2298
      %2310 = vst.msk [vmem:[#allocation2 + $0x48] sm:$0xff] %vm1024, %v2300
      %v2311 = vld [vmem:[%s345 + $0x8] sm:$0xc]
      %v2312 = vld [vmem:[%s345 + $0xc] sm:$0xf]
      %v2313 = vld [vmem:[%s345 + $0x10] sm:$0xf]
      %v2314 = vld [vmem:[%s345 + $0x14] sm:$0xf]
      %v2315 = vld [vmem:[%s345 + $0x18] sm:$0xf]
      %v2316 = vld [vmem:[%s345 + $0x1c] sm:$0xf]
      %v2317 = vld [vmem:[%s345 + $0x20] sm:$0xf]
      %v2318 = vld [vmem:[%s345 + $0x24] sm:$0xf]
      %v2319 = vld [vmem:[%s345 + $0x28] sm:$0xf]
      %v2320 = vld [vmem:[%s345 + $0x2c] sm:$0xf]
      %v2321 = vld [vmem:[%s345 + $0x30] sm:$0x3]
      %v2333 = vunpack.c.l.b16 %v2311
      %v2334 = vunpack.c.l.b16 %v2312
      %v2335 = vunpack.c.l.b16 %v2313
      %v2336 = vunpack.c.l.b16 %v2314
      %v2337 = vunpack.c.l.b16 %v2315
      %v2338 = vunpack.c.l.b16 %v2316
      %v2339 = vunpack.c.l.b16 %v2317
      %v2340 = vunpack.c.l.b16 %v2318
      %v2341 = vunpack.c.l.b16 %v2319
      %v2342 = vunpack.c.l.b16 %v2320
      %v2343 = vunpack.c.l.b16 %v2321
      %v2344 = vpack.c.b16 %v2334, %v2333
      %v2345 = vpack.c.b16 %v2336, %v2335
      %v2346 = vpack.c.b16 %v2338, %v2337
      %v2347 = vpack.c.b16 %v2340, %v2339
      %v2348 = vpack.c.b16 %v2342, %v2341
      %v2349 = vpack.c.b16 %v2343, %v2343
      %v2350 = vrot.slane %v2344, 2
      %v2351 = vrot.slane %v2345, 2
      %v2352 = vsel %vm812, %v2350, %v2351
      %v2353 = vrot.slane %v2346, 2
      %v2354 = vsel %vm812, %v2351, %v2353
      %v2355 = vrot.slane %v2347, 2
      %v2356 = vsel %vm812, %v2353, %v2355
      %v2357 = vrot.slane %v2348, 2
      %v2358 = vsel %vm812, %v2355, %v2357
      %v2359 = vrot.slane %v2349, 2
      %v2360 = vsel %vm812, %v2357, %v2359
      %2361 = vrot.lane.b32.xlu0 %v2352, 64
      %v2362 = vpop.permute.xlu0 %2361
      %2363 = vrot.lane.b32.xlu0 %v2354, 64
      %v2364 = vpop.permute.xlu0 %2363
      %2365 = vrot.lane.b32.xlu0 %v2356, 64
      %v2366 = vpop.permute.xlu0 %2365
      %2367 = vrot.lane.b32.xlu0 %v2358, 64
      %v2368 = vpop.permute.xlu0 %2367
      %2369 = vrot.lane.b32.xlu0 %v2360, 64
      %v2370 = vpop.permute.xlu0 %2369
      %2376 = vst.msk [vmem:[#allocation2 + $0x8] sm:$0xff] %vm1096, %v2362
      %2377 = vst.msk [vmem:[#allocation2 + $0x18] sm:$0xff] %vm1096, %v2364
      %2378 = vst.msk [vmem:[#allocation2 + $0x28] sm:$0xff] %vm1096, %v2366
      %2379 = vst.msk [vmem:[#allocation2 + $0x38] sm:$0xff] %vm1096, %v2368
      %2380 = vst.msk [vmem:[#allocation2 + $0x48] sm:$0xff] %vm1096, %v2370
      %v2381 = vld [vmem:[%s345 + $0x8] sm:$0xc]
      %v2382 = vld [vmem:[%s345 + $0xc] sm:$0xf]
      %v2383 = vld [vmem:[%s345 + $0x10] sm:$0xf]
      %v2384 = vld [vmem:[%s345 + $0x14] sm:$0xf]
      %v2385 = vld [vmem:[%s345 + $0x18] sm:$0xf]
      %v2386 = vld [vmem:[%s345 + $0x1c] sm:$0xf]
      %v2387 = vld [vmem:[%s345 + $0x20] sm:$0xf]
      %v2388 = vld [vmem:[%s345 + $0x24] sm:$0xf]
      %v2389 = vld [vmem:[%s345 + $0x28] sm:$0xf]
      %v2390 = vld [vmem:[%s345 + $0x2c] sm:$0xf]
      %v2391 = vld [vmem:[%s345 + $0x30] sm:$0x7]
      %v2403 = vunpack.c.l.b16 %v2381
      %v2404 = vunpack.c.l.b16 %v2382
      %v2405 = vunpack.c.l.b16 %v2383
      %v2406 = vunpack.c.l.b16 %v2384
      %v2407 = vunpack.c.l.b16 %v2385
      %v2408 = vunpack.c.l.b16 %v2386
      %v2409 = vunpack.c.l.b16 %v2387
      %v2410 = vunpack.c.l.b16 %v2388
      %v2411 = vunpack.c.l.b16 %v2389
      %v2412 = vunpack.c.l.b16 %v2390
      %v2413 = vunpack.c.l.b16 %v2391
      %v2414 = vpack.c.b16 %v2404, %v2403
      %v2415 = vpack.c.b16 %v2406, %v2405
      %v2416 = vpack.c.b16 %v2408, %v2407
      %v2417 = vpack.c.b16 %v2410, %v2409
      %v2418 = vpack.c.b16 %v2412, %v2411
      %v2419 = vpack.c.b16 %v2413, %v2413
      %v2421 = vshrl.u32 %v2414, 16
      %v2423 = vrot.slane %v2421, 2
      %v2424 = vshll.u32 %v2414, 16
      %v2426 = vrot.slane %v2424, 3
      %v2427 = vor.u32 %v2423, %v2426
      %v2429 = vshrl.u32 %v2415, 16
      %v2431 = vrot.slane %v2429, 2
      %v2432 = vshll.u32 %v2415, 16
      %v2434 = vrot.slane %v2432, 3
      %v2435 = vor.u32 %v2431, %v2434
      %v2436 = vsel %vm955, %v2427, %v2435
      %v2438 = vshrl.u32 %v2416, 16
      %v2440 = vrot.slane %v2438, 2
      %v2441 = vshll.u32 %v2416, 16
      %v2443 = vrot.slane %v2441, 3
      %v2444 = vor.u32 %v2440, %v2443
      %v2445 = vsel %vm955, %v2435, %v2444
      %v2447 = vshrl.u32 %v2417, 16
      %v2449 = vrot.slane %v2447, 2
      %v2450 = vshll.u32 %v2417, 16
      %v2452 = vrot.slane %v2450, 3
      %v2453 = vor.u32 %v2449, %v2452
      %v2454 = vsel %vm955, %v2444, %v2453
      %v2456 = vshrl.u32 %v2418, 16
      %v2458 = vrot.slane %v2456, 2
      %v2459 = vshll.u32 %v2418, 16
      %v2461 = vrot.slane %v2459, 3
      %v2462 = vor.u32 %v2458, %v2461
      %v2463 = vsel %vm955, %v2453, %v2462
      %v2465 = vshrl.u32 %v2419, 16
      %v2467 = vrot.slane %v2465, 2
      %v2468 = vshll.u32 %v2419, 16
      %v2470 = vrot.slane %v2468, 3
      %v2471 = vor.u32 %v2467, %v2470
      %v2472 = vsel %vm955, %v2462, %v2471
      %2473 = vrot.lane.b32.xlu0 %v2436, 72
      %v2474 = vpop.permute.xlu0 %2473
      %2475 = vrot.lane.b32.xlu0 %v2445, 72
      %v2476 = vpop.permute.xlu0 %2475
      %2477 = vrot.lane.b32.xlu0 %v2454, 72
      %v2478 = vpop.permute.xlu0 %2477
      %2479 = vrot.lane.b32.xlu0 %v2463, 72
      %v2480 = vpop.permute.xlu0 %2479
      %2481 = vrot.lane.b32.xlu0 %v2472, 72
      %v2482 = vpop.permute.xlu0 %2481
      %2488 = vst.msk [vmem:[#allocation2 + $0x8] sm:$0xff] %vm1152, %v2474
      %2489 = vst.msk [vmem:[#allocation2 + $0x18] sm:$0xff] %vm1152, %v2476
      %2490 = vst.msk [vmem:[#allocation2 + $0x28] sm:$0xff] %vm1152, %v2478
      %2491 = vst.msk [vmem:[#allocation2 + $0x38] sm:$0xff] %vm1152, %v2480
      %2492 = vst.msk [vmem:[#allocation2 + $0x48] sm:$0xff] %vm1152, %v2482
      %v2493 = vld [vmem:[%s345 + $0x8] sm:$0x8]
      %v2494 = vld [vmem:[%s345 + $0xc] sm:$0xf]
      %v2495 = vld [vmem:[%s345 + $0x10] sm:$0xf]
      %v2496 = vld [vmem:[%s345 + $0x14] sm:$0xf]
      %v2497 = vld [vmem:[%s345 + $0x18] sm:$0xf]
      %v2498 = vld [vmem:[%s345 + $0x1c] sm:$0xf]
      %v2499 = vld [vmem:[%s345 + $0x20] sm:$0xf]
      %v2500 = vld [vmem:[%s345 + $0x24] sm:$0xf]
      %v2501 = vld [vmem:[%s345 + $0x28] sm:$0xf]
      %v2502 = vld [vmem:[%s345 + $0x2c] sm:$0xf]
      %v2503 = vld [vmem:[%s345 + $0x30] sm:$0x7]
      %v2515 = vunpack.c.l.b16 %v2493
      %v2516 = vunpack.c.l.b16 %v2494
      %v2517 = vunpack.c.l.b16 %v2495
      %v2518 = vunpack.c.l.b16 %v2496
      %v2519 = vunpack.c.l.b16 %v2497
      %v2520 = vunpack.c.l.b16 %v2498
      %v2521 = vunpack.c.l.b16 %v2499
      %v2522 = vunpack.c.l.b16 %v2500
      %v2523 = vunpack.c.l.b16 %v2501
      %v2524 = vunpack.c.l.b16 %v2502
      %v2525 = vunpack.c.l.b16 %v2503
      %v2526 = vpack.c.b16 %v2516, %v2515
      %v2527 = vpack.c.b16 %v2518, %v2517
      %v2528 = vpack.c.b16 %v2520, %v2519
      %v2529 = vpack.c.b16 %v2522, %v2521
      %v2530 = vpack.c.b16 %v2524, %v2523
      %v2531 = vpack.c.b16 %v2525, %v2525
      %v2532 = vrot.slane %v2526, 3
      %v2533 = vrot.slane %v2527, 3
      %v2534 = vsel %vm1069, %v2532, %v2533
      %v2535 = vrot.slane %v2528, 3
      %v2536 = vsel %vm1069, %v2533, %v2535
      %v2537 = vrot.slane %v2529, 3
      %v2538 = vsel %vm1069, %v2535, %v2537
      %v2539 = vrot.slane %v2530, 3
      %v2540 = vsel %vm1069, %v2537, %v2539
      %v2541 = vrot.slane %v2531, 3
      %v2542 = vsel %vm1069, %v2539, %v2541
      %2543 = vrot.lane.b32.xlu0 %v2534, 80
      %v2544 = vpop.permute.xlu0 %2543
      %2545 = vrot.lane.b32.xlu0 %v2536, 80
      %v2546 = vpop.permute.xlu0 %2545
      %2547 = vrot.lane.b32.xlu0 %v2538, 80
      %v2548 = vpop.permute.xlu0 %2547
      %2549 = vrot.lane.b32.xlu0 %v2540, 80
      %v2550 = vpop.permute.xlu0 %2549
      %2551 = vrot.lane.b32.xlu0 %v2542, 80
      %v2552 = vpop.permute.xlu0 %2551
      %2558 = vst.msk [vmem:[#allocation2 + $0x8] sm:$0xff] %vm1256, %v2544
      %2559 = vst.msk [vmem:[#allocation2 + $0x18] sm:$0xff] %vm1256, %v2546
      %2560 = vst.msk [vmem:[#allocation2 + $0x28] sm:$0xff] %vm1256, %v2548
      %2561 = vst.msk [vmem:[#allocation2 + $0x38] sm:$0xff] %vm1256, %v2550
      %2562 = vst.msk [vmem:[#allocation2 + $0x48] sm:$0xff] %vm1256, %v2552
      %v2563 = vld [vmem:[#allocation2] sm:$0xff]
      %v2564 = vld [vmem:[#allocation2 + $0x8] sm:$0xff]
      %v2565 = vld [vmem:[#allocation2 + $0x10] sm:$0xff]
      %v2566 = vld [vmem:[#allocation2 + $0x18] sm:$0xff]
      %v2567 = vld [vmem:[#allocation2 + $0x20] sm:$0xff]
      %v2568 = vld [vmem:[#allocation2 + $0x28] sm:$0xff]
      %v2569 = vld [vmem:[#allocation2 + $0x30] sm:$0xff]
      %v2570 = vld [vmem:[#allocation2 + $0x38] sm:$0xff]
      %v2571 = vld [vmem:[#allocation2 + $0x40] sm:$0xff]
      %v2572 = vld [vmem:[#allocation2 + $0x48] sm:$0xff]
      %v2573 = vld [vmem:[%s3] sm:$0xf]
      %v2574 = vld [vmem:[%s3 + $0x4] sm:$0xf]
      %v2575 = vld [vmem:[%s3 + $0x8] sm:$0xf]
      %v2576 = vld [vmem:[%s3 + $0xc] sm:$0xf]
      %v2577 = vld [vmem:[%s3 + $0x10] sm:$0xf]
      %v2578 = vld [vmem:[%s3 + $0x14] sm:$0xf]
      %v2579 = vld [vmem:[%s3 + $0x18] sm:$0xf]
      %v2580 = vld [vmem:[%s3 + $0x1c] sm:$0xf]
      %v2581 = vld [vmem:[%s3 + $0x20] sm:$0xf]
      %v2582 = vld [vmem:[%s3 + $0x24] sm:$0xf]
      %v2583 = vld [vmem:[%s3 + $0x28] sm:$0xf]
      %v2584 = vld [vmem:[%s3 + $0x2c] sm:$0xf]
      %v2585 = vld [vmem:[%s3 + $0x30] sm:$0xf]
      %v2586 = vld [vmem:[%s3 + $0x34] sm:$0xf]
      %v2587 = vld [vmem:[%s3 + $0x38] sm:$0xf]
      %v2588 = vld [vmem:[%s3 + $0x3c] sm:$0xf]
      %v2589 = vld [vmem:[%s3 + $0x40] sm:$0xf]
      %v2590 = vld [vmem:[%s3 + $0x44] sm:$0xf]
      %v2591 = vld [vmem:[%s3 + $0x48] sm:$0xf]
      %v2592 = vld [vmem:[%s3 + $0x4c] sm:$0xf]
      %v2593 = vld [vmem:[%s3 + $0x50] sm:$0xf]
      %v2594 = vld [vmem:[%s3 + $0x54] sm:$0xf]
      %v2595 = vld [vmem:[%s3 + $0x58] sm:$0xf]
      %v2596 = vld [vmem:[%s3 + $0x5c] sm:$0xf]
      %v2597 = vld [vmem:[%s3 + $0x60] sm:$0xf]
      %v2598 = vld [vmem:[%s3 + $0x64] sm:$0xf]
      %v2599 = vld [vmem:[%s3 + $0x68] sm:$0xf]
      %v2627 = vunpack.c.l.b16 %v2573
      %v2628 = vunpack.c.l.b16 %v2574
      %v2629 = vunpack.c.l.b16 %v2575
      %v2630 = vunpack.c.l.b16 %v2576
      %v2631 = vunpack.c.l.b16 %v2577
      %v2632 = vunpack.c.l.b16 %v2578
      %v2633 = vunpack.c.l.b16 %v2579
      %v2634 = vunpack.c.l.b16 %v2580
      %v2635 = vunpack.c.l.b16 %v2581
      %v2636 = vunpack.c.l.b16 %v2582
      %v2637 = vunpack.c.l.b16 %v2583
      %v2638 = vunpack.c.l.b16 %v2584
      %v2639 = vunpack.c.l.b16 %v2585
      %v2640 = vunpack.c.l.b16 %v2586
      %v2641 = vunpack.c.l.b16 %v2587
      %v2642 = vunpack.c.l.b16 %v2588
      %v2643 = vunpack.c.l.b16 %v2589
      %v2644 = vunpack.c.l.b16 %v2590
      %v2645 = vunpack.c.l.b16 %v2591
      %v2646 = vunpack.c.l.b16 %v2592
      %v2647 = vunpack.c.l.b16 %v2593
      %v2648 = vunpack.c.l.b16 %v2594
      %v2649 = vunpack.c.l.b16 %v2595
      %v2650 = vunpack.c.l.b16 %v2596
      %v2651 = vunpack.c.l.b16 %v2597
      %v2652 = vunpack.c.l.b16 %v2598
      %v2653 = vunpack.c.l.b16 %v2599
      %v2654 = vpack.c.b16 %v2628, %v2627
      %v2655 = vpack.c.b16 %v2630, %v2629
      %v2656 = vpack.c.b16 %v2632, %v2631
      %v2657 = vpack.c.b16 %v2634, %v2633
      %v2658 = vpack.c.b16 %v2636, %v2635
      %v2659 = vpack.c.b16 %v2638, %v2637
      %v2660 = vpack.c.b16 %v2640, %v2639
      %v2661 = vpack.c.b16 %v2642, %v2641
      %v2662 = vpack.c.b16 %v2644, %v2643
      %v2663 = vpack.c.b16 %v2646, %v2645
      %v2664 = vpack.c.b16 %v2648, %v2647
      %v2665 = vpack.c.b16 %v2650, %v2649
      %v2666 = vpack.c.b16 %v2652, %v2651
      %v2667 = vpack.c.b16 %v2653, %v2653
      %vm2681 = vcmask 719872
      %v2683 = vsel %vm2681, %v2564, 0
      %v2686 = vsel %vm2681, %v2566, 0
      %v2689 = vsel %vm2681, %v2568, 0
      %v2692 = vsel %vm2681, %v2570, 0
      %v2695 = vsel %vm2681, %v2572, 0
      %vm2697 = vcmask 1043456
      %v2699 = vsel %vm2697, %v2667, 0
      %2701 = vmatprep.subr.bf16.mxu0 0
      %2702 = vmatpush1.bf16.msra.mxu0 %v2654
      %2703 = vmatprep.subr.bf16.mxu0 0
      %2704 = vmatpush1.bf16.msra.mxu0 %v2655
      %2705 = vmatprep.subr.bf16.mxu0 0
      %2706 = vmatpush1.bf16.msra.mxu0 %v2656
      %2707 = vmatprep.subr.bf16.mxu0 0
      %2708 = vmatpush1.bf16.msra.mxu0 %v2657
      %2709 = vmatprep.subr.bf16.mxu0 0
      %2710 = vmatpush1.bf16.msra.mxu0 %v2658
      %2711 = vmatprep.subr.bf16.mxu0 0
      %2712 = vmatpush1.bf16.msra.mxu0 %v2659
      %2713 = vmatprep.subr.bf16.mxu0 0
      %2714 = vmatpush1.bf16.msra.mxu0 %v2660
      %2715 = vmatprep.subr.bf16.mxu0 0
      %2716 = vmatpush1.bf16.msra.mxu0 %v2661
      %2717 = vmatprep.subr.bf16.mxu0 0
      %2718 = vmatpush1.bf16.msra.mxu0 %v2662
      %2719 = vmatprep.subr.bf16.mxu0 0
      %2720 = vmatpush1.bf16.msra.mxu0 %v2663
      %2721 = vmatprep.subr.bf16.mxu0 0
      %2722 = vmatpush1.bf16.msra.mxu0 %v2664
      %2723 = vmatprep.subr.bf16.mxu0 0
      %2724 = vmatpush1.bf16.msra.mxu0 %v2665
      %2725 = vmatprep.subr.bf16.mxu0 0
      %2726 = vmatpush1.bf16.msra.mxu0 %v2666
      %2727 = vmatprep.subr.bf16.mxu0 0
      %2728 = vmatpush1.bf16.msra.mxu0 %v2699
      %2729 = vmatprep.subr.bf16.mxu0 0
      %2730 = vmatpush1.bf16.msra.mxu0 0
      %2731 = vmatprep.subr.bf16.mxu0 0
      %2732 = vmatpush1.bf16.msra.mxu0 0
      %2733 = vmatprep.mubr.bf16.mxu0 %v2683
      %2734 = vmatmul.mubr.bf16.gmra.mrb[0].mxu0 %v2563
      %v2735 = vpop.f32.mrb[0].mxu0
      %v2736 = vadd.f32 0.0, %v2735
      %v2737 = vpop.f32.mrb[0].mxu0
      %v2738 = vpop.f32.mrb[0].mxu0
      %v2739 = vadd.f32 0.0, %v2738
      %v2740 = vpop.f32.mrb[0].mxu0
      %2741 = vmatprep.mubr.bf16.mxu0 %v2686
      %2742 = vmatmul.mubr.bf16.gmra.mrb[0].mxu0 %v2565
      %v2743 = vpop.f32.mrb[0].mxu0
      %v2744 = vadd.f32 0.0, %v2743
      %v2745 = vpop.f32.mrb[0].mxu0
      %v2746 = vpop.f32.mrb[0].mxu0
      %v2747 = vadd.f32 0.0, %v2746
      %v2748 = vpop.f32.mrb[0].mxu0
      %2749 = vmatprep.mubr.bf16.mxu0 %v2689
      %2750 = vmatmul.mubr.bf16.gmra.mrb[0].mxu0 %v2567
      %v2751 = vpop.f32.mrb[0].mxu0
      %v2752 = vadd.f32 0.0, %v2751
      %v2753 = vpop.f32.mrb[0].mxu0
      %v2754 = vpop.f32.mrb[0].mxu0
      %v2755 = vadd.f32 0.0, %v2754
      %v2756 = vpop.f32.mrb[0].mxu0
      %2757 = vmatprep.mubr.bf16.mxu0 %v2692
      %2758 = vmatmul.mubr.bf16.gmra.mrb[0].mxu0 %v2569
      %v2759 = vpop.f32.mrb[0].mxu0
      %v2760 = vadd.f32 0.0, %v2759
      %v2761 = vpop.f32.mrb[0].mxu0
      %v2762 = vpop.f32.mrb[0].mxu0
      %v2763 = vadd.f32 0.0, %v2762
      %v2764 = vpop.f32.mrb[0].mxu0
      %2765 = vmatprep.mubr.bf16.mxu0 %v2695
      %2766 = vmatmul.mubr.bf16.gmra.mrb[0].mxu0 %v2571
      %v2767 = vpop.f32.mrb[0].mxu0
      %v2768 = vadd.f32 0.0, %v2767
      %v2769 = vpop.f32.mrb[0].mxu0
      %v2770 = vpop.f32.mrb[0].mxu0
      %v2771 = vadd.f32 0.0, %v2770
      %v2772 = vpop.f32.mrb[0].mxu0
      %2773 = vdwg.mxu0
      %2774 = vst [vmem:[%s355] sm:$0xff] %v2736
      %2775 = vst [vmem:[%s355 + $0x8] sm:$0xff] %v2739
      %2776 = vst [vmem:[%s355 + $0x10] sm:$0xff] %v2744
      %2777 = vst [vmem:[%s355 + $0x18] sm:$0xff] %v2747
      %2778 = vst [vmem:[%s355 + $0x20] sm:$0xff] %v2752
      %2779 = vst [vmem:[%s355 + $0x28] sm:$0xff] %v2755
      %2780 = vst [vmem:[%s355 + $0x30] sm:$0xff] %v2760
      %2781 = vst [vmem:[%s355 + $0x38] sm:$0xff] %v2763
      %2782 = vst [vmem:[%s355 + $0x40] sm:$0xff] %v2768
      %2783 = vst [vmem:[%s355 + $0x48] sm:$0xff] %v2771
      %v2784 = vlaneseq
      %v2785 = vshrl.u32 %v2784, 7
      %v2786 = vadd.s32 %v2785, 8
      %v2787 = vadd.s32 %v2785, 16
      %v2788 = vadd.s32 %v2785, 24
      %v2789 = vadd.s32 %v2785, 32
      %v2790 = vadd.s32 %v2785, 40
      %v2791 = vadd.s32 %v2785, 48
      %v2792 = vadd.s32 %v2785, 56
      %v2793 = vadd.s32 %v2785, 64
      %v2794 = vadd.s32 %v2785, 72
      %vm2795 = vcmp.lt.s32.totalorder %v2785, 0
      %v2796 = vsub.s32 0, %v2785
      %v2797 = vsel %vm2795, %v2796, %v2785
      %v2798 = vmul.u32.u64.compose %v2797, 3435973837
      %v2799 = vextract.low.u32 %v2798
      %v2800 = vextract.high.u32 %v2798
      %v2801 = vshrl.u32 %v2800, 3
      %v2802 = vmul.u32 %v2801, 10
      %v2803 = vsub.s32 %v2797, %v2802
      %v2804 = vsub.s32 0, %v2803
      %v2805 = vsel %vm2795, %v2804, %v2803
      %vm2806 = vcmp.lt.s32.totalorder %v2786, 0
      %v2807 = vsub.s32 0, %v2786
      %v2808 = vsel %vm2806, %v2807, %v2786
      %v2809 = vmul.u32.u64.compose %v2808, 3435973837
      %v2810 = vextract.low.u32 %v2809
      %v2811 = vextract.high.u32 %v2809
      %v2812 = vshrl.u32 %v2811, 3
      %v2813 = vmul.u32 %v2812, 10
      %v2814 = vsub.s32 %v2808, %v2813
      %v2815 = vsub.s32 0, %v2814
      %v2816 = vsel %vm2806, %v2815, %v2814
      %vm2817 = vcmp.lt.s32.totalorder %v2787, 0
      %v2818 = vsub.s32 0, %v2787
      %v2819 = vsel %vm2817, %v2818, %v2787
      %v2820 = vmul.u32.u64.compose %v2819, 3435973837
      %v2821 = vextract.low.u32 %v2820
      %v2822 = vextract.high.u32 %v2820
      %v2823 = vshrl.u32 %v2822, 3
      %v2824 = vmul.u32 %v2823, 10
      %v2825 = vsub.s32 %v2819, %v2824
      %v2826 = vsub.s32 0, %v2825
      %v2827 = vsel %vm2817, %v2826, %v2825
      %vm2828 = vcmp.lt.s32.totalorder %v2788, 0
      %v2829 = vsub.s32 0, %v2788
      %v2830 = vsel %vm2828, %v2829, %v2788
      %v2831 = vmul.u32.u64.compose %v2830, 3435973837
      %v2832 = vextract.low.u32 %v2831
      %v2833 = vextract.high.u32 %v2831
      %v2834 = vshrl.u32 %v2833, 3
      %v2835 = vmul.u32 %v2834, 10
      %v2836 = vsub.s32 %v2830, %v2835
      %v2837 = vsub.s32 0, %v2836
      %v2838 = vsel %vm2828, %v2837, %v2836
      %vm2839 = vcmp.lt.s32.totalorder %v2789, 0
      %v2840 = vsub.s32 0, %v2789
      %v2841 = vsel %vm2839, %v2840, %v2789
      %v2842 = vmul.u32.u64.compose %v2841, 3435973837
      %v2843 = vextract.low.u32 %v2842
      %v2844 = vextract.high.u32 %v2842
      %v2845 = vshrl.u32 %v2844, 3
      %v2846 = vmul.u32 %v2845, 10
      %v2847 = vsub.s32 %v2841, %v2846
      %v2848 = vsub.s32 0, %v2847
      %v2849 = vsel %vm2839, %v2848, %v2847
      %vm2850 = vcmp.lt.s32.totalorder %v2790, 0
      %v2851 = vsub.s32 0, %v2790
      %v2852 = vsel %vm2850, %v2851, %v2790
      %v2853 = vmul.u32.u64.compose %v2852, 3435973837
      %v2854 = vextract.low.u32 %v2853
      %v2855 = vextract.high.u32 %v2853
      %v2856 = vshrl.u32 %v2855, 3
      %v2857 = vmul.u32 %v2856, 10
      %v2858 = vsub.s32 %v2852, %v2857
      %v2859 = vsub.s32 0, %v2858
      %v2860 = vsel %vm2850, %v2859, %v2858
      %vm2861 = vcmp.lt.s32.totalorder %v2791, 0
      %v2862 = vsub.s32 0, %v2791
      %v2863 = vsel %vm2861, %v2862, %v2791
      %v2864 = vmul.u32.u64.compose %v2863, 3435973837
      %v2865 = vextract.low.u32 %v2864
      %v2866 = vextract.high.u32 %v2864
      %v2867 = vshrl.u32 %v2866, 3
      %v2868 = vmul.u32 %v2867, 10
      %v2869 = vsub.s32 %v2863, %v2868
      %v2870 = vsub.s32 0, %v2869
      %v2871 = vsel %vm2861, %v2870, %v2869
      %vm2872 = vcmp.lt.s32.totalorder %v2792, 0
      %v2873 = vsub.s32 0, %v2792
      %v2874 = vsel %vm2872, %v2873, %v2792
      %v2875 = vmul.u32.u64.compose %v2874, 3435973837
      %v2876 = vextract.low.u32 %v2875
      %v2877 = vextract.high.u32 %v2875
      %v2878 = vshrl.u32 %v2877, 3
      %v2879 = vmul.u32 %v2878, 10
      %v2880 = vsub.s32 %v2874, %v2879
      %v2881 = vsub.s32 0, %v2880
      %v2882 = vsel %vm2872, %v2881, %v2880
      %vm2883 = vcmp.lt.s32.totalorder %v2793, 0
      %v2884 = vsub.s32 0, %v2793
      %v2885 = vsel %vm2883, %v2884, %v2793
      %v2886 = vmul.u32.u64.compose %v2885, 3435973837
      %v2887 = vextract.low.u32 %v2886
      %v2888 = vextract.high.u32 %v2886
      %v2889 = vshrl.u32 %v2888, 3
      %v2890 = vmul.u32 %v2889, 10
      %v2891 = vsub.s32 %v2885, %v2890
      %v2892 = vsub.s32 0, %v2891
      %v2893 = vsel %vm2883, %v2892, %v2891
      %vm2894 = vcmp.lt.s32.totalorder %v2794, 0
      %v2895 = vsub.s32 0, %v2794
      %v2896 = vsel %vm2894, %v2895, %v2794
      %v2897 = vmul.u32.u64.compose %v2896, 3435973837
      %v2898 = vextract.low.u32 %v2897
      %v2899 = vextract.high.u32 %v2897
      %v2900 = vshrl.u32 %v2899, 3
      %v2901 = vmul.u32 %v2900, 10
      %v2902 = vsub.s32 %v2896, %v2901
      %v2903 = vsub.s32 0, %v2902
      %v2904 = vsel %vm2894, %v2903, %v2902
      %vm2905 = vcmp.ne.s32.totalorder %v2805, 0
      %vm2906 = vcmp.ne.s32.totalorder %v2816, 0
      %vm2907 = vcmp.ne.s32.totalorder %v2827, 0
      %vm2908 = vcmp.ne.s32.totalorder %v2838, 0
      %vm2909 = vcmp.ne.s32.totalorder %v2849, 0
      %vm2910 = vcmp.ne.s32.totalorder %v2860, 0
      %vm2911 = vcmp.ne.s32.totalorder %v2871, 0
      %vm2912 = vcmp.ne.s32.totalorder %v2882, 0
      %vm2913 = vcmp.ne.s32.totalorder %v2893, 0
      %vm2914 = vcmp.ne.s32.totalorder %v2904, 0
      %vm2915 = vcmp.lt.s32.totalorder %v2805, 0
      %vm2916 = vcmp.lt.s32.totalorder %v2816, 0
      %vm2917 = vcmp.lt.s32.totalorder %v2827, 0
      %vm2918 = vcmp.lt.s32.totalorder %v2838, 0
      %vm2919 = vcmp.lt.s32.totalorder %v2849, 0
      %vm2920 = vcmp.lt.s32.totalorder %v2860, 0
      %vm2921 = vcmp.lt.s32.totalorder %v2871, 0
      %vm2922 = vcmp.lt.s32.totalorder %v2882, 0
      %vm2923 = vcmp.lt.s32.totalorder %v2893, 0
      %vm2924 = vcmp.lt.s32.totalorder %v2904, 0
      %vm2925 = vmand %vm2915, %vm2905
      %vm2926 = vmand %vm2916, %vm2906
      %vm2927 = vmand %vm2917, %vm2907
      %vm2928 = vmand %vm2918, %vm2908
      %vm2929 = vmand %vm2919, %vm2909
      %vm2930 = vmand %vm2920, %vm2910
      %vm2931 = vmand %vm2921, %vm2911
      %vm2932 = vmand %vm2922, %vm2912
      %vm2933 = vmand %vm2923, %vm2913
      %vm2934 = vmand %vm2924, %vm2914
      %v2935 = vadd.s32 %v2805, 10
      %v2936 = vadd.s32 %v2816, 10
      %v2937 = vadd.s32 %v2827, 10
      %v2938 = vadd.s32 %v2838, 10
      %v2939 = vadd.s32 %v2849, 10
      %v2940 = vadd.s32 %v2860, 10
      %v2941 = vadd.s32 %v2871, 10
      %v2942 = vadd.s32 %v2882, 10
      %v2943 = vadd.s32 %v2893, 10
      %v2944 = vadd.s32 %v2904, 10
      %v2945 = vsel %vm2925, %v2935, %v2805
      %v2946 = vsel %vm2926, %v2936, %v2816
      %v2947 = vsel %vm2927, %v2937, %v2827
      %v2948 = vsel %vm2928, %v2938, %v2838
      %v2949 = vsel %vm2929, %v2939, %v2849
      %v2950 = vsel %vm2930, %v2940, %v2860
      %v2951 = vsel %vm2931, %v2941, %v2871
      %v2952 = vsel %vm2932, %v2942, %v2882
      %v2953 = vsel %vm2933, %v2943, %v2893
      %v2954 = vsel %vm2934, %v2944, %v2904
      %vm2955 = vcmp.lt.s32.totalorder %v2945, 8
      %vm2956 = vcmp.lt.s32.totalorder %v2946, 8
      %vm2957 = vcmp.lt.s32.totalorder %v2947, 8
      %vm2958 = vcmp.lt.s32.totalorder %v2948, 8
      %vm2959 = vcmp.lt.s32.totalorder %v2949, 8
      %vm2960 = vcmp.lt.s32.totalorder %v2950, 8
      %vm2961 = vcmp.lt.s32.totalorder %v2951, 8
      %vm2962 = vcmp.lt.s32.totalorder %v2952, 8
      %vm2963 = vcmp.lt.s32.totalorder %v2953, 8
      %vm2964 = vcmp.lt.s32.totalorder %v2954, 8
      %v2965 = vsel %vm2955, 1, 0
      %v2966 = vsel %vm2956, 1, 0
      %v2967 = vsel %vm2957, 1, 0
      %v2968 = vsel %vm2958, 1, 0
      %v2969 = vsel %vm2959, 1, 0
      %v2970 = vsel %vm2960, 1, 0
      %v2971 = vsel %vm2961, 1, 0
      %v2972 = vsel %vm2962, 1, 0
      %v2973 = vsel %vm2963, 1, 0
      %v2974 = vsel %vm2964, 1, 0
      %v2975 = vcvt.s32.f32 %v2965
      %v2976 = vcvt.s32.f32 %v2966
      %v2977 = vcvt.s32.f32 %v2967
      %v2978 = vcvt.s32.f32 %v2968
      %v2979 = vcvt.s32.f32 %v2969
      %v2980 = vcvt.s32.f32 %v2970
      %v2981 = vcvt.s32.f32 %v2971
      %v2982 = vcvt.s32.f32 %v2972
      %v2983 = vcvt.s32.f32 %v2973
      %v2984 = vcvt.s32.f32 %v2974
      %v2985 = vmul.f32 %v2736, %v2975
      %v2986 = vmul.f32 %v2739, %v2976
      %v2987 = vmul.f32 %v2744, %v2977
      %v2988 = vmul.f32 %v2747, %v2978
      %v2989 = vmul.f32 %v2752, %v2979
      %v2990 = vmul.f32 %v2755, %v2980
      %v2991 = vmul.f32 %v2760, %v2981
      %v2992 = vmul.f32 %v2763, %v2982
      %v2993 = vmul.f32 %v2768, %v2983
      %v2994 = vmul.f32 %v2771, %v2984
      %v2995 = vadd.f32 %v2985, %v2986
      %v2996 = vadd.f32 %v2995, %v2987
      %v2997 = vadd.f32 %v2996, %v2988
      %v2998 = vadd.f32 %v2997, %v2989
      %v2999 = vadd.f32 %v2998, %v2990
      %v3000 = vadd.f32 %v2999, %v2991
      %v3001 = vadd.f32 %v3000, %v2992
      %v3002 = vadd.f32 %v3001, %v2993
      %v3003 = vadd.f32 %v3002, %v2994
      %v3004 = vrot.slane %v3003, 4
      %v3005 = vadd.f32 %v3003, %v3004
      %v3006 = vrot.slane %v3005, 2
      %v3007 = vadd.f32 %v3005, %v3006
      %v3008 = vrot.slane %v3007, 1
      %v3009 = vadd.f32 %v3007, %v3008
      %v3010 = vmul.f32 %v2985, %v2985
      %v3011 = vmul.f32 %v2986, %v2986
      %v3012 = vmul.f32 %v2987, %v2987
      %v3013 = vmul.f32 %v2988, %v2988
      %v3014 = vmul.f32 %v2989, %v2989
      %v3015 = vmul.f32 %v2990, %v2990
      %v3016 = vmul.f32 %v2991, %v2991
      %v3017 = vmul.f32 %v2992, %v2992
      %v3018 = vmul.f32 %v2993, %v2993
      %v3019 = vmul.f32 %v2994, %v2994
      %v3020 = vadd.f32 %v3010, %v3011
      %v3021 = vadd.f32 %v3020, %v3012
      %v3022 = vadd.f32 %v3021, %v3013
      %v3023 = vadd.f32 %v3022, %v3014
      %v3024 = vadd.f32 %v3023, %v3015
      %v3025 = vadd.f32 %v3024, %v3016
      %v3026 = vadd.f32 %v3025, %v3017
      %v3027 = vadd.f32 %v3026, %v3018
      %v3028 = vadd.f32 %v3027, %v3019
      %v3029 = vrot.slane %v3028, 4
      %v3030 = vadd.f32 %v3028, %v3029
      %v3031 = vrot.slane %v3030, 2
      %v3032 = vadd.f32 %v3030, %v3031
      %v3033 = vrot.slane %v3032, 1
      %v3034 = vadd.f32 %v3032, %v3033
      %vm3035 = vcmask 1040384
      %v3036 = vsel %vm3035, %v3009, %v3034
      %3037 = vst [vmem:[%s363] sm:$0x3] %v3036
      %p3038 = scmp.lt.s32.totalorder %s21, 1
      %s3039 = scalar_select %p3038, %s21, 1
      %p3040 = scmp.lt.s32.totalorder %s22, 7
      %s3041 = scalar_select %p3040, %s22, 7
      %s3042 = smul.addr %s3041, 10
      %s3043 = smul.addr %s3039, 80
      %s3044 = sadd.s32 %s3042, %s3043
      %s3045 = smul.addr %s3044, 8
      %s3046 = scalar_lea.vmem %s4, %s3045
      %p3047 = scmp.lt.s32.totalorder %s21, 1
      %s3048 = scalar_select %p3047, %s21, 1
      %p3049 = scmp.lt.s32.totalorder %s22, 7
      %s3050 = scalar_select %p3049, %s22, 7
      %s3051 = smul.addr %s3048, 8
      %s3052 = sadd.s32 %s3050, %s3051
      %s3053 = smul.addr %s3052, 2
      %s3054 = scalar_lea.vmem %s5, %s3053
      // Predicated region
      $region37: #{up_forward.4} parent=35 // pred_check
        %p3055 = pneg %p158
      $region38: #{up_forward.4} parent=35 // pred_check_branch
        %3057 = sbr.rel (%p3055) target = $region40
      $region39: #{up_forward.4} parent=35 // pred_region
        _
      $region40: #{up_forward.4} parent=35 // pred_fallthru
        _
      // Predicated region
      $region41: #{up_forward.4} parent=35 // pred_check
        %p3058 = pneg %p186
      $region42: #{up_forward.4} parent=35 // pred_check_branch
        %3060 = sbr.rel (%p3058) target = $region44
      $region43: #{up_forward.4} parent=35 // pred_region
        _
      $region44: #{up_forward.4} parent=35 // pred_fallthru
        _
    $region36: #{up_forward.4} parent=5 // pred_fallthru
      _
    %p3061 = scmp.le.s32.totalorder 2, %s12
    // Predicated region
    $region45: #{up_forward.4} parent=5 // pred_check
      %p3062 = pneg %p3061
    $region46: #{up_forward.4} parent=5 // pred_check_branch
      %3064 = sbr.rel (%p3062) target = $region48
    $region47: #{up_forward.4} parent=5 // pred_region
      %s3065 = ssub.s32 %s12, 2
      // Predicated region
      $region49: #{up_forward.4} parent=47 // pred_check
        %p3066 = pneg %p164
      $region50: #{up_forward.4} parent=47 // pred_check_branch
        %3068 = sbr.rel (%p3066) target = $region52
      $region51: #{up_forward.4} parent=47 // pred_region
        %p3069 = scmp.lt.s32.totalorder %s23, 1
        %s3070 = scalar_select %p3069, %s23, 1
        %p3071 = scmp.lt.s32.totalorder %s24, 7
        %s3072 = scalar_select %p3071, %s24, 7
        %s3073 = smul.addr %s3072, 10
        %s3074 = smul.addr %s3070, 80
        %s3075 = sadd.s32 %s3073, %s3074
        %s3076 = smul.addr %s3075, 8
        %s3077 = scalar_lea.vmem %s4, %s3076
      $region52: #{up_forward.4} parent=47 // pred_fallthru
        _
      // Predicated region
      $region53: #{up_forward.4} parent=47 // pred_check
        %p3078 = pneg %p192
      $region54: #{up_forward.4} parent=47 // pred_check_branch
        %3080 = sbr.rel (%p3078) target = $region56
      $region55: #{up_forward.4} parent=47 // pred_region
        %p3081 = scmp.lt.s32.totalorder %s23, 1
        %s3082 = scalar_select %p3081, %s23, 1
        %p3083 = scmp.lt.s32.totalorder %s24, 7
        %s3084 = scalar_select %p3083, %s24, 7
        %s3085 = smul.addr %s3082, 8
        %s3086 = sadd.s32 %s3084, %s3085
        %s3087 = smul.addr %s3086, 2
        %s3088 = scalar_lea.vmem %s5, %s3087
      $region56: #{up_forward.4} parent=47 // pred_fallthru
        _
    $region48: #{up_forward.4} parent=5 // pred_fallthru
      _
  $region6: #{up_forward.4} parent=0 // loop_footer
    %s16 = sadd.s32 1, %s12
  $region7: #{up_forward.4} parent=0 // loop_footer_branch
    %11 = sbr.rel target = $region3
  $region8: #{up_forward.4} parent=0 // loop_exit
    _

// kernel: up_forward.7
$region0: #{up_forward.7}
  #allocation0 [shape = 'u32[]', space=smem, size = 0x4, offset = 0x4, fixed_abs, tag = 'smem constant byte address 0x4 - core index']
  #allocation1 [shape = 'u32[144,128]{1,0:T(1,128)}', space=vmem, size = 0x12000, scoped, tag = 'internal scratch']
  %s0 = inlined_call_operand.vmem [shape: f32[1280,128], index: 0, kind: input, shape index: {}]
  %s1 = inlined_call_operand.vmem [shape: f32[2,128], index: 1, kind: input, shape index: {}]
  %s2 = inlined_call_operand.vmem [shape: f32[1280,128], index: 2, kind: output, shape index: {}]
  %s3 = sld [smem:[#allocation0]]
  $region18: #{up_forward.7} parent=0
    _
  %s5 = ssub.s32 1, %s3
  %s6 = scalar_select 0, %s5, %s3
  // Predicated region
  $region2: #{up_forward.7} parent=0 // pred_check
    _
  $region3: #{up_forward.7} parent=0 // pred_check_branch
    %8 = sbr.rel (0) target = $region5
  $region4: #{up_forward.7} parent=0 // pred_region
    _
  $region5: #{up_forward.7} parent=0 // pred_fallthru
    _
  // Predicated region
  $region6: #{up_forward.7} parent=0 // pred_check
    _
  $region7: #{up_forward.7} parent=0 // pred_check_branch
    %10 = sbr.rel (0) target = $region9
  $region8: #{up_forward.7} parent=0 // pred_region
    _
  $region9: #{up_forward.7} parent=0 // pred_fallthru
    _
  %v11 = vld [vmem:[%s1] sm:$0x1]
  %v12 = vld [vmem:[%s1 + $0x1] sm:$0x1]
  %v13 = vld [vmem:[%s0] sm:$0xff]
  %v14 = vld [vmem:[%s0 + $0x8] sm:$0xff]
  %v15 = vld [vmem:[%s0 + $0x10] sm:$0xff]
  %v16 = vld [vmem:[%s0 + $0x18] sm:$0xff]
  %v17 = vld [vmem:[%s0 + $0x20] sm:$0xff]
  %v18 = vld [vmem:[%s0 + $0x28] sm:$0xff]
  %v19 = vld [vmem:[%s0 + $0x30] sm:$0xff]
  %v20 = vld [vmem:[%s0 + $0x38] sm:$0xff]
  %v21 = vld [vmem:[%s0 + $0x40] sm:$0xff]
  %v22 = vld [vmem:[%s0 + $0x48] sm:$0xff]
  %v23 = vld [vmem:[%s0 + $0x50] sm:$0xff]
  %v24 = vld [vmem:[%s0 + $0x58] sm:$0xff]
  %v25 = vld [vmem:[%s0 + $0x60] sm:$0xff]
  %v26 = vld [vmem:[%s0 + $0x68] sm:$0xff]
  %v27 = vld [vmem:[%s0 + $0x70] sm:$0xff]
  %v28 = vld [vmem:[%s0 + $0x78] sm:$0xff]
  %v29 = vld [vmem:[%s0 + $0x80] sm:$0xff]
  %v30 = vld [vmem:[%s0 + $0x88] sm:$0xff]
  %v31 = vld [vmem:[%s0 + $0x90] sm:$0xff]
  %v32 = vld [vmem:[%s0 + $0x98] sm:$0xff]
  %v33 = vld [vmem:[%s0 + $0xa0] sm:$0xff]
  %v34 = vld [vmem:[%s0 + $0xa8] sm:$0xff]
  %v35 = vld [vmem:[%s0 + $0xb0] sm:$0xff]
  %v36 = vld [vmem:[%s0 + $0xb8] sm:$0xff]
  %v37 = vld [vmem:[%s0 + $0xc0] sm:$0xff]
  %v38 = vld [vmem:[%s0 + $0xc8] sm:$0xff]
  %v39 = vld [vmem:[%s0 + $0xd0] sm:$0xff]
  %v40 = vld [vmem:[%s0 + $0xd8] sm:$0xff]
  %v41 = vld [vmem:[%s0 + $0xe0] sm:$0xff]
  %v42 = vld [vmem:[%s0 + $0xe8] sm:$0xff]
  %v43 = vld [vmem:[%s0 + $0xf0] sm:$0xff]
  %v44 = vld [vmem:[%s0 + $0xf8] sm:$0xff]
  %v45 = vld [vmem:[%s0 + $0x100] sm:$0xff]
  %v46 = vld [vmem:[%s0 + $0x108] sm:$0xff]
  %v47 = vld [vmem:[%s0 + $0x110] sm:$0xff]
  %v48 = vld [vmem:[%s0 + $0x118] sm:$0xff]
  %v49 = vld [vmem:[%s0 + $0x120] sm:$0xff]
  %v50 = vld [vmem:[%s0 + $0x128] sm:$0xff]
  %v51 = vld [vmem:[%s0 + $0x130] sm:$0xff]
  %v52 = vld [vmem:[%s0 + $0x138] sm:$0xff]
  %v53 = vld [vmem:[%s0 + $0x140] sm:$0xff]
  %v54 = vld [vmem:[%s0 + $0x148] sm:$0xff]
  %v55 = vld [vmem:[%s0 + $0x150] sm:$0xff]
  %v56 = vld [vmem:[%s0 + $0x158] sm:$0xff]
  %v57 = vld [vmem:[%s0 + $0x160] sm:$0xff]
  %v58 = vld [vmem:[%s0 + $0x168] sm:$0xff]
  %v59 = vld [vmem:[%s0 + $0x170] sm:$0xff]
  %v60 = vld [vmem:[%s0 + $0x178] sm:$0xff]
  %v61 = vld [vmem:[%s0 + $0x180] sm:$0xff]
  %v62 = vld [vmem:[%s0 + $0x188] sm:$0xff]
  %v63 = vld [vmem:[%s0 + $0x190] sm:$0xff]
  %v64 = vld [vmem:[%s0 + $0x198] sm:$0xff]
  %v65 = vld [vmem:[%s0 + $0x1a0] sm:$0xff]
  %v66 = vld [vmem:[%s0 + $0x1a8] sm:$0xff]
  %v67 = vld [vmem:[%s0 + $0x1b0] sm:$0xff]
  %v68 = vld [vmem:[%s0 + $0x1b8] sm:$0xff]
  %v69 = vld [vmem:[%s0 + $0x1c0] sm:$0xff]
  %v70 = vld [vmem:[%s0 + $0x1c8] sm:$0xff]
  %v71 = vld [vmem:[%s0 + $0x1d0] sm:$0xff]
  %v72 = vld [vmem:[%s0 + $0x1d8] sm:$0xff]
  %v73 = vld [vmem:[%s0 + $0x1e0] sm:$0xff]
  %v74 = vld [vmem:[%s0 + $0x1e8] sm:$0xff]
  %v75 = vld [vmem:[%s0 + $0x1f0] sm:$0xff]
  %v76 = vld [vmem:[%s0 + $0x1f8] sm:$0xff]
  %v77 = vld [vmem:[%s0 + $0x200] sm:$0xff]
  %v78 = vld [vmem:[%s0 + $0x208] sm:$0xff]
  %v79 = vld [vmem:[%s0 + $0x210] sm:$0xff]
  %v80 = vld [vmem:[%s0 + $0x218] sm:$0xff]
  %v81 = vld [vmem:[%s0 + $0x220] sm:$0xff]
  %v82 = vld [vmem:[%s0 + $0x228] sm:$0xff]
  %v83 = vld [vmem:[%s0 + $0x230] sm:$0xff]
  %v84 = vld [vmem:[%s0 + $0x238] sm:$0xff]
  %v85 = vld [vmem:[%s0 + $0x240] sm:$0xff]
  %v86 = vld [vmem:[%s0 + $0x248] sm:$0xff]
  %v87 = vld [vmem:[%s0 + $0x250] sm:$0xff]
  %v88 = vld [vmem:[%s0 + $0x258] sm:$0xff]
  %v89 = vld [vmem:[%s0 + $0x260] sm:$0xff]
  %v90 = vld [vmem:[%s0 + $0x268] sm:$0xff]
  %v91 = vld [vmem:[%s0 + $0x270] sm:$0xff]
  %v92 = vld [vmem:[%s0 + $0x278] sm:$0xff]
  %v93 = vld [vmem:[%s0 + $0x280] sm:$0xff]
  %v94 = vld [vmem:[%s0 + $0x288] sm:$0xff]
  %v95 = vld [vmem:[%s0 + $0x290] sm:$0xff]
  %v96 = vld [vmem:[%s0 + $0x298] sm:$0xff]
  %v97 = vld [vmem:[%s0 + $0x2a0] sm:$0xff]
  %v98 = vld [vmem:[%s0 + $0x2a8] sm:$0xff]
  %v99 = vld [vmem:[%s0 + $0x2b0] sm:$0xff]
  %v100 = vld [vmem:[%s0 + $0x2b8] sm:$0xff]
  %v101 = vld [vmem:[%s0 + $0x2c0] sm:$0xff]
  %v102 = vld [vmem:[%s0 + $0x2c8] sm:$0xff]
  %v103 = vld [vmem:[%s0 + $0x2d0] sm:$0xff]
  %v104 = vld [vmem:[%s0 + $0x2d8] sm:$0xff]
  %v105 = vld [vmem:[%s0 + $0x2e0] sm:$0xff]
  %v106 = vld [vmem:[%s0 + $0x2e8] sm:$0xff]
  %v107 = vld [vmem:[%s0 + $0x2f0] sm:$0xff]
  %v108 = vld [vmem:[%s0 + $0x2f8] sm:$0xff]
  %v109 = vld [vmem:[%s0 + $0x300] sm:$0xff]
  %v110 = vld [vmem:[%s0 + $0x308] sm:$0xff]
  %v111 = vld [vmem:[%s0 + $0x310] sm:$0xff]
  %v112 = vld [vmem:[%s0 + $0x318] sm:$0xff]
  %v113 = vld [vmem:[%s0 + $0x320] sm:$0xff]
  %v114 = vld [vmem:[%s0 + $0x328] sm:$0xff]
  %v115 = vld [vmem:[%s0 + $0x330] sm:$0xff]
  %v116 = vld [vmem:[%s0 + $0x338] sm:$0xff]
  %v117 = vld [vmem:[%s0 + $0x340] sm:$0xff]
  %v118 = vld [vmem:[%s0 + $0x348] sm:$0xff]
  %v119 = vld [vmem:[%s0 + $0x350] sm:$0xff]
  %v120 = vld [vmem:[%s0 + $0x358] sm:$0xff]
  %v121 = vld [vmem:[%s0 + $0x360] sm:$0xff]
  %v122 = vld [vmem:[%s0 + $0x368] sm:$0xff]
  %v123 = vld [vmem:[%s0 + $0x370] sm:$0xff]
  %v124 = vld [vmem:[%s0 + $0x378] sm:$0xff]
  %v125 = vld [vmem:[%s0 + $0x380] sm:$0xff]
  %v126 = vld [vmem:[%s0 + $0x388] sm:$0xff]
  %v127 = vld [vmem:[%s0 + $0x390] sm:$0xff]
  %v128 = vld [vmem:[%s0 + $0x398] sm:$0xff]
  %v129 = vld [vmem:[%s0 + $0x3a0] sm:$0xff]
  %v130 = vld [vmem:[%s0 + $0x3a8] sm:$0xff]
  %v131 = vld [vmem:[%s0 + $0x3b0] sm:$0xff]
  %v132 = vld [vmem:[%s0 + $0x3b8] sm:$0xff]
  %v133 = vld [vmem:[%s0 + $0x3c0] sm:$0xff]
  %v134 = vld [vmem:[%s0 + $0x3c8] sm:$0xff]
  %v135 = vld [vmem:[%s0 + $0x3d0] sm:$0xff]
  %v136 = vld [vmem:[%s0 + $0x3d8] sm:$0xff]
  %v137 = vld [vmem:[%s0 + $0x3e0] sm:$0xff]
  %v138 = vld [vmem:[%s0 + $0x3e8] sm:$0xff]
  %v139 = vld [vmem:[%s0 + $0x3f0] sm:$0xff]
  %v140 = vld [vmem:[%s0 + $0x3f8] sm:$0xff]
  %v141 = vld [vmem:[%s0 + $0x400] sm:$0xff]
  %v142 = vld [vmem:[%s0 + $0x408] sm:$0xff]
  %v143 = vld [vmem:[%s0 + $0x410] sm:$0xff]
  %v144 = vld [vmem:[%s0 + $0x418] sm:$0xff]
  %v145 = vld [vmem:[%s0 + $0x420] sm:$0xff]
  %v146 = vld [vmem:[%s0 + $0x428] sm:$0xff]
  %v147 = vld [vmem:[%s0 + $0x430] sm:$0xff]
  %v148 = vld [vmem:[%s0 + $0x438] sm:$0xff]
  %v149 = vld [vmem:[%s0 + $0x440] sm:$0xff]
  %v150 = vld [vmem:[%s0 + $0x448] sm:$0xff]
  %v151 = vld [vmem:[%s0 + $0x450] sm:$0xff]
  %v152 = vld [vmem:[%s0 + $0x458] sm:$0xff]
  %v153 = vld [vmem:[%s0 + $0x460] sm:$0xff]
  %v154 = vld [vmem:[%s0 + $0x468] sm:$0xff]
  %v155 = vld [vmem:[%s0 + $0x470] sm:$0xff]
  %v156 = vld [vmem:[%s0 + $0x478] sm:$0xff]
  %v157 = vld [vmem:[%s0 + $0x480] sm:$0xff]
  %v158 = vld [vmem:[%s0 + $0x488] sm:$0xff]
  %v159 = vld [vmem:[%s0 + $0x490] sm:$0xff]
  %v160 = vld [vmem:[%s0 + $0x498] sm:$0xff]
  %v161 = vld [vmem:[%s0 + $0x4a0] sm:$0xff]
  %v162 = vld [vmem:[%s0 + $0x4a8] sm:$0xff]
  %v163 = vld [vmem:[%s0 + $0x4b0] sm:$0xff]
  %v164 = vld [vmem:[%s0 + $0x4b8] sm:$0xff]
  %v165 = vld [vmem:[%s0 + $0x4c0] sm:$0xff]
  %v166 = vld [vmem:[%s0 + $0x4c8] sm:$0xff]
  %v167 = vld [vmem:[%s0 + $0x4d0] sm:$0xff]
  %v168 = vld [vmem:[%s0 + $0x4d8] sm:$0xff]
  %v169 = vld [vmem:[%s0 + $0x4e0] sm:$0xff]
  %v170 = vld [vmem:[%s0 + $0x4e8] sm:$0xff]
  %v171 = vld [vmem:[%s0 + $0x4f0] sm:$0xff]
  %v172 = vld [vmem:[%s0 + $0x4f8] sm:$0xff]
  %v173 = vlaneseq
  %v174 = vshrl.u32 %v173, 7
  %v175 = vsub.s32 0, %v174
  %v176 = vrot.slane %v11, %v175
  %v177 = vmul.f32 %v13, %v176
  %v178 = vmul.f32 %v14, %v176
  %v179 = vmul.f32 %v15, %v176
  %v180 = vmul.f32 %v16, %v176
  %v181 = vmul.f32 %v17, %v176
  %v182 = vmul.f32 %v18, %v176
  %v183 = vmul.f32 %v19, %v176
  %v184 = vmul.f32 %v20, %v176
  %v185 = vmul.f32 %v21, %v176
  %v186 = vmul.f32 %v22, %v176
  %v187 = vmul.f32 %v23, %v176
  %v188 = vmul.f32 %v24, %v176
  %v189 = vmul.f32 %v25, %v176
  %v190 = vmul.f32 %v26, %v176
  %v191 = vmul.f32 %v27, %v176
  %v192 = vmul.f32 %v28, %v176
  %v193 = vmul.f32 %v29, %v176
  %v194 = vmul.f32 %v30, %v176
  %v195 = vmul.f32 %v31, %v176
  %v196 = vmul.f32 %v32, %v176
  %v197 = vmul.f32 %v33, %v176
  %v198 = vmul.f32 %v34, %v176
  %v199 = vmul.f32 %v35, %v176
  %v200 = vmul.f32 %v36, %v176
  %v201 = vmul.f32 %v37, %v176
  %v202 = vmul.f32 %v38, %v176
  %v203 = vmul.f32 %v39, %v176
  %v204 = vmul.f32 %v40, %v176
  %v205 = vmul.f32 %v41, %v176
  %v206 = vmul.f32 %v42, %v176
  %v207 = vmul.f32 %v43, %v176
  %v208 = vmul.f32 %v44, %v176
  %v209 = vmul.f32 %v45, %v176
  %v210 = vmul.f32 %v46, %v176
  %v211 = vmul.f32 %v47, %v176
  %v212 = vmul.f32 %v48, %v176
  %v213 = vmul.f32 %v49, %v176
  %v214 = vmul.f32 %v50, %v176
  %v215 = vmul.f32 %v51, %v176
  %v216 = vmul.f32 %v52, %v176
  %v217 = vmul.f32 %v53, %v176
  %v218 = vmul.f32 %v54, %v176
  %v219 = vmul.f32 %v55, %v176
  %v220 = vmul.f32 %v56, %v176
  %v221 = vmul.f32 %v57, %v176
  %v222 = vmul.f32 %v58, %v176
  %v223 = vmul.f32 %v59, %v176
  %v224 = vmul.f32 %v60, %v176
  %v225 = vmul.f32 %v61, %v176
  %v226 = vmul.f32 %v62, %v176
  %v227 = vmul.f32 %v63, %v176
  %v228 = vmul.f32 %v64, %v176
  %v229 = vmul.f32 %v65, %v176
  %v230 = vmul.f32 %v66, %v176
  %v231 = vmul.f32 %v67, %v176
  %v232 = vmul.f32 %v68, %v176
  %v233 = vmul.f32 %v69, %v176
  %v234 = vmul.f32 %v70, %v176
  %v235 = vmul.f32 %v71, %v176
  %v236 = vmul.f32 %v72, %v176
  %v237 = vmul.f32 %v73, %v176
  %v238 = vmul.f32 %v74, %v176
  %v239 = vmul.f32 %v75, %v176
  %v240 = vmul.f32 %v76, %v176
  %v241 = vmul.f32 %v77, %v176
  %v242 = vmul.f32 %v78, %v176
  %v243 = vmul.f32 %v79, %v176
  %v244 = vmul.f32 %v80, %v176
  %v245 = vmul.f32 %v81, %v176
  %v246 = vmul.f32 %v82, %v176
  %v247 = vmul.f32 %v83, %v176
  %v248 = vmul.f32 %v84, %v176
  %v249 = vmul.f32 %v85, %v176
  %v250 = vmul.f32 %v86, %v176
  %v251 = vmul.f32 %v87, %v176
  %v252 = vmul.f32 %v88, %v176
  %v253 = vmul.f32 %v89, %v176
  %v254 = vmul.f32 %v90, %v176
  %v255 = vmul.f32 %v91, %v176
  %v256 = vmul.f32 %v92, %v176
  %v257 = vmul.f32 %v93, %v176
  %v258 = vmul.f32 %v94, %v176
  %v259 = vmul.f32 %v95, %v176
  %v260 = vmul.f32 %v96, %v176
  %v261 = vmul.f32 %v97, %v176
  %v262 = vmul.f32 %v98, %v176
  %v263 = vmul.f32 %v99, %v176
  %v264 = vmul.f32 %v100, %v176
  %v265 = vmul.f32 %v101, %v176
  %v266 = vmul.f32 %v102, %v176
  %v267 = vmul.f32 %v103, %v176
  %v268 = vmul.f32 %v104, %v176
  %v269 = vmul.f32 %v105, %v176
  %v270 = vmul.f32 %v106, %v176
  %v271 = vmul.f32 %v107, %v176
  %v272 = vmul.f32 %v108, %v176
  %v273 = vmul.f32 %v109, %v176
  %v274 = vmul.f32 %v110, %v176
  %v275 = vmul.f32 %v111, %v176
  %v276 = vmul.f32 %v112, %v176
  %v277 = vmul.f32 %v113, %v176
  %v278 = vmul.f32 %v114, %v176
  %v279 = vmul.f32 %v115, %v176
  %v280 = vmul.f32 %v116, %v176
  %v281 = vmul.f32 %v117, %v176
  %v282 = vmul.f32 %v118, %v176
  %v283 = vmul.f32 %v119, %v176
  %v284 = vmul.f32 %v120, %v176
  %v285 = vmul.f32 %v121, %v176
  %v286 = vmul.f32 %v122, %v176
  %v287 = vmul.f32 %v123, %v176
  %v288 = vmul.f32 %v124, %v176
  %v289 = vmul.f32 %v125, %v176
  %v290 = vmul.f32 %v126, %v176
  %v291 = vmul.f32 %v127, %v176
  %v292 = vmul.f32 %v128, %v176
  %v293 = vmul.f32 %v129, %v176
  %v294 = vmul.f32 %v130, %v176
  %v295 = vmul.f32 %v131, %v176
  %v296 = vmul.f32 %v132, %v176
  %v297 = vmul.f32 %v133, %v176
  %v298 = vmul.f32 %v134, %v176
  %v299 = vmul.f32 %v135, %v176
  %v300 = vmul.f32 %v136, %v176
  %v301 = vmul.f32 %v137, %v176
  %v302 = vmul.f32 %v138, %v176
  %v303 = vmul.f32 %v139, %v176
  %v304 = vmul.f32 %v140, %v176
  %v305 = vmul.f32 %v141, %v176
  %v306 = vmul.f32 %v142, %v176
  %v307 = vmul.f32 %v143, %v176
  %v308 = vmul.f32 %v144, %v176
  %v309 = vmul.f32 %v145, %v176
  %v310 = vmul.f32 %v146, %v176
  %v311 = vmul.f32 %v147, %v176
  %v312 = vmul.f32 %v148, %v176
  %v313 = vmul.f32 %v149, %v176
  %v314 = vmul.f32 %v150, %v176
  %v315 = vmul.f32 %v151, %v176
  %v316 = vmul.f32 %v152, %v176
  %v317 = vmul.f32 %v153, %v176
  %v318 = vmul.f32 %v154, %v176
  %v319 = vmul.f32 %v155, %v176
  %v320 = vmul.f32 %v156, %v176
  %v321 = vmul.f32 %v157, %v176
  %v322 = vmul.f32 %v158, %v176
  %v323 = vmul.f32 %v159, %v176
  %v324 = vmul.f32 %v160, %v176
  %v325 = vmul.f32 %v161, %v176
  %v326 = vmul.f32 %v162, %v176
  %v327 = vmul.f32 %v163, %v176
  %v328 = vmul.f32 %v164, %v176
  %v329 = vmul.f32 %v165, %v176
  %v330 = vmul.f32 %v166, %v176
  %v331 = vmul.f32 %v167, %v176
  %v332 = vmul.f32 %v168, %v176
  %v333 = vmul.f32 %v169, %v176
  %v334 = vmul.f32 %v170, %v176
  %v335 = vmul.f32 %v171, %v176
  %v336 = vmul.f32 %v172, %v176
  %v337 = vlaneseq
  %v338 = vshrl.u32 %v337, 7
  %v339 = vsub.s32 0, %v338
  %v340 = vrot.slane %v12, %v339
  %v341 = vadd.f32 %v177, %v340
  %v342 = vadd.f32 %v178, %v340
  %v343 = vadd.f32 %v179, %v340
  %v344 = vadd.f32 %v180, %v340
  %v345 = vadd.f32 %v181, %v340
  %v346 = vadd.f32 %v182, %v340
  %v347 = vadd.f32 %v183, %v340
  %v348 = vadd.f32 %v184, %v340
  %v349 = vadd.f32 %v185, %v340
  %v350 = vadd.f32 %v186, %v340
  %v351 = vadd.f32 %v187, %v340
  %v352 = vadd.f32 %v188, %v340
  %v353 = vadd.f32 %v189, %v340
  %v354 = vadd.f32 %v190, %v340
  %v355 = vadd.f32 %v191, %v340
  %v356 = vadd.f32 %v192, %v340
  %v357 = vadd.f32 %v193, %v340
  %v358 = vadd.f32 %v194, %v340
  %v359 = vadd.f32 %v195, %v340
  %v360 = vadd.f32 %v196, %v340
  %v361 = vadd.f32 %v197, %v340
  %v362 = vadd.f32 %v198, %v340
  %v363 = vadd.f32 %v199, %v340
  %v364 = vadd.f32 %v200, %v340
  %v365 = vadd.f32 %v201, %v340
  %v366 = vadd.f32 %v202, %v340
  %v367 = vadd.f32 %v203, %v340
  %v368 = vadd.f32 %v204, %v340
  %v369 = vadd.f32 %v205, %v340
  %v370 = vadd.f32 %v206, %v340
  %v371 = vadd.f32 %v207, %v340
  %v372 = vadd.f32 %v208, %v340
  %v373 = vadd.f32 %v209, %v340
  %v374 = vadd.f32 %v210, %v340
  %v375 = vadd.f32 %v211, %v340
  %v376 = vadd.f32 %v212, %v340
  %v377 = vadd.f32 %v213, %v340
  %v378 = vadd.f32 %v214, %v340
  %v379 = vadd.f32 %v215, %v340
  %v380 = vadd.f32 %v216, %v340
  %v381 = vadd.f32 %v217, %v340
  %v382 = vadd.f32 %v218, %v340
  %v383 = vadd.f32 %v219, %v340
  %v384 = vadd.f32 %v220, %v340
  %v385 = vadd.f32 %v221, %v340
  %v386 = vadd.f32 %v222, %v340
  %v387 = vadd.f32 %v223, %v340
  %v388 = vadd.f32 %v224, %v340
  %v389 = vadd.f32 %v225, %v340
  %v390 = vadd.f32 %v226, %v340
  %v391 = vadd.f32 %v227, %v340
  %v392 = vadd.f32 %v228, %v340
  %v393 = vadd.f32 %v229, %v340
  %v394 = vadd.f32 %v230, %v340
  %v395 = vadd.f32 %v231, %v340
  %v396 = vadd.f32 %v232, %v340
  %v397 = vadd.f32 %v233, %v340
  %v398 = vadd.f32 %v234, %v340
  %v399 = vadd.f32 %v235, %v340
  %v400 = vadd.f32 %v236, %v340
  %v401 = vadd.f32 %v237, %v340
  %v402 = vadd.f32 %v238, %v340
  %v403 = vadd.f32 %v239, %v340
  %v404 = vadd.f32 %v240, %v340
  %v405 = vadd.f32 %v241, %v340
  %v406 = vadd.f32 %v242, %v340
  %v407 = vadd.f32 %v243, %v340
  %v408 = vadd.f32 %v244, %v340
  %v409 = vadd.f32 %v245, %v340
  %v410 = vadd.f32 %v246, %v340
  %v411 = vadd.f32 %v247, %v340
  %v412 = vadd.f32 %v248, %v340
  %v413 = vadd.f32 %v249, %v340
  %v414 = vadd.f32 %v250, %v340
  %v415 = vadd.f32 %v251, %v340
  %v416 = vadd.f32 %v252, %v340
  %v417 = vadd.f32 %v253, %v340
  %v418 = vadd.f32 %v254, %v340
  %v419 = vadd.f32 %v255, %v340
  %v420 = vadd.f32 %v256, %v340
  %v421 = vadd.f32 %v257, %v340
  %v422 = vadd.f32 %v258, %v340
  %v423 = vadd.f32 %v259, %v340
  %v424 = vadd.f32 %v260, %v340
  %v425 = vadd.f32 %v261, %v340
  %v426 = vadd.f32 %v262, %v340
  %v427 = vadd.f32 %v263, %v340
  %v428 = vadd.f32 %v264, %v340
  %v429 = vadd.f32 %v265, %v340
  %v430 = vadd.f32 %v266, %v340
  %v431 = vadd.f32 %v267, %v340
  %v432 = vadd.f32 %v268, %v340
  %v433 = vadd.f32 %v269, %v340
  %v434 = vadd.f32 %v270, %v340
  %v435 = vadd.f32 %v271, %v340
  %v436 = vadd.f32 %v272, %v340
  %v437 = vadd.f32 %v273, %v340
  %v438 = vadd.f32 %v274, %v340
  %v439 = vadd.f32 %v275, %v340
  %v440 = vadd.f32 %v276, %v340
  %v441 = vadd.f32 %v277, %v340
  %v442 = vadd.f32 %v278, %v340
  %v443 = vadd.f32 %v279, %v340
  %v444 = vadd.f32 %v280, %v340
  %v445 = vadd.f32 %v281, %v340
  %v446 = vadd.f32 %v282, %v340
  %v447 = vadd.f32 %v283, %v340
  %v448 = vadd.f32 %v284, %v340
  %v449 = vadd.f32 %v285, %v340
  %v450 = vadd.f32 %v286, %v340
  %v451 = vadd.f32 %v287, %v340
  %v452 = vadd.f32 %v288, %v340
  %v453 = vadd.f32 %v289, %v340
  %v454 = vadd.f32 %v290, %v340
  %v455 = vadd.f32 %v291, %v340
  %v456 = vadd.f32 %v292, %v340
  %v457 = vadd.f32 %v293, %v340
  %v458 = vadd.f32 %v294, %v340
  %v459 = vadd.f32 %v295, %v340
  %v460 = vadd.f32 %v296, %v340
  %v461 = vadd.f32 %v297, %v340
  %v462 = vadd.f32 %v298, %v340
  %v463 = vadd.f32 %v299, %v340
  %v464 = vadd.f32 %v300, %v340
  %v465 = vadd.f32 %v301, %v340
  %v466 = vadd.f32 %v302, %v340
  %v467 = vadd.f32 %v303, %v340
  %v468 = vadd.f32 %v304, %v340
  %v469 = vadd.f32 %v305, %v340
  %v470 = vadd.f32 %v306, %v340
  %v471 = vadd.f32 %v307, %v340
  %v472 = vadd.f32 %v308, %v340
  %v473 = vadd.f32 %v309, %v340
  %v474 = vadd.f32 %v310, %v340
  %v475 = vadd.f32 %v311, %v340
  %v476 = vadd.f32 %v312, %v340
  %v477 = vadd.f32 %v313, %v340
  %v478 = vadd.f32 %v314, %v340
  %v479 = vadd.f32 %v315, %v340
  %v480 = vadd.f32 %v316, %v340
  %v481 = vadd.f32 %v317, %v340
  %v482 = vadd.f32 %v318, %v340
  %v483 = vadd.f32 %v319, %v340
  %v484 = vadd.f32 %v320, %v340
  %v485 = vadd.f32 %v321, %v340
  %v486 = vadd.f32 %v322, %v340
  %v487 = vadd.f32 %v323, %v340
  %v488 = vadd.f32 %v324, %v340
  %v489 = vadd.f32 %v325, %v340
  %v490 = vadd.f32 %v326, %v340
  %v491 = vadd.f32 %v327, %v340
  %v492 = vadd.f32 %v328, %v340
  %v493 = vadd.f32 %v329, %v340
  %v494 = vadd.f32 %v330, %v340
  %v495 = vadd.f32 %v331, %v340
  %v496 = vadd.f32 %v332, %v340
  %v497 = vadd.f32 %v333, %v340
  %v498 = vadd.f32 %v334, %v340
  %v499 = vadd.f32 %v335, %v340
  %v500 = vadd.f32 %v336, %v340
  %v501 = vmax.f32 %v341, 0.0
  %v502 = vmax.f32 %v342, 0.0
  %v503 = vmax.f32 %v343, 0.0
  %v504 = vmax.f32 %v344, 0.0
  %v505 = vmax.f32 %v345, 0.0
  %v506 = vmax.f32 %v346, 0.0
  %v507 = vmax.f32 %v347, 0.0
  %v508 = vmax.f32 %v348, 0.0
  %v509 = vmax.f32 %v349, 0.0
  %v510 = vmax.f32 %v350, 0.0
  %v511 = vmax.f32 %v351, 0.0
  %v512 = vmax.f32 %v352, 0.0
  %v513 = vmax.f32 %v353, 0.0
  %v514 = vmax.f32 %v354, 0.0
  %v515 = vmax.f32 %v355, 0.0
  %v516 = vmax.f32 %v356, 0.0
  %v517 = vmax.f32 %v357, 0.0
  %v518 = vmax.f32 %v358, 0.0
  %v519 = vmax.f32 %v359, 0.0
  %v520 = vmax.f32 %v360, 0.0
  %v521 = vmax.f32 %v361, 0.0
  %v522 = vmax.f32 %v362, 0.0
  %v523 = vmax.f32 %v363, 0.0
  %v524 = vmax.f32 %v364, 0.0
  %v525 = vmax.f32 %v365, 0.0
  %v526 = vmax.f32 %v366, 0.0
  %v527 = vmax.f32 %v367, 0.0
  %v528 = vmax.f32 %v368, 0.0
  %v529 = vmax.f32 %v369, 0.0
  %v530 = vmax.f32 %v370, 0.0
  %v531 = vmax.f32 %v371, 0.0
  %v532 = vmax.f32 %v372, 0.0
  %v533 = vmax.f32 %v373, 0.0
  %v534 = vmax.f32 %v374, 0.0
  %v535 = vmax.f32 %v375, 0.0
  %v536 = vmax.f32 %v376, 0.0
  %v537 = vmax.f32 %v377, 0.0
  %v538 = vmax.f32 %v378, 0.0
  %v539 = vmax.f32 %v379, 0.0
  %v540 = vmax.f32 %v380, 0.0
  %v541 = vmax.f32 %v381, 0.0
  %v542 = vmax.f32 %v382, 0.0
  %v543 = vmax.f32 %v383, 0.0
  %v544 = vmax.f32 %v384, 0.0
  %v545 = vmax.f32 %v385, 0.0
  %v546 = vmax.f32 %v386, 0.0
  %v547 = vmax.f32 %v387, 0.0
  %v548 = vmax.f32 %v388, 0.0
  %v549 = vmax.f32 %v389, 0.0
  %v550 = vmax.f32 %v390, 0.0
  %v551 = vmax.f32 %v391, 0.0
  %v552 = vmax.f32 %v392, 0.0
  %v553 = vmax.f32 %v393, 0.0
  %v554 = vmax.f32 %v394, 0.0
  %v555 = vmax.f32 %v395, 0.0
  %v556 = vmax.f32 %v396, 0.0
  %v557 = vmax.f32 %v397, 0.0
  %v558 = vmax.f32 %v398, 0.0
  %v559 = vmax.f32 %v399, 0.0
  %v560 = vmax.f32 %v400, 0.0
  %v561 = vmax.f32 %v401, 0.0
  %v562 = vmax.f32 %v402, 0.0
  %v563 = vmax.f32 %v403, 0.0
  %v564 = vmax.f32 %v404, 0.0
  %v565 = vmax.f32 %v405, 0.0
  %v566 = vmax.f32 %v406, 0.0
  %v567 = vmax.f32 %v407, 0.0
  %v568 = vmax.f32 %v408, 0.0
  %v569 = vmax.f32 %v409, 0.0
  %v570 = vmax.f32 %v410, 0.0
  %v571 = vmax.f32 %v411, 0.0
  %v572 = vmax.f32 %v412, 0.0
  %v573 = vmax.f32 %v413, 0.0
  %v574 = vmax.f32 %v414, 0.0
  %v575 = vmax.f32 %v415, 0.0
  %v576 = vmax.f32 %v416, 0.0
  %v577 = vmax.f32 %v417, 0.0
  %v578 = vmax.f32 %v418, 0.0
  %v579 = vmax.f32 %v419, 0.0
  %v580 = vmax.f32 %v420, 0.0
  %v581 = vmax.f32 %v421, 0.0
  %v582 = vmax.f32 %v422, 0.0
  %v583 = vmax.f32 %v423, 0.0
  %v584 = vmax.f32 %v424, 0.0
  %v585 = vmax.f32 %v425, 0.0
  %v586 = vmax.f32 %v426, 0.0
  %v587 = vmax.f32 %v427, 0.0
  %v588 = vmax.f32 %v428, 0.0
  %v589 = vmax.f32 %v429, 0.0
  %v590 = vmax.f32 %v430, 0.0
  %v591 = vmax.f32 %v431, 0.0
  %v592 = vmax.f32 %v432, 0.0
  %v593 = vmax.f32 %v433, 0.0
  %v594 = vmax.f32 %v434, 0.0
  %v595 = vmax.f32 %v435, 0.0
  %v596 = vmax.f32 %v436, 0.0
  %v597 = vmax.f32 %v437, 0.0
  %v598 = vmax.f32 %v438, 0.0
  %v599 = vmax.f32 %v439, 0.0
  %v600 = vmax.f32 %v440, 0.0
  %v601 = vmax.f32 %v441, 0.0
  %v602 = vmax.f32 %v442, 0.0
  %v603 = vmax.f32 %v443, 0.0
  %v604 = vmax.f32 %v444, 0.0
  %v605 = vmax.f32 %v445, 0.0
  %v606 = vmax.f32 %v446, 0.0
  %v607 = vmax.f32 %v447, 0.0
  %v608 = vmax.f32 %v448, 0.0
  %v609 = vmax.f32 %v449, 0.0
  %v610 = vmax.f32 %v450, 0.0
  %v611 = vmax.f32 %v451, 0.0
  %v612 = vmax.f32 %v452, 0.0
  %v613 = vmax.f32 %v453, 0.0
  %v614 = vmax.f32 %v454, 0.0
  %v615 = vmax.f32 %v455, 0.0
  %v616 = vmax.f32 %v456, 0.0
  %v617 = vmax.f32 %v457, 0.0
  %v618 = vmax.f32 %v458, 0.0
  %v619 = vmax.f32 %v459, 0.0
  %v620 = vmax.f32 %v460, 0.0
  %v621 = vmax.f32 %v461, 0.0
  %v622 = vmax.f32 %v462, 0.0
  %v623 = vmax.f32 %v463, 0.0
  %v624 = vmax.f32 %v464, 0.0
  %v625 = vmax.f32 %v465, 0.0
  %v626 = vmax.f32 %v466, 0.0
  %v627 = vmax.f32 %v467, 0.0
  %v628 = vmax.f32 %v468, 0.0
  %v629 = vmax.f32 %v469, 0.0
  %v630 = vmax.f32 %v470, 0.0
  %v631 = vmax.f32 %v471, 0.0
  %v632 = vmax.f32 %v472, 0.0
  %v633 = vmax.f32 %v473, 0.0
  %v634 = vmax.f32 %v474, 0.0
  %v635 = vmax.f32 %v475, 0.0
  %v636 = vmax.f32 %v476, 0.0
  %v637 = vmax.f32 %v477, 0.0
  %v638 = vmax.f32 %v478, 0.0
  %v639 = vmax.f32 %v479, 0.0
  %v640 = vmax.f32 %v480, 0.0
  %v641 = vmax.f32 %v481, 0.0
  %v642 = vmax.f32 %v482, 0.0
  %v643 = vmax.f32 %v483, 0.0
  %v644 = vmax.f32 %v484, 0.0
  %v645 = vmax.f32 %v485, 0.0
  %v646 = vmax.f32 %v486, 0.0
  %v647 = vmax.f32 %v487, 0.0
  %v648 = vmax.f32 %v488, 0.0
  %v649 = vmax.f32 %v489, 0.0
  %v650 = vmax.f32 %v490, 0.0
  %v651 = vmax.f32 %v491, 0.0
  %v652 = vmax.f32 %v492, 0.0
  %v653 = vmax.f32 %v493, 0.0
  %v654 = vmax.f32 %v494, 0.0
  %v655 = vmax.f32 %v495, 0.0
  %v656 = vmax.f32 %v496, 0.0
  %v657 = vmax.f32 %v497, 0.0
  %v658 = vmax.f32 %v498, 0.0
  %v659 = vmax.f32 %v499, 0.0
  %v660 = vmax.f32 %v500, 0.0
  %661 = vst [vmem:[%s2] sm:$0xff] %v501
  %662 = vst [vmem:[%s2 + $0x8] sm:$0xff] %v502
  %663 = vst [vmem:[%s2 + $0x10] sm:$0xff] %v503
  %664 = vst [vmem:[%s2 + $0x18] sm:$0xff] %v504
  %665 = vst [vmem:[%s2 + $0x20] sm:$0xff] %v505
  %666 = vst [vmem:[%s2 + $0x28] sm:$0xff] %v506
  %667 = vst [vmem:[%s2 + $0x30] sm:$0xff] %v507
  %668 = vst [vmem:[%s2 + $0x38] sm:$0xff] %v508
  %669 = vst [vmem:[%s2 + $0x40] sm:$0xff] %v509
  %670 = vst [vmem:[%s2 + $0x48] sm:$0xff] %v510
  %671 = vst [vmem:[%s2 + $0x50] sm:$0xff] %v511
  %672 = vst [vmem:[%s2 + $0x58] sm:$0xff] %v512
  %673 = vst [vmem:[%s2 + $0x60] sm:$0xff] %v513
  %674 = vst [vmem:[%s2 + $0x68] sm:$0xff] %v514
  %675 = vst [vmem:[%s2 + $0x70] sm:$0xff] %v515
  %676 = vst [vmem:[%s2 + $0x78] sm:$0xff] %v516
  %677 = vst [vmem:[%s2 + $0x80] sm:$0xff] %v517
  %678 = vst [vmem:[%s2 + $0x88] sm:$0xff] %v518
  %679 = vst [vmem:[%s2 + $0x90] sm:$0xff] %v519
  %680 = vst [vmem:[%s2 + $0x98] sm:$0xff] %v520
  %681 = vst [vmem:[%s2 + $0xa0] sm:$0xff] %v521
  %682 = vst [vmem:[%s2 + $0xa8] sm:$0xff] %v522
  %683 = vst [vmem:[%s2 + $0xb0] sm:$0xff] %v523
  %684 = vst [vmem:[%s2 + $0xb8] sm:$0xff] %v524
  %685 = vst [vmem:[%s2 + $0xc0] sm:$0xff] %v525
  %686 = vst [vmem:[%s2 + $0xc8] sm:$0xff] %v526
  %687 = vst [vmem:[%s2 + $0xd0] sm:$0xff] %v527
  %688 = vst [vmem:[%s2 + $0xd8] sm:$0xff] %v528
  %689 = vst [vmem:[%s2 + $0xe0] sm:$0xff] %v529
  %690 = vst [vmem:[%s2 + $0xe8] sm:$0xff] %v530
  %691 = vst [vmem:[%s2 + $0xf0] sm:$0xff] %v531
  %692 = vst [vmem:[%s2 + $0xf8] sm:$0xff] %v532
  %693 = vst [vmem:[%s2 + $0x100] sm:$0xff] %v533
  %694 = vst [vmem:[%s2 + $0x108] sm:$0xff] %v534
  %695 = vst [vmem:[%s2 + $0x110] sm:$0xff] %v535
  %696 = vst [vmem:[%s2 + $0x118] sm:$0xff] %v536
  %697 = vst [vmem:[%s2 + $0x120] sm:$0xff] %v537
  %698 = vst [vmem:[%s2 + $0x128] sm:$0xff] %v538
  %699 = vst [vmem:[%s2 + $0x130] sm:$0xff] %v539
  %700 = vst [vmem:[%s2 + $0x138] sm:$0xff] %v540
  %701 = vst [vmem:[%s2 + $0x140] sm:$0xff] %v541
  %702 = vst [vmem:[%s2 + $0x148] sm:$0xff] %v542
  %703 = vst [vmem:[%s2 + $0x150] sm:$0xff] %v543
  %704 = vst [vmem:[%s2 + $0x158] sm:$0xff] %v544
  %705 = vst [vmem:[%s2 + $0x160] sm:$0xff] %v545
  %706 = vst [vmem:[%s2 + $0x168] sm:$0xff] %v546
  %707 = vst [vmem:[%s2 + $0x170] sm:$0xff] %v547
  %708 = vst [vmem:[%s2 + $0x178] sm:$0xff] %v548
  %709 = vst [vmem:[%s2 + $0x180] sm:$0xff] %v549
  %710 = vst [vmem:[%s2 + $0x188] sm:$0xff] %v550
  %711 = vst [vmem:[%s2 + $0x190] sm:$0xff] %v551
  %712 = vst [vmem:[%s2 + $0x198] sm:$0xff] %v552
  %713 = vst [vmem:[%s2 + $0x1a0] sm:$0xff] %v553
  %714 = vst [vmem:[%s2 + $0x1a8] sm:$0xff] %v554
  %715 = vst [vmem:[%s2 + $0x1b0] sm:$0xff] %v555
  %716 = vst [vmem:[%s2 + $0x1b8] sm:$0xff] %v556
  %717 = vst [vmem:[%s2 + $0x1c0] sm:$0xff] %v557
  %718 = vst [vmem:[%s2 + $0x1c8] sm:$0xff] %v558
  %719 = vst [vmem:[%s2 + $0x1d0] sm:$0xff] %v559
  %720 = vst [vmem:[%s2 + $0x1d8] sm:$0xff] %v560
  %721 = vst [vmem:[%s2 + $0x1e0] sm:$0xff] %v561
  %722 = vst [vmem:[%s2 + $0x1e8] sm:$0xff] %v562
  %723 = vst [vmem:[%s2 + $0x1f0] sm:$0xff] %v563
  %724 = vst [vmem:[%s2 + $0x1f8] sm:$0xff] %v564
  %725 = vst [vmem:[%s2 + $0x200] sm:$0xff] %v565
  %726 = vst [vmem:[%s2 + $0x208] sm:$0xff] %v566
  %727 = vst [vmem:[%s2 + $0x210] sm:$0xff] %v567
  %728 = vst [vmem:[%s2 + $0x218] sm:$0xff] %v568
  %729 = vst [vmem:[%s2 + $0x220] sm:$0xff] %v569
  %730 = vst [vmem:[%s2 + $0x228] sm:$0xff] %v570
  %731 = vst [vmem:[%s2 + $0x230] sm:$0xff] %v571
  %732 = vst [vmem:[%s2 + $0x238] sm:$0xff] %v572
  %733 = vst [vmem:[%s2 + $0x240] sm:$0xff] %v573
  %734 = vst [vmem:[%s2 + $0x248] sm:$0xff] %v574
  %735 = vst [vmem:[%s2 + $0x250] sm:$0xff] %v575
  %736 = vst [vmem:[%s2 + $0x258] sm:$0xff] %v576
  %737 = vst [vmem:[%s2 + $0x260] sm:$0xff] %v577
  %738 = vst [vmem:[%s2 + $0x268] sm:$0xff] %v578
  %739 = vst [vmem:[%s2 + $0x270] sm:$0xff] %v579
  %740 = vst [vmem:[%s2 + $0x278] sm:$0xff] %v580
  %741 = vst [vmem:[%s2 + $0x280] sm:$0xff] %v581
  %742 = vst [vmem:[%s2 + $0x288] sm:$0xff] %v582
  %743 = vst [vmem:[%s2 + $0x290] sm:$0xff] %v583
  %744 = vst [vmem:[%s2 + $0x298] sm:$0xff] %v584
  %745 = vst [vmem:[%s2 + $0x2a0] sm:$0xff] %v585
  %746 = vst [vmem:[%s2 + $0x2a8] sm:$0xff] %v586
  %747 = vst [vmem:[%s2 + $0x2b0] sm:$0xff] %v587
  %748 = vst [vmem:[%s2 + $0x2b8] sm:$0xff] %v588
  %749 = vst [vmem:[%s2 + $0x2c0] sm:$0xff] %v589
  %750 = vst [vmem:[%s2 + $0x2c8] sm:$0xff] %v590
  %751 = vst [vmem:[%s2 + $0x2d0] sm:$0xff] %v591
  %752 = vst [vmem:[%s2 + $0x2d8] sm:$0xff] %v592
  %753 = vst [vmem:[%s2 + $0x2e0] sm:$0xff] %v593
  %754 = vst [vmem:[%s2 + $0x2e8] sm:$0xff] %v594
  %755 = vst [vmem:[%s2 + $0x2f0] sm:$0xff] %v595
  %756 = vst [vmem:[%s2 + $0x2f8] sm:$0xff] %v596
  %757 = vst [vmem:[%s2 + $0x300] sm:$0xff] %v597
  %758 = vst [vmem:[%s2 + $0x308] sm:$0xff] %v598
  %759 = vst [vmem:[%s2 + $0x310] sm:$0xff] %v599
  %760 = vst [vmem:[%s2 + $0x318] sm:$0xff] %v600
  %761 = vst [vmem:[%s2 + $0x320] sm:$0xff] %v601
  %762 = vst [vmem:[%s2 + $0x328] sm:$0xff] %v602
  %763 = vst [vmem:[%s2 + $0x330] sm:$0xff] %v603
  %764 = vst [vmem:[%s2 + $0x338] sm:$0xff] %v604
  %765 = vst [vmem:[%s2 + $0x340] sm:$0xff] %v605
  %766 = vst [vmem:[%s2 + $0x348] sm:$0xff] %v606
  %767 = vst [vmem:[%s2 + $0x350] sm:$0xff] %v607
  %768 = vst [vmem:[%s2 + $0x358] sm:$0xff] %v608
  %769 = vst [vmem:[%s2 + $0x360] sm:$0xff] %v609
  %770 = vst [vmem:[%s2 + $0x368] sm:$0xff] %v610
  %771 = vst [vmem:[%s2 + $0x370] sm:$0xff] %v611
  %772 = vst [vmem:[%s2 + $0x378] sm:$0xff] %v612
  %773 = vst [vmem:[%s2 + $0x380] sm:$0xff] %v613
  %774 = vst [vmem:[%s2 + $0x388] sm:$0xff] %v614
  %775 = vst [vmem:[%s2 + $0x390] sm:$0xff] %v615
  %776 = vst [vmem:[%s2 + $0x398] sm:$0xff] %v616
  %777 = vst [vmem:[%s2 + $0x3a0] sm:$0xff] %v617
  %778 = vst [vmem:[%s2 + $0x3a8] sm:$0xff] %v618
  %779 = vst [vmem:[%s2 + $0x3b0] sm:$0xff] %v619
  %780 = vst [vmem:[%s2 + $0x3b8] sm:$0xff] %v620
  %781 = vst [vmem:[%s2 + $0x3c0] sm:$0xff] %v621
  %782 = vst [vmem:[%s2 + $0x3c8] sm:$0xff] %v622
  %783 = vst [vmem:[%s2 + $0x3d0] sm:$0xff] %v623
  %784 = vst [vmem:[%s2 + $0x3d8] sm:$0xff] %v624
  %785 = vst [vmem:[%s2 + $0x3e0] sm:$0xff] %v625
  %786 = vst [vmem:[%s2 + $0x3e8] sm:$0xff] %v626
  %787 = vst [vmem:[%s2 + $0x3f0] sm:$0xff] %v627
  %788 = vst [vmem:[%s2 + $0x3f8] sm:$0xff] %v628
  %789 = vst [vmem:[%s2 + $0x400] sm:$0xff] %v629
  %790 = vst [vmem:[%s2 + $0x408] sm:$0xff] %v630
  %791 = vst [vmem:[%s2 + $0x410] sm:$0xff] %v631
  %792 = vst [vmem:[%s2 + $0x418] sm:$0xff] %v632
  %793 = vst [vmem:[%s2 + $0x420] sm:$0xff] %v633
  %794 = vst [vmem:[%s2 + $0x428] sm:$0xff] %v634
  %795 = vst [vmem:[%s2 + $0x430] sm:$0xff] %v635
  %796 = vst [vmem:[%s2 + $0x438] sm:$0xff] %v636
  %797 = vst [vmem:[%s2 + $0x440] sm:$0xff] %v637
  %798 = vst [vmem:[%s2 + $0x448] sm:$0xff] %v638
  %799 = vst [vmem:[%s2 + $0x450] sm:$0xff] %v639
  %800 = vst [vmem:[%s2 + $0x458] sm:$0xff] %v640
  %801 = vst [vmem:[%s2 + $0x460] sm:$0xff] %v641
  %802 = vst [vmem:[%s2 + $0x468] sm:$0xff] %v642
  %803 = vst [vmem:[%s2 + $0x470] sm:$0xff] %v643
  %804 = vst [vmem:[%s2 + $0x478] sm:$0xff] %v644
  %805 = vst [vmem:[%s2 + $0x480] sm:$0xff] %v645
  %806 = vst [vmem:[%s2 + $0x488] sm:$0xff] %v646
  %807 = vst [vmem:[%s2 + $0x490] sm:$0xff] %v647
  %808 = vst [vmem:[%s2 + $0x498] sm:$0xff] %v648
  %809 = vst [vmem:[%s2 + $0x4a0] sm:$0xff] %v649
  %810 = vst [vmem:[%s2 + $0x4a8] sm:$0xff] %v650
  %811 = vst [vmem:[%s2 + $0x4b0] sm:$0xff] %v651
  %812 = vst [vmem:[%s2 + $0x4b8] sm:$0xff] %v652
  %813 = vst [vmem:[%s2 + $0x4c0] sm:$0xff] %v653
  %814 = vst [vmem:[%s2 + $0x4c8] sm:$0xff] %v654
  %815 = vst [vmem:[%s2 + $0x4d0] sm:$0xff] %v655
  %816 = vst [vmem:[%s2 + $0x4d8] sm:$0xff] %v656
  %817 = vst [vmem:[%s2 + $0x4e0] sm:$0xff] %v657
  %818 = vst [vmem:[%s2 + $0x4e8] sm:$0xff] %v658
  %819 = vst [vmem:[%s2 + $0x4f0] sm:$0xff] %v659
  %820 = vst [vmem:[%s2 + $0x4f8] sm:$0xff] %v660
  // Predicated region
  $region10: #{up_forward.7} parent=0 // pred_check
    _
  $region11: #{up_forward.7} parent=0 // pred_check_branch
    %822 = sbr.rel (0) target = $region13
  $region12: #{up_forward.7} parent=0 // pred_region
    _
  $region13: #{up_forward.7} parent=0 // pred_fallthru
    _
  // Predicated region
  $region14: #{up_forward.7} parent=0 // pred_check
    _
  $region15: #{up_forward.7} parent=0 // pred_check_branch
    %824 = sbr.rel (0) target = $region17
  $region16: #{up_forward.7} parent=0 // pred_region
    _
  $region17: #{up_forward.7} parent=0 // pred_fallthru
    _

// kernel: up_forward.6
$region0: #{up_forward.6}
  #allocation0 [shape = 'u32[]', space=smem, size = 0x4, offset = 0x4, fixed_abs, tag = 'smem constant byte address 0x4 - core index']
  #allocation1 [shape = 'u32[144,128]{1,0:T(1,128)}', space=vmem, size = 0x12000, scoped, tag = 'internal scratch']
  #allocation2 [shape = 'bf16[80,3456]{1,0:T(16,128)(2,1)}', space=vmem, size = 0x87000, scoped, tag = 'scratch operand']
  %s0 = inlined_call_operand.vmem [shape: bf16[2,10,108,128], index: 0, kind: input, shape index: {}, may-alias: {0,1,2}]
  %s1 = inlined_call_operand.vmem [shape: bf16[2,10,108,128], index: 1, kind: input, shape index: {}, may-alias: {0,1,2}]
  %s2 = inlined_call_operand.vmem [shape: bf16[2,10,108,128], index: 2, kind: input, shape index: {}, may-alias: {0,1,2}]
  %s3 = inlined_call_operand.vmem [shape: bf16[3456,128], index: 3, kind: input, shape index: {}]
  %s4 = inlined_call_operand.vmem [shape: f32[2,8,80,128], index: 4, kind: output, shape index: {0}]
  %s5 = inlined_call_operand.vmem [shape: f32[2,8,2,128], index: 5, kind: output, shape index: {1}]
  %6 = xla_tuple %s4, %s5
  %s7 = sld [smem:[#allocation0]]
  $region57: #{up_forward.6} parent=0
    _
  %s9 = ssub.s32 1, %s7
  %s10 = scalar_select 0, %s9, %s7
  loop: start=0, step=1, limit=18
  $region2: #{up_forward.6} parent=0 // loop_pre_header
    _
  $region3: #{up_forward.6} parent=0 // loop_header
    %s12 = sphi 0, %s16
    %p13 = scmp.ge.s32.totalorder %s12, 18
    %s19 = sphi 0, %s31
    %s20 = sphi 0, %s27
    %s21 = sphi 0, %s19
    %s22 = sphi 0, %s20
    %s23 = sphi 0, %s21
    %s24 = sphi 0, %s22
    %s36 = sphi 0, %s38
    %s39 = sphi 0, %s36
    %s40 = sphi 0, %s39
    %s56 = sphi 0, %s40
    %s66 = sphi 0, %s68
    %s69 = sphi 0, %s66
    %s70 = sphi 0, %s69
    %s86 = sphi 0, %s70
    %s96 = sphi 0, %s98
    %s99 = sphi 0, %s96
    %s100 = sphi 0, %s99
    %s116 = sphi 0, %s100
    %s120 = sphi 0, %s120
    %s122 = sphi 0, %s120
    %s123 = sphi 0, %s122
    %s137 = sphi 0, %s123
    %s145 = sphi 0, %s147
    %s148 = sphi 0, %s145
    %s149 = sphi 0, %s148
    %s165 = sphi 0, %s149
    %s173 = sphi 0, %s175
    %s176 = sphi 0, %s173
    %s177 = sphi 0, %s176
    %s193 = sphi 0, %s177
  $region4: #{up_forward.6} parent=0 // loop_header_branch
    %15 = sbr.rel (%p13) target = $region8
  $region5: #{up_forward.6} parent=0 // loop_body
    %s17 = ssub.s32 %s12, 1
    %s18 = ssub.s32 %s12, 2
    %s25 = sadd.s32 1, %s20
    %p26 = scmp.ge.s32.totalorder %s25, 8
    %s27 = scalar_select %p26, 0, %s25
    %s28 = sadd.s32 1, %s19
    %s29 = scalar_select %p26, %s28, %s19
    %p30 = scmp.ge.s32.totalorder %s29, 2
    %s31 = scalar_select %p30, 0, %s29
    %s32 = ssub.s32 %s19, %s31
    %s33 = ssub.s32 %s20, %s27
    %s34 = sor.u32 %s32, %s33
    %p35 = scmp.eq.s32.totalorder %s34, 0
    %s37 = sadd.s32 %s36, 1
    %s38 = scalar_select %p35, %s36, %s37
    %p41 = pneg %p35
    %p42 = scmp.eq.s32.totalorder %s12, 15
    %p43 = por %p41, %p42
    %p44 = scmp.ne.s32.totalorder %s36, %s39
    %p45 = scmp.eq.s32.totalorder %s12, 0
    %p46 = por %p44, %p45
    %p47 = scmp.ne.s32.totalorder %s36, %s39
    %p48 = scmp.eq.s32.totalorder %s17, 15
    %p49 = por %p47, %p48
    %p50 = scmp.ne.s32.totalorder %s39, %s40
    %p51 = scmp.eq.s32.totalorder %s17, 0
    %p52 = por %p50, %p51
    %p53 = scmp.ne.s32.totalorder %s39, %s40
    %p54 = scmp.eq.s32.totalorder %s18, 15
    %p55 = por %p53, %p54
    %p57 = scmp.ne.s32.totalorder %s40, %s56
    %p58 = scmp.eq.s32.totalorder %s18, 0
    %p59 = por %p57, %p58
    %s60 = sadd.s32 %s20, 1
    %s61 = sadd.s32 %s27, 1
    %s62 = ssub.s32 %s19, %s31
    %s63 = ssub.s32 %s60, %s61
    %s64 = sor.u32 %s62, %s63
    %p65 = scmp.eq.s32.totalorder %s64, 0
    %s67 = sadd.s32 %s66, 1
    %s68 = scalar_select %p65, %s66, %s67
    %p71 = pneg %p65
    %p72 = scmp.eq.s32.totalorder %s12, 15
    %p73 = por %p71, %p72
    %p74 = scmp.ne.s32.totalorder %s66, %s69
    %p75 = scmp.eq.s32.totalorder %s12, 0
    %p76 = por %p74, %p75
    %p77 = scmp.ne.s32.totalorder %s66, %s69
    %p78 = scmp.eq.s32.totalorder %s17, 15
    %p79 = por %p77, %p78
    %p80 = scmp.ne.s32.totalorder %s69, %s70
    %p81 = scmp.eq.s32.totalorder %s17, 0
    %p82 = por %p80, %p81
    %p83 = scmp.ne.s32.totalorder %s69, %s70
    %p84 = scmp.eq.s32.totalorder %s18, 15
    %p85 = por %p83, %p84
    %p87 = scmp.ne.s32.totalorder %s70, %s86
    %p88 = scmp.eq.s32.totalorder %s18, 0
    %p89 = por %p87, %p88
    %s90 = sadd.s32 %s20, 2
    %s91 = sadd.s32 %s27, 2
    %s92 = ssub.s32 %s19, %s31
    %s93 = ssub.s32 %s90, %s91
    %s94 = sor.u32 %s92, %s93
    %p95 = scmp.eq.s32.totalorder %s94, 0
    %s97 = sadd.s32 %s96, 1
    %s98 = scalar_select %p95, %s96, %s97
    %p101 = pneg %p95
    %p102 = scmp.eq.s32.totalorder %s12, 15
    %p103 = por %p101, %p102
    %p104 = scmp.ne.s32.totalorder %s96, %s99
    %p105 = scmp.eq.s32.totalorder %s12, 0
    %p106 = por %p104, %p105
    %p107 = scmp.ne.s32.totalorder %s96, %s99
    %p108 = scmp.eq.s32.totalorder %s17, 15
    %p109 = por %p107, %p108
    %p110 = scmp.ne.s32.totalorder %s99, %s100
    %p111 = scmp.eq.s32.totalorder %s17, 0
    %p112 = por %p110, %p111
    %p113 = scmp.ne.s32.totalorder %s99, %s100
    %p114 = scmp.eq.s32.totalorder %s18, 15
    %p115 = por %p113, %p114
    %p117 = scmp.ne.s32.totalorder %s100, %s116
    %p118 = scmp.eq.s32.totalorder %s18, 0
    %p119 = por %p117, %p118
    %s121 = sadd.s32 %s120, 1
    %p124 = scmp.eq.s32.totalorder %s12, 15
    %p125 = scmp.ne.s32.totalorder %s120, %s122
    %p126 = scmp.eq.s32.totalorder %s12, 0
    %p127 = por %p125, %p126
    %p128 = scmp.ne.s32.totalorder %s120, %s122
    %p129 = scmp.eq.s32.totalorder %s17, 15
    %p130 = por %p128, %p129
    %p131 = scmp.ne.s32.totalorder %s122, %s123
    %p132 = scmp.eq.s32.totalorder %s17, 0
    %p133 = por %p131, %p132
    %p134 = scmp.ne.s32.totalorder %s122, %s123
    %p135 = scmp.eq.s32.totalorder %s18, 15
    %p136 = por %p134, %p135
    %p138 = scmp.ne.s32.totalorder %s123, %s137
    %p139 = scmp.eq.s32.totalorder %s18, 0
    %p140 = por %p138, %p139
    %s141 = ssub.s32 %s19, %s31
    %s142 = ssub.s32 %s20, %s27
    %s143 = sor.u32 %s141, %s142
    %p144 = scmp.eq.s32.totalorder %s143, 0
    %s146 = sadd.s32 %s145, 1
    %s147 = scalar_select %p144, %s145, %s146
    %p150 = pneg %p144
    %p151 = scmp.eq.s32.totalorder %s12, 15
    %p152 = por %p150, %p151
    %p153 = scmp.ne.s32.totalorder %s145, %s148
    %p154 = scmp.eq.s32.totalorder %s12, 0
    %p155 = por %p153, %p154
    %p156 = scmp.ne.s32.totalorder %s145, %s148
    %p157 = scmp.eq.s32.totalorder %s17, 15
    %p158 = por %p156, %p157
    %p159 = scmp.ne.s32.totalorder %s148, %s149
    %p160 = scmp.eq.s32.totalorder %s17, 0
    %p161 = por %p159, %p160
    %p162 = scmp.ne.s32.totalorder %s148, %s149
    %p163 = scmp.eq.s32.totalorder %s18, 15
    %p164 = por %p162, %p163
    %p166 = scmp.ne.s32.totalorder %s149, %s165
    %p167 = scmp.eq.s32.totalorder %s18, 0
    %p168 = por %p166, %p167
    %s169 = ssub.s32 %s19, %s31
    %s170 = ssub.s32 %s20, %s27
    %s171 = sor.u32 %s169, %s170
    %p172 = scmp.eq.s32.totalorder %s171, 0
    %s174 = sadd.s32 %s173, 1
    %s175 = scalar_select %p172, %s173, %s174
    %p178 = pneg %p172
    %p179 = scmp.eq.s32.totalorder %s12, 15
    %p180 = por %p178, %p179
    %p181 = scmp.ne.s32.totalorder %s173, %s176
    %p182 = scmp.eq.s32.totalorder %s12, 0
    %p183 = por %p181, %p182
    %p184 = scmp.ne.s32.totalorder %s173, %s176
    %p185 = scmp.eq.s32.totalorder %s17, 15
    %p186 = por %p184, %p185
    %p187 = scmp.ne.s32.totalorder %s176, %s177
    %p188 = scmp.eq.s32.totalorder %s17, 0
    %p189 = por %p187, %p188
    %p190 = scmp.ne.s32.totalorder %s176, %s177
    %p191 = scmp.eq.s32.totalorder %s18, 15
    %p192 = por %p190, %p191
    %p194 = scmp.ne.s32.totalorder %s177, %s193
    %p195 = scmp.eq.s32.totalorder %s18, 0
    %p196 = por %p194, %p195
    %p197 = scmp.le.s32.totalorder 1, %s12
    %p198 = scmp.lt.s32.totalorder %s12, 17
    %p199 = pnand %p197, %p198
    %p200 = pneg %p199
    // Predicated region
    $region9: #{up_forward.6} parent=5 // pred_check
      _
    $region10: #{up_forward.6} parent=5 // pred_check_branch
      %202 = sbr.rel (%p199) target = $region12
    $region11: #{up_forward.6} parent=5 // pred_region
      %s203 = ssub.s32 %s12, 1
      // Predicated region
      $region13: #{up_forward.6} parent=11 // pred_check
        %p204 = pneg %p133
      $region14: #{up_forward.6} parent=11 // pred_check_branch
        %206 = sbr.rel (%p204) target = $region16
      $region15: #{up_forward.6} parent=11 // pred_region
        _
      $region16: #{up_forward.6} parent=11 // pred_fallthru
        _
    $region12: #{up_forward.6} parent=5 // pred_fallthru
      _
    %p207 = scmp.lt.s32.totalorder %s12, 16
    // Predicated region
    $region17: #{up_forward.6} parent=5 // pred_check
      %p208 = pneg %p207
    $region18: #{up_forward.6} parent=5 // pred_check_branch
      %210 = sbr.rel (%p208) target = $region20
    $region19: #{up_forward.6} parent=5 // pred_region
      // Predicated region
      $region21: #{up_forward.6} parent=19 // pred_check
        %p211 = pneg %p46
      $region22: #{up_forward.6} parent=19 // pred_check_branch
        %213 = sbr.rel (%p211) target = $region24
      $region23: #{up_forward.6} parent=19 // pred_region
        %p214 = scmp.lt.s32.totalorder %s19, 1
        %s215 = scalar_select %p214, %s19, 1
        %p216 = scmp.lt.s32.totalorder %s20, 9
        %s217 = scalar_select %p216, %s20, 9
        %s218 = smul.addr %s217, 14
        %s219 = smul.addr %s215, 140
        %s220 = sadd.s32 %s218, %s219
        %s221 = smul.addr %s220, 4
        %s222 = scalar_lea.vmem %s0, %s221
      $region24: #{up_forward.6} parent=19 // pred_fallthru
        _
      // Predicated region
      $region25: #{up_forward.6} parent=19 // pred_check
        %p223 = pneg %p76
      $region26: #{up_forward.6} parent=19 // pred_check_branch
        %225 = sbr.rel (%p223) target = $region28
      $region27: #{up_forward.6} parent=19 // pred_region
        %s226 = sadd.s32 %s20, 1
        %p227 = scmp.lt.s32.totalorder %s19, 1
        %s228 = scalar_select %p227, %s19, 1
        %p229 = scmp.lt.s32.totalorder %s226, 9
        %s230 = scalar_select %p229, %s226, 9
        %s231 = smul.addr %s230, 14
        %s232 = smul.addr %s228, 140
        %s233 = sadd.s32 %s231, %s232
        %s234 = smul.addr %s233, 4
        %s235 = scalar_lea.vmem %s1, %s234
        %s236 = sadd.s32 %s20, 1
      $region28: #{up_forward.6} parent=19 // pred_fallthru
        _
      // Predicated region
      $region29: #{up_forward.6} parent=19 // pred_check
        %p237 = pneg %p106
      $region30: #{up_forward.6} parent=19 // pred_check_branch
        %239 = sbr.rel (%p237) target = $region32
      $region31: #{up_forward.6} parent=19 // pred_region
        %s240 = sadd.s32 %s20, 2
        %p241 = scmp.lt.s32.totalorder %s19, 1
        %s242 = scalar_select %p241, %s19, 1
        %p243 = scmp.lt.s32.totalorder %s240, 9
        %s244 = scalar_select %p243, %s240, 9
        %s245 = smul.addr %s244, 14
        %s246 = smul.addr %s242, 140
        %s247 = sadd.s32 %s245, %s246
        %s248 = smul.addr %s247, 4
        %s249 = scalar_lea.vmem %s2, %s248
        %s250 = sadd.s32 %s20, 2
      $region32: #{up_forward.6} parent=19 // pred_fallthru
        _
    $region20: #{up_forward.6} parent=5 // pred_fallthru
      _
    %p251 = scmp.le.s32.totalorder 1, %s12
    %p252 = scmp.lt.s32.totalorder %s12, 17
    %p253 = pnand %p251, %p252
    %p254 = pneg %p253
    // Predicated region
    $region33: #{up_forward.6} parent=5 // pred_check
      _
    $region34: #{up_forward.6} parent=5 // pred_check_branch
      %256 = sbr.rel (%p253) target = $region36
    $region35: #{up_forward.6} parent=5 // pred_region
      %s257 = ssub.s32 %s12, 1
      %p258 = scmp.lt.s32.totalorder %s21, 1
      %s259 = scalar_select %p258, %s21, 1
      %p260 = scmp.lt.s32.totalorder %s22, 9
      %s261 = scalar_select %p260, %s22, 9
      %s262 = smul.addr %s261, 14
      %s263 = smul.addr %s259, 140
      %s264 = sadd.s32 %s262, %s263
      %s265 = smul.addr %s264, 4
      %s266 = scalar_lea.vmem %s0, %s265
      %p267 = pneg %p52
      %p268 = pneg %p49
      %s269 = sadd.s32 %s22, 1
      %p270 = scmp.lt.s32.totalorder %s21, 1
      %s271 = scalar_select %p270, %s21, 1
      %p272 = scmp.lt.s32.totalorder %s269, 9
      %s273 = scalar_select %p272, %s269, 9
      %s274 = smul.addr %s273, 14
      %s275 = smul.addr %s271, 140
      %s276 = sadd.s32 %s274, %s275
      %s277 = smul.addr %s276, 4
      %s278 = scalar_lea.vmem %s1, %s277
      %p279 = pneg %p82
      %p280 = pneg %p79
      %s281 = sadd.s32 %s22, 2
      %p282 = scmp.lt.s32.totalorder %s21, 1
      %s283 = scalar_select %p282, %s21, 1
      %p284 = scmp.lt.s32.totalorder %s281, 9
      %s285 = scalar_select %p284, %s281, 9
      %s286 = smul.addr %s285, 14
      %s287 = smul.addr %s283, 140
      %s288 = sadd.s32 %s286, %s287
      %s289 = smul.addr %s288, 4
      %s290 = scalar_lea.vmem %s2, %s289
      %p291 = pneg %p112
      %p292 = pneg %p109
      %p293 = pneg %p133
      %p294 = pneg %p130
      %p295 = pneg %p161
      %p296 = pneg %p158
      %p297 = scmp.lt.s32.totalorder %s21, 1
      %s298 = scalar_select %p297, %s21, 1
      %p299 = scmp.lt.s32.totalorder %s22, 7
      %s300 = scalar_select %p299, %s22, 7
      %s301 = smul.addr %s300, 10
      %s302 = smul.addr %s298, 80
      %s303 = sadd.s32 %s301, %s302
      %s304 = smul.addr %s303, 8
      %s305 = scalar_lea.vmem %s4, %s304
      %p306 = pneg %p189
      %p307 = pneg %p186
      %p308 = scmp.lt.s32.totalorder %s21, 1
      %s309 = scalar_select %p308, %s21, 1
      %p310 = scmp.lt.s32.totalorder %s22, 7
      %s311 = scalar_select %p310, %s22, 7
      %s312 = smul.addr %s309, 8
      %s313 = sadd.s32 %s311, %s312
      %s314 = smul.addr %s313, 2
      %s315 = scalar_lea.vmem %s5, %s314
      %p316 = scmp.lt.s32.totalorder %s21, 1
      %s317 = scalar_select %p316, %s21, 1
      %p318 = scmp.lt.s32.totalorder %s22, 9
      %s319 = scalar_select %p318, %s22, 9
      %s320 = smul.addr %s319, 14
      %s321 = smul.addr %s317, 140
      %s322 = sadd.s32 %s320, %s321
      %s323 = smul.addr %s322, 4
      %s324 = scalar_lea.vmem %s0, %s323
      %s325 = sadd.s32 %s22, 1
      %p326 = scmp.lt.s32.totalorder %s21, 1
      %s327 = scalar_select %p326, %s21, 1
      %p328 = scmp.lt.s32.totalorder %s325, 9
      %s329 = scalar_select %p328, %s325, 9
      %s330 = smul.addr %s329, 14
      %s331 = smul.addr %s327, 140
      %s332 = sadd.s32 %s330, %s331
      %s333 = smul.addr %s332, 4
      %s334 = scalar_lea.vmem %s1, %s333
      %s335 = sadd.s32 %s22, 1
      %s336 = sadd.s32 %s22, 2
      %p337 = scmp.lt.s32.totalorder %s21, 1
      %s338 = scalar_select %p337, %s21, 1
      %p339 = scmp.lt.s32.totalorder %s336, 9
      %s340 = scalar_select %p339, %s336, 9
      %s341 = smul.addr %s340, 14
      %s342 = smul.addr %s338, 140
      %s343 = sadd.s32 %s341, %s342
      %s344 = smul.addr %s343, 4
      %s345 = scalar_lea.vmem %s2, %s344
      %s346 = sadd.s32 %s22, 2
      %p347 = scmp.lt.s32.totalorder %s21, 1
      %s348 = scalar_select %p347, %s21, 1
      %p349 = scmp.lt.s32.totalorder %s22, 7
      %s350 = scalar_select %p349, %s22, 7
      %s351 = smul.addr %s350, 10
      %s352 = smul.addr %s348, 80
      %s353 = sadd.s32 %s351, %s352
      %s354 = smul.addr %s353, 8
      %s355 = scalar_lea.vmem %s4, %s354
      %p356 = scmp.lt.s32.totalorder %s21, 1
      %s357 = scalar_select %p356, %s21, 1
      %p358 = scmp.lt.s32.totalorder %s22, 7
      %s359 = scalar_select %p358, %s22, 7
      %s360 = smul.addr %s357, 8
      %s361 = sadd.s32 %s359, %s360
      %s362 = smul.addr %s361, 2
      %s363 = scalar_lea.vmem %s5, %s362
      %v365 = vld [vmem:[%s324] sm:$0xf]
      %v366 = vld [vmem:[%s324 + $0x4] sm:$0xf]
      %v367 = vld [vmem:[%s324 + $0x8] sm:$0xf]
      %v368 = vld [vmem:[%s324 + $0xc] sm:$0xf]
      %v369 = vld [vmem:[%s324 + $0x10] sm:$0xf]
      %v370 = vld [vmem:[%s324 + $0x14] sm:$0xf]
      %v371 = vld [vmem:[%s324 + $0x18] sm:$0xf]
      %v372 = vld [vmem:[%s324 + $0x1c] sm:$0xf]
      %v373 = vld [vmem:[%s324 + $0x20] sm:$0xf]
      %v374 = vld [vmem:[%s324 + $0x24] sm:$0xf]
      %v385 = vunpack.c.l.b16 %v365
      %v386 = vunpack.c.l.b16 %v366
      %v387 = vunpack.c.l.b16 %v367
      %v388 = vunpack.c.l.b16 %v368
      %v389 = vunpack.c.l.b16 %v369
      %v390 = vunpack.c.l.b16 %v370
      %v391 = vunpack.c.l.b16 %v371
      %v392 = vunpack.c.l.b16 %v372
      %v393 = vunpack.c.l.b16 %v373
      %v394 = vunpack.c.l.b16 %v374
      %v395 = vpack.c.b16 %v386, %v385
      %v396 = vpack.c.b16 %v388, %v387
      %v397 = vpack.c.b16 %v390, %v389
      %v398 = vpack.c.b16 %v392, %v391
      %v399 = vpack.c.b16 %v394, %v393
      %405 = vst [vmem:[#allocation2] sm:$0xff] %v395
      %406 = vst [vmem:[#allocation2 + $0xd8] sm:$0xff] %v396
      %407 = vst [vmem:[#allocation2 + $0x1b0] sm:$0xff] %v397
      %408 = vst [vmem:[#allocation2 + $0x288] sm:$0xff] %v398
      %409 = vst [vmem:[#allocation2 + $0x360] sm:$0xff] %v399
      %v410 = vld [vmem:[%s324] sm:$0xf]
      %v411 = vld [vmem:[%s324 + $0x4] sm:$0xf]
      %v412 = vld [vmem:[%s324 + $0x8] sm:$0xf]
      %v413 = vld [vmem:[%s324 + $0xc] sm:$0xf]
      %v414 = vld [vmem:[%s324 + $0x10] sm:$0xf]
      %v415 = vld [vmem:[%s324 + $0x14] sm:$0xf]
      %v416 = vld [vmem:[%s324 + $0x18] sm:$0xf]
      %v417 = vld [vmem:[%s324 + $0x1c] sm:$0xf]
      %v418 = vld [vmem:[%s324 + $0x20] sm:$0xf]
      %v419 = vld [vmem:[%s324 + $0x24] sm:$0xf]
      %v420 = vld [vmem:[%s324 + $0x28] sm:$0x1]
      %v432 = vunpack.c.l.b16 %v410
      %v433 = vunpack.c.l.b16 %v411
      %v434 = vunpack.c.l.b16 %v412
      %v435 = vunpack.c.l.b16 %v413
      %v436 = vunpack.c.l.b16 %v414
      %v437 = vunpack.c.l.b16 %v415
      %v438 = vunpack.c.l.b16 %v416
      %v439 = vunpack.c.l.b16 %v417
      %v440 = vunpack.c.l.b16 %v418
      %v441 = vunpack.c.l.b16 %v419
      %v442 = vunpack.c.l.b16 %v420
      %v443 = vpack.c.b16 %v433, %v432
      %v444 = vpack.c.b16 %v435, %v434
      %v445 = vpack.c.b16 %v437, %v436
      %v446 = vpack.c.b16 %v439, %v438
      %v447 = vpack.c.b16 %v441, %v440
      %v448 = vpack.c.b16 %v442, %v442
      %vm449 = vsmask.f32 7424
      %v451 = vshrl.u32 %v443, 16
      %v453 = vshll.u32 %v443, 16
      %v455 = vrot.slane %v453, 1
      %v456 = vor.u32 %v451, %v455
      %v458 = vshll.u32 %v444, 16
      %v460 = vrot.slane %v458, 1
      %v461 = vsel %vm449, %v456, %v460
      %v462 = vshrl.u32 %v444, 16
      %v464 = vor.u32 %v462, %v460
      %v466 = vshll.u32 %v445, 16
      %v468 = vrot.slane %v466, 1
      %v469 = vsel %vm449, %v464, %v468
      %v470 = vshrl.u32 %v445, 16
      %v472 = vor.u32 %v470, %v468
      %v474 = vshll.u32 %v446, 16
      %v476 = vrot.slane %v474, 1
      %v477 = vsel %vm449, %v472, %v476
      %v478 = vshrl.u32 %v446, 16
      %v480 = vor.u32 %v478, %v476
      %v482 = vshll.u32 %v447, 16
      %v484 = vrot.slane %v482, 1
      %v485 = vsel %vm449, %v480, %v484
      %v486 = vshrl.u32 %v447, 16
      %v488 = vor.u32 %v486, %v484
      %v490 = vshll.u32 %v448, 16
      %v492 = vrot.slane %v490, 1
      %v493 = vsel %vm449, %v488, %v492
      %499 = vst [vmem:[#allocation2 + $0x8] sm:$0xff] %v461
      %500 = vst [vmem:[#allocation2 + $0xe0] sm:$0xff] %v469
      %501 = vst [vmem:[#allocation2 + $0x1b8] sm:$0xff] %v477
      %502 = vst [vmem:[#allocation2 + $0x290] sm:$0xff] %v485
      %503 = vst [vmem:[#allocation2 + $0x368] sm:$0xff] %v493
      %v504 = vld [vmem:[%s324] sm:$0xe]
      %v505 = vld [vmem:[%s324 + $0x4] sm:$0xf]
      %v506 = vld [vmem:[%s324 + $0x8] sm:$0xf]
      %v507 = vld [vmem:[%s324 + $0xc] sm:$0xf]
      %v508 = vld [vmem:[%s324 + $0x10] sm:$0xf]
      %v509 = vld [vmem:[%s324 + $0x14] sm:$0xf]
      %v510 = vld [vmem:[%s324 + $0x18] sm:$0xf]
      %v511 = vld [vmem:[%s324 + $0x1c] sm:$0xf]
      %v512 = vld [vmem:[%s324 + $0x20] sm:$0xf]
      %v513 = vld [vmem:[%s324 + $0x24] sm:$0xf]
      %v514 = vld [vmem:[%s324 + $0x28] sm:$0x1]
      %v526 = vunpack.c.l.b16 %v504
      %v527 = vunpack.c.l.b16 %v505
      %v528 = vunpack.c.l.b16 %v506
      %v529 = vunpack.c.l.b16 %v507
      %v530 = vunpack.c.l.b16 %v508
      %v531 = vunpack.c.l.b16 %v509
      %v532 = vunpack.c.l.b16 %v510
      %v533 = vunpack.c.l.b16 %v511
      %v534 = vunpack.c.l.b16 %v512
      %v535 = vunpack.c.l.b16 %v513
      %v536 = vunpack.c.l.b16 %v514
      %v537 = vpack.c.b16 %v527, %v526
      %v538 = vpack.c.b16 %v529, %v528
      %v539 = vpack.c.b16 %v531, %v530
      %v540 = vpack.c.b16 %v533, %v532
      %v541 = vpack.c.b16 %v535, %v534
      %v542 = vpack.c.b16 %v536, %v536
      %vm543 = vcmask 1046528
      %v544 = vrot.slane %v537, 1
      %v545 = vrot.slane %v538, 1
      %v546 = vsel %vm543, %v544, %v545
      %v547 = vrot.slane %v539, 1
      %v548 = vsel %vm543, %v545, %v547
      %v549 = vrot.slane %v540, 1
      %v550 = vsel %vm543, %v547, %v549
      %v551 = vrot.slane %v541, 1
      %v552 = vsel %vm543, %v549, %v551
      %v553 = vrot.slane %v542, 1
      %v554 = vsel %vm543, %v551, %v553
      %560 = vst [vmem:[#allocation2 + $0x10] sm:$0xff] %v546
      %561 = vst [vmem:[#allocation2 + $0xe8] sm:$0xff] %v548
      %562 = vst [vmem:[#allocation2 + $0x1c0] sm:$0xff] %v550
      %563 = vst [vmem:[#allocation2 + $0x298] sm:$0xff] %v552
      %564 = vst [vmem:[#allocation2 + $0x370] sm:$0xff] %v554
      %v565 = vld [vmem:[%s324 + $0x4] sm:$0xe]
      %v566 = vld [vmem:[%s324 + $0x8] sm:$0xf]
      %v567 = vld [vmem:[%s324 + $0xc] sm:$0xf]
      %v568 = vld [vmem:[%s324 + $0x10] sm:$0xf]
      %v569 = vld [vmem:[%s324 + $0x14] sm:$0xf]
      %v570 = vld [vmem:[%s324 + $0x18] sm:$0xf]
      %v571 = vld [vmem:[%s324 + $0x1c] sm:$0xf]
      %v572 = vld [vmem:[%s324 + $0x20] sm:$0xf]
      %v573 = vld [vmem:[%s324 + $0x24] sm:$0xf]
      %v574 = vld [vmem:[%s324 + $0x28] sm:$0xf]
      %v575 = vld [vmem:[%s324 + $0x2c] sm:$0x1]
      %v587 = vunpack.c.l.b16 %v565
      %v588 = vunpack.c.l.b16 %v566
      %v589 = vunpack.c.l.b16 %v567
      %v590 = vunpack.c.l.b16 %v568
      %v591 = vunpack.c.l.b16 %v569
      %v592 = vunpack.c.l.b16 %v570
      %v593 = vunpack.c.l.b16 %v571
      %v594 = vunpack.c.l.b16 %v572
      %v595 = vunpack.c.l.b16 %v573
      %v596 = vunpack.c.l.b16 %v574
      %v597 = vunpack.c.l.b16 %v575
      %v598 = vpack.c.b16 %v588, %v587
      %v599 = vpack.c.b16 %v590, %v589
      %v600 = vpack.c.b16 %v592, %v591
      %v601 = vpack.c.b16 %v594, %v593
      %v602 = vpack.c.b16 %v596, %v595
      %v603 = vpack.c.b16 %v597, %v597
      %v604 = vrot.slane %v598, 1
      %v605 = vrot.slane %v599, 1
      %v606 = vsel %vm543, %v604, %v605
      %v607 = vrot.slane %v600, 1
      %v608 = vsel %vm543, %v605, %v607
      %v609 = vrot.slane %v601, 1
      %v610 = vsel %vm543, %v607, %v609
      %v611 = vrot.slane %v602, 1
      %v612 = vsel %vm543, %v609, %v611
      %v613 = vrot.slane %v603, 1
      %v614 = vsel %vm543, %v611, %v613
      %620 = vst [vmem:[#allocation2 + $0x18] sm:$0xff] %v606
      %621 = vst [vmem:[#allocation2 + $0xf0] sm:$0xff] %v608
      %622 = vst [vmem:[#allocation2 + $0x1c8] sm:$0xff] %v610
      %623 = vst [vmem:[#allocation2 + $0x2a0] sm:$0xff] %v612
      %624 = vst [vmem:[#allocation2 + $0x378] sm:$0xff] %v614
      %v625 = vld [vmem:[%s324 + $0x4] sm:$0xe]
      %v626 = vld [vmem:[%s324 + $0x8] sm:$0xf]
      %v627 = vld [vmem:[%s324 + $0xc] sm:$0xf]
      %v628 = vld [vmem:[%s324 + $0x10] sm:$0xf]
      %v629 = vld [vmem:[%s324 + $0x14] sm:$0xf]
      %v630 = vld [vmem:[%s324 + $0x18] sm:$0xf]
      %v631 = vld [vmem:[%s324 + $0x1c] sm:$0xf]
      %v632 = vld [vmem:[%s324 + $0x20] sm:$0xf]
      %v633 = vld [vmem:[%s324 + $0x24] sm:$0xf]
      %v634 = vld [vmem:[%s324 + $0x28] sm:$0xf]
      %v635 = vld [vmem:[%s324 + $0x2c] sm:$0x3]
      %v647 = vunpack.c.l.b16 %v625
      %v648 = vunpack.c.l.b16 %v626
      %v649 = vunpack.c.l.b16 %v627
      %v650 = vunpack.c.l.b16 %v628
      %v651 = vunpack.c.l.b16 %v629
      %v652 = vunpack.c.l.b16 %v630
      %v653 = vunpack.c.l.b16 %v631
      %v654 = vunpack.c.l.b16 %v632
      %v655 = vunpack.c.l.b16 %v633
      %v656 = vunpack.c.l.b16 %v634
      %v657 = vunpack.c.l.b16 %v635
      %v658 = vpack.c.b16 %v648, %v647
      %v659 = vpack.c.b16 %v650, %v649
      %v660 = vpack.c.b16 %v652, %v651
      %v661 = vpack.c.b16 %v654, %v653
      %v662 = vpack.c.b16 %v656, %v655
      %v663 = vpack.c.b16 %v657, %v657
      %vm664 = vsmask.f32 6400
      %v666 = vshrl.u32 %v658, 16
      %v668 = vrot.slane %v666, 1
      %v669 = vshll.u32 %v658, 16
      %v671 = vrot.slane %v669, 2
      %v672 = vor.u32 %v668, %v671
      %v674 = vshrl.u32 %v659, 16
      %v676 = vrot.slane %v674, 1
      %v677 = vshll.u32 %v659, 16
      %v679 = vrot.slane %v677, 2
      %v680 = vor.u32 %v676, %v679
      %v681 = vsel %vm664, %v672, %v680
      %v683 = vshrl.u32 %v660, 16
      %v685 = vrot.slane %v683, 1
      %v686 = vshll.u32 %v660, 16
      %v688 = vrot.slane %v686, 2
      %v689 = vor.u32 %v685, %v688
      %v690 = vsel %vm664, %v680, %v689
      %v692 = vshrl.u32 %v661, 16
      %v694 = vrot.slane %v692, 1
      %v695 = vshll.u32 %v661, 16
      %v697 = vrot.slane %v695, 2
      %v698 = vor.u32 %v694, %v697
      %v699 = vsel %vm664, %v689, %v698
      %v701 = vshrl.u32 %v662, 16
      %v703 = vrot.slane %v701, 1
      %v704 = vshll.u32 %v662, 16
      %v706 = vrot.slane %v704, 2
      %v707 = vor.u32 %v703, %v706
      %v708 = vsel %vm664, %v698, %v707
      %v710 = vshrl.u32 %v663, 16
      %v712 = vrot.slane %v710, 1
      %v713 = vshll.u32 %v663, 16
      %v715 = vrot.slane %v713, 2
      %v716 = vor.u32 %v712, %v715
      %v717 = vsel %vm664, %v707, %v716
      %723 = vst [vmem:[#allocation2 + $0x20] sm:$0xff] %v681
      %724 = vst [vmem:[#allocation2 + $0xf8] sm:$0xff] %v690
      %725 = vst [vmem:[#allocation2 + $0x1d0] sm:$0xff] %v699
      %726 = vst [vmem:[#allocation2 + $0x2a8] sm:$0xff] %v708
      %727 = vst [vmem:[#allocation2 + $0x380] sm:$0xff] %v717
      %v728 = vld [vmem:[%s324 + $0x4] sm:$0xc]
      %v729 = vld [vmem:[%s324 + $0x8] sm:$0xf]
      %v730 = vld [vmem:[%s324 + $0xc] sm:$0xf]
      %v731 = vld [vmem:[%s324 + $0x10] sm:$0xf]
      %v732 = vld [vmem:[%s324 + $0x14] sm:$0xf]
      %v733 = vld [vmem:[%s324 + $0x18] sm:$0xf]
      %v734 = vld [vmem:[%s324 + $0x1c] sm:$0xf]
      %v735 = vld [vmem:[%s324 + $0x20] sm:$0xf]
      %v736 = vld [vmem:[%s324 + $0x24] sm:$0xf]
      %v737 = vld [vmem:[%s324 + $0x28] sm:$0xf]
      %v738 = vld [vmem:[%s324 + $0x2c] sm:$0x3]
      %v750 = vunpack.c.l.b16 %v728
      %v751 = vunpack.c.l.b16 %v729
      %v752 = vunpack.c.l.b16 %v730
      %v753 = vunpack.c.l.b16 %v731
      %v754 = vunpack.c.l.b16 %v732
      %v755 = vunpack.c.l.b16 %v733
      %v756 = vunpack.c.l.b16 %v734
      %v757 = vunpack.c.l.b16 %v735
      %v758 = vunpack.c.l.b16 %v736
      %v759 = vunpack.c.l.b16 %v737
      %v760 = vunpack.c.l.b16 %v738
      %v761 = vpack.c.b16 %v751, %v750
      %v762 = vpack.c.b16 %v753, %v752
      %v763 = vpack.c.b16 %v755, %v754
      %v764 = vpack.c.b16 %v757, %v756
      %v765 = vpack.c.b16 %v759, %v758
      %v766 = vpack.c.b16 %v760, %v760
      %vm767 = vcmask 1045504
      %v768 = vrot.slane %v761, 2
      %v769 = vrot.slane %v762, 2
      %v770 = vsel %vm767, %v768, %v769
      %v771 = vrot.slane %v763, 2
      %v772 = vsel %vm767, %v769, %v771
      %v773 = vrot.slane %v764, 2
      %v774 = vsel %vm767, %v771, %v773
      %v775 = vrot.slane %v765, 2
      %v776 = vsel %vm767, %v773, %v775
      %v777 = vrot.slane %v766, 2
      %v778 = vsel %vm767, %v775, %v777
      %784 = vst [vmem:[#allocation2 + $0x28] sm:$0xff] %v770
      %785 = vst [vmem:[#allocation2 + $0x100] sm:$0xff] %v772
      %786 = vst [vmem:[#allocation2 + $0x1d8] sm:$0xff] %v774
      %787 = vst [vmem:[#allocation2 + $0x2b0] sm:$0xff] %v776
      %788 = vst [vmem:[#allocation2 + $0x388] sm:$0xff] %v778
      %v789 = vld [vmem:[%s324 + $0x8] sm:$0xc]
      %v790 = vld [vmem:[%s324 + $0xc] sm:$0xf]
      %v791 = vld [vmem:[%s324 + $0x10] sm:$0xf]
      %v792 = vld [vmem:[%s324 + $0x14] sm:$0xf]
      %v793 = vld [vmem:[%s324 + $0x18] sm:$0xf]
      %v794 = vld [vmem:[%s324 + $0x1c] sm:$0xf]
      %v795 = vld [vmem:[%s324 + $0x20] sm:$0xf]
      %v796 = vld [vmem:[%s324 + $0x24] sm:$0xf]
      %v797 = vld [vmem:[%s324 + $0x28] sm:$0xf]
      %v798 = vld [vmem:[%s324 + $0x2c] sm:$0xf]
      %v799 = vld [vmem:[%s324 + $0x30] sm:$0x3]
      %v811 = vunpack.c.l.b16 %v789
      %v812 = vunpack.c.l.b16 %v790
      %v813 = vunpack.c.l.b16 %v791
      %v814 = vunpack.c.l.b16 %v792
      %v815 = vunpack.c.l.b16 %v793
      %v816 = vunpack.c.l.b16 %v794
      %v817 = vunpack.c.l.b16 %v795
      %v818 = vunpack.c.l.b16 %v796
      %v819 = vunpack.c.l.b16 %v797
      %v820 = vunpack.c.l.b16 %v798
      %v821 = vunpack.c.l.b16 %v799
      %v822 = vpack.c.b16 %v812, %v811
      %v823 = vpack.c.b16 %v814, %v813
      %v824 = vpack.c.b16 %v816, %v815
      %v825 = vpack.c.b16 %v818, %v817
      %v826 = vpack.c.b16 %v820, %v819
      %v827 = vpack.c.b16 %v821, %v821
      %v828 = vrot.slane %v822, 2
      %v829 = vrot.slane %v823, 2
      %v830 = vsel %vm767, %v828, %v829
      %v831 = vrot.slane %v824, 2
      %v832 = vsel %vm767, %v829, %v831
      %v833 = vrot.slane %v825, 2
      %v834 = vsel %vm767, %v831, %v833
      %v835 = vrot.slane %v826, 2
      %v836 = vsel %vm767, %v833, %v835
      %v837 = vrot.slane %v827, 2
      %v838 = vsel %vm767, %v835, %v837
      %844 = vst [vmem:[#allocation2 + $0x30] sm:$0xff] %v830
      %845 = vst [vmem:[#allocation2 + $0x108] sm:$0xff] %v832
      %846 = vst [vmem:[#allocation2 + $0x1e0] sm:$0xff] %v834
      %847 = vst [vmem:[#allocation2 + $0x2b8] sm:$0xff] %v836
      %848 = vst [vmem:[#allocation2 + $0x390] sm:$0xff] %v838
      %v849 = vld [vmem:[%s324 + $0x8] sm:$0xc]
      %v850 = vld [vmem:[%s324 + $0xc] sm:$0xf]
      %v851 = vld [vmem:[%s324 + $0x10] sm:$0xf]
      %v852 = vld [vmem:[%s324 + $0x14] sm:$0xf]
      %v853 = vld [vmem:[%s324 + $0x18] sm:$0xf]
      %v854 = vld [vmem:[%s324 + $0x1c] sm:$0xf]
      %v855 = vld [vmem:[%s324 + $0x20] sm:$0xf]
      %v856 = vld [vmem:[%s324 + $0x24] sm:$0xf]
      %v857 = vld [vmem:[%s324 + $0x28] sm:$0xf]
      %v858 = vld [vmem:[%s324 + $0x2c] sm:$0xf]
      %v859 = vld [vmem:[%s324 + $0x30] sm:$0x7]
      %v871 = vunpack.c.l.b16 %v849
      %v872 = vunpack.c.l.b16 %v850
      %v873 = vunpack.c.l.b16 %v851
      %v874 = vunpack.c.l.b16 %v852
      %v875 = vunpack.c.l.b16 %v853
      %v876 = vunpack.c.l.b16 %v854
      %v877 = vunpack.c.l.b16 %v855
      %v878 = vunpack.c.l.b16 %v856
      %v879 = vunpack.c.l.b16 %v857
      %v880 = vunpack.c.l.b16 %v858
      %v881 = vunpack.c.l.b16 %v859
      %v882 = vpack.c.b16 %v872, %v871
      %v883 = vpack.c.b16 %v874, %v873
      %v884 = vpack.c.b16 %v876, %v875
      %v885 = vpack.c.b16 %v878, %v877
      %v886 = vpack.c.b16 %v880, %v879
      %v887 = vpack.c.b16 %v881, %v881
      %vm888 = vsmask.f32 5376
      %v890 = vshrl.u32 %v882, 16
      %v892 = vrot.slane %v890, 2
      %v893 = vshll.u32 %v882, 16
      %v895 = vrot.slane %v893, 3
      %v896 = vor.u32 %v892, %v895
      %v898 = vshrl.u32 %v883, 16
      %v900 = vrot.slane %v898, 2
      %v901 = vshll.u32 %v883, 16
      %v903 = vrot.slane %v901, 3
      %v904 = vor.u32 %v900, %v903
      %v905 = vsel %vm888, %v896, %v904
      %v907 = vshrl.u32 %v884, 16
      %v909 = vrot.slane %v907, 2
      %v910 = vshll.u32 %v884, 16
      %v912 = vrot.slane %v910, 3
      %v913 = vor.u32 %v909, %v912
      %v914 = vsel %vm888, %v904, %v913
      %v916 = vshrl.u32 %v885, 16
      %v918 = vrot.slane %v916, 2
      %v919 = vshll.u32 %v885, 16
      %v921 = vrot.slane %v919, 3
      %v922 = vor.u32 %v918, %v921
      %v923 = vsel %vm888, %v913, %v922
      %v925 = vshrl.u32 %v886, 16
      %v927 = vrot.slane %v925, 2
      %v928 = vshll.u32 %v886, 16
      %v930 = vrot.slane %v928, 3
      %v931 = vor.u32 %v927, %v930
      %v932 = vsel %vm888, %v922, %v931
      %v934 = vshrl.u32 %v887, 16
      %v936 = vrot.slane %v934, 2
      %v937 = vshll.u32 %v887, 16
      %v939 = vrot.slane %v937, 3
      %v940 = vor.u32 %v936, %v939
      %v941 = vsel %vm888, %v931, %v940
      %947 = vst [vmem:[#allocation2 + $0x38] sm:$0xff] %v905
      %948 = vst [vmem:[#allocation2 + $0x110] sm:$0xff] %v914
      %949 = vst [vmem:[#allocation2 + $0x1e8] sm:$0xff] %v923
      %950 = vst [vmem:[#allocation2 + $0x2c0] sm:$0xff] %v932
      %951 = vst [vmem:[#allocation2 + $0x398] sm:$0xff] %v941
      %v952 = vld [vmem:[%s324 + $0x8] sm:$0x8]
      %v953 = vld [vmem:[%s324 + $0xc] sm:$0xf]
      %v954 = vld [vmem:[%s324 + $0x10] sm:$0xf]
      %v955 = vld [vmem:[%s324 + $0x14] sm:$0xf]
      %v956 = vld [vmem:[%s324 + $0x18] sm:$0xf]
      %v957 = vld [vmem:[%s324 + $0x1c] sm:$0xf]
      %v958 = vld [vmem:[%s324 + $0x20] sm:$0xf]
      %v959 = vld [vmem:[%s324 + $0x24] sm:$0xf]
      %v960 = vld [vmem:[%s324 + $0x28] sm:$0xf]
      %v961 = vld [vmem:[%s324 + $0x2c] sm:$0xf]
      %v962 = vld [vmem:[%s324 + $0x30] sm:$0x7]
      %v974 = vunpack.c.l.b16 %v952
      %v975 = vunpack.c.l.b16 %v953
      %v976 = vunpack.c.l.b16 %v954
      %v977 = vunpack.c.l.b16 %v955
      %v978 = vunpack.c.l.b16 %v956
      %v979 = vunpack.c.l.b16 %v957
      %v980 = vunpack.c.l.b16 %v958
      %v981 = vunpack.c.l.b16 %v959
      %v982 = vunpack.c.l.b16 %v960
      %v983 = vunpack.c.l.b16 %v961
      %v984 = vunpack.c.l.b16 %v962
      %v985 = vpack.c.b16 %v975, %v974
      %v986 = vpack.c.b16 %v977, %v976
      %v987 = vpack.c.b16 %v979, %v978
      %v988 = vpack.c.b16 %v981, %v980
      %v989 = vpack.c.b16 %v983, %v982
      %v990 = vpack.c.b16 %v984, %v984
      %vm991 = vcmask 1044480
      %v992 = vrot.slane %v985, 3
      %v993 = vrot.slane %v986, 3
      %v994 = vsel %vm991, %v992, %v993
      %v995 = vrot.slane %v987, 3
      %v996 = vsel %vm991, %v993, %v995
      %v997 = vrot.slane %v988, 3
      %v998 = vsel %vm991, %v995, %v997
      %v999 = vrot.slane %v989, 3
      %v1000 = vsel %vm991, %v997, %v999
      %v1001 = vrot.slane %v990, 3
      %v1002 = vsel %vm991, %v999, %v1001
      %1008 = vst [vmem:[#allocation2 + $0x40] sm:$0xff] %v994
      %1009 = vst [vmem:[#allocation2 + $0x118] sm:$0xff] %v996
      %1010 = vst [vmem:[#allocation2 + $0x1f0] sm:$0xff] %v998
      %1011 = vst [vmem:[#allocation2 + $0x2c8] sm:$0xff] %v1000
      %1012 = vst [vmem:[#allocation2 + $0x3a0] sm:$0xff] %v1002
      %v1013 = vld [vmem:[%s334] sm:$0xf]
      %v1014 = vld [vmem:[%s334 + $0x4] sm:$0xf]
      %v1015 = vld [vmem:[%s334 + $0x8] sm:$0xf]
      %v1016 = vld [vmem:[%s334 + $0xc] sm:$0xf]
      %v1017 = vld [vmem:[%s334 + $0x10] sm:$0xf]
      %v1018 = vld [vmem:[%s334 + $0x14] sm:$0xf]
      %v1019 = vld [vmem:[%s334 + $0x18] sm:$0xf]
      %v1020 = vld [vmem:[%s334 + $0x1c] sm:$0xf]
      %v1021 = vld [vmem:[%s334 + $0x20] sm:$0xf]
      %v1022 = vld [vmem:[%s334 + $0x24] sm:$0xf]
      %v1033 = vunpack.c.l.b16 %v1013
      %v1034 = vunpack.c.l.b16 %v1014
      %v1035 = vunpack.c.l.b16 %v1015
      %v1036 = vunpack.c.l.b16 %v1016
      %v1037 = vunpack.c.l.b16 %v1017
      %v1038 = vunpack.c.l.b16 %v1018
      %v1039 = vunpack.c.l.b16 %v1019
      %v1040 = vunpack.c.l.b16 %v1020
      %v1041 = vunpack.c.l.b16 %v1021
      %v1042 = vunpack.c.l.b16 %v1022
      %v1043 = vpack.c.b16 %v1034, %v1033
      %v1044 = vpack.c.b16 %v1036, %v1035
      %v1045 = vpack.c.b16 %v1038, %v1037
      %v1046 = vpack.c.b16 %v1040, %v1039
      %v1047 = vpack.c.b16 %v1042, %v1041
      %1053 = vst [vmem:[#allocation2 + $0x48] sm:$0xff] %v1043
      %1054 = vst [vmem:[#allocation2 + $0x120] sm:$0xff] %v1044
      %1055 = vst [vmem:[#allocation2 + $0x1f8] sm:$0xff] %v1045
      %1056 = vst [vmem:[#allocation2 + $0x2d0] sm:$0xff] %v1046
      %1057 = vst [vmem:[#allocation2 + $0x3a8] sm:$0xff] %v1047
      %v1058 = vld [vmem:[%s334] sm:$0xf]
      %v1059 = vld [vmem:[%s334 + $0x4] sm:$0xf]
      %v1060 = vld [vmem:[%s334 + $0x8] sm:$0xf]
      %v1061 = vld [vmem:[%s334 + $0xc] sm:$0xf]
      %v1062 = vld [vmem:[%s334 + $0x10] sm:$0xf]
      %v1063 = vld [vmem:[%s334 + $0x14] sm:$0xf]
      %v1064 = vld [vmem:[%s334 + $0x18] sm:$0xf]
      %v1065 = vld [vmem:[%s334 + $0x1c] sm:$0xf]
      %v1066 = vld [vmem:[%s334 + $0x20] sm:$0xf]
      %v1067 = vld [vmem:[%s334 + $0x24] sm:$0xf]
      %v1068 = vld [vmem:[%s334 + $0x28] sm:$0x1]
      %v1080 = vunpack.c.l.b16 %v1058
      %v1081 = vunpack.c.l.b16 %v1059
      %v1082 = vunpack.c.l.b16 %v1060
      %v1083 = vunpack.c.l.b16 %v1061
      %v1084 = vunpack.c.l.b16 %v1062
      %v1085 = vunpack.c.l.b16 %v1063
      %v1086 = vunpack.c.l.b16 %v1064
      %v1087 = vunpack.c.l.b16 %v1065
      %v1088 = vunpack.c.l.b16 %v1066
      %v1089 = vunpack.c.l.b16 %v1067
      %v1090 = vunpack.c.l.b16 %v1068
      %v1091 = vpack.c.b16 %v1081, %v1080
      %v1092 = vpack.c.b16 %v1083, %v1082
      %v1093 = vpack.c.b16 %v1085, %v1084
      %v1094 = vpack.c.b16 %v1087, %v1086
      %v1095 = vpack.c.b16 %v1089, %v1088
      %v1096 = vpack.c.b16 %v1090, %v1090
      %v1098 = vshrl.u32 %v1091, 16
      %v1100 = vshll.u32 %v1091, 16
      %v1102 = vrot.slane %v1100, 1
      %v1103 = vor.u32 %v1098, %v1102
      %v1105 = vshll.u32 %v1092, 16
      %v1107 = vrot.slane %v1105, 1
      %v1108 = vsel %vm449, %v1103, %v1107
      %v1109 = vshrl.u32 %v1092, 16
      %v1111 = vor.u32 %v1109, %v1107
      %v1113 = vshll.u32 %v1093, 16
      %v1115 = vrot.slane %v1113, 1
      %v1116 = vsel %vm449, %v1111, %v1115
      %v1117 = vshrl.u32 %v1093, 16
      %v1119 = vor.u32 %v1117, %v1115
      %v1121 = vshll.u32 %v1094, 16
      %v1123 = vrot.slane %v1121, 1
      %v1124 = vsel %vm449, %v1119, %v1123
      %v1125 = vshrl.u32 %v1094, 16
      %v1127 = vor.u32 %v1125, %v1123
      %v1129 = vshll.u32 %v1095, 16
      %v1131 = vrot.slane %v1129, 1
      %v1132 = vsel %vm449, %v1127, %v1131
      %v1133 = vshrl.u32 %v1095, 16
      %v1135 = vor.u32 %v1133, %v1131
      %v1137 = vshll.u32 %v1096, 16
      %v1139 = vrot.slane %v1137, 1
      %v1140 = vsel %vm449, %v1135, %v1139
      %1146 = vst [vmem:[#allocation2 + $0x50] sm:$0xff] %v1108
      %1147 = vst [vmem:[#allocation2 + $0x128] sm:$0xff] %v1116
      %1148 = vst [vmem:[#allocation2 + $0x200] sm:$0xff] %v1124
      %1149 = vst [vmem:[#allocation2 + $0x2d8] sm:$0xff] %v1132
      %1150 = vst [vmem:[#allocation2 + $0x3b0] sm:$0xff] %v1140
      %v1151 = vld [vmem:[%s334] sm:$0xe]
      %v1152 = vld [vmem:[%s334 + $0x4] sm:$0xf]
      %v1153 = vld [vmem:[%s334 + $0x8] sm:$0xf]
      %v1154 = vld [vmem:[%s334 + $0xc] sm:$0xf]
      %v1155 = vld [vmem:[%s334 + $0x10] sm:$0xf]
      %v1156 = vld [vmem:[%s334 + $0x14] sm:$0xf]
      %v1157 = vld [vmem:[%s334 + $0x18] sm:$0xf]
      %v1158 = vld [vmem:[%s334 + $0x1c] sm:$0xf]
      %v1159 = vld [vmem:[%s334 + $0x20] sm:$0xf]
      %v1160 = vld [vmem:[%s334 + $0x24] sm:$0xf]
      %v1161 = vld [vmem:[%s334 + $0x28] sm:$0x1]
      %v1173 = vunpack.c.l.b16 %v1151
      %v1174 = vunpack.c.l.b16 %v1152
      %v1175 = vunpack.c.l.b16 %v1153
      %v1176 = vunpack.c.l.b16 %v1154
      %v1177 = vunpack.c.l.b16 %v1155
      %v1178 = vunpack.c.l.b16 %v1156
      %v1179 = vunpack.c.l.b16 %v1157
      %v1180 = vunpack.c.l.b16 %v1158
      %v1181 = vunpack.c.l.b16 %v1159
      %v1182 = vunpack.c.l.b16 %v1160
      %v1183 = vunpack.c.l.b16 %v1161
      %v1184 = vpack.c.b16 %v1174, %v1173
      %v1185 = vpack.c.b16 %v1176, %v1175
      %v1186 = vpack.c.b16 %v1178, %v1177
      %v1187 = vpack.c.b16 %v1180, %v1179
      %v1188 = vpack.c.b16 %v1182, %v1181
      %v1189 = vpack.c.b16 %v1183, %v1183
      %v1190 = vrot.slane %v1184, 1
      %v1191 = vrot.slane %v1185, 1
      %v1192 = vsel %vm543, %v1190, %v1191
      %v1193 = vrot.slane %v1186, 1
      %v1194 = vsel %vm543, %v1191, %v1193
      %v1195 = vrot.slane %v1187, 1
      %v1196 = vsel %vm543, %v1193, %v1195
      %v1197 = vrot.slane %v1188, 1
      %v1198 = vsel %vm543, %v1195, %v1197
      %v1199 = vrot.slane %v1189, 1
      %v1200 = vsel %vm543, %v1197, %v1199
      %1206 = vst [vmem:[#allocation2 + $0x58] sm:$0xff] %v1192
      %1207 = vst [vmem:[#allocation2 + $0x130] sm:$0xff] %v1194
      %1208 = vst [vmem:[#allocation2 + $0x208] sm:$0xff] %v1196
      %1209 = vst [vmem:[#allocation2 + $0x2e0] sm:$0xff] %v1198
      %1210 = vst [vmem:[#allocation2 + $0x3b8] sm:$0xff] %v1200
      %v1211 = vld [vmem:[%s334 + $0x4] sm:$0xe]
      %v1212 = vld [vmem:[%s334 + $0x8] sm:$0xf]
      %v1213 = vld [vmem:[%s334 + $0xc] sm:$0xf]
      %v1214 = vld [vmem:[%s334 + $0x10] sm:$0xf]
      %v1215 = vld [vmem:[%s334 + $0x14] sm:$0xf]
      %v1216 = vld [vmem:[%s334 + $0x18] sm:$0xf]
      %v1217 = vld [vmem:[%s334 + $0x1c] sm:$0xf]
      %v1218 = vld [vmem:[%s334 + $0x20] sm:$0xf]
      %v1219 = vld [vmem:[%s334 + $0x24] sm:$0xf]
      %v1220 = vld [vmem:[%s334 + $0x28] sm:$0xf]
      %v1221 = vld [vmem:[%s334 + $0x2c] sm:$0x1]
      %v1233 = vunpack.c.l.b16 %v1211
      %v1234 = vunpack.c.l.b16 %v1212
      %v1235 = vunpack.c.l.b16 %v1213
      %v1236 = vunpack.c.l.b16 %v1214
      %v1237 = vunpack.c.l.b16 %v1215
      %v1238 = vunpack.c.l.b16 %v1216
      %v1239 = vunpack.c.l.b16 %v1217
      %v1240 = vunpack.c.l.b16 %v1218
      %v1241 = vunpack.c.l.b16 %v1219
      %v1242 = vunpack.c.l.b16 %v1220
      %v1243 = vunpack.c.l.b16 %v1221
      %v1244 = vpack.c.b16 %v1234, %v1233
      %v1245 = vpack.c.b16 %v1236, %v1235
      %v1246 = vpack.c.b16 %v1238, %v1237
      %v1247 = vpack.c.b16 %v1240, %v1239
      %v1248 = vpack.c.b16 %v1242, %v1241
      %v1249 = vpack.c.b16 %v1243, %v1243
      %v1250 = vrot.slane %v1244, 1
      %v1251 = vrot.slane %v1245, 1
      %v1252 = vsel %vm543, %v1250, %v1251
      %v1253 = vrot.slane %v1246, 1
      %v1254 = vsel %vm543, %v1251, %v1253
      %v1255 = vrot.slane %v1247, 1
      %v1256 = vsel %vm543, %v1253, %v1255
      %v1257 = vrot.slane %v1248, 1
      %v1258 = vsel %vm543, %v1255, %v1257
      %v1259 = vrot.slane %v1249, 1
      %v1260 = vsel %vm543, %v1257, %v1259
      %1266 = vst [vmem:[#allocation2 + $0x60] sm:$0xff] %v1252
      %1267 = vst [vmem:[#allocation2 + $0x138] sm:$0xff] %v1254
      %1268 = vst [vmem:[#allocation2 + $0x210] sm:$0xff] %v1256
      %1269 = vst [vmem:[#allocation2 + $0x2e8] sm:$0xff] %v1258
      %1270 = vst [vmem:[#allocation2 + $0x3c0] sm:$0xff] %v1260
      %v1271 = vld [vmem:[%s334 + $0x4] sm:$0xe]
      %v1272 = vld [vmem:[%s334 + $0x8] sm:$0xf]
      %v1273 = vld [vmem:[%s334 + $0xc] sm:$0xf]
      %v1274 = vld [vmem:[%s334 + $0x10] sm:$0xf]
      %v1275 = vld [vmem:[%s334 + $0x14] sm:$0xf]
      %v1276 = vld [vmem:[%s334 + $0x18] sm:$0xf]
      %v1277 = vld [vmem:[%s334 + $0x1c] sm:$0xf]
      %v1278 = vld [vmem:[%s334 + $0x20] sm:$0xf]
      %v1279 = vld [vmem:[%s334 + $0x24] sm:$0xf]
      %v1280 = vld [vmem:[%s334 + $0x28] sm:$0xf]
      %v1281 = vld [vmem:[%s334 + $0x2c] sm:$0x3]
      %v1293 = vunpack.c.l.b16 %v1271
      %v1294 = vunpack.c.l.b16 %v1272
      %v1295 = vunpack.c.l.b16 %v1273
      %v1296 = vunpack.c.l.b16 %v1274
      %v1297 = vunpack.c.l.b16 %v1275
      %v1298 = vunpack.c.l.b16 %v1276
      %v1299 = vunpack.c.l.b16 %v1277
      %v1300 = vunpack.c.l.b16 %v1278
      %v1301 = vunpack.c.l.b16 %v1279
      %v1302 = vunpack.c.l.b16 %v1280
      %v1303 = vunpack.c.l.b16 %v1281
      %v1304 = vpack.c.b16 %v1294, %v1293
      %v1305 = vpack.c.b16 %v1296, %v1295
      %v1306 = vpack.c.b16 %v1298, %v1297
      %v1307 = vpack.c.b16 %v1300, %v1299
      %v1308 = vpack.c.b16 %v1302, %v1301
      %v1309 = vpack.c.b16 %v1303, %v1303
      %v1311 = vshrl.u32 %v1304, 16
      %v1313 = vrot.slane %v1311, 1
      %v1314 = vshll.u32 %v1304, 16
      %v1316 = vrot.slane %v1314, 2
      %v1317 = vor.u32 %v1313, %v1316
      %v1319 = vshrl.u32 %v1305, 16
      %v1321 = vrot.slane %v1319, 1
      %v1322 = vshll.u32 %v1305, 16
      %v1324 = vrot.slane %v1322, 2
      %v1325 = vor.u32 %v1321, %v1324
      %v1326 = vsel %vm664, %v1317, %v1325
      %v1328 = vshrl.u32 %v1306, 16
      %v1330 = vrot.slane %v1328, 1
      %v1331 = vshll.u32 %v1306, 16
      %v1333 = vrot.slane %v1331, 2
      %v1334 = vor.u32 %v1330, %v1333
      %v1335 = vsel %vm664, %v1325, %v1334
      %v1337 = vshrl.u32 %v1307, 16
      %v1339 = vrot.slane %v1337, 1
      %v1340 = vshll.u32 %v1307, 16
      %v1342 = vrot.slane %v1340, 2
      %v1343 = vor.u32 %v1339, %v1342
      %v1344 = vsel %vm664, %v1334, %v1343
      %v1346 = vshrl.u32 %v1308, 16
      %v1348 = vrot.slane %v1346, 1
      %v1349 = vshll.u32 %v1308, 16
      %v1351 = vrot.slane %v1349, 2
      %v1352 = vor.u32 %v1348, %v1351
      %v1353 = vsel %vm664, %v1343, %v1352
      %v1355 = vshrl.u32 %v1309, 16
      %v1357 = vrot.slane %v1355, 1
      %v1358 = vshll.u32 %v1309, 16
      %v1360 = vrot.slane %v1358, 2
      %v1361 = vor.u32 %v1357, %v1360
      %v1362 = vsel %vm664, %v1352, %v1361
      %1368 = vst [vmem:[#allocation2 + $0x68] sm:$0xff] %v1326
      %1369 = vst [vmem:[#allocation2 + $0x140] sm:$0xff] %v1335
      %1370 = vst [vmem:[#allocation2 + $0x218] sm:$0xff] %v1344
      %1371 = vst [vmem:[#allocation2 + $0x2f0] sm:$0xff] %v1353
      %1372 = vst [vmem:[#allocation2 + $0x3c8] sm:$0xff] %v1362
      %v1373 = vld [vmem:[%s334 + $0x4] sm:$0xc]
      %v1374 = vld [vmem:[%s334 + $0x8] sm:$0xf]
      %v1375 = vld [vmem:[%s334 + $0xc] sm:$0xf]
      %v1376 = vld [vmem:[%s334 + $0x10] sm:$0xf]
      %v1377 = vld [vmem:[%s334 + $0x14] sm:$0xf]
      %v1378 = vld [vmem:[%s334 + $0x18] sm:$0xf]
      %v1379 = vld [vmem:[%s334 + $0x1c] sm:$0xf]
      %v1380 = vld [vmem:[%s334 + $0x20] sm:$0xf]
      %v1381 = vld [vmem:[%s334 + $0x24] sm:$0xf]
      %v1382 = vld [vmem:[%s334 + $0x28] sm:$0xf]
      %v1383 = vld [vmem:[%s334 + $0x2c] sm:$0x3]
      %v1395 = vunpack.c.l.b16 %v1373
      %v1396 = vunpack.c.l.b16 %v1374
      %v1397 = vunpack.c.l.b16 %v1375
      %v1398 = vunpack.c.l.b16 %v1376
      %v1399 = vunpack.c.l.b16 %v1377
      %v1400 = vunpack.c.l.b16 %v1378
      %v1401 = vunpack.c.l.b16 %v1379
      %v1402 = vunpack.c.l.b16 %v1380
      %v1403 = vunpack.c.l.b16 %v1381
      %v1404 = vunpack.c.l.b16 %v1382
      %v1405 = vunpack.c.l.b16 %v1383
      %v1406 = vpack.c.b16 %v1396, %v1395
      %v1407 = vpack.c.b16 %v1398, %v1397
      %v1408 = vpack.c.b16 %v1400, %v1399
      %v1409 = vpack.c.b16 %v1402, %v1401
      %v1410 = vpack.c.b16 %v1404, %v1403
      %v1411 = vpack.c.b16 %v1405, %v1405
      %v1412 = vrot.slane %v1406, 2
      %v1413 = vrot.slane %v1407, 2
      %v1414 = vsel %vm767, %v1412, %v1413
      %v1415 = vrot.slane %v1408, 2
      %v1416 = vsel %vm767, %v1413, %v1415
      %v1417 = vrot.slane %v1409, 2
      %v1418 = vsel %vm767, %v1415, %v1417
      %v1419 = vrot.slane %v1410, 2
      %v1420 = vsel %vm767, %v1417, %v1419
      %v1421 = vrot.slane %v1411, 2
      %v1422 = vsel %vm767, %v1419, %v1421
      %1428 = vst [vmem:[#allocation2 + $0x70] sm:$0xff] %v1414
      %1429 = vst [vmem:[#allocation2 + $0x148] sm:$0xff] %v1416
      %1430 = vst [vmem:[#allocation2 + $0x220] sm:$0xff] %v1418
      %1431 = vst [vmem:[#allocation2 + $0x2f8] sm:$0xff] %v1420
      %1432 = vst [vmem:[#allocation2 + $0x3d0] sm:$0xff] %v1422
      %v1433 = vld [vmem:[%s334 + $0x8] sm:$0xc]
      %v1434 = vld [vmem:[%s334 + $0xc] sm:$0xf]
      %v1435 = vld [vmem:[%s334 + $0x10] sm:$0xf]
      %v1436 = vld [vmem:[%s334 + $0x14] sm:$0xf]
      %v1437 = vld [vmem:[%s334 + $0x18] sm:$0xf]
      %v1438 = vld [vmem:[%s334 + $0x1c] sm:$0xf]
      %v1439 = vld [vmem:[%s334 + $0x20] sm:$0xf]
      %v1440 = vld [vmem:[%s334 + $0x24] sm:$0xf]
      %v1441 = vld [vmem:[%s334 + $0x28] sm:$0xf]
      %v1442 = vld [vmem:[%s334 + $0x2c] sm:$0xf]
      %v1443 = vld [vmem:[%s334 + $0x30] sm:$0x3]
      %v1455 = vunpack.c.l.b16 %v1433
      %v1456 = vunpack.c.l.b16 %v1434
      %v1457 = vunpack.c.l.b16 %v1435
      %v1458 = vunpack.c.l.b16 %v1436
      %v1459 = vunpack.c.l.b16 %v1437
      %v1460 = vunpack.c.l.b16 %v1438
      %v1461 = vunpack.c.l.b16 %v1439
      %v1462 = vunpack.c.l.b16 %v1440
      %v1463 = vunpack.c.l.b16 %v1441
      %v1464 = vunpack.c.l.b16 %v1442
      %v1465 = vunpack.c.l.b16 %v1443
      %v1466 = vpack.c.b16 %v1456, %v1455
      %v1467 = vpack.c.b16 %v1458, %v1457
      %v1468 = vpack.c.b16 %v1460, %v1459
      %v1469 = vpack.c.b16 %v1462, %v1461
      %v1470 = vpack.c.b16 %v1464, %v1463
      %v1471 = vpack.c.b16 %v1465, %v1465
      %v1472 = vrot.slane %v1466, 2
      %v1473 = vrot.slane %v1467, 2
      %v1474 = vsel %vm767, %v1472, %v1473
      %v1475 = vrot.slane %v1468, 2
      %v1476 = vsel %vm767, %v1473, %v1475
      %v1477 = vrot.slane %v1469, 2
      %v1478 = vsel %vm767, %v1475, %v1477
      %v1479 = vrot.slane %v1470, 2
      %v1480 = vsel %vm767, %v1477, %v1479
      %v1481 = vrot.slane %v1471, 2
      %v1482 = vsel %vm767, %v1479, %v1481
      %1488 = vst [vmem:[#allocation2 + $0x78] sm:$0xff] %v1474
      %1489 = vst [vmem:[#allocation2 + $0x150] sm:$0xff] %v1476
      %1490 = vst [vmem:[#allocation2 + $0x228] sm:$0xff] %v1478
      %1491 = vst [vmem:[#allocation2 + $0x300] sm:$0xff] %v1480
      %1492 = vst [vmem:[#allocation2 + $0x3d8] sm:$0xff] %v1482
      %v1493 = vld [vmem:[%s334 + $0x8] sm:$0xc]
      %v1494 = vld [vmem:[%s334 + $0xc] sm:$0xf]
      %v1495 = vld [vmem:[%s334 + $0x10] sm:$0xf]
      %v1496 = vld [vmem:[%s334 + $0x14] sm:$0xf]
      %v1497 = vld [vmem:[%s334 + $0x18] sm:$0xf]
      %v1498 = vld [vmem:[%s334 + $0x1c] sm:$0xf]
      %v1499 = vld [vmem:[%s334 + $0x20] sm:$0xf]
      %v1500 = vld [vmem:[%s334 + $0x24] sm:$0xf]
      %v1501 = vld [vmem:[%s334 + $0x28] sm:$0xf]
      %v1502 = vld [vmem:[%s334 + $0x2c] sm:$0xf]
      %v1503 = vld [vmem:[%s334 + $0x30] sm:$0x7]
      %v1515 = vunpack.c.l.b16 %v1493
      %v1516 = vunpack.c.l.b16 %v1494
      %v1517 = vunpack.c.l.b16 %v1495
      %v1518 = vunpack.c.l.b16 %v1496
      %v1519 = vunpack.c.l.b16 %v1497
      %v1520 = vunpack.c.l.b16 %v1498
      %v1521 = vunpack.c.l.b16 %v1499
      %v1522 = vunpack.c.l.b16 %v1500
      %v1523 = vunpack.c.l.b16 %v1501
      %v1524 = vunpack.c.l.b16 %v1502
      %v1525 = vunpack.c.l.b16 %v1503
      %v1526 = vpack.c.b16 %v1516, %v1515
      %v1527 = vpack.c.b16 %v1518, %v1517
      %v1528 = vpack.c.b16 %v1520, %v1519
      %v1529 = vpack.c.b16 %v1522, %v1521
      %v1530 = vpack.c.b16 %v1524, %v1523
      %v1531 = vpack.c.b16 %v1525, %v1525
      %v1533 = vshrl.u32 %v1526, 16
      %v1535 = vrot.slane %v1533, 2
      %v1536 = vshll.u32 %v1526, 16
      %v1538 = vrot.slane %v1536, 3
      %v1539 = vor.u32 %v1535, %v1538
      %v1541 = vshrl.u32 %v1527, 16
      %v1543 = vrot.slane %v1541, 2
      %v1544 = vshll.u32 %v1527, 16
      %v1546 = vrot.slane %v1544, 3
      %v1547 = vor.u32 %v1543, %v1546
      %v1548 = vsel %vm888, %v1539, %v1547
      %v1550 = vshrl.u32 %v1528, 16
      %v1552 = vrot.slane %v1550, 2
      %v1553 = vshll.u32 %v1528, 16
      %v1555 = vrot.slane %v1553, 3
      %v1556 = vor.u32 %v1552, %v1555
      %v1557 = vsel %vm888, %v1547, %v1556
      %v1559 = vshrl.u32 %v1529, 16
      %v1561 = vrot.slane %v1559, 2
      %v1562 = vshll.u32 %v1529, 16
      %v1564 = vrot.slane %v1562, 3
      %v1565 = vor.u32 %v1561, %v1564
      %v1566 = vsel %vm888, %v1556, %v1565
      %v1568 = vshrl.u32 %v1530, 16
      %v1570 = vrot.slane %v1568, 2
      %v1571 = vshll.u32 %v1530, 16
      %v1573 = vrot.slane %v1571, 3
      %v1574 = vor.u32 %v1570, %v1573
      %v1575 = vsel %vm888, %v1565, %v1574
      %v1577 = vshrl.u32 %v1531, 16
      %v1579 = vrot.slane %v1577, 2
      %v1580 = vshll.u32 %v1531, 16
      %v1582 = vrot.slane %v1580, 3
      %v1583 = vor.u32 %v1579, %v1582
      %v1584 = vsel %vm888, %v1574, %v1583
      %1590 = vst [vmem:[#allocation2 + $0x80] sm:$0xff] %v1548
      %1591 = vst [vmem:[#allocation2 + $0x158] sm:$0xff] %v1557
      %1592 = vst [vmem:[#allocation2 + $0x230] sm:$0xff] %v1566
      %1593 = vst [vmem:[#allocation2 + $0x308] sm:$0xff] %v1575
      %1594 = vst [vmem:[#allocation2 + $0x3e0] sm:$0xff] %v1584
      %v1595 = vld [vmem:[%s334 + $0x8] sm:$0x8]
      %v1596 = vld [vmem:[%s334 + $0xc] sm:$0xf]
      %v1597 = vld [vmem:[%s334 + $0x10] sm:$0xf]
      %v1598 = vld [vmem:[%s334 + $0x14] sm:$0xf]
      %v1599 = vld [vmem:[%s334 + $0x18] sm:$0xf]
      %v1600 = vld [vmem:[%s334 + $0x1c] sm:$0xf]
      %v1601 = vld [vmem:[%s334 + $0x20] sm:$0xf]
      %v1602 = vld [vmem:[%s334 + $0x24] sm:$0xf]
      %v1603 = vld [vmem:[%s334 + $0x28] sm:$0xf]
      %v1604 = vld [vmem:[%s334 + $0x2c] sm:$0xf]
      %v1605 = vld [vmem:[%s334 + $0x30] sm:$0x7]
      %v1617 = vunpack.c.l.b16 %v1595
      %v1618 = vunpack.c.l.b16 %v1596
      %v1619 = vunpack.c.l.b16 %v1597
      %v1620 = vunpack.c.l.b16 %v1598
      %v1621 = vunpack.c.l.b16 %v1599
      %v1622 = vunpack.c.l.b16 %v1600
      %v1623 = vunpack.c.l.b16 %v1601
      %v1624 = vunpack.c.l.b16 %v1602
      %v1625 = vunpack.c.l.b16 %v1603
      %v1626 = vunpack.c.l.b16 %v1604
      %v1627 = vunpack.c.l.b16 %v1605
      %v1628 = vpack.c.b16 %v1618, %v1617
      %v1629 = vpack.c.b16 %v1620, %v1619
      %v1630 = vpack.c.b16 %v1622, %v1621
      %v1631 = vpack.c.b16 %v1624, %v1623
      %v1632 = vpack.c.b16 %v1626, %v1625
      %v1633 = vpack.c.b16 %v1627, %v1627
      %v1634 = vrot.slane %v1628, 3
      %v1635 = vrot.slane %v1629, 3
      %v1636 = vsel %vm991, %v1634, %v1635
      %v1637 = vrot.slane %v1630, 3
      %v1638 = vsel %vm991, %v1635, %v1637
      %v1639 = vrot.slane %v1631, 3
      %v1640 = vsel %vm991, %v1637, %v1639
      %v1641 = vrot.slane %v1632, 3
      %v1642 = vsel %vm991, %v1639, %v1641
      %v1643 = vrot.slane %v1633, 3
      %v1644 = vsel %vm991, %v1641, %v1643
      %1650 = vst [vmem:[#allocation2 + $0x88] sm:$0xff] %v1636
      %1651 = vst [vmem:[#allocation2 + $0x160] sm:$0xff] %v1638
      %1652 = vst [vmem:[#allocation2 + $0x238] sm:$0xff] %v1640
      %1653 = vst [vmem:[#allocation2 + $0x310] sm:$0xff] %v1642
      %1654 = vst [vmem:[#allocation2 + $0x3e8] sm:$0xff] %v1644
      %v1655 = vld [vmem:[%s345] sm:$0xf]
      %v1656 = vld [vmem:[%s345 + $0x4] sm:$0xf]
      %v1657 = vld [vmem:[%s345 + $0x8] sm:$0xf]
      %v1658 = vld [vmem:[%s345 + $0xc] sm:$0xf]
      %v1659 = vld [vmem:[%s345 + $0x10] sm:$0xf]
      %v1660 = vld [vmem:[%s345 + $0x14] sm:$0xf]
      %v1661 = vld [vmem:[%s345 + $0x18] sm:$0xf]
      %v1662 = vld [vmem:[%s345 + $0x1c] sm:$0xf]
      %v1663 = vld [vmem:[%s345 + $0x20] sm:$0xf]
      %v1664 = vld [vmem:[%s345 + $0x24] sm:$0xf]
      %v1675 = vunpack.c.l.b16 %v1655
      %v1676 = vunpack.c.l.b16 %v1656
      %v1677 = vunpack.c.l.b16 %v1657
      %v1678 = vunpack.c.l.b16 %v1658
      %v1679 = vunpack.c.l.b16 %v1659
      %v1680 = vunpack.c.l.b16 %v1660
      %v1681 = vunpack.c.l.b16 %v1661
      %v1682 = vunpack.c.l.b16 %v1662
      %v1683 = vunpack.c.l.b16 %v1663
      %v1684 = vunpack.c.l.b16 %v1664
      %v1685 = vpack.c.b16 %v1676, %v1675
      %v1686 = vpack.c.b16 %v1678, %v1677
      %v1687 = vpack.c.b16 %v1680, %v1679
      %v1688 = vpack.c.b16 %v1682, %v1681
      %v1689 = vpack.c.b16 %v1684, %v1683
      %1695 = vst [vmem:[#allocation2 + $0x90] sm:$0xff] %v1685
      %1696 = vst [vmem:[#allocation2 + $0x168] sm:$0xff] %v1686
      %1697 = vst [vmem:[#allocation2 + $0x240] sm:$0xff] %v1687
      %1698 = vst [vmem:[#allocation2 + $0x318] sm:$0xff] %v1688
      %1699 = vst [vmem:[#allocation2 + $0x3f0] sm:$0xff] %v1689
      %v1700 = vld [vmem:[%s345] sm:$0xf]
      %v1701 = vld [vmem:[%s345 + $0x4] sm:$0xf]
      %v1702 = vld [vmem:[%s345 + $0x8] sm:$0xf]
      %v1703 = vld [vmem:[%s345 + $0xc] sm:$0xf]
      %v1704 = vld [vmem:[%s345 + $0x10] sm:$0xf]
      %v1705 = vld [vmem:[%s345 + $0x14] sm:$0xf]
      %v1706 = vld [vmem:[%s345 + $0x18] sm:$0xf]
      %v1707 = vld [vmem:[%s345 + $0x1c] sm:$0xf]
      %v1708 = vld [vmem:[%s345 + $0x20] sm:$0xf]
      %v1709 = vld [vmem:[%s345 + $0x24] sm:$0xf]
      %v1710 = vld [vmem:[%s345 + $0x28] sm:$0x1]
      %v1722 = vunpack.c.l.b16 %v1700
      %v1723 = vunpack.c.l.b16 %v1701
      %v1724 = vunpack.c.l.b16 %v1702
      %v1725 = vunpack.c.l.b16 %v1703
      %v1726 = vunpack.c.l.b16 %v1704
      %v1727 = vunpack.c.l.b16 %v1705
      %v1728 = vunpack.c.l.b16 %v1706
      %v1729 = vunpack.c.l.b16 %v1707
      %v1730 = vunpack.c.l.b16 %v1708
      %v1731 = vunpack.c.l.b16 %v1709
      %v1732 = vunpack.c.l.b16 %v1710
      %v1733 = vpack.c.b16 %v1723, %v1722
      %v1734 = vpack.c.b16 %v1725, %v1724
      %v1735 = vpack.c.b16 %v1727, %v1726
      %v1736 = vpack.c.b16 %v1729, %v1728
      %v1737 = vpack.c.b16 %v1731, %v1730
      %v1738 = vpack.c.b16 %v1732, %v1732
      %v1740 = vshrl.u32 %v1733, 16
      %v1742 = vshll.u32 %v1733, 16
      %v1744 = vrot.slane %v1742, 1
      %v1745 = vor.u32 %v1740, %v1744
      %v1747 = vshll.u32 %v1734, 16
      %v1749 = vrot.slane %v1747, 1
      %v1750 = vsel %vm449, %v1745, %v1749
      %v1751 = vshrl.u32 %v1734, 16
      %v1753 = vor.u32 %v1751, %v1749
      %v1755 = vshll.u32 %v1735, 16
      %v1757 = vrot.slane %v1755, 1
      %v1758 = vsel %vm449, %v1753, %v1757
      %v1759 = vshrl.u32 %v1735, 16
      %v1761 = vor.u32 %v1759, %v1757
      %v1763 = vshll.u32 %v1736, 16
      %v1765 = vrot.slane %v1763, 1
      %v1766 = vsel %vm449, %v1761, %v1765
      %v1767 = vshrl.u32 %v1736, 16
      %v1769 = vor.u32 %v1767, %v1765
      %v1771 = vshll.u32 %v1737, 16
      %v1773 = vrot.slane %v1771, 1
      %v1774 = vsel %vm449, %v1769, %v1773
      %v1775 = vshrl.u32 %v1737, 16
      %v1777 = vor.u32 %v1775, %v1773
      %v1779 = vshll.u32 %v1738, 16
      %v1781 = vrot.slane %v1779, 1
      %v1782 = vsel %vm449, %v1777, %v1781
      %1788 = vst [vmem:[#allocation2 + $0x98] sm:$0xff] %v1750
      %1789 = vst [vmem:[#allocation2 + $0x170] sm:$0xff] %v1758
      %1790 = vst [vmem:[#allocation2 + $0x248] sm:$0xff] %v1766
      %1791 = vst [vmem:[#allocation2 + $0x320] sm:$0xff] %v1774
      %1792 = vst [vmem:[#allocation2 + $0x3f8] sm:$0xff] %v1782
      %v1793 = vld [vmem:[%s345] sm:$0xe]
      %v1794 = vld [vmem:[%s345 + $0x4] sm:$0xf]
      %v1795 = vld [vmem:[%s345 + $0x8] sm:$0xf]
      %v1796 = vld [vmem:[%s345 + $0xc] sm:$0xf]
      %v1797 = vld [vmem:[%s345 + $0x10] sm:$0xf]
      %v1798 = vld [vmem:[%s345 + $0x14] sm:$0xf]
      %v1799 = vld [vmem:[%s345 + $0x18] sm:$0xf]
      %v1800 = vld [vmem:[%s345 + $0x1c] sm:$0xf]
      %v1801 = vld [vmem:[%s345 + $0x20] sm:$0xf]
      %v1802 = vld [vmem:[%s345 + $0x24] sm:$0xf]
      %v1803 = vld [vmem:[%s345 + $0x28] sm:$0x1]
      %v1815 = vunpack.c.l.b16 %v1793
      %v1816 = vunpack.c.l.b16 %v1794
      %v1817 = vunpack.c.l.b16 %v1795
      %v1818 = vunpack.c.l.b16 %v1796
      %v1819 = vunpack.c.l.b16 %v1797
      %v1820 = vunpack.c.l.b16 %v1798
      %v1821 = vunpack.c.l.b16 %v1799
      %v1822 = vunpack.c.l.b16 %v1800
      %v1823 = vunpack.c.l.b16 %v1801
      %v1824 = vunpack.c.l.b16 %v1802
      %v1825 = vunpack.c.l.b16 %v1803
      %v1826 = vpack.c.b16 %v1816, %v1815
      %v1827 = vpack.c.b16 %v1818, %v1817
      %v1828 = vpack.c.b16 %v1820, %v1819
      %v1829 = vpack.c.b16 %v1822, %v1821
      %v1830 = vpack.c.b16 %v1824, %v1823
      %v1831 = vpack.c.b16 %v1825, %v1825
      %v1832 = vrot.slane %v1826, 1
      %v1833 = vrot.slane %v1827, 1
      %v1834 = vsel %vm543, %v1832, %v1833
      %v1835 = vrot.slane %v1828, 1
      %v1836 = vsel %vm543, %v1833, %v1835
      %v1837 = vrot.slane %v1829, 1
      %v1838 = vsel %vm543, %v1835, %v1837
      %v1839 = vrot.slane %v1830, 1
      %v1840 = vsel %vm543, %v1837, %v1839
      %v1841 = vrot.slane %v1831, 1
      %v1842 = vsel %vm543, %v1839, %v1841
      %1848 = vst [vmem:[#allocation2 + $0xa0] sm:$0xff] %v1834
      %1849 = vst [vmem:[#allocation2 + $0x178] sm:$0xff] %v1836
      %1850 = vst [vmem:[#allocation2 + $0x250] sm:$0xff] %v1838
      %1851 = vst [vmem:[#allocation2 + $0x328] sm:$0xff] %v1840
      %1852 = vst [vmem:[#allocation2 + $0x400] sm:$0xff] %v1842
      %v1853 = vld [vmem:[%s345 + $0x4] sm:$0xe]
      %v1854 = vld [vmem:[%s345 + $0x8] sm:$0xf]
      %v1855 = vld [vmem:[%s345 + $0xc] sm:$0xf]
      %v1856 = vld [vmem:[%s345 + $0x10] sm:$0xf]
      %v1857 = vld [vmem:[%s345 + $0x14] sm:$0xf]
      %v1858 = vld [vmem:[%s345 + $0x18] sm:$0xf]
      %v1859 = vld [vmem:[%s345 + $0x1c] sm:$0xf]
      %v1860 = vld [vmem:[%s345 + $0x20] sm:$0xf]
      %v1861 = vld [vmem:[%s345 + $0x24] sm:$0xf]
      %v1862 = vld [vmem:[%s345 + $0x28] sm:$0xf]
      %v1863 = vld [vmem:[%s345 + $0x2c] sm:$0x1]
      %v1875 = vunpack.c.l.b16 %v1853
      %v1876 = vunpack.c.l.b16 %v1854
      %v1877 = vunpack.c.l.b16 %v1855
      %v1878 = vunpack.c.l.b16 %v1856
      %v1879 = vunpack.c.l.b16 %v1857
      %v1880 = vunpack.c.l.b16 %v1858
      %v1881 = vunpack.c.l.b16 %v1859
      %v1882 = vunpack.c.l.b16 %v1860
      %v1883 = vunpack.c.l.b16 %v1861
      %v1884 = vunpack.c.l.b16 %v1862
      %v1885 = vunpack.c.l.b16 %v1863
      %v1886 = vpack.c.b16 %v1876, %v1875
      %v1887 = vpack.c.b16 %v1878, %v1877
      %v1888 = vpack.c.b16 %v1880, %v1879
      %v1889 = vpack.c.b16 %v1882, %v1881
      %v1890 = vpack.c.b16 %v1884, %v1883
      %v1891 = vpack.c.b16 %v1885, %v1885
      %v1892 = vrot.slane %v1886, 1
      %v1893 = vrot.slane %v1887, 1
      %v1894 = vsel %vm543, %v1892, %v1893
      %v1895 = vrot.slane %v1888, 1
      %v1896 = vsel %vm543, %v1893, %v1895
      %v1897 = vrot.slane %v1889, 1
      %v1898 = vsel %vm543, %v1895, %v1897
      %v1899 = vrot.slane %v1890, 1
      %v1900 = vsel %vm543, %v1897, %v1899
      %v1901 = vrot.slane %v1891, 1
      %v1902 = vsel %vm543, %v1899, %v1901
      %1908 = vst [vmem:[#allocation2 + $0xa8] sm:$0xff] %v1894
      %1909 = vst [vmem:[#allocation2 + $0x180] sm:$0xff] %v1896
      %1910 = vst [vmem:[#allocation2 + $0x258] sm:$0xff] %v1898
      %1911 = vst [vmem:[#allocation2 + $0x330] sm:$0xff] %v1900
      %1912 = vst [vmem:[#allocation2 + $0x408] sm:$0xff] %v1902
      %v1913 = vld [vmem:[%s345 + $0x4] sm:$0xe]
      %v1914 = vld [vmem:[%s345 + $0x8] sm:$0xf]
      %v1915 = vld [vmem:[%s345 + $0xc] sm:$0xf]
      %v1916 = vld [vmem:[%s345 + $0x10] sm:$0xf]
      %v1917 = vld [vmem:[%s345 + $0x14] sm:$0xf]
      %v1918 = vld [vmem:[%s345 + $0x18] sm:$0xf]
      %v1919 = vld [vmem:[%s345 + $0x1c] sm:$0xf]
      %v1920 = vld [vmem:[%s345 + $0x20] sm:$0xf]
      %v1921 = vld [vmem:[%s345 + $0x24] sm:$0xf]
      %v1922 = vld [vmem:[%s345 + $0x28] sm:$0xf]
      %v1923 = vld [vmem:[%s345 + $0x2c] sm:$0x3]
      %v1935 = vunpack.c.l.b16 %v1913
      %v1936 = vunpack.c.l.b16 %v1914
      %v1937 = vunpack.c.l.b16 %v1915
      %v1938 = vunpack.c.l.b16 %v1916
      %v1939 = vunpack.c.l.b16 %v1917
      %v1940 = vunpack.c.l.b16 %v1918
      %v1941 = vunpack.c.l.b16 %v1919
      %v1942 = vunpack.c.l.b16 %v1920
      %v1943 = vunpack.c.l.b16 %v1921
      %v1944 = vunpack.c.l.b16 %v1922
      %v1945 = vunpack.c.l.b16 %v1923
      %v1946 = vpack.c.b16 %v1936, %v1935
      %v1947 = vpack.c.b16 %v1938, %v1937
      %v1948 = vpack.c.b16 %v1940, %v1939
      %v1949 = vpack.c.b16 %v1942, %v1941
      %v1950 = vpack.c.b16 %v1944, %v1943
      %v1951 = vpack.c.b16 %v1945, %v1945
      %v1953 = vshrl.u32 %v1946, 16
      %v1955 = vrot.slane %v1953, 1
      %v1956 = vshll.u32 %v1946, 16
      %v1958 = vrot.slane %v1956, 2
      %v1959 = vor.u32 %v1955, %v1958
      %v1961 = vshrl.u32 %v1947, 16
      %v1963 = vrot.slane %v1961, 1
      %v1964 = vshll.u32 %v1947, 16
      %v1966 = vrot.slane %v1964, 2
      %v1967 = vor.u32 %v1963, %v1966
      %v1968 = vsel %vm664, %v1959, %v1967
      %v1970 = vshrl.u32 %v1948, 16
      %v1972 = vrot.slane %v1970, 1
      %v1973 = vshll.u32 %v1948, 16
      %v1975 = vrot.slane %v1973, 2
      %v1976 = vor.u32 %v1972, %v1975
      %v1977 = vsel %vm664, %v1967, %v1976
      %v1979 = vshrl.u32 %v1949, 16
      %v1981 = vrot.slane %v1979, 1
      %v1982 = vshll.u32 %v1949, 16
      %v1984 = vrot.slane %v1982, 2
      %v1985 = vor.u32 %v1981, %v1984
      %v1986 = vsel %vm664, %v1976, %v1985
      %v1988 = vshrl.u32 %v1950, 16
      %v1990 = vrot.slane %v1988, 1
      %v1991 = vshll.u32 %v1950, 16
      %v1993 = vrot.slane %v1991, 2
      %v1994 = vor.u32 %v1990, %v1993
      %v1995 = vsel %vm664, %v1985, %v1994
      %v1997 = vshrl.u32 %v1951, 16
      %v1999 = vrot.slane %v1997, 1
      %v2000 = vshll.u32 %v1951, 16
      %v2002 = vrot.slane %v2000, 2
      %v2003 = vor.u32 %v1999, %v2002
      %v2004 = vsel %vm664, %v1994, %v2003
      %2010 = vst [vmem:[#allocation2 + $0xb0] sm:$0xff] %v1968
      %2011 = vst [vmem:[#allocation2 + $0x188] sm:$0xff] %v1977
      %2012 = vst [vmem:[#allocation2 + $0x260] sm:$0xff] %v1986
      %2013 = vst [vmem:[#allocation2 + $0x338] sm:$0xff] %v1995
      %2014 = vst [vmem:[#allocation2 + $0x410] sm:$0xff] %v2004
      %v2015 = vld [vmem:[%s345 + $0x4] sm:$0xc]
      %v2016 = vld [vmem:[%s345 + $0x8] sm:$0xf]
      %v2017 = vld [vmem:[%s345 + $0xc] sm:$0xf]
      %v2018 = vld [vmem:[%s345 + $0x10] sm:$0xf]
      %v2019 = vld [vmem:[%s345 + $0x14] sm:$0xf]
      %v2020 = vld [vmem:[%s345 + $0x18] sm:$0xf]
      %v2021 = vld [vmem:[%s345 + $0x1c] sm:$0xf]
      %v2022 = vld [vmem:[%s345 + $0x20] sm:$0xf]
      %v2023 = vld [vmem:[%s345 + $0x24] sm:$0xf]
      %v2024 = vld [vmem:[%s345 + $0x28] sm:$0xf]
      %v2025 = vld [vmem:[%s345 + $0x2c] sm:$0x3]
      %v2037 = vunpack.c.l.b16 %v2015
      %v2038 = vunpack.c.l.b16 %v2016
      %v2039 = vunpack.c.l.b16 %v2017
      %v2040 = vunpack.c.l.b16 %v2018
      %v2041 = vunpack.c.l.b16 %v2019
      %v2042 = vunpack.c.l.b16 %v2020
      %v2043 = vunpack.c.l.b16 %v2021
      %v2044 = vunpack.c.l.b16 %v2022
      %v2045 = vunpack.c.l.b16 %v2023
      %v2046 = vunpack.c.l.b16 %v2024
      %v2047 = vunpack.c.l.b16 %v2025
      %v2048 = vpack.c.b16 %v2038, %v2037
      %v2049 = vpack.c.b16 %v2040, %v2039
      %v2050 = vpack.c.b16 %v2042, %v2041
      %v2051 = vpack.c.b16 %v2044, %v2043
      %v2052 = vpack.c.b16 %v2046, %v2045
      %v2053 = vpack.c.b16 %v2047, %v2047
      %v2054 = vrot.slane %v2048, 2
      %v2055 = vrot.slane %v2049, 2
      %v2056 = vsel %vm767, %v2054, %v2055
      %v2057 = vrot.slane %v2050, 2
      %v2058 = vsel %vm767, %v2055, %v2057
      %v2059 = vrot.slane %v2051, 2
      %v2060 = vsel %vm767, %v2057, %v2059
      %v2061 = vrot.slane %v2052, 2
      %v2062 = vsel %vm767, %v2059, %v2061
      %v2063 = vrot.slane %v2053, 2
      %v2064 = vsel %vm767, %v2061, %v2063
      %2070 = vst [vmem:[#allocation2 + $0xb8] sm:$0xff] %v2056
      %2071 = vst [vmem:[#allocation2 + $0x190] sm:$0xff] %v2058
      %2072 = vst [vmem:[#allocation2 + $0x268] sm:$0xff] %v2060
      %2073 = vst [vmem:[#allocation2 + $0x340] sm:$0xff] %v2062
      %2074 = vst [vmem:[#allocation2 + $0x418] sm:$0xff] %v2064
      %v2075 = vld [vmem:[%s345 + $0x8] sm:$0xc]
      %v2076 = vld [vmem:[%s345 + $0xc] sm:$0xf]
      %v2077 = vld [vmem:[%s345 + $0x10] sm:$0xf]
      %v2078 = vld [vmem:[%s345 + $0x14] sm:$0xf]
      %v2079 = vld [vmem:[%s345 + $0x18] sm:$0xf]
      %v2080 = vld [vmem:[%s345 + $0x1c] sm:$0xf]
      %v2081 = vld [vmem:[%s345 + $0x20] sm:$0xf]
      %v2082 = vld [vmem:[%s345 + $0x24] sm:$0xf]
      %v2083 = vld [vmem:[%s345 + $0x28] sm:$0xf]
      %v2084 = vld [vmem:[%s345 + $0x2c] sm:$0xf]
      %v2085 = vld [vmem:[%s345 + $0x30] sm:$0x3]
      %v2097 = vunpack.c.l.b16 %v2075
      %v2098 = vunpack.c.l.b16 %v2076
      %v2099 = vunpack.c.l.b16 %v2077
      %v2100 = vunpack.c.l.b16 %v2078
      %v2101 = vunpack.c.l.b16 %v2079
      %v2102 = vunpack.c.l.b16 %v2080
      %v2103 = vunpack.c.l.b16 %v2081
      %v2104 = vunpack.c.l.b16 %v2082
      %v2105 = vunpack.c.l.b16 %v2083
      %v2106 = vunpack.c.l.b16 %v2084
      %v2107 = vunpack.c.l.b16 %v2085
      %v2108 = vpack.c.b16 %v2098, %v2097
      %v2109 = vpack.c.b16 %v2100, %v2099
      %v2110 = vpack.c.b16 %v2102, %v2101
      %v2111 = vpack.c.b16 %v2104, %v2103
      %v2112 = vpack.c.b16 %v2106, %v2105
      %v2113 = vpack.c.b16 %v2107, %v2107
      %v2114 = vrot.slane %v2108, 2
      %v2115 = vrot.slane %v2109, 2
      %v2116 = vsel %vm767, %v2114, %v2115
      %v2117 = vrot.slane %v2110, 2
      %v2118 = vsel %vm767, %v2115, %v2117
      %v2119 = vrot.slane %v2111, 2
      %v2120 = vsel %vm767, %v2117, %v2119
      %v2121 = vrot.slane %v2112, 2
      %v2122 = vsel %vm767, %v2119, %v2121
      %v2123 = vrot.slane %v2113, 2
      %v2124 = vsel %vm767, %v2121, %v2123
      %2130 = vst [vmem:[#allocation2 + $0xc0] sm:$0xff] %v2116
      %2131 = vst [vmem:[#allocation2 + $0x198] sm:$0xff] %v2118
      %2132 = vst [vmem:[#allocation2 + $0x270] sm:$0xff] %v2120
      %2133 = vst [vmem:[#allocation2 + $0x348] sm:$0xff] %v2122
      %2134 = vst [vmem:[#allocation2 + $0x420] sm:$0xff] %v2124
      %v2135 = vld [vmem:[%s345 + $0x8] sm:$0xc]
      %v2136 = vld [vmem:[%s345 + $0xc] sm:$0xf]
      %v2137 = vld [vmem:[%s345 + $0x10] sm:$0xf]
      %v2138 = vld [vmem:[%s345 + $0x14] sm:$0xf]
      %v2139 = vld [vmem:[%s345 + $0x18] sm:$0xf]
      %v2140 = vld [vmem:[%s345 + $0x1c] sm:$0xf]
      %v2141 = vld [vmem:[%s345 + $0x20] sm:$0xf]
      %v2142 = vld [vmem:[%s345 + $0x24] sm:$0xf]
      %v2143 = vld [vmem:[%s345 + $0x28] sm:$0xf]
      %v2144 = vld [vmem:[%s345 + $0x2c] sm:$0xf]
      %v2145 = vld [vmem:[%s345 + $0x30] sm:$0x7]
      %v2157 = vunpack.c.l.b16 %v2135
      %v2158 = vunpack.c.l.b16 %v2136
      %v2159 = vunpack.c.l.b16 %v2137
      %v2160 = vunpack.c.l.b16 %v2138
      %v2161 = vunpack.c.l.b16 %v2139
      %v2162 = vunpack.c.l.b16 %v2140
      %v2163 = vunpack.c.l.b16 %v2141
      %v2164 = vunpack.c.l.b16 %v2142
      %v2165 = vunpack.c.l.b16 %v2143
      %v2166 = vunpack.c.l.b16 %v2144
      %v2167 = vunpack.c.l.b16 %v2145
      %v2168 = vpack.c.b16 %v2158, %v2157
      %v2169 = vpack.c.b16 %v2160, %v2159
      %v2170 = vpack.c.b16 %v2162, %v2161
      %v2171 = vpack.c.b16 %v2164, %v2163
      %v2172 = vpack.c.b16 %v2166, %v2165
      %v2173 = vpack.c.b16 %v2167, %v2167
      %v2175 = vshrl.u32 %v2168, 16
      %v2177 = vrot.slane %v2175, 2
      %v2178 = vshll.u32 %v2168, 16
      %v2180 = vrot.slane %v2178, 3
      %v2181 = vor.u32 %v2177, %v2180
      %v2183 = vshrl.u32 %v2169, 16
      %v2185 = vrot.slane %v2183, 2
      %v2186 = vshll.u32 %v2169, 16
      %v2188 = vrot.slane %v2186, 3
      %v2189 = vor.u32 %v2185, %v2188
      %v2190 = vsel %vm888, %v2181, %v2189
      %v2192 = vshrl.u32 %v2170, 16
      %v2194 = vrot.slane %v2192, 2
      %v2195 = vshll.u32 %v2170, 16
      %v2197 = vrot.slane %v2195, 3
      %v2198 = vor.u32 %v2194, %v2197
      %v2199 = vsel %vm888, %v2189, %v2198
      %v2201 = vshrl.u32 %v2171, 16
      %v2203 = vrot.slane %v2201, 2
      %v2204 = vshll.u32 %v2171, 16
      %v2206 = vrot.slane %v2204, 3
      %v2207 = vor.u32 %v2203, %v2206
      %v2208 = vsel %vm888, %v2198, %v2207
      %v2210 = vshrl.u32 %v2172, 16
      %v2212 = vrot.slane %v2210, 2
      %v2213 = vshll.u32 %v2172, 16
      %v2215 = vrot.slane %v2213, 3
      %v2216 = vor.u32 %v2212, %v2215
      %v2217 = vsel %vm888, %v2207, %v2216
      %v2219 = vshrl.u32 %v2173, 16
      %v2221 = vrot.slane %v2219, 2
      %v2222 = vshll.u32 %v2173, 16
      %v2224 = vrot.slane %v2222, 3
      %v2225 = vor.u32 %v2221, %v2224
      %v2226 = vsel %vm888, %v2216, %v2225
      %2232 = vst [vmem:[#allocation2 + $0xc8] sm:$0xff] %v2190
      %2233 = vst [vmem:[#allocation2 + $0x1a0] sm:$0xff] %v2199
      %2234 = vst [vmem:[#allocation2 + $0x278] sm:$0xff] %v2208
      %2235 = vst [vmem:[#allocation2 + $0x350] sm:$0xff] %v2217
      %2236 = vst [vmem:[#allocation2 + $0x428] sm:$0xff] %v2226
      %v2237 = vld [vmem:[%s345 + $0x8] sm:$0x8]
      %v2238 = vld [vmem:[%s345 + $0xc] sm:$0xf]
      %v2239 = vld [vmem:[%s345 + $0x10] sm:$0xf]
      %v2240 = vld [vmem:[%s345 + $0x14] sm:$0xf]
      %v2241 = vld [vmem:[%s345 + $0x18] sm:$0xf]
      %v2242 = vld [vmem:[%s345 + $0x1c] sm:$0xf]
      %v2243 = vld [vmem:[%s345 + $0x20] sm:$0xf]
      %v2244 = vld [vmem:[%s345 + $0x24] sm:$0xf]
      %v2245 = vld [vmem:[%s345 + $0x28] sm:$0xf]
      %v2246 = vld [vmem:[%s345 + $0x2c] sm:$0xf]
      %v2247 = vld [vmem:[%s345 + $0x30] sm:$0x7]
      %v2259 = vunpack.c.l.b16 %v2237
      %v2260 = vunpack.c.l.b16 %v2238
      %v2261 = vunpack.c.l.b16 %v2239
      %v2262 = vunpack.c.l.b16 %v2240
      %v2263 = vunpack.c.l.b16 %v2241
      %v2264 = vunpack.c.l.b16 %v2242
      %v2265 = vunpack.c.l.b16 %v2243
      %v2266 = vunpack.c.l.b16 %v2244
      %v2267 = vunpack.c.l.b16 %v2245
      %v2268 = vunpack.c.l.b16 %v2246
      %v2269 = vunpack.c.l.b16 %v2247
      %v2270 = vpack.c.b16 %v2260, %v2259
      %v2271 = vpack.c.b16 %v2262, %v2261
      %v2272 = vpack.c.b16 %v2264, %v2263
      %v2273 = vpack.c.b16 %v2266, %v2265
      %v2274 = vpack.c.b16 %v2268, %v2267
      %v2275 = vpack.c.b16 %v2269, %v2269
      %v2276 = vrot.slane %v2270, 3
      %v2277 = vrot.slane %v2271, 3
      %v2278 = vsel %vm991, %v2276, %v2277
      %v2279 = vrot.slane %v2272, 3
      %v2280 = vsel %vm991, %v2277, %v2279
      %v2281 = vrot.slane %v2273, 3
      %v2282 = vsel %vm991, %v2279, %v2281
      %v2283 = vrot.slane %v2274, 3
      %v2284 = vsel %vm991, %v2281, %v2283
      %v2285 = vrot.slane %v2275, 3
      %v2286 = vsel %vm991, %v2283, %v2285
      %2292 = vst [vmem:[#allocation2 + $0xd0] sm:$0xff] %v2278
      %2293 = vst [vmem:[#allocation2 + $0x1a8] sm:$0xff] %v2280
      %2294 = vst [vmem:[#allocation2 + $0x280] sm:$0xff] %v2282
      %2295 = vst [vmem:[#allocation2 + $0x358] sm:$0xff] %v2284
      %2296 = vst [vmem:[#allocation2 + $0x430] sm:$0xff] %v2286
      %v2297 = vld [vmem:[#allocation2] sm:$0xff]
      %v2298 = vld [vmem:[#allocation2 + $0x8] sm:$0xff]
      %v2299 = vld [vmem:[#allocation2 + $0x10] sm:$0xff]
      %v2300 = vld [vmem:[#allocation2 + $0x18] sm:$0xff]
      %v2301 = vld [vmem:[#allocation2 + $0x20] sm:$0xff]
      %v2302 = vld [vmem:[#allocation2 + $0x28] sm:$0xff]
      %v2303 = vld [vmem:[#allocation2 + $0x30] sm:$0xff]
      %v2304 = vld [vmem:[#allocation2 + $0x38] sm:$0xff]
      %v2305 = vld [vmem:[#allocation2 + $0x40] sm:$0xff]
      %v2306 = vld [vmem:[#allocation2 + $0x48] sm:$0xff]
      %v2307 = vld [vmem:[#allocation2 + $0x50] sm:$0xff]
      %v2308 = vld [vmem:[#allocation2 + $0x58] sm:$0xff]
      %v2309 = vld [vmem:[#allocation2 + $0x60] sm:$0xff]
      %v2310 = vld [vmem:[#allocation2 + $0x68] sm:$0xff]
      %v2311 = vld [vmem:[#allocation2 + $0x70] sm:$0xff]
      %v2312 = vld [vmem:[#allocation2 + $0x78] sm:$0xff]
      %v2313 = vld [vmem:[#allocation2 + $0x80] sm:$0xff]
      %v2314 = vld [vmem:[#allocation2 + $0x88] sm:$0xff]
      %v2315 = vld [vmem:[#allocation2 + $0x90] sm:$0xff]
      %v2316 = vld [vmem:[#allocation2 + $0x98] sm:$0xff]
      %v2317 = vld [vmem:[#allocation2 + $0xa0] sm:$0xff]
      %v2318 = vld [vmem:[#allocation2 + $0xa8] sm:$0xff]
      %v2319 = vld [vmem:[#allocation2 + $0xb0] sm:$0xff]
      %v2320 = vld [vmem:[#allocation2 + $0xb8] sm:$0xff]
      %v2321 = vld [vmem:[#allocation2 + $0xc0] sm:$0xff]
      %v2322 = vld [vmem:[#allocation2 + $0xc8] sm:$0xff]
      %v2323 = vld [vmem:[#allocation2 + $0xd0] sm:$0xff]
      %v2324 = vld [vmem:[#allocation2 + $0xd8] sm:$0xff]
      %v2325 = vld [vmem:[#allocation2 + $0xe0] sm:$0xff]
      %v2326 = vld [vmem:[#allocation2 + $0xe8] sm:$0xff]
      %v2327 = vld [vmem:[#allocation2 + $0xf0] sm:$0xff]
      %v2328 = vld [vmem:[#allocation2 + $0xf8] sm:$0xff]
      %v2329 = vld [vmem:[#allocation2 + $0x100] sm:$0xff]
      %v2330 = vld [vmem:[#allocation2 + $0x108] sm:$0xff]
      %v2331 = vld [vmem:[#allocation2 + $0x110] sm:$0xff]
      %v2332 = vld [vmem:[#allocation2 + $0x118] sm:$0xff]
      %v2333 = vld [vmem:[#allocation2 + $0x120] sm:$0xff]
      %v2334 = vld [vmem:[#allocation2 + $0x128] sm:$0xff]
      %v2335 = vld [vmem:[#allocation2 + $0x130] sm:$0xff]
      %v2336 = vld [vmem:[#allocation2 + $0x138] sm:$0xff]
      %v2337 = vld [vmem:[#allocation2 + $0x140] sm:$0xff]
      %v2338 = vld [vmem:[#allocation2 + $0x148] sm:$0xff]
      %v2339 = vld [vmem:[#allocation2 + $0x150] sm:$0xff]
      %v2340 = vld [vmem:[#allocation2 + $0x158] sm:$0xff]
      %v2341 = vld [vmem:[#allocation2 + $0x160] sm:$0xff]
      %v2342 = vld [vmem:[#allocation2 + $0x168] sm:$0xff]
      %v2343 = vld [vmem:[#allocation2 + $0x170] sm:$0xff]
      %v2344 = vld [vmem:[#allocation2 + $0x178] sm:$0xff]
      %v2345 = vld [vmem:[#allocation2 + $0x180] sm:$0xff]
      %v2346 = vld [vmem:[#allocation2 + $0x188] sm:$0xff]
      %v2347 = vld [vmem:[#allocation2 + $0x190] sm:$0xff]
      %v2348 = vld [vmem:[#allocation2 + $0x198] sm:$0xff]
      %v2349 = vld [vmem:[#allocation2 + $0x1a0] sm:$0xff]
      %v2350 = vld [vmem:[#allocation2 + $0x1a8] sm:$0xff]
      %v2351 = vld [vmem:[#allocation2 + $0x1b0] sm:$0xff]
      %v2352 = vld [vmem:[#allocation2 + $0x1b8] sm:$0xff]
      %v2353 = vld [vmem:[#allocation2 + $0x1c0] sm:$0xff]
      %v2354 = vld [vmem:[#allocation2 + $0x1c8] sm:$0xff]
      %v2355 = vld [vmem:[#allocation2 + $0x1d0] sm:$0xff]
      %v2356 = vld [vmem:[#allocation2 + $0x1d8] sm:$0xff]
      %v2357 = vld [vmem:[#allocation2 + $0x1e0] sm:$0xff]
      %v2358 = vld [vmem:[#allocation2 + $0x1e8] sm:$0xff]
      %v2359 = vld [vmem:[#allocation2 + $0x1f0] sm:$0xff]
      %v2360 = vld [vmem:[#allocation2 + $0x1f8] sm:$0xff]
      %v2361 = vld [vmem:[#allocation2 + $0x200] sm:$0xff]
      %v2362 = vld [vmem:[#allocation2 + $0x208] sm:$0xff]
      %v2363 = vld [vmem:[#allocation2 + $0x210] sm:$0xff]
      %v2364 = vld [vmem:[#allocation2 + $0x218] sm:$0xff]
      %v2365 = vld [vmem:[#allocation2 + $0x220] sm:$0xff]
      %v2366 = vld [vmem:[#allocation2 + $0x228] sm:$0xff]
      %v2367 = vld [vmem:[#allocation2 + $0x230] sm:$0xff]
      %v2368 = vld [vmem:[#allocation2 + $0x238] sm:$0xff]
      %v2369 = vld [vmem:[#allocation2 + $0x240] sm:$0xff]
      %v2370 = vld [vmem:[#allocation2 + $0x248] sm:$0xff]
      %v2371 = vld [vmem:[#allocation2 + $0x250] sm:$0xff]
      %v2372 = vld [vmem:[#allocation2 + $0x258] sm:$0xff]
      %v2373 = vld [vmem:[#allocation2 + $0x260] sm:$0xff]
      %v2374 = vld [vmem:[#allocation2 + $0x268] sm:$0xff]
      %v2375 = vld [vmem:[#allocation2 + $0x270] sm:$0xff]
      %v2376 = vld [vmem:[#allocation2 + $0x278] sm:$0xff]
      %v2377 = vld [vmem:[#allocation2 + $0x280] sm:$0xff]
      %v2378 = vld [vmem:[#allocation2 + $0x288] sm:$0xff]
      %v2379 = vld [vmem:[#allocation2 + $0x290] sm:$0xff]
      %v2380 = vld [vmem:[#allocation2 + $0x298] sm:$0xff]
      %v2381 = vld [vmem:[#allocation2 + $0x2a0] sm:$0xff]
      %v2382 = vld [vmem:[#allocation2 + $0x2a8] sm:$0xff]
      %v2383 = vld [vmem:[#allocation2 + $0x2b0] sm:$0xff]
      %v2384 = vld [vmem:[#allocation2 + $0x2b8] sm:$0xff]
      %v2385 = vld [vmem:[#allocation2 + $0x2c0] sm:$0xff]
      %v2386 = vld [vmem:[#allocation2 + $0x2c8] sm:$0xff]
      %v2387 = vld [vmem:[#allocation2 + $0x2d0] sm:$0xff]
      %v2388 = vld [vmem:[#allocation2 + $0x2d8] sm:$0xff]
      %v2389 = vld [vmem:[#allocation2 + $0x2e0] sm:$0xff]
      %v2390 = vld [vmem:[#allocation2 + $0x2e8] sm:$0xff]
      %v2391 = vld [vmem:[#allocation2 + $0x2f0] sm:$0xff]
      %v2392 = vld [vmem:[#allocation2 + $0x2f8] sm:$0xff]
      %v2393 = vld [vmem:[#allocation2 + $0x300] sm:$0xff]
      %v2394 = vld [vmem:[#allocation2 + $0x308] sm:$0xff]
      %v2395 = vld [vmem:[#allocation2 + $0x310] sm:$0xff]
      %v2396 = vld [vmem:[#allocation2 + $0x318] sm:$0xff]
      %v2397 = vld [vmem:[#allocation2 + $0x320] sm:$0xff]
      %v2398 = vld [vmem:[#allocation2 + $0x328] sm:$0xff]
      %v2399 = vld [vmem:[#allocation2 + $0x330] sm:$0xff]
      %v2400 = vld [vmem:[#allocation2 + $0x338] sm:$0xff]
      %v2401 = vld [vmem:[#allocation2 + $0x340] sm:$0xff]
      %v2402 = vld [vmem:[#allocation2 + $0x348] sm:$0xff]
      %v2403 = vld [vmem:[#allocation2 + $0x350] sm:$0xff]
      %v2404 = vld [vmem:[#allocation2 + $0x358] sm:$0xff]
      %v2405 = vld [vmem:[#allocation2 + $0x360] sm:$0xff]
      %v2406 = vld [vmem:[#allocation2 + $0x368] sm:$0xff]
      %v2407 = vld [vmem:[#allocation2 + $0x370] sm:$0xff]
      %v2408 = vld [vmem:[#allocation2 + $0x378] sm:$0xff]
      %v2409 = vld [vmem:[#allocation2 + $0x380] sm:$0xff]
      %v2410 = vld [vmem:[#allocation2 + $0x388] sm:$0xff]
      %v2411 = vld [vmem:[#allocation2 + $0x390] sm:$0xff]
      %v2412 = vld [vmem:[#allocation2 + $0x398] sm:$0xff]
      %v2413 = vld [vmem:[#allocation2 + $0x3a0] sm:$0xff]
      %v2414 = vld [vmem:[#allocation2 + $0x3a8] sm:$0xff]
      %v2415 = vld [vmem:[#allocation2 + $0x3b0] sm:$0xff]
      %v2416 = vld [vmem:[#allocation2 + $0x3b8] sm:$0xff]
      %v2417 = vld [vmem:[#allocation2 + $0x3c0] sm:$0xff]
      %v2418 = vld [vmem:[#allocation2 + $0x3c8] sm:$0xff]
      %v2419 = vld [vmem:[#allocation2 + $0x3d0] sm:$0xff]
      %v2420 = vld [vmem:[#allocation2 + $0x3d8] sm:$0xff]
      %v2421 = vld [vmem:[#allocation2 + $0x3e0] sm:$0xff]
      %v2422 = vld [vmem:[#allocation2 + $0x3e8] sm:$0xff]
      %v2423 = vld [vmem:[#allocation2 + $0x3f0] sm:$0xff]
      %v2424 = vld [vmem:[#allocation2 + $0x3f8] sm:$0xff]
      %v2425 = vld [vmem:[#allocation2 + $0x400] sm:$0xff]
      %v2426 = vld [vmem:[#allocation2 + $0x408] sm:$0xff]
      %v2427 = vld [vmem:[#allocation2 + $0x410] sm:$0xff]
      %v2428 = vld [vmem:[#allocation2 + $0x418] sm:$0xff]
      %v2429 = vld [vmem:[#allocation2 + $0x420] sm:$0xff]
      %v2430 = vld [vmem:[#allocation2 + $0x428] sm:$0xff]
      %v2431 = vld [vmem:[#allocation2 + $0x430] sm:$0xff]
      %v2432 = vld [vmem:[%s3] sm:$0xf]
      %v2433 = vld [vmem:[%s3 + $0x4] sm:$0xf]
      %v2434 = vld [vmem:[%s3 + $0x8] sm:$0xf]
      %v2435 = vld [vmem:[%s3 + $0xc] sm:$0xf]
      %v2436 = vld [vmem:[%s3 + $0x10] sm:$0xf]
      %v2437 = vld [vmem:[%s3 + $0x14] sm:$0xf]
      %v2438 = vld [vmem:[%s3 + $0x18] sm:$0xf]
      %v2439 = vld [vmem:[%s3 + $0x1c] sm:$0xf]
      %v2440 = vld [vmem:[%s3 + $0x20] sm:$0xf]
      %v2441 = vld [vmem:[%s3 + $0x24] sm:$0xf]
      %v2442 = vld [vmem:[%s3 + $0x28] sm:$0xf]
      %v2443 = vld [vmem:[%s3 + $0x2c] sm:$0xf]
      %v2444 = vld [vmem:[%s3 + $0x30] sm:$0xf]
      %v2445 = vld [vmem:[%s3 + $0x34] sm:$0xf]
      %v2446 = vld [vmem:[%s3 + $0x38] sm:$0xf]
      %v2447 = vld [vmem:[%s3 + $0x3c] sm:$0xf]
      %v2448 = vld [vmem:[%s3 + $0x40] sm:$0xf]
      %v2449 = vld [vmem:[%s3 + $0x44] sm:$0xf]
      %v2450 = vld [vmem:[%s3 + $0x48] sm:$0xf]
      %v2451 = vld [vmem:[%s3 + $0x4c] sm:$0xf]
      %v2452 = vld [vmem:[%s3 + $0x50] sm:$0xf]
      %v2453 = vld [vmem:[%s3 + $0x54] sm:$0xf]
      %v2454 = vld [vmem:[%s3 + $0x58] sm:$0xf]
      %v2455 = vld [vmem:[%s3 + $0x5c] sm:$0xf]
      %v2456 = vld [vmem:[%s3 + $0x60] sm:$0xf]
      %v2457 = vld [vmem:[%s3 + $0x64] sm:$0xf]
      %v2458 = vld [vmem:[%s3 + $0x68] sm:$0xf]
      %v2459 = vld [vmem:[%s3 + $0x6c] sm:$0xf]
      %v2460 = vld [vmem:[%s3 + $0x70] sm:$0xf]
      %v2461 = vld [vmem:[%s3 + $0x74] sm:$0xf]
      %v2462 = vld [vmem:[%s3 + $0x78] sm:$0xf]
      %v2463 = vld [vmem:[%s3 + $0x7c] sm:$0xf]
      %v2464 = vld [vmem:[%s3 + $0x80] sm:$0xf]
      %v2465 = vld [vmem:[%s3 + $0x84] sm:$0xf]
      %v2466 = vld [vmem:[%s3 + $0x88] sm:$0xf]
      %v2467 = vld [vmem:[%s3 + $0x8c] sm:$0xf]
      %v2468 = vld [vmem:[%s3 + $0x90] sm:$0xf]
      %v2469 = vld [vmem:[%s3 + $0x94] sm:$0xf]
      %v2470 = vld [vmem:[%s3 + $0x98] sm:$0xf]
      %v2471 = vld [vmem:[%s3 + $0x9c] sm:$0xf]
      %v2472 = vld [vmem:[%s3 + $0xa0] sm:$0xf]
      %v2473 = vld [vmem:[%s3 + $0xa4] sm:$0xf]
      %v2474 = vld [vmem:[%s3 + $0xa8] sm:$0xf]
      %v2475 = vld [vmem:[%s3 + $0xac] sm:$0xf]
      %v2476 = vld [vmem:[%s3 + $0xb0] sm:$0xf]
      %v2477 = vld [vmem:[%s3 + $0xb4] sm:$0xf]
      %v2478 = vld [vmem:[%s3 + $0xb8] sm:$0xf]
      %v2479 = vld [vmem:[%s3 + $0xbc] sm:$0xf]
      %v2480 = vld [vmem:[%s3 + $0xc0] sm:$0xf]
      %v2481 = vld [vmem:[%s3 + $0xc4] sm:$0xf]
      %v2482 = vld [vmem:[%s3 + $0xc8] sm:$0xf]
      %v2483 = vld [vmem:[%s3 + $0xcc] sm:$0xf]
      %v2484 = vld [vmem:[%s3 + $0xd0] sm:$0xf]
      %v2485 = vld [vmem:[%s3 + $0xd4] sm:$0xf]
      %v2486 = vld [vmem:[%s3 + $0xd8] sm:$0xf]
      %v2487 = vld [vmem:[%s3 + $0xdc] sm:$0xf]
      %v2488 = vld [vmem:[%s3 + $0xe0] sm:$0xf]
      %v2489 = vld [vmem:[%s3 + $0xe4] sm:$0xf]
      %v2490 = vld [vmem:[%s3 + $0xe8] sm:$0xf]
      %v2491 = vld [vmem:[%s3 + $0xec] sm:$0xf]
      %v2492 = vld [vmem:[%s3 + $0xf0] sm:$0xf]
      %v2493 = vld [vmem:[%s3 + $0xf4] sm:$0xf]
      %v2494 = vld [vmem:[%s3 + $0xf8] sm:$0xf]
      %v2495 = vld [vmem:[%s3 + $0xfc] sm:$0xf]
      %v2496 = vld [vmem:[%s3 + $0x100] sm:$0xf]
      %v2497 = vld [vmem:[%s3 + $0x104] sm:$0xf]
      %v2498 = vld [vmem:[%s3 + $0x108] sm:$0xf]
      %v2499 = vld [vmem:[%s3 + $0x10c] sm:$0xf]
      %v2500 = vld [vmem:[%s3 + $0x110] sm:$0xf]
      %v2501 = vld [vmem:[%s3 + $0x114] sm:$0xf]
      %v2502 = vld [vmem:[%s3 + $0x118] sm:$0xf]
      %v2503 = vld [vmem:[%s3 + $0x11c] sm:$0xf]
      %v2504 = vld [vmem:[%s3 + $0x120] sm:$0xf]
      %v2505 = vld [vmem:[%s3 + $0x124] sm:$0xf]
      %v2506 = vld [vmem:[%s3 + $0x128] sm:$0xf]
      %v2507 = vld [vmem:[%s3 + $0x12c] sm:$0xf]
      %v2508 = vld [vmem:[%s3 + $0x130] sm:$0xf]
      %v2509 = vld [vmem:[%s3 + $0x134] sm:$0xf]
      %v2510 = vld [vmem:[%s3 + $0x138] sm:$0xf]
      %v2511 = vld [vmem:[%s3 + $0x13c] sm:$0xf]
      %v2512 = vld [vmem:[%s3 + $0x140] sm:$0xf]
      %v2513 = vld [vmem:[%s3 + $0x144] sm:$0xf]
      %v2514 = vld [vmem:[%s3 + $0x148] sm:$0xf]
      %v2515 = vld [vmem:[%s3 + $0x14c] sm:$0xf]
      %v2516 = vld [vmem:[%s3 + $0x150] sm:$0xf]
      %v2517 = vld [vmem:[%s3 + $0x154] sm:$0xf]
      %v2518 = vld [vmem:[%s3 + $0x158] sm:$0xf]
      %v2519 = vld [vmem:[%s3 + $0x15c] sm:$0xf]
      %v2520 = vld [vmem:[%s3 + $0x160] sm:$0xf]
      %v2521 = vld [vmem:[%s3 + $0x164] sm:$0xf]
      %v2522 = vld [vmem:[%s3 + $0x168] sm:$0xf]
      %v2523 = vld [vmem:[%s3 + $0x16c] sm:$0xf]
      %v2524 = vld [vmem:[%s3 + $0x170] sm:$0xf]
      %v2525 = vld [vmem:[%s3 + $0x174] sm:$0xf]
      %v2526 = vld [vmem:[%s3 + $0x178] sm:$0xf]
      %v2527 = vld [vmem:[%s3 + $0x17c] sm:$0xf]
      %v2528 = vld [vmem:[%s3 + $0x180] sm:$0xf]
      %v2529 = vld [vmem:[%s3 + $0x184] sm:$0xf]
      %v2530 = vld [vmem:[%s3 + $0x188] sm:$0xf]
      %v2531 = vld [vmem:[%s3 + $0x18c] sm:$0xf]
      %v2532 = vld [vmem:[%s3 + $0x190] sm:$0xf]
      %v2533 = vld [vmem:[%s3 + $0x194] sm:$0xf]
      %v2534 = vld [vmem:[%s3 + $0x198] sm:$0xf]
      %v2535 = vld [vmem:[%s3 + $0x19c] sm:$0xf]
      %v2536 = vld [vmem:[%s3 + $0x1a0] sm:$0xf]
      %v2537 = vld [vmem:[%s3 + $0x1a4] sm:$0xf]
      %v2538 = vld [vmem:[%s3 + $0x1a8] sm:$0xf]
      %v2539 = vld [vmem:[%s3 + $0x1ac] sm:$0xf]
      %v2540 = vld [vmem:[%s3 + $0x1b0] sm:$0xf]
      %v2541 = vld [vmem:[%s3 + $0x1b4] sm:$0xf]
      %v2542 = vld [vmem:[%s3 + $0x1b8] sm:$0xf]
      %v2543 = vld [vmem:[%s3 + $0x1bc] sm:$0xf]
      %v2544 = vld [vmem:[%s3 + $0x1c0] sm:$0xf]
      %v2545 = vld [vmem:[%s3 + $0x1c4] sm:$0xf]
      %v2546 = vld [vmem:[%s3 + $0x1c8] sm:$0xf]
      %v2547 = vld [vmem:[%s3 + $0x1cc] sm:$0xf]
      %v2548 = vld [vmem:[%s3 + $0x1d0] sm:$0xf]
      %v2549 = vld [vmem:[%s3 + $0x1d4] sm:$0xf]
      %v2550 = vld [vmem:[%s3 + $0x1d8] sm:$0xf]
      %v2551 = vld [vmem:[%s3 + $0x1dc] sm:$0xf]
      %v2552 = vld [vmem:[%s3 + $0x1e0] sm:$0xf]
      %v2553 = vld [vmem:[%s3 + $0x1e4] sm:$0xf]
      %v2554 = vld [vmem:[%s3 + $0x1e8] sm:$0xf]
      %v2555 = vld [vmem:[%s3 + $0x1ec] sm:$0xf]
      %v2556 = vld [vmem:[%s3 + $0x1f0] sm:$0xf]
      %v2557 = vld [vmem:[%s3 + $0x1f4] sm:$0xf]
      %v2558 = vld [vmem:[%s3 + $0x1f8] sm:$0xf]
      %v2559 = vld [vmem:[%s3 + $0x1fc] sm:$0xf]
      %v2560 = vld [vmem:[%s3 + $0x200] sm:$0xf]
      %v2561 = vld [vmem:[%s3 + $0x204] sm:$0xf]
      %v2562 = vld [vmem:[%s3 + $0x208] sm:$0xf]
      %v2563 = vld [vmem:[%s3 + $0x20c] sm:$0xf]
      %v2564 = vld [vmem:[%s3 + $0x210] sm:$0xf]
      %v2565 = vld [vmem:[%s3 + $0x214] sm:$0xf]
      %v2566 = vld [vmem:[%s3 + $0x218] sm:$0xf]
      %v2567 = vld [vmem:[%s3 + $0x21c] sm:$0xf]
      %v2568 = vld [vmem:[%s3 + $0x220] sm:$0xf]
      %v2569 = vld [vmem:[%s3 + $0x224] sm:$0xf]
      %v2570 = vld [vmem:[%s3 + $0x228] sm:$0xf]
      %v2571 = vld [vmem:[%s3 + $0x22c] sm:$0xf]
      %v2572 = vld [vmem:[%s3 + $0x230] sm:$0xf]
      %v2573 = vld [vmem:[%s3 + $0x234] sm:$0xf]
      %v2574 = vld [vmem:[%s3 + $0x238] sm:$0xf]
      %v2575 = vld [vmem:[%s3 + $0x23c] sm:$0xf]
      %v2576 = vld [vmem:[%s3 + $0x240] sm:$0xf]
      %v2577 = vld [vmem:[%s3 + $0x244] sm:$0xf]
      %v2578 = vld [vmem:[%s3 + $0x248] sm:$0xf]
      %v2579 = vld [vmem:[%s3 + $0x24c] sm:$0xf]
      %v2580 = vld [vmem:[%s3 + $0x250] sm:$0xf]
      %v2581 = vld [vmem:[%s3 + $0x254] sm:$0xf]
      %v2582 = vld [vmem:[%s3 + $0x258] sm:$0xf]
      %v2583 = vld [vmem:[%s3 + $0x25c] sm:$0xf]
      %v2584 = vld [vmem:[%s3 + $0x260] sm:$0xf]
      %v2585 = vld [vmem:[%s3 + $0x264] sm:$0xf]
      %v2586 = vld [vmem:[%s3 + $0x268] sm:$0xf]
      %v2587 = vld [vmem:[%s3 + $0x26c] sm:$0xf]
      %v2588 = vld [vmem:[%s3 + $0x270] sm:$0xf]
      %v2589 = vld [vmem:[%s3 + $0x274] sm:$0xf]
      %v2590 = vld [vmem:[%s3 + $0x278] sm:$0xf]
      %v2591 = vld [vmem:[%s3 + $0x27c] sm:$0xf]
      %v2592 = vld [vmem:[%s3 + $0x280] sm:$0xf]
      %v2593 = vld [vmem:[%s3 + $0x284] sm:$0xf]
      %v2594 = vld [vmem:[%s3 + $0x288] sm:$0xf]
      %v2595 = vld [vmem:[%s3 + $0x28c] sm:$0xf]
      %v2596 = vld [vmem:[%s3 + $0x290] sm:$0xf]
      %v2597 = vld [vmem:[%s3 + $0x294] sm:$0xf]
      %v2598 = vld [vmem:[%s3 + $0x298] sm:$0xf]
      %v2599 = vld [vmem:[%s3 + $0x29c] sm:$0xf]
      %v2600 = vld [vmem:[%s3 + $0x2a0] sm:$0xf]
      %v2601 = vld [vmem:[%s3 + $0x2a4] sm:$0xf]
      %v2602 = vld [vmem:[%s3 + $0x2a8] sm:$0xf]
      %v2603 = vld [vmem:[%s3 + $0x2ac] sm:$0xf]
      %v2604 = vld [vmem:[%s3 + $0x2b0] sm:$0xf]
      %v2605 = vld [vmem:[%s3 + $0x2b4] sm:$0xf]
      %v2606 = vld [vmem:[%s3 + $0x2b8] sm:$0xf]
      %v2607 = vld [vmem:[%s3 + $0x2bc] sm:$0xf]
      %v2608 = vld [vmem:[%s3 + $0x2c0] sm:$0xf]
      %v2609 = vld [vmem:[%s3 + $0x2c4] sm:$0xf]
      %v2610 = vld [vmem:[%s3 + $0x2c8] sm:$0xf]
      %v2611 = vld [vmem:[%s3 + $0x2cc] sm:$0xf]
      %v2612 = vld [vmem:[%s3 + $0x2d0] sm:$0xf]
      %v2613 = vld [vmem:[%s3 + $0x2d4] sm:$0xf]
      %v2614 = vld [vmem:[%s3 + $0x2d8] sm:$0xf]
      %v2615 = vld [vmem:[%s3 + $0x2dc] sm:$0xf]
      %v2616 = vld [vmem:[%s3 + $0x2e0] sm:$0xf]
      %v2617 = vld [vmem:[%s3 + $0x2e4] sm:$0xf]
      %v2618 = vld [vmem:[%s3 + $0x2e8] sm:$0xf]
      %v2619 = vld [vmem:[%s3 + $0x2ec] sm:$0xf]
      %v2620 = vld [vmem:[%s3 + $0x2f0] sm:$0xf]
      %v2621 = vld [vmem:[%s3 + $0x2f4] sm:$0xf]
      %v2622 = vld [vmem:[%s3 + $0x2f8] sm:$0xf]
      %v2623 = vld [vmem:[%s3 + $0x2fc] sm:$0xf]
      %v2624 = vld [vmem:[%s3 + $0x300] sm:$0xf]
      %v2625 = vld [vmem:[%s3 + $0x304] sm:$0xf]
      %v2626 = vld [vmem:[%s3 + $0x308] sm:$0xf]
      %v2627 = vld [vmem:[%s3 + $0x30c] sm:$0xf]
      %v2628 = vld [vmem:[%s3 + $0x310] sm:$0xf]
      %v2629 = vld [vmem:[%s3 + $0x314] sm:$0xf]
      %v2630 = vld [vmem:[%s3 + $0x318] sm:$0xf]
      %v2631 = vld [vmem:[%s3 + $0x31c] sm:$0xf]
      %v2632 = vld [vmem:[%s3 + $0x320] sm:$0xf]
      %v2633 = vld [vmem:[%s3 + $0x324] sm:$0xf]
      %v2634 = vld [vmem:[%s3 + $0x328] sm:$0xf]
      %v2635 = vld [vmem:[%s3 + $0x32c] sm:$0xf]
      %v2636 = vld [vmem:[%s3 + $0x330] sm:$0xf]
      %v2637 = vld [vmem:[%s3 + $0x334] sm:$0xf]
      %v2638 = vld [vmem:[%s3 + $0x338] sm:$0xf]
      %v2639 = vld [vmem:[%s3 + $0x33c] sm:$0xf]
      %v2640 = vld [vmem:[%s3 + $0x340] sm:$0xf]
      %v2641 = vld [vmem:[%s3 + $0x344] sm:$0xf]
      %v2642 = vld [vmem:[%s3 + $0x348] sm:$0xf]
      %v2643 = vld [vmem:[%s3 + $0x34c] sm:$0xf]
      %v2644 = vld [vmem:[%s3 + $0x350] sm:$0xf]
      %v2645 = vld [vmem:[%s3 + $0x354] sm:$0xf]
      %v2646 = vld [vmem:[%s3 + $0x358] sm:$0xf]
      %v2647 = vld [vmem:[%s3 + $0x35c] sm:$0xf]
      %v2648 = vld [vmem:[%s3 + $0x360] sm:$0xf]
      %v2649 = vld [vmem:[%s3 + $0x364] sm:$0xf]
      %v2650 = vld [vmem:[%s3 + $0x368] sm:$0xf]
      %v2651 = vld [vmem:[%s3 + $0x36c] sm:$0xf]
      %v2652 = vld [vmem:[%s3 + $0x370] sm:$0xf]
      %v2653 = vld [vmem:[%s3 + $0x374] sm:$0xf]
      %v2654 = vld [vmem:[%s3 + $0x378] sm:$0xf]
      %v2655 = vld [vmem:[%s3 + $0x37c] sm:$0xf]
      %v2656 = vld [vmem:[%s3 + $0x380] sm:$0xf]
      %v2657 = vld [vmem:[%s3 + $0x384] sm:$0xf]
      %v2658 = vld [vmem:[%s3 + $0x388] sm:$0xf]
      %v2659 = vld [vmem:[%s3 + $0x38c] sm:$0xf]
      %v2660 = vld [vmem:[%s3 + $0x390] sm:$0xf]
      %v2661 = vld [vmem:[%s3 + $0x394] sm:$0xf]
      %v2662 = vld [vmem:[%s3 + $0x398] sm:$0xf]
      %v2663 = vld [vmem:[%s3 + $0x39c] sm:$0xf]
      %v2664 = vld [vmem:[%s3 + $0x3a0] sm:$0xf]
      %v2665 = vld [vmem:[%s3 + $0x3a4] sm:$0xf]
      %v2666 = vld [vmem:[%s3 + $0x3a8] sm:$0xf]
      %v2667 = vld [vmem:[%s3 + $0x3ac] sm:$0xf]
      %v2668 = vld [vmem:[%s3 + $0x3b0] sm:$0xf]
      %v2669 = vld [vmem:[%s3 + $0x3b4] sm:$0xf]
      %v2670 = vld [vmem:[%s3 + $0x3b8] sm:$0xf]
      %v2671 = vld [vmem:[%s3 + $0x3bc] sm:$0xf]
      %v2672 = vld [vmem:[%s3 + $0x3c0] sm:$0xf]
      %v2673 = vld [vmem:[%s3 + $0x3c4] sm:$0xf]
      %v2674 = vld [vmem:[%s3 + $0x3c8] sm:$0xf]
      %v2675 = vld [vmem:[%s3 + $0x3cc] sm:$0xf]
      %v2676 = vld [vmem:[%s3 + $0x3d0] sm:$0xf]
      %v2677 = vld [vmem:[%s3 + $0x3d4] sm:$0xf]
      %v2678 = vld [vmem:[%s3 + $0x3d8] sm:$0xf]
      %v2679 = vld [vmem:[%s3 + $0x3dc] sm:$0xf]
      %v2680 = vld [vmem:[%s3 + $0x3e0] sm:$0xf]
      %v2681 = vld [vmem:[%s3 + $0x3e4] sm:$0xf]
      %v2682 = vld [vmem:[%s3 + $0x3e8] sm:$0xf]
      %v2683 = vld [vmem:[%s3 + $0x3ec] sm:$0xf]
      %v2684 = vld [vmem:[%s3 + $0x3f0] sm:$0xf]
      %v2685 = vld [vmem:[%s3 + $0x3f4] sm:$0xf]
      %v2686 = vld [vmem:[%s3 + $0x3f8] sm:$0xf]
      %v2687 = vld [vmem:[%s3 + $0x3fc] sm:$0xf]
      %v2688 = vld [vmem:[%s3 + $0x400] sm:$0xf]
      %v2689 = vld [vmem:[%s3 + $0x404] sm:$0xf]
      %v2690 = vld [vmem:[%s3 + $0x408] sm:$0xf]
      %v2691 = vld [vmem:[%s3 + $0x40c] sm:$0xf]
      %v2692 = vld [vmem:[%s3 + $0x410] sm:$0xf]
      %v2693 = vld [vmem:[%s3 + $0x414] sm:$0xf]
      %v2694 = vld [vmem:[%s3 + $0x418] sm:$0xf]
      %v2695 = vld [vmem:[%s3 + $0x41c] sm:$0xf]
      %v2696 = vld [vmem:[%s3 + $0x420] sm:$0xf]
      %v2697 = vld [vmem:[%s3 + $0x424] sm:$0xf]
      %v2698 = vld [vmem:[%s3 + $0x428] sm:$0xf]
      %v2699 = vld [vmem:[%s3 + $0x42c] sm:$0xf]
      %v2700 = vld [vmem:[%s3 + $0x430] sm:$0xf]
      %v2701 = vld [vmem:[%s3 + $0x434] sm:$0xf]
      %v2702 = vld [vmem:[%s3 + $0x438] sm:$0xf]
      %v2703 = vld [vmem:[%s3 + $0x43c] sm:$0xf]
      %v2704 = vld [vmem:[%s3 + $0x440] sm:$0xf]
      %v2705 = vld [vmem:[%s3 + $0x444] sm:$0xf]
      %v2706 = vld [vmem:[%s3 + $0x448] sm:$0xf]
      %v2707 = vld [vmem:[%s3 + $0x44c] sm:$0xf]
      %v2708 = vld [vmem:[%s3 + $0x450] sm:$0xf]
      %v2709 = vld [vmem:[%s3 + $0x454] sm:$0xf]
      %v2710 = vld [vmem:[%s3 + $0x458] sm:$0xf]
      %v2711 = vld [vmem:[%s3 + $0x45c] sm:$0xf]
      %v2712 = vld [vmem:[%s3 + $0x460] sm:$0xf]
      %v2713 = vld [vmem:[%s3 + $0x464] sm:$0xf]
      %v2714 = vld [vmem:[%s3 + $0x468] sm:$0xf]
      %v2715 = vld [vmem:[%s3 + $0x46c] sm:$0xf]
      %v2716 = vld [vmem:[%s3 + $0x470] sm:$0xf]
      %v2717 = vld [vmem:[%s3 + $0x474] sm:$0xf]
      %v2718 = vld [vmem:[%s3 + $0x478] sm:$0xf]
      %v2719 = vld [vmem:[%s3 + $0x47c] sm:$0xf]
      %v2720 = vld [vmem:[%s3 + $0x480] sm:$0xf]
      %v2721 = vld [vmem:[%s3 + $0x484] sm:$0xf]
      %v2722 = vld [vmem:[%s3 + $0x488] sm:$0xf]
      %v2723 = vld [vmem:[%s3 + $0x48c] sm:$0xf]
      %v2724 = vld [vmem:[%s3 + $0x490] sm:$0xf]
      %v2725 = vld [vmem:[%s3 + $0x494] sm:$0xf]
      %v2726 = vld [vmem:[%s3 + $0x498] sm:$0xf]
      %v2727 = vld [vmem:[%s3 + $0x49c] sm:$0xf]
      %v2728 = vld [vmem:[%s3 + $0x4a0] sm:$0xf]
      %v2729 = vld [vmem:[%s3 + $0x4a4] sm:$0xf]
      %v2730 = vld [vmem:[%s3 + $0x4a8] sm:$0xf]
      %v2731 = vld [vmem:[%s3 + $0x4ac] sm:$0xf]
      %v2732 = vld [vmem:[%s3 + $0x4b0] sm:$0xf]
      %v2733 = vld [vmem:[%s3 + $0x4b4] sm:$0xf]
      %v2734 = vld [vmem:[%s3 + $0x4b8] sm:$0xf]
      %v2735 = vld [vmem:[%s3 + $0x4bc] sm:$0xf]
      %v2736 = vld [vmem:[%s3 + $0x4c0] sm:$0xf]
      %v2737 = vld [vmem:[%s3 + $0x4c4] sm:$0xf]
      %v2738 = vld [vmem:[%s3 + $0x4c8] sm:$0xf]
      %v2739 = vld [vmem:[%s3 + $0x4cc] sm:$0xf]
      %v2740 = vld [vmem:[%s3 + $0x4d0] sm:$0xf]
      %v2741 = vld [vmem:[%s3 + $0x4d4] sm:$0xf]
      %v2742 = vld [vmem:[%s3 + $0x4d8] sm:$0xf]
      %v2743 = vld [vmem:[%s3 + $0x4dc] sm:$0xf]
      %v2744 = vld [vmem:[%s3 + $0x4e0] sm:$0xf]
      %v2745 = vld [vmem:[%s3 + $0x4e4] sm:$0xf]
      %v2746 = vld [vmem:[%s3 + $0x4e8] sm:$0xf]
      %v2747 = vld [vmem:[%s3 + $0x4ec] sm:$0xf]
      %v2748 = vld [vmem:[%s3 + $0x4f0] sm:$0xf]
      %v2749 = vld [vmem:[%s3 + $0x4f4] sm:$0xf]
      %v2750 = vld [vmem:[%s3 + $0x4f8] sm:$0xf]
      %v2751 = vld [vmem:[%s3 + $0x4fc] sm:$0xf]
      %v2752 = vld [vmem:[%s3 + $0x500] sm:$0xf]
      %v2753 = vld [vmem:[%s3 + $0x504] sm:$0xf]
      %v2754 = vld [vmem:[%s3 + $0x508] sm:$0xf]
      %v2755 = vld [vmem:[%s3 + $0x50c] sm:$0xf]
      %v2756 = vld [vmem:[%s3 + $0x510] sm:$0xf]
      %v2757 = vld [vmem:[%s3 + $0x514] sm:$0xf]
      %v2758 = vld [vmem:[%s3 + $0x518] sm:$0xf]
      %v2759 = vld [vmem:[%s3 + $0x51c] sm:$0xf]
      %v2760 = vld [vmem:[%s3 + $0x520] sm:$0xf]
      %v2761 = vld [vmem:[%s3 + $0x524] sm:$0xf]
      %v2762 = vld [vmem:[%s3 + $0x528] sm:$0xf]
      %v2763 = vld [vmem:[%s3 + $0x52c] sm:$0xf]
      %v2764 = vld [vmem:[%s3 + $0x530] sm:$0xf]
      %v2765 = vld [vmem:[%s3 + $0x534] sm:$0xf]
      %v2766 = vld [vmem:[%s3 + $0x538] sm:$0xf]
      %v2767 = vld [vmem:[%s3 + $0x53c] sm:$0xf]
      %v2768 = vld [vmem:[%s3 + $0x540] sm:$0xf]
      %v2769 = vld [vmem:[%s3 + $0x544] sm:$0xf]
      %v2770 = vld [vmem:[%s3 + $0x548] sm:$0xf]
      %v2771 = vld [vmem:[%s3 + $0x54c] sm:$0xf]
      %v2772 = vld [vmem:[%s3 + $0x550] sm:$0xf]
      %v2773 = vld [vmem:[%s3 + $0x554] sm:$0xf]
      %v2774 = vld [vmem:[%s3 + $0x558] sm:$0xf]
      %v2775 = vld [vmem:[%s3 + $0x55c] sm:$0xf]
      %v2776 = vld [vmem:[%s3 + $0x560] sm:$0xf]
      %v2777 = vld [vmem:[%s3 + $0x564] sm:$0xf]
      %v2778 = vld [vmem:[%s3 + $0x568] sm:$0xf]
      %v2779 = vld [vmem:[%s3 + $0x56c] sm:$0xf]
      %v2780 = vld [vmem:[%s3 + $0x570] sm:$0xf]
      %v2781 = vld [vmem:[%s3 + $0x574] sm:$0xf]
      %v2782 = vld [vmem:[%s3 + $0x578] sm:$0xf]
      %v2783 = vld [vmem:[%s3 + $0x57c] sm:$0xf]
      %v2784 = vld [vmem:[%s3 + $0x580] sm:$0xf]
      %v2785 = vld [vmem:[%s3 + $0x584] sm:$0xf]
      %v2786 = vld [vmem:[%s3 + $0x588] sm:$0xf]
      %v2787 = vld [vmem:[%s3 + $0x58c] sm:$0xf]
      %v2788 = vld [vmem:[%s3 + $0x590] sm:$0xf]
      %v2789 = vld [vmem:[%s3 + $0x594] sm:$0xf]
      %v2790 = vld [vmem:[%s3 + $0x598] sm:$0xf]
      %v2791 = vld [vmem:[%s3 + $0x59c] sm:$0xf]
      %v2792 = vld [vmem:[%s3 + $0x5a0] sm:$0xf]
      %v2793 = vld [vmem:[%s3 + $0x5a4] sm:$0xf]
      %v2794 = vld [vmem:[%s3 + $0x5a8] sm:$0xf]
      %v2795 = vld [vmem:[%s3 + $0x5ac] sm:$0xf]
      %v2796 = vld [vmem:[%s3 + $0x5b0] sm:$0xf]
      %v2797 = vld [vmem:[%s3 + $0x5b4] sm:$0xf]
      %v2798 = vld [vmem:[%s3 + $0x5b8] sm:$0xf]
      %v2799 = vld [vmem:[%s3 + $0x5bc] sm:$0xf]
      %v2800 = vld [vmem:[%s3 + $0x5c0] sm:$0xf]
      %v2801 = vld [vmem:[%s3 + $0x5c4] sm:$0xf]
      %v2802 = vld [vmem:[%s3 + $0x5c8] sm:$0xf]
      %v2803 = vld [vmem:[%s3 + $0x5cc] sm:$0xf]
      %v2804 = vld [vmem:[%s3 + $0x5d0] sm:$0xf]
      %v2805 = vld [vmem:[%s3 + $0x5d4] sm:$0xf]
      %v2806 = vld [vmem:[%s3 + $0x5d8] sm:$0xf]
      %v2807 = vld [vmem:[%s3 + $0x5dc] sm:$0xf]
      %v2808 = vld [vmem:[%s3 + $0x5e0] sm:$0xf]
      %v2809 = vld [vmem:[%s3 + $0x5e4] sm:$0xf]
      %v2810 = vld [vmem:[%s3 + $0x5e8] sm:$0xf]
      %v2811 = vld [vmem:[%s3 + $0x5ec] sm:$0xf]
      %v2812 = vld [vmem:[%s3 + $0x5f0] sm:$0xf]
      %v2813 = vld [vmem:[%s3 + $0x5f4] sm:$0xf]
      %v2814 = vld [vmem:[%s3 + $0x5f8] sm:$0xf]
      %v2815 = vld [vmem:[%s3 + $0x5fc] sm:$0xf]
      %v2816 = vld [vmem:[%s3 + $0x600] sm:$0xf]
      %v2817 = vld [vmem:[%s3 + $0x604] sm:$0xf]
      %v2818 = vld [vmem:[%s3 + $0x608] sm:$0xf]
      %v2819 = vld [vmem:[%s3 + $0x60c] sm:$0xf]
      %v2820 = vld [vmem:[%s3 + $0x610] sm:$0xf]
      %v2821 = vld [vmem:[%s3 + $0x614] sm:$0xf]
      %v2822 = vld [vmem:[%s3 + $0x618] sm:$0xf]
      %v2823 = vld [vmem:[%s3 + $0x61c] sm:$0xf]
      %v2824 = vld [vmem:[%s3 + $0x620] sm:$0xf]
      %v2825 = vld [vmem:[%s3 + $0x624] sm:$0xf]
      %v2826 = vld [vmem:[%s3 + $0x628] sm:$0xf]
      %v2827 = vld [vmem:[%s3 + $0x62c] sm:$0xf]
      %v2828 = vld [vmem:[%s3 + $0x630] sm:$0xf]
      %v2829 = vld [vmem:[%s3 + $0x634] sm:$0xf]
      %v2830 = vld [vmem:[%s3 + $0x638] sm:$0xf]
      %v2831 = vld [vmem:[%s3 + $0x63c] sm:$0xf]
      %v2832 = vld [vmem:[%s3 + $0x640] sm:$0xf]
      %v2833 = vld [vmem:[%s3 + $0x644] sm:$0xf]
      %v2834 = vld [vmem:[%s3 + $0x648] sm:$0xf]
      %v2835 = vld [vmem:[%s3 + $0x64c] sm:$0xf]
      %v2836 = vld [vmem:[%s3 + $0x650] sm:$0xf]
      %v2837 = vld [vmem:[%s3 + $0x654] sm:$0xf]
      %v2838 = vld [vmem:[%s3 + $0x658] sm:$0xf]
      %v2839 = vld [vmem:[%s3 + $0x65c] sm:$0xf]
      %v2840 = vld [vmem:[%s3 + $0x660] sm:$0xf]
      %v2841 = vld [vmem:[%s3 + $0x664] sm:$0xf]
      %v2842 = vld [vmem:[%s3 + $0x668] sm:$0xf]
      %v2843 = vld [vmem:[%s3 + $0x66c] sm:$0xf]
      %v2844 = vld [vmem:[%s3 + $0x670] sm:$0xf]
      %v2845 = vld [vmem:[%s3 + $0x674] sm:$0xf]
      %v2846 = vld [vmem:[%s3 + $0x678] sm:$0xf]
      %v2847 = vld [vmem:[%s3 + $0x67c] sm:$0xf]
      %v2848 = vld [vmem:[%s3 + $0x680] sm:$0xf]
      %v2849 = vld [vmem:[%s3 + $0x684] sm:$0xf]
      %v2850 = vld [vmem:[%s3 + $0x688] sm:$0xf]
      %v2851 = vld [vmem:[%s3 + $0x68c] sm:$0xf]
      %v2852 = vld [vmem:[%s3 + $0x690] sm:$0xf]
      %v2853 = vld [vmem:[%s3 + $0x694] sm:$0xf]
      %v2854 = vld [vmem:[%s3 + $0x698] sm:$0xf]
      %v2855 = vld [vmem:[%s3 + $0x69c] sm:$0xf]
      %v2856 = vld [vmem:[%s3 + $0x6a0] sm:$0xf]
      %v2857 = vld [vmem:[%s3 + $0x6a4] sm:$0xf]
      %v2858 = vld [vmem:[%s3 + $0x6a8] sm:$0xf]
      %v2859 = vld [vmem:[%s3 + $0x6ac] sm:$0xf]
      %v2860 = vld [vmem:[%s3 + $0x6b0] sm:$0xf]
      %v2861 = vld [vmem:[%s3 + $0x6b4] sm:$0xf]
      %v2862 = vld [vmem:[%s3 + $0x6b8] sm:$0xf]
      %v2863 = vld [vmem:[%s3 + $0x6bc] sm:$0xf]
      %v3296 = vunpack.c.l.b16 %v2432
      %v3297 = vunpack.c.l.b16 %v2433
      %v3298 = vunpack.c.l.b16 %v2434
      %v3299 = vunpack.c.l.b16 %v2435
      %v3300 = vunpack.c.l.b16 %v2436
      %v3301 = vunpack.c.l.b16 %v2437
      %v3302 = vunpack.c.l.b16 %v2438
      %v3303 = vunpack.c.l.b16 %v2439
      %v3304 = vunpack.c.l.b16 %v2440
      %v3305 = vunpack.c.l.b16 %v2441
      %v3306 = vunpack.c.l.b16 %v2442
      %v3307 = vunpack.c.l.b16 %v2443
      %v3308 = vunpack.c.l.b16 %v2444
      %v3309 = vunpack.c.l.b16 %v2445
      %v3310 = vunpack.c.l.b16 %v2446
      %v3311 = vunpack.c.l.b16 %v2447
      %v3312 = vunpack.c.l.b16 %v2448
      %v3313 = vunpack.c.l.b16 %v2449
      %v3314 = vunpack.c.l.b16 %v2450
      %v3315 = vunpack.c.l.b16 %v2451
      %v3316 = vunpack.c.l.b16 %v2452
      %v3317 = vunpack.c.l.b16 %v2453
      %v3318 = vunpack.c.l.b16 %v2454
      %v3319 = vunpack.c.l.b16 %v2455
      %v3320 = vunpack.c.l.b16 %v2456
      %v3321 = vunpack.c.l.b16 %v2457
      %v3322 = vunpack.c.l.b16 %v2458
      %v3323 = vunpack.c.l.b16 %v2459
      %v3324 = vunpack.c.l.b16 %v2460
      %v3325 = vunpack.c.l.b16 %v2461
      %v3326 = vunpack.c.l.b16 %v2462
      %v3327 = vunpack.c.l.b16 %v2463
      %v3328 = vunpack.c.l.b16 %v2464
      %v3329 = vunpack.c.l.b16 %v2465
      %v3330 = vunpack.c.l.b16 %v2466
      %v3331 = vunpack.c.l.b16 %v2467
      %v3332 = vunpack.c.l.b16 %v2468
      %v3333 = vunpack.c.l.b16 %v2469
      %v3334 = vunpack.c.l.b16 %v2470
      %v3335 = vunpack.c.l.b16 %v2471
      %v3336 = vunpack.c.l.b16 %v2472
      %v3337 = vunpack.c.l.b16 %v2473
      %v3338 = vunpack.c.l.b16 %v2474
      %v3339 = vunpack.c.l.b16 %v2475
      %v3340 = vunpack.c.l.b16 %v2476
      %v3341 = vunpack.c.l.b16 %v2477
      %v3342 = vunpack.c.l.b16 %v2478
      %v3343 = vunpack.c.l.b16 %v2479
      %v3344 = vunpack.c.l.b16 %v2480
      %v3345 = vunpack.c.l.b16 %v2481
      %v3346 = vunpack.c.l.b16 %v2482
      %v3347 = vunpack.c.l.b16 %v2483
      %v3348 = vunpack.c.l.b16 %v2484
      %v3349 = vunpack.c.l.b16 %v2485
      %v3350 = vunpack.c.l.b16 %v2486
      %v3351 = vunpack.c.l.b16 %v2487
      %v3352 = vunpack.c.l.b16 %v2488
      %v3353 = vunpack.c.l.b16 %v2489
      %v3354 = vunpack.c.l.b16 %v2490
      %v3355 = vunpack.c.l.b16 %v2491
      %v3356 = vunpack.c.l.b16 %v2492
      %v3357 = vunpack.c.l.b16 %v2493
      %v3358 = vunpack.c.l.b16 %v2494
      %v3359 = vunpack.c.l.b16 %v2495
      %v3360 = vunpack.c.l.b16 %v2496
      %v3361 = vunpack.c.l.b16 %v2497
      %v3362 = vunpack.c.l.b16 %v2498
      %v3363 = vunpack.c.l.b16 %v2499
      %v3364 = vunpack.c.l.b16 %v2500
      %v3365 = vunpack.c.l.b16 %v2501
      %v3366 = vunpack.c.l.b16 %v2502
      %v3367 = vunpack.c.l.b16 %v2503
      %v3368 = vunpack.c.l.b16 %v2504
      %v3369 = vunpack.c.l.b16 %v2505
      %v3370 = vunpack.c.l.b16 %v2506
      %v3371 = vunpack.c.l.b16 %v2507
      %v3372 = vunpack.c.l.b16 %v2508
      %v3373 = vunpack.c.l.b16 %v2509
      %v3374 = vunpack.c.l.b16 %v2510
      %v3375 = vunpack.c.l.b16 %v2511
      %v3376 = vunpack.c.l.b16 %v2512
      %v3377 = vunpack.c.l.b16 %v2513
      %v3378 = vunpack.c.l.b16 %v2514
      %v3379 = vunpack.c.l.b16 %v2515
      %v3380 = vunpack.c.l.b16 %v2516
      %v3381 = vunpack.c.l.b16 %v2517
      %v3382 = vunpack.c.l.b16 %v2518
      %v3383 = vunpack.c.l.b16 %v2519
      %v3384 = vunpack.c.l.b16 %v2520
      %v3385 = vunpack.c.l.b16 %v2521
      %v3386 = vunpack.c.l.b16 %v2522
      %v3387 = vunpack.c.l.b16 %v2523
      %v3388 = vunpack.c.l.b16 %v2524
      %v3389 = vunpack.c.l.b16 %v2525
      %v3390 = vunpack.c.l.b16 %v2526
      %v3391 = vunpack.c.l.b16 %v2527
      %v3392 = vunpack.c.l.b16 %v2528
      %v3393 = vunpack.c.l.b16 %v2529
      %v3394 = vunpack.c.l.b16 %v2530
      %v3395 = vunpack.c.l.b16 %v2531
      %v3396 = vunpack.c.l.b16 %v2532
      %v3397 = vunpack.c.l.b16 %v2533
      %v3398 = vunpack.c.l.b16 %v2534
      %v3399 = vunpack.c.l.b16 %v2535
      %v3400 = vunpack.c.l.b16 %v2536
      %v3401 = vunpack.c.l.b16 %v2537
      %v3402 = vunpack.c.l.b16 %v2538
      %v3403 = vunpack.c.l.b16 %v2539
      %v3404 = vunpack.c.l.b16 %v2540
      %v3405 = vunpack.c.l.b16 %v2541
      %v3406 = vunpack.c.l.b16 %v2542
      %v3407 = vunpack.c.l.b16 %v2543
      %v3408 = vunpack.c.l.b16 %v2544
      %v3409 = vunpack.c.l.b16 %v2545
      %v3410 = vunpack.c.l.b16 %v2546
      %v3411 = vunpack.c.l.b16 %v2547
      %v3412 = vunpack.c.l.b16 %v2548
      %v3413 = vunpack.c.l.b16 %v2549
      %v3414 = vunpack.c.l.b16 %v2550
      %v3415 = vunpack.c.l.b16 %v2551
      %v3416 = vunpack.c.l.b16 %v2552
      %v3417 = vunpack.c.l.b16 %v2553
      %v3418 = vunpack.c.l.b16 %v2554
      %v3419 = vunpack.c.l.b16 %v2555
      %v3420 = vunpack.c.l.b16 %v2556
      %v3421 = vunpack.c.l.b16 %v2557
      %v3422 = vunpack.c.l.b16 %v2558
      %v3423 = vunpack.c.l.b16 %v2559
      %v3424 = vunpack.c.l.b16 %v2560
      %v3425 = vunpack.c.l.b16 %v2561
      %v3426 = vunpack.c.l.b16 %v2562
      %v3427 = vunpack.c.l.b16 %v2563
      %v3428 = vunpack.c.l.b16 %v2564
      %v3429 = vunpack.c.l.b16 %v2565
      %v3430 = vunpack.c.l.b16 %v2566
      %v3431 = vunpack.c.l.b16 %v2567
      %v3432 = vunpack.c.l.b16 %v2568
      %v3433 = vunpack.c.l.b16 %v2569
      %v3434 = vunpack.c.l.b16 %v2570
      %v3435 = vunpack.c.l.b16 %v2571
      %v3436 = vunpack.c.l.b16 %v2572
      %v3437 = vunpack.c.l.b16 %v2573
      %v3438 = vunpack.c.l.b16 %v2574
      %v3439 = vunpack.c.l.b16 %v2575
      %v3440 = vunpack.c.l.b16 %v2576
      %v3441 = vunpack.c.l.b16 %v2577
      %v3442 = vunpack.c.l.b16 %v2578
      %v3443 = vunpack.c.l.b16 %v2579
      %v3444 = vunpack.c.l.b16 %v2580
      %v3445 = vunpack.c.l.b16 %v2581
      %v3446 = vunpack.c.l.b16 %v2582
      %v3447 = vunpack.c.l.b16 %v2583
      %v3448 = vunpack.c.l.b16 %v2584
      %v3449 = vunpack.c.l.b16 %v2585
      %v3450 = vunpack.c.l.b16 %v2586
      %v3451 = vunpack.c.l.b16 %v2587
      %v3452 = vunpack.c.l.b16 %v2588
      %v3453 = vunpack.c.l.b16 %v2589
      %v3454 = vunpack.c.l.b16 %v2590
      %v3455 = vunpack.c.l.b16 %v2591
      %v3456 = vunpack.c.l.b16 %v2592
      %v3457 = vunpack.c.l.b16 %v2593
      %v3458 = vunpack.c.l.b16 %v2594
      %v3459 = vunpack.c.l.b16 %v2595
      %v3460 = vunpack.c.l.b16 %v2596
      %v3461 = vunpack.c.l.b16 %v2597
      %v3462 = vunpack.c.l.b16 %v2598
      %v3463 = vunpack.c.l.b16 %v2599
      %v3464 = vunpack.c.l.b16 %v2600
      %v3465 = vunpack.c.l.b16 %v2601
      %v3466 = vunpack.c.l.b16 %v2602
      %v3467 = vunpack.c.l.b16 %v2603
      %v3468 = vunpack.c.l.b16 %v2604
      %v3469 = vunpack.c.l.b16 %v2605
      %v3470 = vunpack.c.l.b16 %v2606
      %v3471 = vunpack.c.l.b16 %v2607
      %v3472 = vunpack.c.l.b16 %v2608
      %v3473 = vunpack.c.l.b16 %v2609
      %v3474 = vunpack.c.l.b16 %v2610
      %v3475 = vunpack.c.l.b16 %v2611
      %v3476 = vunpack.c.l.b16 %v2612
      %v3477 = vunpack.c.l.b16 %v2613
      %v3478 = vunpack.c.l.b16 %v2614
      %v3479 = vunpack.c.l.b16 %v2615
      %v3480 = vunpack.c.l.b16 %v2616
      %v3481 = vunpack.c.l.b16 %v2617
      %v3482 = vunpack.c.l.b16 %v2618
      %v3483 = vunpack.c.l.b16 %v2619
      %v3484 = vunpack.c.l.b16 %v2620
      %v3485 = vunpack.c.l.b16 %v2621
      %v3486 = vunpack.c.l.b16 %v2622
      %v3487 = vunpack.c.l.b16 %v2623
      %v3488 = vunpack.c.l.b16 %v2624
      %v3489 = vunpack.c.l.b16 %v2625
      %v3490 = vunpack.c.l.b16 %v2626
      %v3491 = vunpack.c.l.b16 %v2627
      %v3492 = vunpack.c.l.b16 %v2628
      %v3493 = vunpack.c.l.b16 %v2629
      %v3494 = vunpack.c.l.b16 %v2630
      %v3495 = vunpack.c.l.b16 %v2631
      %v3496 = vunpack.c.l.b16 %v2632
      %v3497 = vunpack.c.l.b16 %v2633
      %v3498 = vunpack.c.l.b16 %v2634
      %v3499 = vunpack.c.l.b16 %v2635
      %v3500 = vunpack.c.l.b16 %v2636
      %v3501 = vunpack.c.l.b16 %v2637
      %v3502 = vunpack.c.l.b16 %v2638
      %v3503 = vunpack.c.l.b16 %v2639
      %v3504 = vunpack.c.l.b16 %v2640
      %v3505 = vunpack.c.l.b16 %v2641
      %v3506 = vunpack.c.l.b16 %v2642
      %v3507 = vunpack.c.l.b16 %v2643
      %v3508 = vunpack.c.l.b16 %v2644
      %v3509 = vunpack.c.l.b16 %v2645
      %v3510 = vunpack.c.l.b16 %v2646
      %v3511 = vunpack.c.l.b16 %v2647
      %v3512 = vunpack.c.l.b16 %v2648
      %v3513 = vunpack.c.l.b16 %v2649
      %v3514 = vunpack.c.l.b16 %v2650
      %v3515 = vunpack.c.l.b16 %v2651
      %v3516 = vunpack.c.l.b16 %v2652
      %v3517 = vunpack.c.l.b16 %v2653
      %v3518 = vunpack.c.l.b16 %v2654
      %v3519 = vunpack.c.l.b16 %v2655
      %v3520 = vunpack.c.l.b16 %v2656
      %v3521 = vunpack.c.l.b16 %v2657
      %v3522 = vunpack.c.l.b16 %v2658
      %v3523 = vunpack.c.l.b16 %v2659
      %v3524 = vunpack.c.l.b16 %v2660
      %v3525 = vunpack.c.l.b16 %v2661
      %v3526 = vunpack.c.l.b16 %v2662
      %v3527 = vunpack.c.l.b16 %v2663
      %v3528 = vunpack.c.l.b16 %v2664
      %v3529 = vunpack.c.l.b16 %v2665
      %v3530 = vunpack.c.l.b16 %v2666
      %v3531 = vunpack.c.l.b16 %v2667
      %v3532 = vunpack.c.l.b16 %v2668
      %v3533 = vunpack.c.l.b16 %v2669
      %v3534 = vunpack.c.l.b16 %v2670
      %v3535 = vunpack.c.l.b16 %v2671
      %v3536 = vunpack.c.l.b16 %v2672
      %v3537 = vunpack.c.l.b16 %v2673
      %v3538 = vunpack.c.l.b16 %v2674
      %v3539 = vunpack.c.l.b16 %v2675
      %v3540 = vunpack.c.l.b16 %v2676
      %v3541 = vunpack.c.l.b16 %v2677
      %v3542 = vunpack.c.l.b16 %v2678
      %v3543 = vunpack.c.l.b16 %v2679
      %v3544 = vunpack.c.l.b16 %v2680
      %v3545 = vunpack.c.l.b16 %v2681
      %v3546 = vunpack.c.l.b16 %v2682
      %v3547 = vunpack.c.l.b16 %v2683
      %v3548 = vunpack.c.l.b16 %v2684
      %v3549 = vunpack.c.l.b16 %v2685
      %v3550 = vunpack.c.l.b16 %v2686
      %v3551 = vunpack.c.l.b16 %v2687
      %v3552 = vunpack.c.l.b16 %v2688
      %v3553 = vunpack.c.l.b16 %v2689
      %v3554 = vunpack.c.l.b16 %v2690
      %v3555 = vunpack.c.l.b16 %v2691
      %v3556 = vunpack.c.l.b16 %v2692
      %v3557 = vunpack.c.l.b16 %v2693
      %v3558 = vunpack.c.l.b16 %v2694
      %v3559 = vunpack.c.l.b16 %v2695
      %v3560 = vunpack.c.l.b16 %v2696
      %v3561 = vunpack.c.l.b16 %v2697
      %v3562 = vunpack.c.l.b16 %v2698
      %v3563 = vunpack.c.l.b16 %v2699
      %v3564 = vunpack.c.l.b16 %v2700
      %v3565 = vunpack.c.l.b16 %v2701
      %v3566 = vunpack.c.l.b16 %v2702
      %v3567 = vunpack.c.l.b16 %v2703
      %v3568 = vunpack.c.l.b16 %v2704
      %v3569 = vunpack.c.l.b16 %v2705
      %v3570 = vunpack.c.l.b16 %v2706
      %v3571 = vunpack.c.l.b16 %v2707
      %v3572 = vunpack.c.l.b16 %v2708
      %v3573 = vunpack.c.l.b16 %v2709
      %v3574 = vunpack.c.l.b16 %v2710
      %v3575 = vunpack.c.l.b16 %v2711
      %v3576 = vunpack.c.l.b16 %v2712
      %v3577 = vunpack.c.l.b16 %v2713
      %v3578 = vunpack.c.l.b16 %v2714
      %v3579 = vunpack.c.l.b16 %v2715
      %v3580 = vunpack.c.l.b16 %v2716
      %v3581 = vunpack.c.l.b16 %v2717
      %v3582 = vunpack.c.l.b16 %v2718
      %v3583 = vunpack.c.l.b16 %v2719
      %v3584 = vunpack.c.l.b16 %v2720
      %v3585 = vunpack.c.l.b16 %v2721
      %v3586 = vunpack.c.l.b16 %v2722
      %v3587 = vunpack.c.l.b16 %v2723
      %v3588 = vunpack.c.l.b16 %v2724
      %v3589 = vunpack.c.l.b16 %v2725
      %v3590 = vunpack.c.l.b16 %v2726
      %v3591 = vunpack.c.l.b16 %v2727
      %v3592 = vunpack.c.l.b16 %v2728
      %v3593 = vunpack.c.l.b16 %v2729
      %v3594 = vunpack.c.l.b16 %v2730
      %v3595 = vunpack.c.l.b16 %v2731
      %v3596 = vunpack.c.l.b16 %v2732
      %v3597 = vunpack.c.l.b16 %v2733
      %v3598 = vunpack.c.l.b16 %v2734
      %v3599 = vunpack.c.l.b16 %v2735
      %v3600 = vunpack.c.l.b16 %v2736
      %v3601 = vunpack.c.l.b16 %v2737
      %v3602 = vunpack.c.l.b16 %v2738
      %v3603 = vunpack.c.l.b16 %v2739
      %v3604 = vunpack.c.l.b16 %v2740
      %v3605 = vunpack.c.l.b16 %v2741
      %v3606 = vunpack.c.l.b16 %v2742
      %v3607 = vunpack.c.l.b16 %v2743
      %v3608 = vunpack.c.l.b16 %v2744
      %v3609 = vunpack.c.l.b16 %v2745
      %v3610 = vunpack.c.l.b16 %v2746
      %v3611 = vunpack.c.l.b16 %v2747
      %v3612 = vunpack.c.l.b16 %v2748
      %v3613 = vunpack.c.l.b16 %v2749
      %v3614 = vunpack.c.l.b16 %v2750
      %v3615 = vunpack.c.l.b16 %v2751
      %v3616 = vunpack.c.l.b16 %v2752
      %v3617 = vunpack.c.l.b16 %v2753
      %v3618 = vunpack.c.l.b16 %v2754
      %v3619 = vunpack.c.l.b16 %v2755
      %v3620 = vunpack.c.l.b16 %v2756
      %v3621 = vunpack.c.l.b16 %v2757
      %v3622 = vunpack.c.l.b16 %v2758
      %v3623 = vunpack.c.l.b16 %v2759
      %v3624 = vunpack.c.l.b16 %v2760
      %v3625 = vunpack.c.l.b16 %v2761
      %v3626 = vunpack.c.l.b16 %v2762
      %v3627 = vunpack.c.l.b16 %v2763
      %v3628 = vunpack.c.l.b16 %v2764
      %v3629 = vunpack.c.l.b16 %v2765
      %v3630 = vunpack.c.l.b16 %v2766
      %v3631 = vunpack.c.l.b16 %v2767
      %v3632 = vunpack.c.l.b16 %v2768
      %v3633 = vunpack.c.l.b16 %v2769
      %v3634 = vunpack.c.l.b16 %v2770
      %v3635 = vunpack.c.l.b16 %v2771
      %v3636 = vunpack.c.l.b16 %v2772
      %v3637 = vunpack.c.l.b16 %v2773
      %v3638 = vunpack.c.l.b16 %v2774
      %v3639 = vunpack.c.l.b16 %v2775
      %v3640 = vunpack.c.l.b16 %v2776
      %v3641 = vunpack.c.l.b16 %v2777
      %v3642 = vunpack.c.l.b16 %v2778
      %v3643 = vunpack.c.l.b16 %v2779
      %v3644 = vunpack.c.l.b16 %v2780
      %v3645 = vunpack.c.l.b16 %v2781
      %v3646 = vunpack.c.l.b16 %v2782
      %v3647 = vunpack.c.l.b16 %v2783
      %v3648 = vunpack.c.l.b16 %v2784
      %v3649 = vunpack.c.l.b16 %v2785
      %v3650 = vunpack.c.l.b16 %v2786
      %v3651 = vunpack.c.l.b16 %v2787
      %v3652 = vunpack.c.l.b16 %v2788
      %v3653 = vunpack.c.l.b16 %v2789
      %v3654 = vunpack.c.l.b16 %v2790
      %v3655 = vunpack.c.l.b16 %v2791
      %v3656 = vunpack.c.l.b16 %v2792
      %v3657 = vunpack.c.l.b16 %v2793
      %v3658 = vunpack.c.l.b16 %v2794
      %v3659 = vunpack.c.l.b16 %v2795
      %v3660 = vunpack.c.l.b16 %v2796
      %v3661 = vunpack.c.l.b16 %v2797
      %v3662 = vunpack.c.l.b16 %v2798
      %v3663 = vunpack.c.l.b16 %v2799
      %v3664 = vunpack.c.l.b16 %v2800
      %v3665 = vunpack.c.l.b16 %v2801
      %v3666 = vunpack.c.l.b16 %v2802
      %v3667 = vunpack.c.l.b16 %v2803
      %v3668 = vunpack.c.l.b16 %v2804
      %v3669 = vunpack.c.l.b16 %v2805
      %v3670 = vunpack.c.l.b16 %v2806
      %v3671 = vunpack.c.l.b16 %v2807
      %v3672 = vunpack.c.l.b16 %v2808
      %v3673 = vunpack.c.l.b16 %v2809
      %v3674 = vunpack.c.l.b16 %v2810
      %v3675 = vunpack.c.l.b16 %v2811
      %v3676 = vunpack.c.l.b16 %v2812
      %v3677 = vunpack.c.l.b16 %v2813
      %v3678 = vunpack.c.l.b16 %v2814
      %v3679 = vunpack.c.l.b16 %v2815
      %v3680 = vunpack.c.l.b16 %v2816
      %v3681 = vunpack.c.l.b16 %v2817
      %v3682 = vunpack.c.l.b16 %v2818
      %v3683 = vunpack.c.l.b16 %v2819
      %v3684 = vunpack.c.l.b16 %v2820
      %v3685 = vunpack.c.l.b16 %v2821
      %v3686 = vunpack.c.l.b16 %v2822
      %v3687 = vunpack.c.l.b16 %v2823
      %v3688 = vunpack.c.l.b16 %v2824
      %v3689 = vunpack.c.l.b16 %v2825
      %v3690 = vunpack.c.l.b16 %v2826
      %v3691 = vunpack.c.l.b16 %v2827
      %v3692 = vunpack.c.l.b16 %v2828
      %v3693 = vunpack.c.l.b16 %v2829
      %v3694 = vunpack.c.l.b16 %v2830
      %v3695 = vunpack.c.l.b16 %v2831
      %v3696 = vunpack.c.l.b16 %v2832
      %v3697 = vunpack.c.l.b16 %v2833
      %v3698 = vunpack.c.l.b16 %v2834
      %v3699 = vunpack.c.l.b16 %v2835
      %v3700 = vunpack.c.l.b16 %v2836
      %v3701 = vunpack.c.l.b16 %v2837
      %v3702 = vunpack.c.l.b16 %v2838
      %v3703 = vunpack.c.l.b16 %v2839
      %v3704 = vunpack.c.l.b16 %v2840
      %v3705 = vunpack.c.l.b16 %v2841
      %v3706 = vunpack.c.l.b16 %v2842
      %v3707 = vunpack.c.l.b16 %v2843
      %v3708 = vunpack.c.l.b16 %v2844
      %v3709 = vunpack.c.l.b16 %v2845
      %v3710 = vunpack.c.l.b16 %v2846
      %v3711 = vunpack.c.l.b16 %v2847
      %v3712 = vunpack.c.l.b16 %v2848
      %v3713 = vunpack.c.l.b16 %v2849
      %v3714 = vunpack.c.l.b16 %v2850
      %v3715 = vunpack.c.l.b16 %v2851
      %v3716 = vunpack.c.l.b16 %v2852
      %v3717 = vunpack.c.l.b16 %v2853
      %v3718 = vunpack.c.l.b16 %v2854
      %v3719 = vunpack.c.l.b16 %v2855
      %v3720 = vunpack.c.l.b16 %v2856
      %v3721 = vunpack.c.l.b16 %v2857
      %v3722 = vunpack.c.l.b16 %v2858
      %v3723 = vunpack.c.l.b16 %v2859
      %v3724 = vunpack.c.l.b16 %v2860
      %v3725 = vunpack.c.l.b16 %v2861
      %v3726 = vunpack.c.l.b16 %v2862
      %v3727 = vunpack.c.l.b16 %v2863
      %v3728 = vpack.c.b16 %v3297, %v3296
      %v3729 = vpack.c.b16 %v3299, %v3298
      %v3730 = vpack.c.b16 %v3301, %v3300
      %v3731 = vpack.c.b16 %v3303, %v3302
      %v3732 = vpack.c.b16 %v3305, %v3304
      %v3733 = vpack.c.b16 %v3307, %v3306
      %v3734 = vpack.c.b16 %v3309, %v3308
      %v3735 = vpack.c.b16 %v3311, %v3310
      %v3736 = vpack.c.b16 %v3313, %v3312
      %v3737 = vpack.c.b16 %v3315, %v3314
      %v3738 = vpack.c.b16 %v3317, %v3316
      %v3739 = vpack.c.b16 %v3319, %v3318
      %v3740 = vpack.c.b16 %v3321, %v3320
      %v3741 = vpack.c.b16 %v3323, %v3322
      %v3742 = vpack.c.b16 %v3325, %v3324
      %v3743 = vpack.c.b16 %v3327, %v3326
      %v3744 = vpack.c.b16 %v3329, %v3328
      %v3745 = vpack.c.b16 %v3331, %v3330
      %v3746 = vpack.c.b16 %v3333, %v3332
      %v3747 = vpack.c.b16 %v3335, %v3334
      %v3748 = vpack.c.b16 %v3337, %v3336
      %v3749 = vpack.c.b16 %v3339, %v3338
      %v3750 = vpack.c.b16 %v3341, %v3340
      %v3751 = vpack.c.b16 %v3343, %v3342
      %v3752 = vpack.c.b16 %v3345, %v3344
      %v3753 = vpack.c.b16 %v3347, %v3346
      %v3754 = vpack.c.b16 %v3349, %v3348
      %v3755 = vpack.c.b16 %v3351, %v3350
      %v3756 = vpack.c.b16 %v3353, %v3352
      %v3757 = vpack.c.b16 %v3355, %v3354
      %v3758 = vpack.c.b16 %v3357, %v3356
      %v3759 = vpack.c.b16 %v3359, %v3358
      %v3760 = vpack.c.b16 %v3361, %v3360
      %v3761 = vpack.c.b16 %v3363, %v3362
      %v3762 = vpack.c.b16 %v3365, %v3364
      %v3763 = vpack.c.b16 %v3367, %v3366
      %v3764 = vpack.c.b16 %v3369, %v3368
      %v3765 = vpack.c.b16 %v3371, %v3370
      %v3766 = vpack.c.b16 %v3373, %v3372
      %v3767 = vpack.c.b16 %v3375, %v3374
      %v3768 = vpack.c.b16 %v3377, %v3376
      %v3769 = vpack.c.b16 %v3379, %v3378
      %v3770 = vpack.c.b16 %v3381, %v3380
      %v3771 = vpack.c.b16 %v3383, %v3382
      %v3772 = vpack.c.b16 %v3385, %v3384
      %v3773 = vpack.c.b16 %v3387, %v3386
      %v3774 = vpack.c.b16 %v3389, %v3388
      %v3775 = vpack.c.b16 %v3391, %v3390
      %v3776 = vpack.c.b16 %v3393, %v3392
      %v3777 = vpack.c.b16 %v3395, %v3394
      %v3778 = vpack.c.b16 %v3397, %v3396
      %v3779 = vpack.c.b16 %v3399, %v3398
      %v3780 = vpack.c.b16 %v3401, %v3400
      %v3781 = vpack.c.b16 %v3403, %v3402
      %v3782 = vpack.c.b16 %v3405, %v3404
      %v3783 = vpack.c.b16 %v3407, %v3406
      %v3784 = vpack.c.b16 %v3409, %v3408
      %v3785 = vpack.c.b16 %v3411, %v3410
      %v3786 = vpack.c.b16 %v3413, %v3412
      %v3787 = vpack.c.b16 %v3415, %v3414
      %v3788 = vpack.c.b16 %v3417, %v3416
      %v3789 = vpack.c.b16 %v3419, %v3418
      %v3790 = vpack.c.b16 %v3421, %v3420
      %v3791 = vpack.c.b16 %v3423, %v3422
      %v3792 = vpack.c.b16 %v3425, %v3424
      %v3793 = vpack.c.b16 %v3427, %v3426
      %v3794 = vpack.c.b16 %v3429, %v3428
      %v3795 = vpack.c.b16 %v3431, %v3430
      %v3796 = vpack.c.b16 %v3433, %v3432
      %v3797 = vpack.c.b16 %v3435, %v3434
      %v3798 = vpack.c.b16 %v3437, %v3436
      %v3799 = vpack.c.b16 %v3439, %v3438
      %v3800 = vpack.c.b16 %v3441, %v3440
      %v3801 = vpack.c.b16 %v3443, %v3442
      %v3802 = vpack.c.b16 %v3445, %v3444
      %v3803 = vpack.c.b16 %v3447, %v3446
      %v3804 = vpack.c.b16 %v3449, %v3448
      %v3805 = vpack.c.b16 %v3451, %v3450
      %v3806 = vpack.c.b16 %v3453, %v3452
      %v3807 = vpack.c.b16 %v3455, %v3454
      %v3808 = vpack.c.b16 %v3457, %v3456
      %v3809 = vpack.c.b16 %v3459, %v3458
      %v3810 = vpack.c.b16 %v3461, %v3460
      %v3811 = vpack.c.b16 %v3463, %v3462
      %v3812 = vpack.c.b16 %v3465, %v3464
      %v3813 = vpack.c.b16 %v3467, %v3466
      %v3814 = vpack.c.b16 %v3469, %v3468
      %v3815 = vpack.c.b16 %v3471, %v3470
      %v3816 = vpack.c.b16 %v3473, %v3472
      %v3817 = vpack.c.b16 %v3475, %v3474
      %v3818 = vpack.c.b16 %v3477, %v3476
      %v3819 = vpack.c.b16 %v3479, %v3478
      %v3820 = vpack.c.b16 %v3481, %v3480
      %v3821 = vpack.c.b16 %v3483, %v3482
      %v3822 = vpack.c.b16 %v3485, %v3484
      %v3823 = vpack.c.b16 %v3487, %v3486
      %v3824 = vpack.c.b16 %v3489, %v3488
      %v3825 = vpack.c.b16 %v3491, %v3490
      %v3826 = vpack.c.b16 %v3493, %v3492
      %v3827 = vpack.c.b16 %v3495, %v3494
      %v3828 = vpack.c.b16 %v3497, %v3496
      %v3829 = vpack.c.b16 %v3499, %v3498
      %v3830 = vpack.c.b16 %v3501, %v3500
      %v3831 = vpack.c.b16 %v3503, %v3502
      %v3832 = vpack.c.b16 %v3505, %v3504
      %v3833 = vpack.c.b16 %v3507, %v3506
      %v3834 = vpack.c.b16 %v3509, %v3508
      %v3835 = vpack.c.b16 %v3511, %v3510
      %v3836 = vpack.c.b16 %v3513, %v3512
      %v3837 = vpack.c.b16 %v3515, %v3514
      %v3838 = vpack.c.b16 %v3517, %v3516
      %v3839 = vpack.c.b16 %v3519, %v3518
      %v3840 = vpack.c.b16 %v3521, %v3520
      %v3841 = vpack.c.b16 %v3523, %v3522
      %v3842 = vpack.c.b16 %v3525, %v3524
      %v3843 = vpack.c.b16 %v3527, %v3526
      %v3844 = vpack.c.b16 %v3529, %v3528
      %v3845 = vpack.c.b16 %v3531, %v3530
      %v3846 = vpack.c.b16 %v3533, %v3532
      %v3847 = vpack.c.b16 %v3535, %v3534
      %v3848 = vpack.c.b16 %v3537, %v3536
      %v3849 = vpack.c.b16 %v3539, %v3538
      %v3850 = vpack.c.b16 %v3541, %v3540
      %v3851 = vpack.c.b16 %v3543, %v3542
      %v3852 = vpack.c.b16 %v3545, %v3544
      %v3853 = vpack.c.b16 %v3547, %v3546
      %v3854 = vpack.c.b16 %v3549, %v3548
      %v3855 = vpack.c.b16 %v3551, %v3550
      %v3856 = vpack.c.b16 %v3553, %v3552
      %v3857 = vpack.c.b16 %v3555, %v3554
      %v3858 = vpack.c.b16 %v3557, %v3556
      %v3859 = vpack.c.b16 %v3559, %v3558
      %v3860 = vpack.c.b16 %v3561, %v3560
      %v3861 = vpack.c.b16 %v3563, %v3562
      %v3862 = vpack.c.b16 %v3565, %v3564
      %v3863 = vpack.c.b16 %v3567, %v3566
      %v3864 = vpack.c.b16 %v3569, %v3568
      %v3865 = vpack.c.b16 %v3571, %v3570
      %v3866 = vpack.c.b16 %v3573, %v3572
      %v3867 = vpack.c.b16 %v3575, %v3574
      %v3868 = vpack.c.b16 %v3577, %v3576
      %v3869 = vpack.c.b16 %v3579, %v3578
      %v3870 = vpack.c.b16 %v3581, %v3580
      %v3871 = vpack.c.b16 %v3583, %v3582
      %v3872 = vpack.c.b16 %v3585, %v3584
      %v3873 = vpack.c.b16 %v3587, %v3586
      %v3874 = vpack.c.b16 %v3589, %v3588
      %v3875 = vpack.c.b16 %v3591, %v3590
      %v3876 = vpack.c.b16 %v3593, %v3592
      %v3877 = vpack.c.b16 %v3595, %v3594
      %v3878 = vpack.c.b16 %v3597, %v3596
      %v3879 = vpack.c.b16 %v3599, %v3598
      %v3880 = vpack.c.b16 %v3601, %v3600
      %v3881 = vpack.c.b16 %v3603, %v3602
      %v3882 = vpack.c.b16 %v3605, %v3604
      %v3883 = vpack.c.b16 %v3607, %v3606
      %v3884 = vpack.c.b16 %v3609, %v3608
      %v3885 = vpack.c.b16 %v3611, %v3610
      %v3886 = vpack.c.b16 %v3613, %v3612
      %v3887 = vpack.c.b16 %v3615, %v3614
      %v3888 = vpack.c.b16 %v3617, %v3616
      %v3889 = vpack.c.b16 %v3619, %v3618
      %v3890 = vpack.c.b16 %v3621, %v3620
      %v3891 = vpack.c.b16 %v3623, %v3622
      %v3892 = vpack.c.b16 %v3625, %v3624
      %v3893 = vpack.c.b16 %v3627, %v3626
      %v3894 = vpack.c.b16 %v3629, %v3628
      %v3895 = vpack.c.b16 %v3631, %v3630
      %v3896 = vpack.c.b16 %v3633, %v3632
      %v3897 = vpack.c.b16 %v3635, %v3634
      %v3898 = vpack.c.b16 %v3637, %v3636
      %v3899 = vpack.c.b16 %v3639, %v3638
      %v3900 = vpack.c.b16 %v3641, %v3640
      %v3901 = vpack.c.b16 %v3643, %v3642
      %v3902 = vpack.c.b16 %v3645, %v3644
      %v3903 = vpack.c.b16 %v3647, %v3646
      %v3904 = vpack.c.b16 %v3649, %v3648
      %v3905 = vpack.c.b16 %v3651, %v3650
      %v3906 = vpack.c.b16 %v3653, %v3652
      %v3907 = vpack.c.b16 %v3655, %v3654
      %v3908 = vpack.c.b16 %v3657, %v3656
      %v3909 = vpack.c.b16 %v3659, %v3658
      %v3910 = vpack.c.b16 %v3661, %v3660
      %v3911 = vpack.c.b16 %v3663, %v3662
      %v3912 = vpack.c.b16 %v3665, %v3664
      %v3913 = vpack.c.b16 %v3667, %v3666
      %v3914 = vpack.c.b16 %v3669, %v3668
      %v3915 = vpack.c.b16 %v3671, %v3670
      %v3916 = vpack.c.b16 %v3673, %v3672
      %v3917 = vpack.c.b16 %v3675, %v3674
      %v3918 = vpack.c.b16 %v3677, %v3676
      %v3919 = vpack.c.b16 %v3679, %v3678
      %v3920 = vpack.c.b16 %v3681, %v3680
      %v3921 = vpack.c.b16 %v3683, %v3682
      %v3922 = vpack.c.b16 %v3685, %v3684
      %v3923 = vpack.c.b16 %v3687, %v3686
      %v3924 = vpack.c.b16 %v3689, %v3688
      %v3925 = vpack.c.b16 %v3691, %v3690
      %v3926 = vpack.c.b16 %v3693, %v3692
      %v3927 = vpack.c.b16 %v3695, %v3694
      %v3928 = vpack.c.b16 %v3697, %v3696
      %v3929 = vpack.c.b16 %v3699, %v3698
      %v3930 = vpack.c.b16 %v3701, %v3700
      %v3931 = vpack.c.b16 %v3703, %v3702
      %v3932 = vpack.c.b16 %v3705, %v3704
      %v3933 = vpack.c.b16 %v3707, %v3706
      %v3934 = vpack.c.b16 %v3709, %v3708
      %v3935 = vpack.c.b16 %v3711, %v3710
      %v3936 = vpack.c.b16 %v3713, %v3712
      %v3937 = vpack.c.b16 %v3715, %v3714
      %v3938 = vpack.c.b16 %v3717, %v3716
      %v3939 = vpack.c.b16 %v3719, %v3718
      %v3940 = vpack.c.b16 %v3721, %v3720
      %v3941 = vpack.c.b16 %v3723, %v3722
      %v3942 = vpack.c.b16 %v3725, %v3724
      %v3943 = vpack.c.b16 %v3727, %v3726
      %4160 = vmatprep.subr.bf16.mxu0 0
      %4161 = vmatpush1.bf16.msra.mxu0 %v3728
      %4162 = vmatprep.subr.bf16.mxu0 0
      %4163 = vmatpush1.bf16.msra.mxu0 %v3729
      %4164 = vmatprep.subr.bf16.mxu0 0
      %4165 = vmatpush1.bf16.msra.mxu0 %v3730
      %4166 = vmatprep.subr.bf16.mxu0 0
      %4167 = vmatpush1.bf16.msra.mxu0 %v3731
      %4168 = vmatprep.subr.bf16.mxu0 0
      %4169 = vmatpush1.bf16.msra.mxu0 %v3732
      %4170 = vmatprep.subr.bf16.mxu0 0
      %4171 = vmatpush1.bf16.msra.mxu0 %v3733
      %4172 = vmatprep.subr.bf16.mxu0 0
      %4173 = vmatpush1.bf16.msra.mxu0 %v3734
      %4174 = vmatprep.subr.bf16.mxu0 0
      %4175 = vmatpush1.bf16.msra.mxu0 %v3735
      %4176 = vmatprep.subr.bf16.mxu0 0
      %4177 = vmatpush1.bf16.msra.mxu0 %v3736
      %4178 = vmatprep.subr.bf16.mxu0 0
      %4179 = vmatpush1.bf16.msra.mxu0 %v3737
      %4180 = vmatprep.subr.bf16.mxu0 0
      %4181 = vmatpush1.bf16.msra.mxu0 %v3738
      %4182 = vmatprep.subr.bf16.mxu0 0
      %4183 = vmatpush1.bf16.msra.mxu0 %v3739
      %4184 = vmatprep.subr.bf16.mxu0 0
      %4185 = vmatpush1.bf16.msra.mxu0 %v3740
      %4186 = vmatprep.subr.bf16.mxu0 0
      %4187 = vmatpush1.bf16.msra.mxu0 %v3741
      %4188 = vmatprep.subr.bf16.mxu0 0
      %4189 = vmatpush1.bf16.msra.mxu0 %v3742
      %4190 = vmatprep.subr.bf16.mxu0 0
      %4191 = vmatpush1.bf16.msra.mxu0 %v3743
      %4192 = vmatprep.mubr.bf16.mxu0 %v2298
      %4193 = vmatmul.mubr.bf16.gmra.mrb[0].mxu0 %v2297
      %v4194 = vpop.f32.mrb[0].mxu0
      %v4195 = vadd.f32 0.0, %v4194
      %v4196 = vpop.f32.mrb[0].mxu0
      %v4197 = vpop.f32.mrb[0].mxu0
      %v4198 = vadd.f32 0.0, %v4197
      %v4199 = vpop.f32.mrb[0].mxu0
      %4200 = vmatprep.mubr.bf16.mxu0 %v2325
      %4201 = vmatmul.mubr.bf16.gmra.mrb[0].mxu0 %v2324
      %v4202 = vpop.f32.mrb[0].mxu0
      %v4203 = vadd.f32 0.0, %v4202
      %v4204 = vpop.f32.mrb[0].mxu0
      %v4205 = vpop.f32.mrb[0].mxu0
      %v4206 = vadd.f32 0.0, %v4205
      %v4207 = vpop.f32.mrb[0].mxu0
      %4208 = vmatprep.mubr.bf16.mxu0 %v2352
      %4209 = vmatmul.mubr.bf16.gmra.mrb[0].mxu0 %v2351
      %v4210 = vpop.f32.mrb[0].mxu0
      %v4211 = vadd.f32 0.0, %v4210
      %v4212 = vpop.f32.mrb[0].mxu0
      %v4213 = vpop.f32.mrb[0].mxu0
      %v4214 = vadd.f32 0.0, %v4213
      %v4215 = vpop.f32.mrb[0].mxu0
      %4216 = vmatprep.mubr.bf16.mxu0 %v2379
      %4217 = vmatmul.mubr.bf16.gmra.mrb[0].mxu0 %v2378
      %v4218 = vpop.f32.mrb[0].mxu0
      %v4219 = vadd.f32 0.0, %v4218
      %v4220 = vpop.f32.mrb[0].mxu0
      %v4221 = vpop.f32.mrb[0].mxu0
      %v4222 = vadd.f32 0.0, %v4221
      %v4223 = vpop.f32.mrb[0].mxu0
      %4224 = vmatprep.mubr.bf16.mxu0 %v2406
      %4225 = vmatmul.mubr.bf16.gmra.mrb[0].mxu0 %v2405
      %v4226 = vpop.f32.mrb[0].mxu0
      %v4227 = vadd.f32 0.0, %v4226
      %v4228 = vpop.f32.mrb[0].mxu0
      %v4229 = vpop.f32.mrb[0].mxu0
      %v4230 = vadd.f32 0.0, %v4229
      %v4231 = vpop.f32.mrb[0].mxu0
      %4232 = vdwg.mxu0
      %4233 = vmatprep.subr.bf16.mxu0 0
      %4234 = vmatpush1.bf16.msra.mxu0 %v3744
      %4235 = vmatprep.subr.bf16.mxu0 0
      %4236 = vmatpush1.bf16.msra.mxu0 %v3745
      %4237 = vmatprep.subr.bf16.mxu0 0
      %4238 = vmatpush1.bf16.msra.mxu0 %v3746
      %4239 = vmatprep.subr.bf16.mxu0 0
      %4240 = vmatpush1.bf16.msra.mxu0 %v3747
      %4241 = vmatprep.subr.bf16.mxu0 0
      %4242 = vmatpush1.bf16.msra.mxu0 %v3748
      %4243 = vmatprep.subr.bf16.mxu0 0
      %4244 = vmatpush1.bf16.msra.mxu0 %v3749
      %4245 = vmatprep.subr.bf16.mxu0 0
      %4246 = vmatpush1.bf16.msra.mxu0 %v3750
      %4247 = vmatprep.subr.bf16.mxu0 0
      %4248 = vmatpush1.bf16.msra.mxu0 %v3751
      %4249 = vmatprep.subr.bf16.mxu0 0
      %4250 = vmatpush1.bf16.msra.mxu0 %v3752
      %4251 = vmatprep.subr.bf16.mxu0 0
      %4252 = vmatpush1.bf16.msra.mxu0 %v3753
      %4253 = vmatprep.subr.bf16.mxu0 0
      %4254 = vmatpush1.bf16.msra.mxu0 %v3754
      %4255 = vmatprep.subr.bf16.mxu0 0
      %4256 = vmatpush1.bf16.msra.mxu0 %v3755
      %4257 = vmatprep.subr.bf16.mxu0 0
      %4258 = vmatpush1.bf16.msra.mxu0 %v3756
      %4259 = vmatprep.subr.bf16.mxu0 0
      %4260 = vmatpush1.bf16.msra.mxu0 %v3757
      %4261 = vmatprep.subr.bf16.mxu0 0
      %4262 = vmatpush1.bf16.msra.mxu0 %v3758
      %4263 = vmatprep.subr.bf16.mxu0 0
      %4264 = vmatpush1.bf16.msra.mxu0 %v3759
      %4265 = vmatprep.mubr.bf16.mxu0 %v2300
      %4266 = vmatmul.mubr.bf16.gmra.mrb[0].mxu0 %v2299
      %v4267 = vpop.f32.mrb[0].mxu0
      %v4268 = vadd.f32 %v4195, %v4267
      %v4269 = vpop.f32.mrb[0].mxu0
      %v4270 = vpop.f32.mrb[0].mxu0
      %v4271 = vadd.f32 %v4198, %v4270
      %v4272 = vpop.f32.mrb[0].mxu0
      %4273 = vmatprep.mubr.bf16.mxu0 %v2327
      %4274 = vmatmul.mubr.bf16.gmra.mrb[0].mxu0 %v2326
      %v4275 = vpop.f32.mrb[0].mxu0
      %v4276 = vadd.f32 %v4203, %v4275
      %v4277 = vpop.f32.mrb[0].mxu0
      %v4278 = vpop.f32.mrb[0].mxu0
      %v4279 = vadd.f32 %v4206, %v4278
      %v4280 = vpop.f32.mrb[0].mxu0
      %4281 = vmatprep.mubr.bf16.mxu0 %v2354
      %4282 = vmatmul.mubr.bf16.gmra.mrb[0].mxu0 %v2353
      %v4283 = vpop.f32.mrb[0].mxu0
      %v4284 = vadd.f32 %v4211, %v4283
      %v4285 = vpop.f32.mrb[0].mxu0
      %v4286 = vpop.f32.mrb[0].mxu0
      %v4287 = vadd.f32 %v4214, %v4286
      %v4288 = vpop.f32.mrb[0].mxu0
      %4289 = vmatprep.mubr.bf16.mxu0 %v2381
      %4290 = vmatmul.mubr.bf16.gmra.mrb[0].mxu0 %v2380
      %v4291 = vpop.f32.mrb[0].mxu0
      %v4292 = vadd.f32 %v4219, %v4291
      %v4293 = vpop.f32.mrb[0].mxu0
      %v4294 = vpop.f32.mrb[0].mxu0
      %v4295 = vadd.f32 %v4222, %v4294
      %v4296 = vpop.f32.mrb[0].mxu0
      %4297 = vmatprep.mubr.bf16.mxu0 %v2408
      %4298 = vmatmul.mubr.bf16.gmra.mrb[0].mxu0 %v2407
      %v4299 = vpop.f32.mrb[0].mxu0
      %v4300 = vadd.f32 %v4227, %v4299
      %v4301 = vpop.f32.mrb[0].mxu0
      %v4302 = vpop.f32.mrb[0].mxu0
      %v4303 = vadd.f32 %v4230, %v4302
      %v4304 = vpop.f32.mrb[0].mxu0
      %4305 = vdwg.mxu0
      %4306 = vmatprep.subr.bf16.mxu0 0
      %4307 = vmatpush1.bf16.msra.mxu0 %v3760
      %4308 = vmatprep.subr.bf16.mxu0 0
      %4309 = vmatpush1.bf16.msra.mxu0 %v3761
      %4310 = vmatprep.subr.bf16.mxu0 0
      %4311 = vmatpush1.bf16.msra.mxu0 %v3762
      %4312 = vmatprep.subr.bf16.mxu0 0
      %4313 = vmatpush1.bf16.msra.mxu0 %v3763
      %4314 = vmatprep.subr.bf16.mxu0 0
      %4315 = vmatpush1.bf16.msra.mxu0 %v3764
      %4316 = vmatprep.subr.bf16.mxu0 0
      %4317 = vmatpush1.bf16.msra.mxu0 %v3765
      %4318 = vmatprep.subr.bf16.mxu0 0
      %4319 = vmatpush1.bf16.msra.mxu0 %v3766
      %4320 = vmatprep.subr.bf16.mxu0 0
      %4321 = vmatpush1.bf16.msra.mxu0 %v3767
      %4322 = vmatprep.subr.bf16.mxu0 0
      %4323 = vmatpush1.bf16.msra.mxu0 %v3768
      %4324 = vmatprep.subr.bf16.mxu0 0
      %4325 = vmatpush1.bf16.msra.mxu0 %v3769
      %4326 = vmatprep.subr.bf16.mxu0 0
      %4327 = vmatpush1.bf16.msra.mxu0 %v3770
      %4328 = vmatprep.subr.bf16.mxu0 0
      %4329 = vmatpush1.bf16.msra.mxu0 %v3771
      %4330 = vmatprep.subr.bf16.mxu0 0
      %4331 = vmatpush1.bf16.msra.mxu0 %v3772
      %4332 = vmatprep.subr.bf16.mxu0 0
      %4333 = vmatpush1.bf16.msra.mxu0 %v3773
      %4334 = vmatprep.subr.bf16.mxu0 0
      %4335 = vmatpush1.bf16.msra.mxu0 %v3774
      %4336 = vmatprep.subr.bf16.mxu0 0
      %4337 = vmatpush1.bf16.msra.mxu0 %v3775
      %4338 = vmatprep.mubr.bf16.mxu0 %v2302
      %4339 = vmatmul.mubr.bf16.gmra.mrb[0].mxu0 %v2301
      %v4340 = vpop.f32.mrb[0].mxu0
      %v4341 = vadd.f32 %v4268, %v4340
      %v4342 = vpop.f32.mrb[0].mxu0
      %v4343 = vpop.f32.mrb[0].mxu0
      %v4344 = vadd.f32 %v4271, %v4343
      %v4345 = vpop.f32.mrb[0].mxu0
      %4346 = vmatprep.mubr.bf16.mxu0 %v2329
      %4347 = vmatmul.mubr.bf16.gmra.mrb[0].mxu0 %v2328
      %v4348 = vpop.f32.mrb[0].mxu0
      %v4349 = vadd.f32 %v4276, %v4348
      %v4350 = vpop.f32.mrb[0].mxu0
      %v4351 = vpop.f32.mrb[0].mxu0
      %v4352 = vadd.f32 %v4279, %v4351
      %v4353 = vpop.f32.mrb[0].mxu0
      %4354 = vmatprep.mubr.bf16.mxu0 %v2356
      %4355 = vmatmul.mubr.bf16.gmra.mrb[0].mxu0 %v2355
      %v4356 = vpop.f32.mrb[0].mxu0
      %v4357 = vadd.f32 %v4284, %v4356
      %v4358 = vpop.f32.mrb[0].mxu0
      %v4359 = vpop.f32.mrb[0].mxu0
      %v4360 = vadd.f32 %v4287, %v4359
      %v4361 = vpop.f32.mrb[0].mxu0
      %4362 = vmatprep.mubr.bf16.mxu0 %v2383
      %4363 = vmatmul.mubr.bf16.gmra.mrb[0].mxu0 %v2382
      %v4364 = vpop.f32.mrb[0].mxu0
      %v4365 = vadd.f32 %v4292, %v4364
      %v4366 = vpop.f32.mrb[0].mxu0
      %v4367 = vpop.f32.mrb[0].mxu0
      %v4368 = vadd.f32 %v4295, %v4367
      %v4369 = vpop.f32.mrb[0].mxu0
      %4370 = vmatprep.mubr.bf16.mxu0 %v2410
      %4371 = vmatmul.mubr.bf16.gmra.mrb[0].mxu0 %v2409
      %v4372 = vpop.f32.mrb[0].mxu0
      %v4373 = vadd.f32 %v4300, %v4372
      %v4374 = vpop.f32.mrb[0].mxu0
      %v4375 = vpop.f32.mrb[0].mxu0
      %v4376 = vadd.f32 %v4303, %v4375
      %v4377 = vpop.f32.mrb[0].mxu0
      %4378 = vdwg.mxu0
      %4379 = vmatprep.subr.bf16.mxu0 0
      %4380 = vmatpush1.bf16.msra.mxu0 %v3776
      %4381 = vmatprep.subr.bf16.mxu0 0
      %4382 = vmatpush1.bf16.msra.mxu0 %v3777
      %4383 = vmatprep.subr.bf16.mxu0 0
      %4384 = vmatpush1.bf16.msra.mxu0 %v3778
      %4385 = vmatprep.subr.bf16.mxu0 0
      %4386 = vmatpush1.bf16.msra.mxu0 %v3779
      %4387 = vmatprep.subr.bf16.mxu0 0
      %4388 = vmatpush1.bf16.msra.mxu0 %v3780
      %4389 = vmatprep.subr.bf16.mxu0 0
      %4390 = vmatpush1.bf16.msra.mxu0 %v3781
      %4391 = vmatprep.subr.bf16.mxu0 0
      %4392 = vmatpush1.bf16.msra.mxu0 %v3782
      %4393 = vmatprep.subr.bf16.mxu0 0
      %4394 = vmatpush1.bf16.msra.mxu0 %v3783
      %4395 = vmatprep.subr.bf16.mxu0 0
      %4396 = vmatpush1.bf16.msra.mxu0 %v3784
      %4397 = vmatprep.subr.bf16.mxu0 0
      %4398 = vmatpush1.bf16.msra.mxu0 %v3785
      %4399 = vmatprep.subr.bf16.mxu0 0
      %4400 = vmatpush1.bf16.msra.mxu0 %v3786
      %4401 = vmatprep.subr.bf16.mxu0 0
      %4402 = vmatpush1.bf16.msra.mxu0 %v3787
      %4403 = vmatprep.subr.bf16.mxu0 0
      %4404 = vmatpush1.bf16.msra.mxu0 %v3788
      %4405 = vmatprep.subr.bf16.mxu0 0
      %4406 = vmatpush1.bf16.msra.mxu0 %v3789
      %4407 = vmatprep.subr.bf16.mxu0 0
      %4408 = vmatpush1.bf16.msra.mxu0 %v3790
      %4409 = vmatprep.subr.bf16.mxu0 0
      %4410 = vmatpush1.bf16.msra.mxu0 %v3791
      %4411 = vmatprep.mubr.bf16.mxu0 %v2304
      %4412 = vmatmul.mubr.bf16.gmra.mrb[0].mxu0 %v2303
      %v4413 = vpop.f32.mrb[0].mxu0
      %v4414 = vadd.f32 %v4341, %v4413
      %v4415 = vpop.f32.mrb[0].mxu0
      %v4416 = vpop.f32.mrb[0].mxu0
      %v4417 = vadd.f32 %v4344, %v4416
      %v4418 = vpop.f32.mrb[0].mxu0
      %4419 = vmatprep.mubr.bf16.mxu0 %v2331
      %4420 = vmatmul.mubr.bf16.gmra.mrb[0].mxu0 %v2330
      %v4421 = vpop.f32.mrb[0].mxu0
      %v4422 = vadd.f32 %v4349, %v4421
      %v4423 = vpop.f32.mrb[0].mxu0
      %v4424 = vpop.f32.mrb[0].mxu0
      %v4425 = vadd.f32 %v4352, %v4424
      %v4426 = vpop.f32.mrb[0].mxu0
      %4427 = vmatprep.mubr.bf16.mxu0 %v2358
      %4428 = vmatmul.mubr.bf16.gmra.mrb[0].mxu0 %v2357
      %v4429 = vpop.f32.mrb[0].mxu0
      %v4430 = vadd.f32 %v4357, %v4429
      %v4431 = vpop.f32.mrb[0].mxu0
      %v4432 = vpop.f32.mrb[0].mxu0
      %v4433 = vadd.f32 %v4360, %v4432
      %v4434 = vpop.f32.mrb[0].mxu0
      %4435 = vmatprep.mubr.bf16.mxu0 %v2385
      %4436 = vmatmul.mubr.bf16.gmra.mrb[0].mxu0 %v2384
      %v4437 = vpop.f32.mrb[0].mxu0
      %v4438 = vadd.f32 %v4365, %v4437
      %v4439 = vpop.f32.mrb[0].mxu0
      %v4440 = vpop.f32.mrb[0].mxu0
      %v4441 = vadd.f32 %v4368, %v4440
      %v4442 = vpop.f32.mrb[0].mxu0
      %4443 = vmatprep.mubr.bf16.mxu0 %v2412
      %4444 = vmatmul.mubr.bf16.gmra.mrb[0].mxu0 %v2411
      %v4445 = vpop.f32.mrb[0].mxu0
      %v4446 = vadd.f32 %v4373, %v4445
      %v4447 = vpop.f32.mrb[0].mxu0
      %v4448 = vpop.f32.mrb[0].mxu0
      %v4449 = vadd.f32 %v4376, %v4448
      %v4450 = vpop.f32.mrb[0].mxu0
      %4451 = vdwg.mxu0
      %4452 = vmatprep.subr.bf16.mxu0 0
      %4453 = vmatpush1.bf16.msra.mxu0 %v3792
      %4454 = vmatprep.subr.bf16.mxu0 0
      %4455 = vmatpush1.bf16.msra.mxu0 %v3793
      %4456 = vmatprep.subr.bf16.mxu0 0
      %4457 = vmatpush1.bf16.msra.mxu0 %v3794
      %4458 = vmatprep.subr.bf16.mxu0 0
      %4459 = vmatpush1.bf16.msra.mxu0 %v3795
      %4460 = vmatprep.subr.bf16.mxu0 0
      %4461 = vmatpush1.bf16.msra.mxu0 %v3796
      %4462 = vmatprep.subr.bf16.mxu0 0
      %4463 = vmatpush1.bf16.msra.mxu0 %v3797
      %4464 = vmatprep.subr.bf16.mxu0 0
      %4465 = vmatpush1.bf16.msra.mxu0 %v3798
      %4466 = vmatprep.subr.bf16.mxu0 0
      %4467 = vmatpush1.bf16.msra.mxu0 %v3799
      %4468 = vmatprep.subr.bf16.mxu0 0
      %4469 = vmatpush1.bf16.msra.mxu0 %v3800
      %4470 = vmatprep.subr.bf16.mxu0 0
      %4471 = vmatpush1.bf16.msra.mxu0 %v3801
      %4472 = vmatprep.subr.bf16.mxu0 0
      %4473 = vmatpush1.bf16.msra.mxu0 %v3802
      %4474 = vmatprep.subr.bf16.mxu0 0
      %4475 = vmatpush1.bf16.msra.mxu0 %v3803
      %4476 = vmatprep.subr.bf16.mxu0 0
      %4477 = vmatpush1.bf16.msra.mxu0 %v3804
      %4478 = vmatprep.subr.bf16.mxu0 0
      %4479 = vmatpush1.bf16.msra.mxu0 %v3805
      %4480 = vmatprep.subr.bf16.mxu0 0
      %4481 = vmatpush1.bf16.msra.mxu0 %v3806
      %4482 = vmatprep.subr.bf16.mxu0 0
      %4483 = vmatpush1.bf16.msra.mxu0 %v3807
      %4484 = vmatprep.mubr.bf16.mxu0 %v2306
      %4485 = vmatmul.mubr.bf16.gmra.mrb[0].mxu0 %v2305
      %v4486 = vpop.f32.mrb[0].mxu0
      %v4487 = vadd.f32 %v4414, %v4486
      %v4488 = vpop.f32.mrb[0].mxu0
      %v4489 = vpop.f32.mrb[0].mxu0
      %v4490 = vadd.f32 %v4417, %v4489
      %v4491 = vpop.f32.mrb[0].mxu0
      %4492 = vmatprep.mubr.bf16.mxu0 %v2333
      %4493 = vmatmul.mubr.bf16.gmra.mrb[0].mxu0 %v2332
      %v4494 = vpop.f32.mrb[0].mxu0
      %v4495 = vadd.f32 %v4422, %v4494
      %v4496 = vpop.f32.mrb[0].mxu0
      %v4497 = vpop.f32.mrb[0].mxu0
      %v4498 = vadd.f32 %v4425, %v4497
      %v4499 = vpop.f32.mrb[0].mxu0
      %4500 = vmatprep.mubr.bf16.mxu0 %v2360
      %4501 = vmatmul.mubr.bf16.gmra.mrb[0].mxu0 %v2359
      %v4502 = vpop.f32.mrb[0].mxu0
      %v4503 = vadd.f32 %v4430, %v4502
      %v4504 = vpop.f32.mrb[0].mxu0
      %v4505 = vpop.f32.mrb[0].mxu0
      %v4506 = vadd.f32 %v4433, %v4505
      %v4507 = vpop.f32.mrb[0].mxu0
      %4508 = vmatprep.mubr.bf16.mxu0 %v2387
      %4509 = vmatmul.mubr.bf16.gmra.mrb[0].mxu0 %v2386
      %v4510 = vpop.f32.mrb[0].mxu0
      %v4511 = vadd.f32 %v4438, %v4510
      %v4512 = vpop.f32.mrb[0].mxu0
      %v4513 = vpop.f32.mrb[0].mxu0
      %v4514 = vadd.f32 %v4441, %v4513
      %v4515 = vpop.f32.mrb[0].mxu0
      %4516 = vmatprep.mubr.bf16.mxu0 %v2414
      %4517 = vmatmul.mubr.bf16.gmra.mrb[0].mxu0 %v2413
      %v4518 = vpop.f32.mrb[0].mxu0
      %v4519 = vadd.f32 %v4446, %v4518
      %v4520 = vpop.f32.mrb[0].mxu0
      %v4521 = vpop.f32.mrb[0].mxu0
      %v4522 = vadd.f32 %v4449, %v4521
      %v4523 = vpop.f32.mrb[0].mxu0
      %4524 = vdwg.mxu0
      %4525 = vmatprep.subr.bf16.mxu0 0
      %4526 = vmatpush1.bf16.msra.mxu0 %v3808
      %4527 = vmatprep.subr.bf16.mxu0 0
      %4528 = vmatpush1.bf16.msra.mxu0 %v3809
      %4529 = vmatprep.subr.bf16.mxu0 0
      %4530 = vmatpush1.bf16.msra.mxu0 %v3810
      %4531 = vmatprep.subr.bf16.mxu0 0
      %4532 = vmatpush1.bf16.msra.mxu0 %v3811
      %4533 = vmatprep.subr.bf16.mxu0 0
      %4534 = vmatpush1.bf16.msra.mxu0 %v3812
      %4535 = vmatprep.subr.bf16.mxu0 0
      %4536 = vmatpush1.bf16.msra.mxu0 %v3813
      %4537 = vmatprep.subr.bf16.mxu0 0
      %4538 = vmatpush1.bf16.msra.mxu0 %v3814
      %4539 = vmatprep.subr.bf16.mxu0 0
      %4540 = vmatpush1.bf16.msra.mxu0 %v3815
      %4541 = vmatprep.subr.bf16.mxu0 0
      %4542 = vmatpush1.bf16.msra.mxu0 %v3816
      %4543 = vmatprep.subr.bf16.mxu0 0
      %4544 = vmatpush1.bf16.msra.mxu0 %v3817
      %4545 = vmatprep.subr.bf16.mxu0 0
      %4546 = vmatpush1.bf16.msra.mxu0 %v3818
      %4547 = vmatprep.subr.bf16.mxu0 0
      %4548 = vmatpush1.bf16.msra.mxu0 %v3819
      %4549 = vmatprep.subr.bf16.mxu0 0
      %4550 = vmatpush1.bf16.msra.mxu0 %v3820
      %4551 = vmatprep.subr.bf16.mxu0 0
      %4552 = vmatpush1.bf16.msra.mxu0 %v3821
      %4553 = vmatprep.subr.bf16.mxu0 0
      %4554 = vmatpush1.bf16.msra.mxu0 %v3822
      %4555 = vmatprep.subr.bf16.mxu0 0
      %4556 = vmatpush1.bf16.msra.mxu0 %v3823
      %4557 = vmatprep.mubr.bf16.mxu0 %v2308
      %4558 = vmatmul.mubr.bf16.gmra.mrb[0].mxu0 %v2307
      %v4559 = vpop.f32.mrb[0].mxu0
      %v4560 = vadd.f32 %v4487, %v4559
      %v4561 = vpop.f32.mrb[0].mxu0
      %v4562 = vpop.f32.mrb[0].mxu0
      %v4563 = vadd.f32 %v4490, %v4562
      %v4564 = vpop.f32.mrb[0].mxu0
      %4565 = vmatprep.mubr.bf16.mxu0 %v2335
      %4566 = vmatmul.mubr.bf16.gmra.mrb[0].mxu0 %v2334
      %v4567 = vpop.f32.mrb[0].mxu0
      %v4568 = vadd.f32 %v4495, %v4567
      %v4569 = vpop.f32.mrb[0].mxu0
      %v4570 = vpop.f32.mrb[0].mxu0
      %v4571 = vadd.f32 %v4498, %v4570
      %v4572 = vpop.f32.mrb[0].mxu0
      %4573 = vmatprep.mubr.bf16.mxu0 %v2362
      %4574 = vmatmul.mubr.bf16.gmra.mrb[0].mxu0 %v2361
      %v4575 = vpop.f32.mrb[0].mxu0
      %v4576 = vadd.f32 %v4503, %v4575
      %v4577 = vpop.f32.mrb[0].mxu0
      %v4578 = vpop.f32.mrb[0].mxu0
      %v4579 = vadd.f32 %v4506, %v4578
      %v4580 = vpop.f32.mrb[0].mxu0
      %4581 = vmatprep.mubr.bf16.mxu0 %v2389
      %4582 = vmatmul.mubr.bf16.gmra.mrb[0].mxu0 %v2388
      %v4583 = vpop.f32.mrb[0].mxu0
      %v4584 = vadd.f32 %v4511, %v4583
      %v4585 = vpop.f32.mrb[0].mxu0
      %v4586 = vpop.f32.mrb[0].mxu0
      %v4587 = vadd.f32 %v4514, %v4586
      %v4588 = vpop.f32.mrb[0].mxu0
      %4589 = vmatprep.mubr.bf16.mxu0 %v2416
      %4590 = vmatmul.mubr.bf16.gmra.mrb[0].mxu0 %v2415
      %v4591 = vpop.f32.mrb[0].mxu0
      %v4592 = vadd.f32 %v4519, %v4591
      %v4593 = vpop.f32.mrb[0].mxu0
      %v4594 = vpop.f32.mrb[0].mxu0
      %v4595 = vadd.f32 %v4522, %v4594
      %v4596 = vpop.f32.mrb[0].mxu0
      %4597 = vdwg.mxu0
      %4598 = vmatprep.subr.bf16.mxu0 0
      %4599 = vmatpush1.bf16.msra.mxu0 %v3824
      %4600 = vmatprep.subr.bf16.mxu0 0
      %4601 = vmatpush1.bf16.msra.mxu0 %v3825
      %4602 = vmatprep.subr.bf16.mxu0 0
      %4603 = vmatpush1.bf16.msra.mxu0 %v3826
      %4604 = vmatprep.subr.bf16.mxu0 0
      %4605 = vmatpush1.bf16.msra.mxu0 %v3827
      %4606 = vmatprep.subr.bf16.mxu0 0
      %4607 = vmatpush1.bf16.msra.mxu0 %v3828
      %4608 = vmatprep.subr.bf16.mxu0 0
      %4609 = vmatpush1.bf16.msra.mxu0 %v3829
      %4610 = vmatprep.subr.bf16.mxu0 0
      %4611 = vmatpush1.bf16.msra.mxu0 %v3830
      %4612 = vmatprep.subr.bf16.mxu0 0
      %4613 = vmatpush1.bf16.msra.mxu0 %v3831
      %4614 = vmatprep.subr.bf16.mxu0 0
      %4615 = vmatpush1.bf16.msra.mxu0 %v3832
      %4616 = vmatprep.subr.bf16.mxu0 0
      %4617 = vmatpush1.bf16.msra.mxu0 %v3833
      %4618 = vmatprep.subr.bf16.mxu0 0
      %4619 = vmatpush1.bf16.msra.mxu0 %v3834
      %4620 = vmatprep.subr.bf16.mxu0 0
      %4621 = vmatpush1.bf16.msra.mxu0 %v3835
      %4622 = vmatprep.subr.bf16.mxu0 0
      %4623 = vmatpush1.bf16.msra.mxu0 %v3836
      %4624 = vmatprep.subr.bf16.mxu0 0
      %4625 = vmatpush1.bf16.msra.mxu0 %v3837
      %4626 = vmatprep.subr.bf16.mxu0 0
      %4627 = vmatpush1.bf16.msra.mxu0 %v3838
      %4628 = vmatprep.subr.bf16.mxu0 0
      %4629 = vmatpush1.bf16.msra.mxu0 %v3839
      %4630 = vmatprep.mubr.bf16.mxu0 %v2310
      %4631 = vmatmul.mubr.bf16.gmra.mrb[0].mxu0 %v2309
      %v4632 = vpop.f32.mrb[0].mxu0
      %v4633 = vadd.f32 %v4560, %v4632
      %v4634 = vpop.f32.mrb[0].mxu0
      %v4635 = vpop.f32.mrb[0].mxu0
      %v4636 = vadd.f32 %v4563, %v4635
      %v4637 = vpop.f32.mrb[0].mxu0
      %4638 = vmatprep.mubr.bf16.mxu0 %v2337
      %4639 = vmatmul.mubr.bf16.gmra.mrb[0].mxu0 %v2336
      %v4640 = vpop.f32.mrb[0].mxu0
      %v4641 = vadd.f32 %v4568, %v4640
      %v4642 = vpop.f32.mrb[0].mxu0
      %v4643 = vpop.f32.mrb[0].mxu0
      %v4644 = vadd.f32 %v4571, %v4643
      %v4645 = vpop.f32.mrb[0].mxu0
      %4646 = vmatprep.mubr.bf16.mxu0 %v2364
      %4647 = vmatmul.mubr.bf16.gmra.mrb[0].mxu0 %v2363
      %v4648 = vpop.f32.mrb[0].mxu0
      %v4649 = vadd.f32 %v4576, %v4648
      %v4650 = vpop.f32.mrb[0].mxu0
      %v4651 = vpop.f32.mrb[0].mxu0
      %v4652 = vadd.f32 %v4579, %v4651
      %v4653 = vpop.f32.mrb[0].mxu0
      %4654 = vmatprep.mubr.bf16.mxu0 %v2391
      %4655 = vmatmul.mubr.bf16.gmra.mrb[0].mxu0 %v2390
      %v4656 = vpop.f32.mrb[0].mxu0
      %v4657 = vadd.f32 %v4584, %v4656
      %v4658 = vpop.f32.mrb[0].mxu0
      %v4659 = vpop.f32.mrb[0].mxu0
      %v4660 = vadd.f32 %v4587, %v4659
      %v4661 = vpop.f32.mrb[0].mxu0
      %4662 = vmatprep.mubr.bf16.mxu0 %v2418
      %4663 = vmatmul.mubr.bf16.gmra.mrb[0].mxu0 %v2417
      %v4664 = vpop.f32.mrb[0].mxu0
      %v4665 = vadd.f32 %v4592, %v4664
      %v4666 = vpop.f32.mrb[0].mxu0
      %v4667 = vpop.f32.mrb[0].mxu0
      %v4668 = vadd.f32 %v4595, %v4667
      %v4669 = vpop.f32.mrb[0].mxu0
      %4670 = vdwg.mxu0
      %4671 = vmatprep.subr.bf16.mxu0 0
      %4672 = vmatpush1.bf16.msra.mxu0 %v3840
      %4673 = vmatprep.subr.bf16.mxu0 0
      %4674 = vmatpush1.bf16.msra.mxu0 %v3841
      %4675 = vmatprep.subr.bf16.mxu0 0
      %4676 = vmatpush1.bf16.msra.mxu0 %v3842
      %4677 = vmatprep.subr.bf16.mxu0 0
      %4678 = vmatpush1.bf16.msra.mxu0 %v3843
      %4679 = vmatprep.subr.bf16.mxu0 0
      %4680 = vmatpush1.bf16.msra.mxu0 %v3844
      %4681 = vmatprep.subr.bf16.mxu0 0
      %4682 = vmatpush1.bf16.msra.mxu0 %v3845
      %4683 = vmatprep.subr.bf16.mxu0 0
      %4684 = vmatpush1.bf16.msra.mxu0 %v3846
      %4685 = vmatprep.subr.bf16.mxu0 0
      %4686 = vmatpush1.bf16.msra.mxu0 %v3847
      %4687 = vmatprep.subr.bf16.mxu0 0
      %4688 = vmatpush1.bf16.msra.mxu0 %v3848
      %4689 = vmatprep.subr.bf16.mxu0 0
      %4690 = vmatpush1.bf16.msra.mxu0 %v3849
      %4691 = vmatprep.subr.bf16.mxu0 0
      %4692 = vmatpush1.bf16.msra.mxu0 %v3850
      %4693 = vmatprep.subr.bf16.mxu0 0
      %4694 = vmatpush1.bf16.msra.mxu0 %v3851
      %4695 = vmatprep.subr.bf16.mxu0 0
      %4696 = vmatpush1.bf16.msra.mxu0 %v3852
      %4697 = vmatprep.subr.bf16.mxu0 0
      %4698 = vmatpush1.bf16.msra.mxu0 %v3853
      %4699 = vmatprep.subr.bf16.mxu0 0
      %4700 = vmatpush1.bf16.msra.mxu0 %v3854
      %4701 = vmatprep.subr.bf16.mxu0 0
      %4702 = vmatpush1.bf16.msra.mxu0 %v3855
      %4703 = vmatprep.mubr.bf16.mxu0 %v2312
      %4704 = vmatmul.mubr.bf16.gmra.mrb[0].mxu0 %v2311
      %v4705 = vpop.f32.mrb[0].mxu0
      %v4706 = vadd.f32 %v4633, %v4705
      %v4707 = vpop.f32.mrb[0].mxu0
      %v4708 = vpop.f32.mrb[0].mxu0
      %v4709 = vadd.f32 %v4636, %v4708
      %v4710 = vpop.f32.mrb[0].mxu0
      %4711 = vmatprep.mubr.bf16.mxu0 %v2339
      %4712 = vmatmul.mubr.bf16.gmra.mrb[0].mxu0 %v2338
      %v4713 = vpop.f32.mrb[0].mxu0
      %v4714 = vadd.f32 %v4641, %v4713
      %v4715 = vpop.f32.mrb[0].mxu0
      %v4716 = vpop.f32.mrb[0].mxu0
      %v4717 = vadd.f32 %v4644, %v4716
      %v4718 = vpop.f32.mrb[0].mxu0
      %4719 = vmatprep.mubr.bf16.mxu0 %v2366
      %4720 = vmatmul.mubr.bf16.gmra.mrb[0].mxu0 %v2365
      %v4721 = vpop.f32.mrb[0].mxu0
      %v4722 = vadd.f32 %v4649, %v4721
      %v4723 = vpop.f32.mrb[0].mxu0
      %v4724 = vpop.f32.mrb[0].mxu0
      %v4725 = vadd.f32 %v4652, %v4724
      %v4726 = vpop.f32.mrb[0].mxu0
      %4727 = vmatprep.mubr.bf16.mxu0 %v2393
      %4728 = vmatmul.mubr.bf16.gmra.mrb[0].mxu0 %v2392
      %v4729 = vpop.f32.mrb[0].mxu0
      %v4730 = vadd.f32 %v4657, %v4729
      %v4731 = vpop.f32.mrb[0].mxu0
      %v4732 = vpop.f32.mrb[0].mxu0
      %v4733 = vadd.f32 %v4660, %v4732
      %v4734 = vpop.f32.mrb[0].mxu0
      %4735 = vmatprep.mubr.bf16.mxu0 %v2420
      %4736 = vmatmul.mubr.bf16.gmra.mrb[0].mxu0 %v2419
      %v4737 = vpop.f32.mrb[0].mxu0
      %v4738 = vadd.f32 %v4665, %v4737
      %v4739 = vpop.f32.mrb[0].mxu0
      %v4740 = vpop.f32.mrb[0].mxu0
      %v4741 = vadd.f32 %v4668, %v4740
      %v4742 = vpop.f32.mrb[0].mxu0
      %4743 = vdwg.mxu0
      %4744 = vmatprep.subr.bf16.mxu0 0
      %4745 = vmatpush1.bf16.msra.mxu0 %v3856
      %4746 = vmatprep.subr.bf16.mxu0 0
      %4747 = vmatpush1.bf16.msra.mxu0 %v3857
      %4748 = vmatprep.subr.bf16.mxu0 0
      %4749 = vmatpush1.bf16.msra.mxu0 %v3858
      %4750 = vmatprep.subr.bf16.mxu0 0
      %4751 = vmatpush1.bf16.msra.mxu0 %v3859
      %4752 = vmatprep.subr.bf16.mxu0 0
      %4753 = vmatpush1.bf16.msra.mxu0 %v3860
      %4754 = vmatprep.subr.bf16.mxu0 0
      %4755 = vmatpush1.bf16.msra.mxu0 %v3861
      %4756 = vmatprep.subr.bf16.mxu0 0
      %4757 = vmatpush1.bf16.msra.mxu0 %v3862
      %4758 = vmatprep.subr.bf16.mxu0 0
      %4759 = vmatpush1.bf16.msra.mxu0 %v3863
      %4760 = vmatprep.subr.bf16.mxu0 0
      %4761 = vmatpush1.bf16.msra.mxu0 %v3864
      %4762 = vmatprep.subr.bf16.mxu0 0
      %4763 = vmatpush1.bf16.msra.mxu0 %v3865
      %4764 = vmatprep.subr.bf16.mxu0 0
      %4765 = vmatpush1.bf16.msra.mxu0 %v3866
      %4766 = vmatprep.subr.bf16.mxu0 0
      %4767 = vmatpush1.bf16.msra.mxu0 %v3867
      %4768 = vmatprep.subr.bf16.mxu0 0
      %4769 = vmatpush1.bf16.msra.mxu0 %v3868
      %4770 = vmatprep.subr.bf16.mxu0 0
      %4771 = vmatpush1.bf16.msra.mxu0 %v3869
      %4772 = vmatprep.subr.bf16.mxu0 0
      %4773 = vmatpush1.bf16.msra.mxu0 %v3870
      %4774 = vmatprep.subr.bf16.mxu0 0
      %4775 = vmatpush1.bf16.msra.mxu0 %v3871
      %4776 = vmatprep.mubr.bf16.mxu0 %v2314
      %4777 = vmatmul.mubr.bf16.gmra.mrb[0].mxu0 %v2313
      %v4778 = vpop.f32.mrb[0].mxu0
      %v4779 = vadd.f32 %v4706, %v4778
      %v4780 = vpop.f32.mrb[0].mxu0
      %v4781 = vpop.f32.mrb[0].mxu0
      %v4782 = vadd.f32 %v4709, %v4781
      %v4783 = vpop.f32.mrb[0].mxu0
      %4784 = vmatprep.mubr.bf16.mxu0 %v2341
      %4785 = vmatmul.mubr.bf16.gmra.mrb[0].mxu0 %v2340
      %v4786 = vpop.f32.mrb[0].mxu0
      %v4787 = vadd.f32 %v4714, %v4786
      %v4788 = vpop.f32.mrb[0].mxu0
      %v4789 = vpop.f32.mrb[0].mxu0
      %v4790 = vadd.f32 %v4717, %v4789
      %v4791 = vpop.f32.mrb[0].mxu0
      %4792 = vmatprep.mubr.bf16.mxu0 %v2368
      %4793 = vmatmul.mubr.bf16.gmra.mrb[0].mxu0 %v2367
      %v4794 = vpop.f32.mrb[0].mxu0
      %v4795 = vadd.f32 %v4722, %v4794
      %v4796 = vpop.f32.mrb[0].mxu0
      %v4797 = vpop.f32.mrb[0].mxu0
      %v4798 = vadd.f32 %v4725, %v4797
      %v4799 = vpop.f32.mrb[0].mxu0
      %4800 = vmatprep.mubr.bf16.mxu0 %v2395
      %4801 = vmatmul.mubr.bf16.gmra.mrb[0].mxu0 %v2394
      %v4802 = vpop.f32.mrb[0].mxu0
      %v4803 = vadd.f32 %v4730, %v4802
      %v4804 = vpop.f32.mrb[0].mxu0
      %v4805 = vpop.f32.mrb[0].mxu0
      %v4806 = vadd.f32 %v4733, %v4805
      %v4807 = vpop.f32.mrb[0].mxu0
      %4808 = vmatprep.mubr.bf16.mxu0 %v2422
      %4809 = vmatmul.mubr.bf16.gmra.mrb[0].mxu0 %v2421
      %v4810 = vpop.f32.mrb[0].mxu0
      %v4811 = vadd.f32 %v4738, %v4810
      %v4812 = vpop.f32.mrb[0].mxu0
      %v4813 = vpop.f32.mrb[0].mxu0
      %v4814 = vadd.f32 %v4741, %v4813
      %v4815 = vpop.f32.mrb[0].mxu0
      %4816 = vdwg.mxu0
      %4817 = vmatprep.subr.bf16.mxu0 0
      %4818 = vmatpush1.bf16.msra.mxu0 %v3872
      %4819 = vmatprep.subr.bf16.mxu0 0
      %4820 = vmatpush1.bf16.msra.mxu0 %v3873
      %4821 = vmatprep.subr.bf16.mxu0 0
      %4822 = vmatpush1.bf16.msra.mxu0 %v3874
      %4823 = vmatprep.subr.bf16.mxu0 0
      %4824 = vmatpush1.bf16.msra.mxu0 %v3875
      %4825 = vmatprep.subr.bf16.mxu0 0
      %4826 = vmatpush1.bf16.msra.mxu0 %v3876
      %4827 = vmatprep.subr.bf16.mxu0 0
      %4828 = vmatpush1.bf16.msra.mxu0 %v3877
      %4829 = vmatprep.subr.bf16.mxu0 0
      %4830 = vmatpush1.bf16.msra.mxu0 %v3878
      %4831 = vmatprep.subr.bf16.mxu0 0
      %4832 = vmatpush1.bf16.msra.mxu0 %v3879
      %4833 = vmatprep.subr.bf16.mxu0 0
      %4834 = vmatpush1.bf16.msra.mxu0 %v3880
      %4835 = vmatprep.subr.bf16.mxu0 0
      %4836 = vmatpush1.bf16.msra.mxu0 %v3881
      %4837 = vmatprep.subr.bf16.mxu0 0
      %4838 = vmatpush1.bf16.msra.mxu0 %v3882
      %4839 = vmatprep.subr.bf16.mxu0 0
      %4840 = vmatpush1.bf16.msra.mxu0 %v3883
      %4841 = vmatprep.subr.bf16.mxu0 0
      %4842 = vmatpush1.bf16.msra.mxu0 %v3884
      %4843 = vmatprep.subr.bf16.mxu0 0
      %4844 = vmatpush1.bf16.msra.mxu0 %v3885
      %4845 = vmatprep.subr.bf16.mxu0 0
      %4846 = vmatpush1.bf16.msra.mxu0 %v3886
      %4847 = vmatprep.subr.bf16.mxu0 0
      %4848 = vmatpush1.bf16.msra.mxu0 %v3887
      %4849 = vmatprep.mubr.bf16.mxu0 %v2316
      %4850 = vmatmul.mubr.bf16.gmra.mrb[0].mxu0 %v2315
      %v4851 = vpop.f32.mrb[0].mxu0
      %v4852 = vadd.f32 %v4779, %v4851
      %v4853 = vpop.f32.mrb[0].mxu0
      %v4854 = vpop.f32.mrb[0].mxu0
      %v4855 = vadd.f32 %v4782, %v4854
      %v4856 = vpop.f32.mrb[0].mxu0
      %4857 = vmatprep.mubr.bf16.mxu0 %v2343
      %4858 = vmatmul.mubr.bf16.gmra.mrb[0].mxu0 %v2342
      %v4859 = vpop.f32.mrb[0].mxu0
      %v4860 = vadd.f32 %v4787, %v4859
      %v4861 = vpop.f32.mrb[0].mxu0
      %v4862 = vpop.f32.mrb[0].mxu0
      %v4863 = vadd.f32 %v4790, %v4862
      %v4864 = vpop.f32.mrb[0].mxu0
      %4865 = vmatprep.mubr.bf16.mxu0 %v2370
      %4866 = vmatmul.mubr.bf16.gmra.mrb[0].mxu0 %v2369
      %v4867 = vpop.f32.mrb[0].mxu0
      %v4868 = vadd.f32 %v4795, %v4867
      %v4869 = vpop.f32.mrb[0].mxu0
      %v4870 = vpop.f32.mrb[0].mxu0
      %v4871 = vadd.f32 %v4798, %v4870
      %v4872 = vpop.f32.mrb[0].mxu0
      %4873 = vmatprep.mubr.bf16.mxu0 %v2397
      %4874 = vmatmul.mubr.bf16.gmra.mrb[0].mxu0 %v2396
      %v4875 = vpop.f32.mrb[0].mxu0
      %v4876 = vadd.f32 %v4803, %v4875
      %v4877 = vpop.f32.mrb[0].mxu0
      %v4878 = vpop.f32.mrb[0].mxu0
      %v4879 = vadd.f32 %v4806, %v4878
      %v4880 = vpop.f32.mrb[0].mxu0
      %4881 = vmatprep.mubr.bf16.mxu0 %v2424
      %4882 = vmatmul.mubr.bf16.gmra.mrb[0].mxu0 %v2423
      %v4883 = vpop.f32.mrb[0].mxu0
      %v4884 = vadd.f32 %v4811, %v4883
      %v4885 = vpop.f32.mrb[0].mxu0
      %v4886 = vpop.f32.mrb[0].mxu0
      %v4887 = vadd.f32 %v4814, %v4886
      %v4888 = vpop.f32.mrb[0].mxu0
      %4889 = vdwg.mxu0
      %4890 = vmatprep.subr.bf16.mxu0 0
      %4891 = vmatpush1.bf16.msra.mxu0 %v3888
      %4892 = vmatprep.subr.bf16.mxu0 0
      %4893 = vmatpush1.bf16.msra.mxu0 %v3889
      %4894 = vmatprep.subr.bf16.mxu0 0
      %4895 = vmatpush1.bf16.msra.mxu0 %v3890
      %4896 = vmatprep.subr.bf16.mxu0 0
      %4897 = vmatpush1.bf16.msra.mxu0 %v3891
      %4898 = vmatprep.subr.bf16.mxu0 0
      %4899 = vmatpush1.bf16.msra.mxu0 %v3892
      %4900 = vmatprep.subr.bf16.mxu0 0
      %4901 = vmatpush1.bf16.msra.mxu0 %v3893
      %4902 = vmatprep.subr.bf16.mxu0 0
      %4903 = vmatpush1.bf16.msra.mxu0 %v3894
      %4904 = vmatprep.subr.bf16.mxu0 0
      %4905 = vmatpush1.bf16.msra.mxu0 %v3895
      %4906 = vmatprep.subr.bf16.mxu0 0
      %4907 = vmatpush1.bf16.msra.mxu0 %v3896
      %4908 = vmatprep.subr.bf16.mxu0 0
      %4909 = vmatpush1.bf16.msra.mxu0 %v3897
      %4910 = vmatprep.subr.bf16.mxu0 0
      %4911 = vmatpush1.bf16.msra.mxu0 %v3898
      %4912 = vmatprep.subr.bf16.mxu0 0
      %4913 = vmatpush1.bf16.msra.mxu0 %v3899
      %4914 = vmatprep.subr.bf16.mxu0 0
      %4915 = vmatpush1.bf16.msra.mxu0 %v3900
      %4916 = vmatprep.subr.bf16.mxu0 0
      %4917 = vmatpush1.bf16.msra.mxu0 %v3901
      %4918 = vmatprep.subr.bf16.mxu0 0
      %4919 = vmatpush1.bf16.msra.mxu0 %v3902
      %4920 = vmatprep.subr.bf16.mxu0 0
      %4921 = vmatpush1.bf16.msra.mxu0 %v3903
      %4922 = vmatprep.mubr.bf16.mxu0 %v2318
      %4923 = vmatmul.mubr.bf16.gmra.mrb[0].mxu0 %v2317
      %v4924 = vpop.f32.mrb[0].mxu0
      %v4925 = vadd.f32 %v4852, %v4924
      %v4926 = vpop.f32.mrb[0].mxu0
      %v4927 = vpop.f32.mrb[0].mxu0
      %v4928 = vadd.f32 %v4855, %v4927
      %v4929 = vpop.f32.mrb[0].mxu0
      %4930 = vmatprep.mubr.bf16.mxu0 %v2345
      %4931 = vmatmul.mubr.bf16.gmra.mrb[0].mxu0 %v2344
      %v4932 = vpop.f32.mrb[0].mxu0
      %v4933 = vadd.f32 %v4860, %v4932
      %v4934 = vpop.f32.mrb[0].mxu0
      %v4935 = vpop.f32.mrb[0].mxu0
      %v4936 = vadd.f32 %v4863, %v4935
      %v4937 = vpop.f32.mrb[0].mxu0
      %4938 = vmatprep.mubr.bf16.mxu0 %v2372
      %4939 = vmatmul.mubr.bf16.gmra.mrb[0].mxu0 %v2371
      %v4940 = vpop.f32.mrb[0].mxu0
      %v4941 = vadd.f32 %v4868, %v4940
      %v4942 = vpop.f32.mrb[0].mxu0
      %v4943 = vpop.f32.mrb[0].mxu0
      %v4944 = vadd.f32 %v4871, %v4943
      %v4945 = vpop.f32.mrb[0].mxu0
      %4946 = vmatprep.mubr.bf16.mxu0 %v2399
      %4947 = vmatmul.mubr.bf16.gmra.mrb[0].mxu0 %v2398
      %v4948 = vpop.f32.mrb[0].mxu0
      %v4949 = vadd.f32 %v4876, %v4948
      %v4950 = vpop.f32.mrb[0].mxu0
      %v4951 = vpop.f32.mrb[0].mxu0
      %v4952 = vadd.f32 %v4879, %v4951
      %v4953 = vpop.f32.mrb[0].mxu0
      %4954 = vmatprep.mubr.bf16.mxu0 %v2426
      %4955 = vmatmul.mubr.bf16.gmra.mrb[0].mxu0 %v2425
      %v4956 = vpop.f32.mrb[0].mxu0
      %v4957 = vadd.f32 %v4884, %v4956
      %v4958 = vpop.f32.mrb[0].mxu0
      %v4959 = vpop.f32.mrb[0].mxu0
      %v4960 = vadd.f32 %v4887, %v4959
      %v4961 = vpop.f32.mrb[0].mxu0
      %4962 = vdwg.mxu0
      %4963 = vmatprep.subr.bf16.mxu0 0
      %4964 = vmatpush1.bf16.msra.mxu0 %v3904
      %4965 = vmatprep.subr.bf16.mxu0 0
      %4966 = vmatpush1.bf16.msra.mxu0 %v3905
      %4967 = vmatprep.subr.bf16.mxu0 0
      %4968 = vmatpush1.bf16.msra.mxu0 %v3906
      %4969 = vmatprep.subr.bf16.mxu0 0
      %4970 = vmatpush1.bf16.msra.mxu0 %v3907
      %4971 = vmatprep.subr.bf16.mxu0 0
      %4972 = vmatpush1.bf16.msra.mxu0 %v3908
      %4973 = vmatprep.subr.bf16.mxu0 0
      %4974 = vmatpush1.bf16.msra.mxu0 %v3909
      %4975 = vmatprep.subr.bf16.mxu0 0
      %4976 = vmatpush1.bf16.msra.mxu0 %v3910
      %4977 = vmatprep.subr.bf16.mxu0 0
      %4978 = vmatpush1.bf16.msra.mxu0 %v3911
      %4979 = vmatprep.subr.bf16.mxu0 0
      %4980 = vmatpush1.bf16.msra.mxu0 %v3912
      %4981 = vmatprep.subr.bf16.mxu0 0
      %4982 = vmatpush1.bf16.msra.mxu0 %v3913
      %4983 = vmatprep.subr.bf16.mxu0 0
      %4984 = vmatpush1.bf16.msra.mxu0 %v3914
      %4985 = vmatprep.subr.bf16.mxu0 0
      %4986 = vmatpush1.bf16.msra.mxu0 %v3915
      %4987 = vmatprep.subr.bf16.mxu0 0
      %4988 = vmatpush1.bf16.msra.mxu0 %v3916
      %4989 = vmatprep.subr.bf16.mxu0 0
      %4990 = vmatpush1.bf16.msra.mxu0 %v3917
      %4991 = vmatprep.subr.bf16.mxu0 0
      %4992 = vmatpush1.bf16.msra.mxu0 %v3918
      %4993 = vmatprep.subr.bf16.mxu0 0
      %4994 = vmatpush1.bf16.msra.mxu0 %v3919
      %4995 = vmatprep.mubr.bf16.mxu0 %v2320
      %4996 = vmatmul.mubr.bf16.gmra.mrb[0].mxu0 %v2319
      %v4997 = vpop.f32.mrb[0].mxu0
      %v4998 = vadd.f32 %v4925, %v4997
      %v4999 = vpop.f32.mrb[0].mxu0
      %v5000 = vpop.f32.mrb[0].mxu0
      %v5001 = vadd.f32 %v4928, %v5000
      %v5002 = vpop.f32.mrb[0].mxu0
      %5003 = vmatprep.mubr.bf16.mxu0 %v2347
      %5004 = vmatmul.mubr.bf16.gmra.mrb[0].mxu0 %v2346
      %v5005 = vpop.f32.mrb[0].mxu0
      %v5006 = vadd.f32 %v4933, %v5005
      %v5007 = vpop.f32.mrb[0].mxu0
      %v5008 = vpop.f32.mrb[0].mxu0
      %v5009 = vadd.f32 %v4936, %v5008
      %v5010 = vpop.f32.mrb[0].mxu0
      %5011 = vmatprep.mubr.bf16.mxu0 %v2374
      %5012 = vmatmul.mubr.bf16.gmra.mrb[0].mxu0 %v2373
      %v5013 = vpop.f32.mrb[0].mxu0
      %v5014 = vadd.f32 %v4941, %v5013
      %v5015 = vpop.f32.mrb[0].mxu0
      %v5016 = vpop.f32.mrb[0].mxu0
      %v5017 = vadd.f32 %v4944, %v5016
      %v5018 = vpop.f32.mrb[0].mxu0
      %5019 = vmatprep.mubr.bf16.mxu0 %v2401
      %5020 = vmatmul.mubr.bf16.gmra.mrb[0].mxu0 %v2400
      %v5021 = vpop.f32.mrb[0].mxu0
      %v5022 = vadd.f32 %v4949, %v5021
      %v5023 = vpop.f32.mrb[0].mxu0
      %v5024 = vpop.f32.mrb[0].mxu0
      %v5025 = vadd.f32 %v4952, %v5024
      %v5026 = vpop.f32.mrb[0].mxu0
      %5027 = vmatprep.mubr.bf16.mxu0 %v2428
      %5028 = vmatmul.mubr.bf16.gmra.mrb[0].mxu0 %v2427
      %v5029 = vpop.f32.mrb[0].mxu0
      %v5030 = vadd.f32 %v4957, %v5029
      %v5031 = vpop.f32.mrb[0].mxu0
      %v5032 = vpop.f32.mrb[0].mxu0
      %v5033 = vadd.f32 %v4960, %v5032
      %v5034 = vpop.f32.mrb[0].mxu0
      %5035 = vdwg.mxu0
      %5036 = vmatprep.subr.bf16.mxu0 0
      %5037 = vmatpush1.bf16.msra.mxu0 %v3920
      %5038 = vmatprep.subr.bf16.mxu0 0
      %5039 = vmatpush1.bf16.msra.mxu0 %v3921
      %5040 = vmatprep.subr.bf16.mxu0 0
      %5041 = vmatpush1.bf16.msra.mxu0 %v3922
      %5042 = vmatprep.subr.bf16.mxu0 0
      %5043 = vmatpush1.bf16.msra.mxu0 %v3923
      %5044 = vmatprep.subr.bf16.mxu0 0
      %5045 = vmatpush1.bf16.msra.mxu0 %v3924
      %5046 = vmatprep.subr.bf16.mxu0 0
      %5047 = vmatpush1.bf16.msra.mxu0 %v3925
      %5048 = vmatprep.subr.bf16.mxu0 0
      %5049 = vmatpush1.bf16.msra.mxu0 %v3926
      %5050 = vmatprep.subr.bf16.mxu0 0
      %5051 = vmatpush1.bf16.msra.mxu0 %v3927
      %5052 = vmatprep.subr.bf16.mxu0 0
      %5053 = vmatpush1.bf16.msra.mxu0 %v3928
      %5054 = vmatprep.subr.bf16.mxu0 0
      %5055 = vmatpush1.bf16.msra.mxu0 %v3929
      %5056 = vmatprep.subr.bf16.mxu0 0
      %5057 = vmatpush1.bf16.msra.mxu0 %v3930
      %5058 = vmatprep.subr.bf16.mxu0 0
      %5059 = vmatpush1.bf16.msra.mxu0 %v3931
      %5060 = vmatprep.subr.bf16.mxu0 0
      %5061 = vmatpush1.bf16.msra.mxu0 %v3932
      %5062 = vmatprep.subr.bf16.mxu0 0
      %5063 = vmatpush1.bf16.msra.mxu0 %v3933
      %5064 = vmatprep.subr.bf16.mxu0 0
      %5065 = vmatpush1.bf16.msra.mxu0 %v3934
      %5066 = vmatprep.subr.bf16.mxu0 0
      %5067 = vmatpush1.bf16.msra.mxu0 %v3935
      %5068 = vmatprep.mubr.bf16.mxu0 %v2322
      %5069 = vmatmul.mubr.bf16.gmra.mrb[0].mxu0 %v2321
      %v5070 = vpop.f32.mrb[0].mxu0
      %v5071 = vadd.f32 %v4998, %v5070
      %v5072 = vpop.f32.mrb[0].mxu0
      %v5073 = vpop.f32.mrb[0].mxu0
      %v5074 = vadd.f32 %v5001, %v5073
      %v5075 = vpop.f32.mrb[0].mxu0
      %5076 = vmatprep.mubr.bf16.mxu0 %v2349
      %5077 = vmatmul.mubr.bf16.gmra.mrb[0].mxu0 %v2348
      %v5078 = vpop.f32.mrb[0].mxu0
      %v5079 = vadd.f32 %v5006, %v5078
      %v5080 = vpop.f32.mrb[0].mxu0
      %v5081 = vpop.f32.mrb[0].mxu0
      %v5082 = vadd.f32 %v5009, %v5081
      %v5083 = vpop.f32.mrb[0].mxu0
      %5084 = vmatprep.mubr.bf16.mxu0 %v2376
      %5085 = vmatmul.mubr.bf16.gmra.mrb[0].mxu0 %v2375
      %v5086 = vpop.f32.mrb[0].mxu0
      %v5087 = vadd.f32 %v5014, %v5086
      %v5088 = vpop.f32.mrb[0].mxu0
      %v5089 = vpop.f32.mrb[0].mxu0
      %v5090 = vadd.f32 %v5017, %v5089
      %v5091 = vpop.f32.mrb[0].mxu0
      %5092 = vmatprep.mubr.bf16.mxu0 %v2403
      %5093 = vmatmul.mubr.bf16.gmra.mrb[0].mxu0 %v2402
      %v5094 = vpop.f32.mrb[0].mxu0
      %v5095 = vadd.f32 %v5022, %v5094
      %v5096 = vpop.f32.mrb[0].mxu0
      %v5097 = vpop.f32.mrb[0].mxu0
      %v5098 = vadd.f32 %v5025, %v5097
      %v5099 = vpop.f32.mrb[0].mxu0
      %5100 = vmatprep.mubr.bf16.mxu0 %v2430
      %5101 = vmatmul.mubr.bf16.gmra.mrb[0].mxu0 %v2429
      %v5102 = vpop.f32.mrb[0].mxu0
      %v5103 = vadd.f32 %v5030, %v5102
      %v5104 = vpop.f32.mrb[0].mxu0
      %v5105 = vpop.f32.mrb[0].mxu0
      %v5106 = vadd.f32 %v5033, %v5105
      %v5107 = vpop.f32.mrb[0].mxu0
      %5108 = vdwg.mxu0
      %5109 = vmatprep.subr.bf16.mxu0 0
      %5110 = vmatpush1.bf16.msra.mxu0 %v3936
      %5111 = vmatprep.subr.bf16.mxu0 0
      %5112 = vmatpush1.bf16.msra.mxu0 %v3937
      %5113 = vmatprep.subr.bf16.mxu0 0
      %5114 = vmatpush1.bf16.msra.mxu0 %v3938
      %5115 = vmatprep.subr.bf16.mxu0 0
      %5116 = vmatpush1.bf16.msra.mxu0 %v3939
      %5117 = vmatprep.subr.bf16.mxu0 0
      %5118 = vmatpush1.bf16.msra.mxu0 %v3940
      %5119 = vmatprep.subr.bf16.mxu0 0
      %5120 = vmatpush1.bf16.msra.mxu0 %v3941
      %5121 = vmatprep.subr.bf16.mxu0 0
      %5122 = vmatpush1.bf16.msra.mxu0 %v3942
      %5123 = vmatprep.subr.bf16.mxu0 0
      %5124 = vmatpush1.bf16.msra.mxu0 %v3943
      %5125 = vmatprep.subr.bf16.mxu0 0
      %5126 = vmatpush1.bf16.msra.mxu0 0
      %5127 = vmatprep.subr.bf16.mxu0 0
      %5128 = vmatpush1.bf16.msra.mxu0 0
      %5129 = vmatprep.subr.bf16.mxu0 0
      %5130 = vmatpush1.bf16.msra.mxu0 0
      %5131 = vmatprep.subr.bf16.mxu0 0
      %5132 = vmatpush1.bf16.msra.mxu0 0
      %5133 = vmatprep.subr.bf16.mxu0 0
      %5134 = vmatpush1.bf16.msra.mxu0 0
      %5135 = vmatprep.subr.bf16.mxu0 0
      %5136 = vmatpush1.bf16.msra.mxu0 0
      %5137 = vmatprep.subr.bf16.mxu0 0
      %5138 = vmatpush1.bf16.msra.mxu0 0
      %5139 = vmatprep.subr.bf16.mxu0 0
      %5140 = vmatpush1.bf16.msra.mxu0 0
      %5141 = vmatprep.mubr.bf16.mxu0 0
      %5142 = vmatmul.mubr.bf16.gmra.mrb[0].mxu0 %v2323
      %v5143 = vpop.f32.mrb[0].mxu0
      %v5144 = vadd.f32 %v5071, %v5143
      %v5145 = vpop.f32.mrb[0].mxu0
      %v5146 = vpop.f32.mrb[0].mxu0
      %v5147 = vadd.f32 %v5074, %v5146
      %v5148 = vpop.f32.mrb[0].mxu0
      %5149 = vmatprep.mubr.bf16.mxu0 0
      %5150 = vmatmul.mubr.bf16.gmra.mrb[0].mxu0 %v2350
      %v5151 = vpop.f32.mrb[0].mxu0
      %v5152 = vadd.f32 %v5079, %v5151
      %v5153 = vpop.f32.mrb[0].mxu0
      %v5154 = vpop.f32.mrb[0].mxu0
      %v5155 = vadd.f32 %v5082, %v5154
      %v5156 = vpop.f32.mrb[0].mxu0
      %5157 = vmatprep.mubr.bf16.mxu0 0
      %5158 = vmatmul.mubr.bf16.gmra.mrb[0].mxu0 %v2377
      %v5159 = vpop.f32.mrb[0].mxu0
      %v5160 = vadd.f32 %v5087, %v5159
      %v5161 = vpop.f32.mrb[0].mxu0
      %v5162 = vpop.f32.mrb[0].mxu0
      %v5163 = vadd.f32 %v5090, %v5162
      %v5164 = vpop.f32.mrb[0].mxu0
      %5165 = vmatprep.mubr.bf16.mxu0 0
      %5166 = vmatmul.mubr.bf16.gmra.mrb[0].mxu0 %v2404
      %v5167 = vpop.f32.mrb[0].mxu0
      %v5168 = vadd.f32 %v5095, %v5167
      %v5169 = vpop.f32.mrb[0].mxu0
      %v5170 = vpop.f32.mrb[0].mxu0
      %v5171 = vadd.f32 %v5098, %v5170
      %v5172 = vpop.f32.mrb[0].mxu0
      %5173 = vmatprep.mubr.bf16.mxu0 0
      %5174 = vmatmul.mubr.bf16.gmra.mrb[0].mxu0 %v2431
      %v5175 = vpop.f32.mrb[0].mxu0
      %v5176 = vadd.f32 %v5103, %v5175
      %v5177 = vpop.f32.mrb[0].mxu0
      %v5178 = vpop.f32.mrb[0].mxu0
      %v5179 = vadd.f32 %v5106, %v5178
      %v5180 = vpop.f32.mrb[0].mxu0
      %5181 = vdwg.mxu0
      %5182 = vst [vmem:[%s355] sm:$0xff] %v5144
      %5183 = vst [vmem:[%s355 + $0x8] sm:$0xff] %v5147
      %5184 = vst [vmem:[%s355 + $0x10] sm:$0xff] %v5152
      %5185 = vst [vmem:[%s355 + $0x18] sm:$0xff] %v5155
      %5186 = vst [vmem:[%s355 + $0x20] sm:$0xff] %v5160
      %5187 = vst [vmem:[%s355 + $0x28] sm:$0xff] %v5163
      %5188 = vst [vmem:[%s355 + $0x30] sm:$0xff] %v5168
      %5189 = vst [vmem:[%s355 + $0x38] sm:$0xff] %v5171
      %5190 = vst [vmem:[%s355 + $0x40] sm:$0xff] %v5176
      %5191 = vst [vmem:[%s355 + $0x48] sm:$0xff] %v5179
      %v5192 = vlaneseq
      %v5193 = vshrl.u32 %v5192, 7
      %v5194 = vadd.s32 %v5193, 8
      %v5195 = vadd.s32 %v5193, 16
      %v5196 = vadd.s32 %v5193, 24
      %v5197 = vadd.s32 %v5193, 32
      %v5198 = vadd.s32 %v5193, 40
      %v5199 = vadd.s32 %v5193, 48
      %v5200 = vadd.s32 %v5193, 56
      %v5201 = vadd.s32 %v5193, 64
      %v5202 = vadd.s32 %v5193, 72
      %vm5203 = vcmp.lt.s32.totalorder %v5193, 0
      %v5204 = vsub.s32 0, %v5193
      %v5205 = vsel %vm5203, %v5204, %v5193
      %v5206 = vmul.u32.u64.compose %v5205, 3435973837
      %v5207 = vextract.low.u32 %v5206
      %v5208 = vextract.high.u32 %v5206
      %v5209 = vshrl.u32 %v5208, 3
      %v5210 = vmul.u32 %v5209, 10
      %v5211 = vsub.s32 %v5205, %v5210
      %v5212 = vsub.s32 0, %v5211
      %v5213 = vsel %vm5203, %v5212, %v5211
      %vm5214 = vcmp.lt.s32.totalorder %v5194, 0
      %v5215 = vsub.s32 0, %v5194
      %v5216 = vsel %vm5214, %v5215, %v5194
      %v5217 = vmul.u32.u64.compose %v5216, 3435973837
      %v5218 = vextract.low.u32 %v5217
      %v5219 = vextract.high.u32 %v5217
      %v5220 = vshrl.u32 %v5219, 3
      %v5221 = vmul.u32 %v5220, 10
      %v5222 = vsub.s32 %v5216, %v5221
      %v5223 = vsub.s32 0, %v5222
      %v5224 = vsel %vm5214, %v5223, %v5222
      %vm5225 = vcmp.lt.s32.totalorder %v5195, 0
      %v5226 = vsub.s32 0, %v5195
      %v5227 = vsel %vm5225, %v5226, %v5195
      %v5228 = vmul.u32.u64.compose %v5227, 3435973837
      %v5229 = vextract.low.u32 %v5228
      %v5230 = vextract.high.u32 %v5228
      %v5231 = vshrl.u32 %v5230, 3
      %v5232 = vmul.u32 %v5231, 10
      %v5233 = vsub.s32 %v5227, %v5232
      %v5234 = vsub.s32 0, %v5233
      %v5235 = vsel %vm5225, %v5234, %v5233
      %vm5236 = vcmp.lt.s32.totalorder %v5196, 0
      %v5237 = vsub.s32 0, %v5196
      %v5238 = vsel %vm5236, %v5237, %v5196
      %v5239 = vmul.u32.u64.compose %v5238, 3435973837
      %v5240 = vextract.low.u32 %v5239
      %v5241 = vextract.high.u32 %v5239
      %v5242 = vshrl.u32 %v5241, 3
      %v5243 = vmul.u32 %v5242, 10
      %v5244 = vsub.s32 %v5238, %v5243
      %v5245 = vsub.s32 0, %v5244
      %v5246 = vsel %vm5236, %v5245, %v5244
      %vm5247 = vcmp.lt.s32.totalorder %v5197, 0
      %v5248 = vsub.s32 0, %v5197
      %v5249 = vsel %vm5247, %v5248, %v5197
      %v5250 = vmul.u32.u64.compose %v5249, 3435973837
      %v5251 = vextract.low.u32 %v5250
      %v5252 = vextract.high.u32 %v5250
      %v5253 = vshrl.u32 %v5252, 3
      %v5254 = vmul.u32 %v5253, 10
      %v5255 = vsub.s32 %v5249, %v5254
      %v5256 = vsub.s32 0, %v5255
      %v5257 = vsel %vm5247, %v5256, %v5255
      %vm5258 = vcmp.lt.s32.totalorder %v5198, 0
      %v5259 = vsub.s32 0, %v5198
      %v5260 = vsel %vm5258, %v5259, %v5198
      %v5261 = vmul.u32.u64.compose %v5260, 3435973837
      %v5262 = vextract.low.u32 %v5261
      %v5263 = vextract.high.u32 %v5261
      %v5264 = vshrl.u32 %v5263, 3
      %v5265 = vmul.u32 %v5264, 10
      %v5266 = vsub.s32 %v5260, %v5265
      %v5267 = vsub.s32 0, %v5266
      %v5268 = vsel %vm5258, %v5267, %v5266
      %vm5269 = vcmp.lt.s32.totalorder %v5199, 0
      %v5270 = vsub.s32 0, %v5199
      %v5271 = vsel %vm5269, %v5270, %v5199
      %v5272 = vmul.u32.u64.compose %v5271, 3435973837
      %v5273 = vextract.low.u32 %v5272
      %v5274 = vextract.high.u32 %v5272
      %v5275 = vshrl.u32 %v5274, 3
      %v5276 = vmul.u32 %v5275, 10
      %v5277 = vsub.s32 %v5271, %v5276
      %v5278 = vsub.s32 0, %v5277
      %v5279 = vsel %vm5269, %v5278, %v5277
      %vm5280 = vcmp.lt.s32.totalorder %v5200, 0
      %v5281 = vsub.s32 0, %v5200
      %v5282 = vsel %vm5280, %v5281, %v5200
      %v5283 = vmul.u32.u64.compose %v5282, 3435973837
      %v5284 = vextract.low.u32 %v5283
      %v5285 = vextract.high.u32 %v5283
      %v5286 = vshrl.u32 %v5285, 3
      %v5287 = vmul.u32 %v5286, 10
      %v5288 = vsub.s32 %v5282, %v5287
      %v5289 = vsub.s32 0, %v5288
      %v5290 = vsel %vm5280, %v5289, %v5288
      %vm5291 = vcmp.lt.s32.totalorder %v5201, 0
      %v5292 = vsub.s32 0, %v5201
      %v5293 = vsel %vm5291, %v5292, %v5201
      %v5294 = vmul.u32.u64.compose %v5293, 3435973837
      %v5295 = vextract.low.u32 %v5294
      %v5296 = vextract.high.u32 %v5294
      %v5297 = vshrl.u32 %v5296, 3
      %v5298 = vmul.u32 %v5297, 10
      %v5299 = vsub.s32 %v5293, %v5298
      %v5300 = vsub.s32 0, %v5299
      %v5301 = vsel %vm5291, %v5300, %v5299
      %vm5302 = vcmp.lt.s32.totalorder %v5202, 0
      %v5303 = vsub.s32 0, %v5202
      %v5304 = vsel %vm5302, %v5303, %v5202
      %v5305 = vmul.u32.u64.compose %v5304, 3435973837
      %v5306 = vextract.low.u32 %v5305
      %v5307 = vextract.high.u32 %v5305
      %v5308 = vshrl.u32 %v5307, 3
      %v5309 = vmul.u32 %v5308, 10
      %v5310 = vsub.s32 %v5304, %v5309
      %v5311 = vsub.s32 0, %v5310
      %v5312 = vsel %vm5302, %v5311, %v5310
      %vm5313 = vcmp.ne.s32.totalorder %v5213, 0
      %vm5314 = vcmp.ne.s32.totalorder %v5224, 0
      %vm5315 = vcmp.ne.s32.totalorder %v5235, 0
      %vm5316 = vcmp.ne.s32.totalorder %v5246, 0
      %vm5317 = vcmp.ne.s32.totalorder %v5257, 0
      %vm5318 = vcmp.ne.s32.totalorder %v5268, 0
      %vm5319 = vcmp.ne.s32.totalorder %v5279, 0
      %vm5320 = vcmp.ne.s32.totalorder %v5290, 0
      %vm5321 = vcmp.ne.s32.totalorder %v5301, 0
      %vm5322 = vcmp.ne.s32.totalorder %v5312, 0
      %vm5323 = vcmp.lt.s32.totalorder %v5213, 0
      %vm5324 = vcmp.lt.s32.totalorder %v5224, 0
      %vm5325 = vcmp.lt.s32.totalorder %v5235, 0
      %vm5326 = vcmp.lt.s32.totalorder %v5246, 0
      %vm5327 = vcmp.lt.s32.totalorder %v5257, 0
      %vm5328 = vcmp.lt.s32.totalorder %v5268, 0
      %vm5329 = vcmp.lt.s32.totalorder %v5279, 0
      %vm5330 = vcmp.lt.s32.totalorder %v5290, 0
      %vm5331 = vcmp.lt.s32.totalorder %v5301, 0
      %vm5332 = vcmp.lt.s32.totalorder %v5312, 0
      %vm5333 = vmand %vm5323, %vm5313
      %vm5334 = vmand %vm5324, %vm5314
      %vm5335 = vmand %vm5325, %vm5315
      %vm5336 = vmand %vm5326, %vm5316
      %vm5337 = vmand %vm5327, %vm5317
      %vm5338 = vmand %vm5328, %vm5318
      %vm5339 = vmand %vm5329, %vm5319
      %vm5340 = vmand %vm5330, %vm5320
      %vm5341 = vmand %vm5331, %vm5321
      %vm5342 = vmand %vm5332, %vm5322
      %v5343 = vadd.s32 %v5213, 10
      %v5344 = vadd.s32 %v5224, 10
      %v5345 = vadd.s32 %v5235, 10
      %v5346 = vadd.s32 %v5246, 10
      %v5347 = vadd.s32 %v5257, 10
      %v5348 = vadd.s32 %v5268, 10
      %v5349 = vadd.s32 %v5279, 10
      %v5350 = vadd.s32 %v5290, 10
      %v5351 = vadd.s32 %v5301, 10
      %v5352 = vadd.s32 %v5312, 10
      %v5353 = vsel %vm5333, %v5343, %v5213
      %v5354 = vsel %vm5334, %v5344, %v5224
      %v5355 = vsel %vm5335, %v5345, %v5235
      %v5356 = vsel %vm5336, %v5346, %v5246
      %v5357 = vsel %vm5337, %v5347, %v5257
      %v5358 = vsel %vm5338, %v5348, %v5268
      %v5359 = vsel %vm5339, %v5349, %v5279
      %v5360 = vsel %vm5340, %v5350, %v5290
      %v5361 = vsel %vm5341, %v5351, %v5301
      %v5362 = vsel %vm5342, %v5352, %v5312
      %vm5363 = vcmp.lt.s32.totalorder %v5353, 8
      %vm5364 = vcmp.lt.s32.totalorder %v5354, 8
      %vm5365 = vcmp.lt.s32.totalorder %v5355, 8
      %vm5366 = vcmp.lt.s32.totalorder %v5356, 8
      %vm5367 = vcmp.lt.s32.totalorder %v5357, 8
      %vm5368 = vcmp.lt.s32.totalorder %v5358, 8
      %vm5369 = vcmp.lt.s32.totalorder %v5359, 8
      %vm5370 = vcmp.lt.s32.totalorder %v5360, 8
      %vm5371 = vcmp.lt.s32.totalorder %v5361, 8
      %vm5372 = vcmp.lt.s32.totalorder %v5362, 8
      %v5373 = vsel %vm5363, 1, 0
      %v5374 = vsel %vm5364, 1, 0
      %v5375 = vsel %vm5365, 1, 0
      %v5376 = vsel %vm5366, 1, 0
      %v5377 = vsel %vm5367, 1, 0
      %v5378 = vsel %vm5368, 1, 0
      %v5379 = vsel %vm5369, 1, 0
      %v5380 = vsel %vm5370, 1, 0
      %v5381 = vsel %vm5371, 1, 0
      %v5382 = vsel %vm5372, 1, 0
      %v5383 = vcvt.s32.f32 %v5373
      %v5384 = vcvt.s32.f32 %v5374
      %v5385 = vcvt.s32.f32 %v5375
      %v5386 = vcvt.s32.f32 %v5376
      %v5387 = vcvt.s32.f32 %v5377
      %v5388 = vcvt.s32.f32 %v5378
      %v5389 = vcvt.s32.f32 %v5379
      %v5390 = vcvt.s32.f32 %v5380
      %v5391 = vcvt.s32.f32 %v5381
      %v5392 = vcvt.s32.f32 %v5382
      %v5393 = vmul.f32 %v5144, %v5383
      %v5394 = vmul.f32 %v5147, %v5384
      %v5395 = vmul.f32 %v5152, %v5385
      %v5396 = vmul.f32 %v5155, %v5386
      %v5397 = vmul.f32 %v5160, %v5387
      %v5398 = vmul.f32 %v5163, %v5388
      %v5399 = vmul.f32 %v5168, %v5389
      %v5400 = vmul.f32 %v5171, %v5390
      %v5401 = vmul.f32 %v5176, %v5391
      %v5402 = vmul.f32 %v5179, %v5392
      %v5403 = vadd.f32 %v5393, %v5394
      %v5404 = vadd.f32 %v5403, %v5395
      %v5405 = vadd.f32 %v5404, %v5396
      %v5406 = vadd.f32 %v5405, %v5397
      %v5407 = vadd.f32 %v5406, %v5398
      %v5408 = vadd.f32 %v5407, %v5399
      %v5409 = vadd.f32 %v5408, %v5400
      %v5410 = vadd.f32 %v5409, %v5401
      %v5411 = vadd.f32 %v5410, %v5402
      %v5412 = vrot.slane %v5411, 4
      %v5413 = vadd.f32 %v5411, %v5412
      %v5414 = vrot.slane %v5413, 2
      %v5415 = vadd.f32 %v5413, %v5414
      %v5416 = vrot.slane %v5415, 1
      %v5417 = vadd.f32 %v5415, %v5416
      %v5418 = vmul.f32 %v5393, %v5393
      %v5419 = vmul.f32 %v5394, %v5394
      %v5420 = vmul.f32 %v5395, %v5395
      %v5421 = vmul.f32 %v5396, %v5396
      %v5422 = vmul.f32 %v5397, %v5397
      %v5423 = vmul.f32 %v5398, %v5398
      %v5424 = vmul.f32 %v5399, %v5399
      %v5425 = vmul.f32 %v5400, %v5400
      %v5426 = vmul.f32 %v5401, %v5401
      %v5427 = vmul.f32 %v5402, %v5402
      %v5428 = vadd.f32 %v5418, %v5419
      %v5429 = vadd.f32 %v5428, %v5420
      %v5430 = vadd.f32 %v5429, %v5421
      %v5431 = vadd.f32 %v5430, %v5422
      %v5432 = vadd.f32 %v5431, %v5423
      %v5433 = vadd.f32 %v5432, %v5424
      %v5434 = vadd.f32 %v5433, %v5425
      %v5435 = vadd.f32 %v5434, %v5426
      %v5436 = vadd.f32 %v5435, %v5427
      %v5437 = vrot.slane %v5436, 4
      %v5438 = vadd.f32 %v5436, %v5437
      %v5439 = vrot.slane %v5438, 2
      %v5440 = vadd.f32 %v5438, %v5439
      %v5441 = vrot.slane %v5440, 1
      %v5442 = vadd.f32 %v5440, %v5441
      %vm5443 = vcmask 1040384
      %v5444 = vsel %vm5443, %v5417, %v5442
      %5445 = vst [vmem:[%s363] sm:$0x3] %v5444
      %p5446 = scmp.lt.s32.totalorder %s21, 1
      %s5447 = scalar_select %p5446, %s21, 1
      %p5448 = scmp.lt.s32.totalorder %s22, 7
      %s5449 = scalar_select %p5448, %s22, 7
      %s5450 = smul.addr %s5449, 10
      %s5451 = smul.addr %s5447, 80
      %s5452 = sadd.s32 %s5450, %s5451
      %s5453 = smul.addr %s5452, 8
      %s5454 = scalar_lea.vmem %s4, %s5453
      %p5455 = scmp.lt.s32.totalorder %s21, 1
      %s5456 = scalar_select %p5455, %s21, 1
      %p5457 = scmp.lt.s32.totalorder %s22, 7
      %s5458 = scalar_select %p5457, %s22, 7
      %s5459 = smul.addr %s5456, 8
      %s5460 = sadd.s32 %s5458, %s5459
      %s5461 = smul.addr %s5460, 2
      %s5462 = scalar_lea.vmem %s5, %s5461
      // Predicated region
      $region37: #{up_forward.6} parent=35 // pred_check
        %p5463 = pneg %p158
      $region38: #{up_forward.6} parent=35 // pred_check_branch
        %5465 = sbr.rel (%p5463) target = $region40
      $region39: #{up_forward.6} parent=35 // pred_region
        _
      $region40: #{up_forward.6} parent=35 // pred_fallthru
        _
      // Predicated region
      $region41: #{up_forward.6} parent=35 // pred_check
        %p5466 = pneg %p186
      $region42: #{up_forward.6} parent=35 // pred_check_branch
        %5468 = sbr.rel (%p5466) target = $region44
      $region43: #{up_forward.6} parent=35 // pred_region
        _
      $region44: #{up_forward.6} parent=35 // pred_fallthru
        _
    $region36: #{up_forward.6} parent=5 // pred_fallthru
      _
    %p5469 = scmp.le.s32.totalorder 2, %s12
    // Predicated region
    $region45: #{up_forward.6} parent=5 // pred_check
      %p5470 = pneg %p5469
    $region46: #{up_forward.6} parent=5 // pred_check_branch
      %5472 = sbr.rel (%p5470) target = $region48
    $region47: #{up_forward.6} parent=5 // pred_region
      %s5473 = ssub.s32 %s12, 2
      // Predicated region
      $region49: #{up_forward.6} parent=47 // pred_check
        %p5474 = pneg %p164
      $region50: #{up_forward.6} parent=47 // pred_check_branch
        %5476 = sbr.rel (%p5474) target = $region52
      $region51: #{up_forward.6} parent=47 // pred_region
        %p5477 = scmp.lt.s32.totalorder %s23, 1
        %s5478 = scalar_select %p5477, %s23, 1
        %p5479 = scmp.lt.s32.totalorder %s24, 7
        %s5480 = scalar_select %p5479, %s24, 7
        %s5481 = smul.addr %s5480, 10
        %s5482 = smul.addr %s5478, 80
        %s5483 = sadd.s32 %s5481, %s5482
        %s5484 = smul.addr %s5483, 8
        %s5485 = scalar_lea.vmem %s4, %s5484
      $region52: #{up_forward.6} parent=47 // pred_fallthru
        _
      // Predicated region
      $region53: #{up_forward.6} parent=47 // pred_check
        %p5486 = pneg %p192
      $region54: #{up_forward.6} parent=47 // pred_check_branch
        %5488 = sbr.rel (%p5486) target = $region56
      $region55: #{up_forward.6} parent=47 // pred_region
        %p5489 = scmp.lt.s32.totalorder %s23, 1
        %s5490 = scalar_select %p5489, %s23, 1
        %p5491 = scmp.lt.s32.totalorder %s24, 7
        %s5492 = scalar_select %p5491, %s24, 7
        %s5493 = smul.addr %s5490, 8
        %s5494 = sadd.s32 %s5492, %s5493
        %s5495 = smul.addr %s5494, 2
        %s5496 = scalar_lea.vmem %s5, %s5495
      $region56: #{up_forward.6} parent=47 // pred_fallthru
        _
    $region48: #{up_forward.6} parent=5 // pred_fallthru
      _
  $region6: #{up_forward.6} parent=0 // loop_footer
    %s16 = sadd.s32 1, %s12
  $region7: #{up_forward.6} parent=0 // loop_footer_branch
    %11 = sbr.rel target = $region3
  $region8: #{up_forward.6} parent=0 // loop_exit
    _

</llo_original>
